<compile_context>
chip_gen: v7x
topology: tpu7x:2x2x1
jax: 0.10.0
libtpu: 0.0.40
codegen_flags: <defaults>
</compile_context>

<pallas_src>
import functools
import math

import jax
import jax.numpy as jnp
from jax import lax
from jax.experimental import pallas as pl
from jax.experimental.pallas import tpu as pltpu

SELU_ALPHA = 1.6732632423543772
SELU_SCALE = 1.0507009873554805
RMS_EPS = 1e-6


# ---------------------------------------------------------------------------
# Fused Pallas kernel (batch folded into M; everything VMEM-resident)
# ---------------------------------------------------------------------------

def _fused_kernel(p1pos_ref, p4_ref,
                  proj_w_ref, proj_b_ref,
                  attn_qkv_w_ref, attn_qkv_b_ref,
                  attn_o_w_ref, attn_o_b_ref,
                  mlp_w1_ref, mlp_b1_ref, mlp_w2_ref, mlp_b2_ref,
                  p1_out_ref, p4_out_ref,
                  *, num_heads, depth, batch_block):
    f32 = jnp.float32
    bf16 = jnp.bfloat16
    bb = batch_block
    L1 = p1pos_ref.shape[1]
    L4 = p4_ref.shape[1]
    D = p4_ref.shape[2]
    hd = D // num_heads
    scale = 1.0 / math.sqrt(hd)

    # ---- biases hoisted out of the unrolled depth loop (loaded once) ----
    proj_b = proj_b_ref[...]                                  # (1, 2D) f32
    qkv_bs = [attn_qkv_b_ref[i:i + 1, :] for i in range(3)]   # (1, 3D) each
    o_bs = [attn_o_b_ref[i:i + 1, :] for i in range(3)]       # (1, D)  each
    m1_bs = [mlp_b1_ref[i:i + 1, :] for i in range(3)]        # (1, H)  each
    m2_bs = [mlp_b2_ref[i:i + 1, :] for i in range(3)]        # (1, D)  each

    def mxu(x_f32, w_bf16):
        # bf16 MXU operands, f32 accumulation.
        return jnp.dot(x_f32.astype(bf16), w_bf16, preferred_element_type=f32)

    def rmsnorm(x):
        ms = jnp.mean(x * x, axis=-1, keepdims=True)
        return x * lax.rsqrt(ms + RMS_EPS)

    def mlp_block(x, idx):
        h = mxu(x, mlp_w1_ref[idx]) + m1_bs[idx]
        # Guarded SELU: exp only ever sees the clamped negative branch.
        h = SELU_SCALE * jnp.where(
            h > 0.0, h, SELU_ALPHA * (jnp.exp(jnp.minimum(h, 0.0)) - 1.0))
        return mxu(h, mlp_w2_ref[idx]) + m2_bs[idx]

    def to_heads(x3):
        # (bb, L, D) -> (H*bb, L, hd): leading-dim concat of static lane
        # slices (no 4-D transposes / relayouts).
        return jnp.concatenate(
            [x3[:, :, h * hd:(h + 1) * hd] for h in range(num_heads)], axis=0)

    def attention(q_in, kv_in, idx, fused_qkv):
        w = attn_qkv_w_ref[idx]                       # (D, 3D) bf16
        b = qkv_bs[idx]                               # (1, 3D) f32
        if fused_qkv:                                 # self-attention: 1 pass
            qkv = mxu(q_in, w) + b
            q, k, v = qkv[:, :D], qkv[:, D:2 * D], qkv[:, 2 * D:]
        else:                                         # cross: q pass + kv pass
            q = mxu(q_in, w[:, :D]) + b[:, :D]
            kvp = mxu(kv_in, w[:, D:]) + b[:, D:]
            k, v = kvp[:, :D], kvp[:, D:]
        lq = q.shape[0] // bb
        lk = k.shape[0] // bb

        qh = to_heads((q * scale).reshape(bb, lq, D))          # (H*bb, lq, hd)
        kh = to_heads(k.reshape(bb, lk, D))
        vh = to_heads(v.reshape(bb, lk, D))

        # One batched score matmul + ONE softmax over all heads & batches.
        s = jnp.einsum('bqd,bkd->bqk', qh.astype(bf16), kh.astype(bf16),
                       preferred_element_type=f32)             # (H*bb, lq, lk)
        s = s - jnp.max(s, axis=-1, keepdims=True)
        p = jnp.exp(s)
        p = p * pl.reciprocal(jnp.sum(p, axis=-1, keepdims=True), approx=True)
        ctx = jnp.einsum('bqk,bkd->bqd', p.astype(bf16), vh.astype(bf16),
                         preferred_element_type=f32)           # (H*bb, lq, hd)

        # Back to (bb, lq, D): leading-dim slices + lane concat, then one
        # K=D output projection.
        ctx = jnp.concatenate(
            [ctx[h * bb:(h + 1) * bb] for h in range(num_heads)], axis=-1)
        ctx = ctx.reshape(bb * lq, D)
        return mxu(ctx, attn_o_w_ref[idx]) + o_bs[idx]

    # ---- fused token projections: single block-diagonal K=2c1, N=2c4 pass --
    p1pos = p1pos_ref[...].reshape(bb * L1, -1)                # (bb*L1, 2*c1)
    proj = mxu(p1pos, proj_w_ref[...]) + proj_b                # (bb*L1, 2*c4)
    p1_emb = proj[:, :D]
    kv = p1_emb + proj[:, D:]                                  # p1_emb + pos_emb

    p4_tok = p4_ref[...].reshape(bb * L4, D)
    p1_to_p4 = kv                                              # defined for depth >= 1
    for _ in range(depth):                                     # static unroll
        sa = attention(p4_tok, p4_tok, 0, fused_qkv=True)
        p4_self = rmsnorm(sa) + p4_tok                         # attn_dropout = id
        p4_to_p1 = attention(p4_self, kv, 1, fused_qkv=False)
        p4_to_p1 = mlp_block(p4_to_p1, 0) + p4_to_p1           # mlp dropout = id
        p1_to_p4 = attention(kv, p4_to_p1, 2, fused_qkv=False)
        p1_to_p4 = rmsnorm(p1_to_p4) + p1_emb                  # residual is p1_emb
        p4_tok = p4_to_p1

    p1_out_ref[...] = mlp_block(p1_to_p4, 1).reshape(bb, L1, D)   # mlp_p1
    p4_out_ref[...] = mlp_block(p4_tok, 2).reshape(bb, L4, D)     # mlp_p4


# ---------------------------------------------------------------------------
# Parameter initialization (deterministic, PyTorch-like shapes) and packing
# ---------------------------------------------------------------------------

def _init_linear(key, d_out, d_in):
    kw, kb = jax.random.split(key)
    bound = 1.0 / math.sqrt(d_in)
    w = jax.random.uniform(kw, (d_out, d_in), jnp.float32, -bound, bound)
    b = jax.random.uniform(kb, (d_out,), jnp.float32, -bound, bound)
    return w, b


def _init_mha(key, d):
    ks = jax.random.split(key, 4)
    p = {}
    for name, k in zip(("q", "k", "v", "o"), ks):
        w, b = _init_linear(k, d, d)
        p["w" + name] = w
        p["b" + name] = b
    return p


def _init_mlp(key, d, hidden):
    k1, k2 = jax.random.split(key)
    w1, b1 = _init_linear(k1, hidden, d)
    w2, b2 = _init_linear(k2, d, hidden)
    return {"w1": w1, "b1": b1, "w2": w2, "b2": b2}


def init_params(key, c1, c4, mlp_dim):
    keys = jax.random.split(key, 8)
    return {
        "proj_p1": _init_linear(keys[0], c4, c1),
        "proj_pos": _init_linear(keys[1], c4, c1),
        "sa_p4": _init_mha(keys[2], c4),
        "ca_p4_to_p1": _init_mha(keys[3], c4),
        "ca_p1_to_p4": _init_mha(keys[4], c4),
        "mlp": _init_mlp(keys[5], c4, mlp_dim),
        "mlp_p1": _init_mlp(keys[6], c4, mlp_dim),
        "mlp_p4": _init_mlp(keys[7], c4, mlp_dim),
    }


def _pack_params(params):
    """Pre-transpose to (Din, Dout), fuse QKV / token projections, cast to bf16."""
    bf16 = jnp.bfloat16
    pw1, pb1 = params["proj_p1"]       # (c4, c1), (c4,)
    pw2, pb2 = params["proj_pos"]
    c4, c1 = pw1.shape

    # Block-diagonal fused token projection: [P1 | pos] @ W -> [p1_emb | pos_emb]
    proj_w = jnp.zeros((2 * c1, 2 * c4), jnp.float32)
    proj_w = proj_w.at[:c1, :c4].set(pw1.T)
    proj_w = proj_w.at[c1:, c4:].set(pw2.T)
    proj_b = jnp.concatenate([pb1, pb2])[None, :]              # (1, 2*c4)

    def mha_pack(p):
        qkv_w = jnp.concatenate([p["wq"].T, p["wk"].T, p["wv"].T], axis=1)  # (c4, 3c4)
        qkv_b = jnp.concatenate([p["bq"], p["bk"], p["bv"]])                # (3c4,)
        return qkv_w, qkv_b, p["wo"].T, p["bo"]

    mhas = [params["sa_p4"], params["ca_p4_to_p1"], params["ca_p1_to_p4"]]
    packs = [mha_pack(m) for m in mhas]
    attn_qkv_w = jnp.stack([p[0] for p in packs]).astype(bf16)   # (3, c4, 3c4)
    attn_qkv_b = jnp.stack([p[1] for p in packs])                # (3, 3c4) f32
    attn_o_w = jnp.stack([p[2] for p in packs]).astype(bf16)     # (3, c4, c4)
    attn_o_b = jnp.stack([p[3] for p in packs])                  # (3, c4)  f32

    mlps = [params["mlp"], params["mlp_p1"], params["mlp_p4"]]
    mlp_w1 = jnp.stack([m["w1"].T for m in mlps]).astype(bf16)   # (3, c4, H)
    mlp_b1 = jnp.stack([m["b1"] for m in mlps])                  # (3, H) f32
    mlp_w2 = jnp.stack([m["w2"].T for m in mlps]).astype(bf16)   # (3, H, c4)
    mlp_b2 = jnp.stack([m["b2"] for m in mlps])                  # (3, c4) f32

    return dict(
        proj_w=proj_w.astype(bf16), proj_b=proj_b,
        attn_qkv_w=attn_qkv_w, attn_qkv_b=attn_qkv_b,
        attn_o_w=attn_o_w, attn_o_b=attn_o_b,
        mlp_w1=mlp_w1, mlp_b1=mlp_b1, mlp_w2=mlp_w2, mlp_b2=mlp_b2,
    )


# ---------------------------------------------------------------------------
# Forward pass (single fused pallas_call)
# ---------------------------------------------------------------------------

@functools.partial(jax.jit, static_argnames=("num_heads", "depth", "batch_block"))
def bidirectional_attention_forward(P1, P4, pos_embed, params, *,
                                    num_heads, depth, batch_block=None):
    assert depth >= 1, "depth must be >= 1 (matches the PyTorch module)"
    b, c1, h1, w1 = P1.shape
    _, c4, h4, w4 = P4.shape
    L1, L4 = h1 * w1, h4 * w4

    # Default: fold the whole batch into M (single grid step) — best on
    # single-TC v5e/v6e.  On v7x pass batch_block=b//2 so both TensorCores
    # each get one "parallel" grid step.
    if batch_block is None:
        batch_block = b
    assert b % batch_block == 0
    bb = batch_block

    # NCHW -> (B, L, C) tokens; concat P1 / pos along features for the fused
    # block-diagonal token projection (plain XLA ops outside the kernel).
    P1_tokens = P1.reshape(b, c1, L1).transpose(0, 2, 1)
    pos_tokens = pos_embed.reshape(b, c1, L1).transpose(0, 2, 1)
    p1pos = jnp.concatenate([P1_tokens, pos_tokens], axis=-1)   # (b, L1, 2*c1)
    P4_tokens = P4.reshape(b, c4, L4).transpose(0, 2, 1)        # (b, L4, c4)

    packed = _pack_params(params)
    mlp_dim = packed["mlp_w1"].shape[-1]

    kern = functools.partial(_fused_kernel, num_heads=num_heads, depth=depth,
                             batch_block=bb)

    p1_out, p4_out = pl.pallas_call(
        kern,
        out_shape=(jax.ShapeDtypeStruct((b, L1, c4), jnp.float32),
                   jax.ShapeDtypeStruct((b, L4, c4), jnp.float32)),
        grid=(b // bb,),
        in_specs=[
            pl.BlockSpec((bb, L1, 2 * c1), lambda i: (i, 0, 0)),     # [P1|pos] tokens
            pl.BlockSpec((bb, L4, c4), lambda i: (i, 0, 0)),         # P4 tokens
            pl.BlockSpec((2 * c1, 2 * c4), lambda i: (0, 0)),        # fused proj W
            pl.BlockSpec((1, 2 * c4), lambda i: (0, 0)),             # fused proj b
            pl.BlockSpec((3, c4, 3 * c4), lambda i: (0, 0, 0)),      # QKV W (x3 attn)
            pl.BlockSpec((3, 3 * c4), lambda i: (0, 0)),             # QKV b
            pl.BlockSpec((3, c4, c4), lambda i: (0, 0, 0)),          # out-proj W
            pl.BlockSpec((3, c4), lambda i: (0, 0)),                 # out-proj b
            pl.BlockSpec((3, c4, mlp_dim), lambda i: (0, 0, 0)),     # MLP W1 (x3)
            pl.BlockSpec((3, mlp_dim), lambda i: (0, 0)),            # MLP b1
            pl.BlockSpec((3, mlp_dim, c4), lambda i: (0, 0, 0)),     # MLP W2 (x3)
            pl.BlockSpec((3, c4), lambda i: (0, 0)),                 # MLP b2
        ],
        out_specs=(pl.BlockSpec((bb, L1, c4), lambda i: (i, 0, 0)),
                   pl.BlockSpec((bb, L4, c4), lambda i: (i, 0, 0))),
        compiler_params=pltpu.CompilerParams(
            dimension_semantics=("parallel",)),
    )(p1pos, P4_tokens,
      packed["proj_w"], packed["proj_b"],
      packed["attn_qkv_w"], packed["attn_qkv_b"],
      packed["attn_o_w"], packed["attn_o_b"],
      packed["mlp_w1"], packed["mlp_b1"],
      packed["mlp_w2"], packed["mlp_b2"])

    # (B, L, C) -> NCHW
    p1_out = p1_out.reshape(b, h1, w1, c4).transpose(0, 3, 1, 2)
    p4_out = p4_out.reshape(b, h4, w4, c4).transpose(0, 3, 1, 2)
    return p1_out, p4_out


# ---------------------------------------------------------------------------
# Main
# ---------------------------------------------------------------------------

if __name__ == "__main__":
    # Module hyper-params
    c1, c4, num_heads, mlp_dim, depth = 16, 32, 4, 64, 2
    # Small spatial shapes: P1 is the high-res map, P4 the low-res one.
    b, h1, w1 = 2, 8, 8
    h4, w4 = 4, 4

    key = jax.random.PRNGKey(0)
    k_p1, k_p4, k_pos, k_par = jax.random.split(key, 4)

    P1 = jax.random.normal(k_p1, (b, c1, h1, w1), jnp.float32)
    P4 = jax.random.normal(k_p4, (b, c4, h4, w4), jnp.float32)
    pos_embed = jax.random.normal(k_pos, (b, c1, h1, w1), jnp.float32)

    params = init_params(k_par, c1, c4, mlp_dim)

    p1_attn, p4_out = bidirectional_attention_forward(
        P1, P4, pos_embed, params, num_heads=num_heads, depth=depth)
    jax.block_until_ready((p1_attn, p4_out))

    assert p1_attn.shape == (b, c4, h1, w1), p1_attn.shape
    assert p4_out.shape == (b, c4, h4, w4), p4_out.shape
    assert bool(jnp.all(jnp.isfinite(p1_attn))) and bool(jnp.all(jnp.isfinite(p4_out)))
    print("KERNEL_OK")
</pallas_src>

<mosaic_0001>
module attributes {stable_mosaic.version = 11 : i64} {
  func.func @_fused_kernel(%arg0: i32, %arg1: memref<2x64x32xf32, #tpu.memory_space<vmem>>, %arg2: memref<2x16x32xf32, #tpu.memory_space<vmem>>, %arg3: memref<32x64xbf16, #tpu.memory_space<vmem>>, %arg4: memref<1x64xf32, #tpu.memory_space<vmem>>, %arg5: memref<3x32x96xbf16, #tpu.memory_space<vmem>>, %arg6: memref<3x96xf32, #tpu.memory_space<vmem>>, %arg7: memref<3x32x32xbf16, #tpu.memory_space<vmem>>, %arg8: memref<3x32xf32, #tpu.memory_space<vmem>>, %arg9: memref<3x32x64xbf16, #tpu.memory_space<vmem>>, %arg10: memref<3x64xf32, #tpu.memory_space<vmem>>, %arg11: memref<3x64x32xbf16, #tpu.memory_space<vmem>>, %arg12: memref<3x32xf32, #tpu.memory_space<vmem>>, %arg13: memref<2x64x32xf32, #tpu.memory_space<vmem>>, %arg14: memref<2x16x32xf32, #tpu.memory_space<vmem>>) attributes {dimension_semantics = [#tpu.dimension_semantics<parallel>], iteration_bounds = array<i64: 1>, scalar_prefetch = 0 : i64, scratch_operands = 0 : i64, tpu.core_type = #tpu.core_type<tc>, window_params = [{transform_indices = @transform_0, window_bounds = array<i64: 2, 64, 32>}, {transform_indices = @transform_1, window_bounds = array<i64: 2, 16, 32>}, {pipeline_mode = #tpu.pipeline_mode<synchronous>, transform_indices = @transform_2, window_bounds = array<i64: 32, 64>}, {pipeline_mode = #tpu.pipeline_mode<synchronous>, transform_indices = @transform_3, window_bounds = array<i64: 1, 64>}, {pipeline_mode = #tpu.pipeline_mode<synchronous>, transform_indices = @transform_4, window_bounds = array<i64: 3, 32, 96>}, {pipeline_mode = #tpu.pipeline_mode<synchronous>, transform_indices = @transform_5, window_bounds = array<i64: 3, 96>}, {pipeline_mode = #tpu.pipeline_mode<synchronous>, transform_indices = @transform_6, window_bounds = array<i64: 3, 32, 32>}, {pipeline_mode = #tpu.pipeline_mode<synchronous>, transform_indices = @transform_7, window_bounds = array<i64: 3, 32>}, {pipeline_mode = #tpu.pipeline_mode<synchronous>, transform_indices = @transform_8, window_bounds = array<i64: 3, 32, 64>}, {pipeline_mode = #tpu.pipeline_mode<synchronous>, transform_indices = @transform_9, window_bounds = array<i64: 3, 64>}, {pipeline_mode = #tpu.pipeline_mode<synchronous>, transform_indices = @transform_10, window_bounds = array<i64: 3, 64, 32>}, {pipeline_mode = #tpu.pipeline_mode<synchronous>, transform_indices = @transform_11, window_bounds = array<i64: 3, 32>}, {transform_indices = @transform_12, window_bounds = array<i64: 2, 64, 32>}, {transform_indices = @transform_13, window_bounds = array<i64: 2, 16, 32>}]} {
    %c0 = arith.constant 0 : index
    %c0_0 = arith.constant 0 : index
    %0 = vector.load %arg4[%c0, %c0_0] : memref<1x64xf32, #tpu.memory_space<vmem>>, vector<1x64xf32>
    %c0_1 = arith.constant 0 : index
    %c0_2 = arith.constant 0 : index
    %1 = vector.load %arg6[%c0_1, %c0_2] : memref<3x96xf32, #tpu.memory_space<vmem>>, vector<1x96xf32>
    %c1 = arith.constant 1 : index
    %c0_3 = arith.constant 0 : index
    %2 = vector.load %arg6[%c1, %c0_3] : memref<3x96xf32, #tpu.memory_space<vmem>>, vector<1x96xf32>
    %c2 = arith.constant 2 : index
    %c0_4 = arith.constant 0 : index
    %3 = vector.load %arg6[%c2, %c0_4] : memref<3x96xf32, #tpu.memory_space<vmem>>, vector<1x96xf32>
    %c0_5 = arith.constant 0 : index
    %c0_6 = arith.constant 0 : index
    %4 = vector.load %arg8[%c0_5, %c0_6] : memref<3x32xf32, #tpu.memory_space<vmem>>, vector<1x32xf32>
    %c1_7 = arith.constant 1 : index
    %c0_8 = arith.constant 0 : index
    %5 = vector.load %arg8[%c1_7, %c0_8] : memref<3x32xf32, #tpu.memory_space<vmem>>, vector<1x32xf32>
    %c2_9 = arith.constant 2 : index
    %c0_10 = arith.constant 0 : index
    %6 = vector.load %arg8[%c2_9, %c0_10] : memref<3x32xf32, #tpu.memory_space<vmem>>, vector<1x32xf32>
    %c0_11 = arith.constant 0 : index
    %c0_12 = arith.constant 0 : index
    %7 = vector.load %arg10[%c0_11, %c0_12] : memref<3x64xf32, #tpu.memory_space<vmem>>, vector<1x64xf32>
    %c1_13 = arith.constant 1 : index
    %c0_14 = arith.constant 0 : index
    %8 = vector.load %arg10[%c1_13, %c0_14] : memref<3x64xf32, #tpu.memory_space<vmem>>, vector<1x64xf32>
    %c2_15 = arith.constant 2 : index
    %c0_16 = arith.constant 0 : index
    %9 = vector.load %arg10[%c2_15, %c0_16] : memref<3x64xf32, #tpu.memory_space<vmem>>, vector<1x64xf32>
    %c0_17 = arith.constant 0 : index
    %c0_18 = arith.constant 0 : index
    %10 = vector.load %arg12[%c0_17, %c0_18] : memref<3x32xf32, #tpu.memory_space<vmem>>, vector<1x32xf32>
    %c1_19 = arith.constant 1 : index
    %c0_20 = arith.constant 0 : index
    %11 = vector.load %arg12[%c1_19, %c0_20] : memref<3x32xf32, #tpu.memory_space<vmem>>, vector<1x32xf32>
    %c2_21 = arith.constant 2 : index
    %c0_22 = arith.constant 0 : index
    %12 = vector.load %arg12[%c2_21, %c0_22] : memref<3x32xf32, #tpu.memory_space<vmem>>, vector<1x32xf32>
    %c0_23 = arith.constant 0 : index
    %c0_24 = arith.constant 0 : index
    %c0_25 = arith.constant 0 : index
    %13 = vector.load %arg1[%c0_23, %c0_24, %c0_25] : memref<2x64x32xf32, #tpu.memory_space<vmem>>, vector<2x64x32xf32>
    %14 = vector.shape_cast %13 : vector<2x64x32xf32> to vector<128x32xf32>
    %c0_26 = arith.constant 0 : index
    %c0_27 = arith.constant 0 : index
    %15 = vector.load %arg3[%c0_26, %c0_27] : memref<32x64xbf16, #tpu.memory_space<vmem>>, vector<32x64xbf16>
    %16 = arith.truncf %14 : vector<128x32xf32> to vector<128x32xbf16>
    %cst = arith.constant dense<0.000000e+00> : vector<128x64xf32>
    %17 = tpu.matmul %16, %15, %cst {dimension_numbers = #tpu.dot_dimension_numbers<[1], [0], [0], [1], [0, 0, 1, 1], [], []>} : vector<128x32xbf16>, vector<32x64xbf16>, vector<128x64xf32> -> vector<128x64xf32>
    %18 = vector.broadcast %0 : vector<1x64xf32> to vector<128x64xf32>
    %19 = arith.addf %17, %18 : vector<128x64xf32>
    %20 = vector.extract_strided_slice %19 {offsets = [0, 0], sizes = [128, 32], strides = [1, 1]} : vector<128x64xf32> to vector<128x32xf32>
    %21 = vector.extract_strided_slice %19 {offsets = [0, 32], sizes = [128, 32], strides = [1, 1]} : vector<128x64xf32> to vector<128x32xf32>
    %22 = arith.addf %20, %21 : vector<128x32xf32>
    %c0_28 = arith.constant 0 : index
    %c0_29 = arith.constant 0 : index
    %c0_30 = arith.constant 0 : index
    %23 = vector.load %arg2[%c0_28, %c0_29, %c0_30] : memref<2x16x32xf32, #tpu.memory_space<vmem>>, vector<2x16x32xf32>
    %24 = vector.shape_cast %23 : vector<2x16x32xf32> to vector<32x32xf32>
    %c0_31 = arith.constant 0 : index
    %c0_32 = arith.constant 0 : index
    %c0_33 = arith.constant 0 : index
    %25 = vector.load %arg5[%c0_31, %c0_32, %c0_33] : memref<3x32x96xbf16, #tpu.memory_space<vmem>>, vector<1x32x96xbf16>
    %26 = vector.shape_cast %25 : vector<1x32x96xbf16> to vector<32x96xbf16>
    %27 = arith.truncf %24 : vector<32x32xf32> to vector<32x32xbf16>
    %cst_34 = arith.constant dense<0.000000e+00> : vector<32x96xf32>
    %28 = tpu.matmul %27, %26, %cst_34 {dimension_numbers = #tpu.dot_dimension_numbers<[1], [0], [0], [1], [0, 0, 1, 1], [], []>} : vector<32x32xbf16>, vector<32x96xbf16>, vector<32x96xf32> -> vector<32x96xf32>
    %29 = vector.broadcast %1 : vector<1x96xf32> to vector<32x96xf32>
    %30 = arith.addf %28, %29 : vector<32x96xf32>
    %31 = vector.extract_strided_slice %30 {offsets = [0, 0], sizes = [32, 32], strides = [1, 1]} : vector<32x96xf32> to vector<32x32xf32>
    %32 = vector.extract_strided_slice %30 {offsets = [0, 32], sizes = [32, 32], strides = [1, 1]} : vector<32x96xf32> to vector<32x32xf32>
    %33 = vector.extract_strided_slice %30 {offsets = [0, 64], sizes = [32, 32], strides = [1, 1]} : vector<32x96xf32> to vector<32x32xf32>
    %cst_35 = arith.constant 0.353553385 : f32
    %34 = vector.broadcast %cst_35 : f32 to vector<32x32xf32>
    %35 = arith.mulf %31, %34 : vector<32x32xf32>
    %36 = vector.shape_cast %35 : vector<32x32xf32> to vector<2x16x32xf32>
    %37 = vector.extract_strided_slice %36 {offsets = [0, 0, 0], sizes = [2, 16, 8], strides = [1, 1, 1]} : vector<2x16x32xf32> to vector<2x16x8xf32>
    %38 = vector.extract_strided_slice %36 {offsets = [0, 0, 8], sizes = [2, 16, 8], strides = [1, 1, 1]} : vector<2x16x32xf32> to vector<2x16x8xf32>
    %39 = vector.extract_strided_slice %36 {offsets = [0, 0, 16], sizes = [2, 16, 8], strides = [1, 1, 1]} : vector<2x16x32xf32> to vector<2x16x8xf32>
    %40 = vector.extract_strided_slice %36 {offsets = [0, 0, 24], sizes = [2, 16, 8], strides = [1, 1, 1]} : vector<2x16x32xf32> to vector<2x16x8xf32>
    %41 = tpu.concatenate %37, %38, %39, %40 in 0 : vector<2x16x8xf32>, vector<2x16x8xf32>, vector<2x16x8xf32>, vector<2x16x8xf32> -> vector<8x16x8xf32>
    %42 = vector.shape_cast %32 : vector<32x32xf32> to vector<2x16x32xf32>
    %43 = vector.extract_strided_slice %42 {offsets = [0, 0, 0], sizes = [2, 16, 8], strides = [1, 1, 1]} : vector<2x16x32xf32> to vector<2x16x8xf32>
    %44 = vector.extract_strided_slice %42 {offsets = [0, 0, 8], sizes = [2, 16, 8], strides = [1, 1, 1]} : vector<2x16x32xf32> to vector<2x16x8xf32>
    %45 = vector.extract_strided_slice %42 {offsets = [0, 0, 16], sizes = [2, 16, 8], strides = [1, 1, 1]} : vector<2x16x32xf32> to vector<2x16x8xf32>
    %46 = vector.extract_strided_slice %42 {offsets = [0, 0, 24], sizes = [2, 16, 8], strides = [1, 1, 1]} : vector<2x16x32xf32> to vector<2x16x8xf32>
    %47 = tpu.concatenate %43, %44, %45, %46 in 0 : vector<2x16x8xf32>, vector<2x16x8xf32>, vector<2x16x8xf32>, vector<2x16x8xf32> -> vector<8x16x8xf32>
    %48 = vector.shape_cast %33 : vector<32x32xf32> to vector<2x16x32xf32>
    %49 = vector.extract_strided_slice %48 {offsets = [0, 0, 0], sizes = [2, 16, 8], strides = [1, 1, 1]} : vector<2x16x32xf32> to vector<2x16x8xf32>
    %50 = vector.extract_strided_slice %48 {offsets = [0, 0, 8], sizes = [2, 16, 8], strides = [1, 1, 1]} : vector<2x16x32xf32> to vector<2x16x8xf32>
    %51 = vector.extract_strided_slice %48 {offsets = [0, 0, 16], sizes = [2, 16, 8], strides = [1, 1, 1]} : vector<2x16x32xf32> to vector<2x16x8xf32>
    %52 = vector.extract_strided_slice %48 {offsets = [0, 0, 24], sizes = [2, 16, 8], strides = [1, 1, 1]} : vector<2x16x32xf32> to vector<2x16x8xf32>
    %53 = tpu.concatenate %49, %50, %51, %52 in 0 : vector<2x16x8xf32>, vector<2x16x8xf32>, vector<2x16x8xf32>, vector<2x16x8xf32> -> vector<8x16x8xf32>
    %54 = arith.truncf %41 : vector<8x16x8xf32> to vector<8x16x8xbf16>
    %55 = arith.truncf %47 : vector<8x16x8xf32> to vector<8x16x8xbf16>
    "tpu.trace_start"() <{level = 10 : i32, message = "bqd,bkd->bqk"}> : () -> ()
    %cst_36 = arith.constant dense<0.000000e+00> : vector<8x16x16xf32>
    %56 = tpu.matmul %54, %55, %cst_36 {dimension_numbers = #tpu.dot_dimension_numbers<[2], [2], [1], [1], [0, 0, 0, 1, 1, 1], [0], [0]>} : vector<8x16x8xbf16>, vector<8x16x8xbf16>, vector<8x16x16xf32> -> vector<8x16x16xf32>
    "tpu.trace_stop"() : () -> ()
    %cst_37 = arith.constant dense<0xFF800000> : vector<8x16xf32>
    %57 = vector.multi_reduction <maximumf>, %56, %cst_37 [2] : vector<8x16x16xf32> to vector<8x16xf32>
    %58 = vector.shape_cast %57 : vector<8x16xf32> to vector<8x16x1xf32>
    %59 = vector.broadcast %58 : vector<8x16x1xf32> to vector<8x16x16xf32>
    %60 = arith.subf %56, %59 : vector<8x16x16xf32>
    %61 = math.exp %60 : vector<8x16x16xf32>
    %cst_38 = arith.constant dense<0.000000e+00> : vector<8x16xf32>
    %62 = vector.multi_reduction <add>, %61, %cst_38 [2] : vector<8x16x16xf32> to vector<8x16xf32>
    %63 = vector.shape_cast %62 : vector<8x16xf32> to vector<8x16x1xf32>
    %64 = tpu.reciprocal %63 {approx = true} : vector<8x16x1xf32> -> vector<8x16x1xf32>
    %65 = vector.broadcast %64 : vector<8x16x1xf32> to vector<8x16x16xf32>
    %66 = arith.mulf %61, %65 : vector<8x16x16xf32>
    %67 = arith.truncf %66 : vector<8x16x16xf32> to vector<8x16x16xbf16>
    %68 = arith.truncf %53 : vector<8x16x8xf32> to vector<8x16x8xbf16>
    "tpu.trace_start"() <{level = 10 : i32, message = "bqk,bkd->bqd"}> : () -> ()
    %cst_39 = arith.constant dense<0.000000e+00> : vector<8x16x8xf32>
    %69 = tpu.matmul %67, %68, %cst_39 {dimension_numbers = #tpu.dot_dimension_numbers<[2], [1], [1], [2], [0, 0, 0, 1, 1, 2], [0], [0]>} : vector<8x16x16xbf16>, vector<8x16x8xbf16>, vector<8x16x8xf32> -> vector<8x16x8xf32>
    "tpu.trace_stop"() : () -> ()
    %70 = vector.extract_strided_slice %69 {offsets = [0, 0, 0], sizes = [2, 16, 8], strides = [1, 1, 1]} : vector<8x16x8xf32> to vector<2x16x8xf32>
    %71 = vector.extract_strided_slice %69 {offsets = [2, 0, 0], sizes = [2, 16, 8], strides = [1, 1, 1]} : vector<8x16x8xf32> to vector<2x16x8xf32>
    %72 = vector.extract_strided_slice %69 {offsets = [4, 0, 0], sizes = [2, 16, 8], strides = [1, 1, 1]} : vector<8x16x8xf32> to vector<2x16x8xf32>
    %73 = vector.extract_strided_slice %69 {offsets = [6, 0, 0], sizes = [2, 16, 8], strides = [1, 1, 1]} : vector<8x16x8xf32> to vector<2x16x8xf32>
    %74 = tpu.concatenate %70, %71, %72, %73 in 2 : vector<2x16x8xf32>, vector<2x16x8xf32>, vector<2x16x8xf32>, vector<2x16x8xf32> -> vector<2x16x32xf32>
    %75 = vector.shape_cast %74 : vector<2x16x32xf32> to vector<32x32xf32>
    %c0_40 = arith.constant 0 : index
    %c0_41 = arith.constant 0 : index
    %c0_42 = arith.constant 0 : index
    %76 = vector.load %arg7[%c0_40, %c0_41, %c0_42] : memref<3x32x32xbf16, #tpu.memory_space<vmem>>, vector<1x32x32xbf16>
    %77 = vector.shape_cast %76 : vector<1x32x32xbf16> to vector<32x32xbf16>
    %78 = arith.truncf %75 : vector<32x32xf32> to vector<32x32xbf16>
    %cst_43 = arith.constant dense<0.000000e+00> : vector<32x32xf32>
    %79 = tpu.matmul %78, %77, %cst_43 {dimension_numbers = #tpu.dot_dimension_numbers<[1], [0], [0], [1], [0, 0, 1, 1], [], []>} : vector<32x32xbf16>, vector<32x32xbf16>, vector<32x32xf32> -> vector<32x32xf32>
    %80 = vector.broadcast %4 : vector<1x32xf32> to vector<32x32xf32>
    %81 = arith.addf %79, %80 : vector<32x32xf32>
    %82 = arith.mulf %81, %81 : vector<32x32xf32>
    %cst_44 = arith.constant dense<0.000000e+00> : vector<32xf32>
    %83 = vector.multi_reduction <add>, %82, %cst_44 [1] : vector<32x32xf32> to vector<32xf32>
    %84 = vector.shape_cast %83 : vector<32xf32> to vector<32x1xf32>
    %cst_45 = arith.constant 3.200000e+01 : f32
    %85 = vector.broadcast %cst_45 : f32 to vector<32x1xf32>
    %86 = arith.divf %84, %85 : vector<32x1xf32>
    %cst_46 = arith.constant 9.99999997E-7 : f32
    %87 = vector.broadcast %cst_46 : f32 to vector<32x1xf32>
    %88 = arith.addf %86, %87 : vector<32x1xf32>
    %89 = math.rsqrt %88 : vector<32x1xf32>
    %90 = vector.broadcast %89 : vector<32x1xf32> to vector<32x32xf32>
    %91 = arith.mulf %81, %90 : vector<32x32xf32>
    %92 = arith.addf %91, %24 : vector<32x32xf32>
    %c1_47 = arith.constant 1 : index
    %c0_48 = arith.constant 0 : index
    %c0_49 = arith.constant 0 : index
    %93 = vector.load %arg5[%c1_47, %c0_48, %c0_49] : memref<3x32x96xbf16, #tpu.memory_space<vmem>>, vector<1x32x96xbf16>
    %94 = vector.shape_cast %93 : vector<1x32x96xbf16> to vector<32x96xbf16>
    %95 = vector.extract_strided_slice %94 {offsets = [0, 0], sizes = [32, 32], strides = [1, 1]} : vector<32x96xbf16> to vector<32x32xbf16>
    %96 = arith.truncf %92 : vector<32x32xf32> to vector<32x32xbf16>
    %cst_50 = arith.constant dense<0.000000e+00> : vector<32x32xf32>
    %97 = tpu.matmul %96, %95, %cst_50 {dimension_numbers = #tpu.dot_dimension_numbers<[1], [0], [0], [1], [0, 0, 1, 1], [], []>} : vector<32x32xbf16>, vector<32x32xbf16>, vector<32x32xf32> -> vector<32x32xf32>
    %98 = vector.extract_strided_slice %2 {offsets = [0, 0], sizes = [1, 32], strides = [1, 1]} : vector<1x96xf32> to vector<1x32xf32>
    %99 = vector.broadcast %98 : vector<1x32xf32> to vector<32x32xf32>
    %100 = arith.addf %97, %99 : vector<32x32xf32>
    %101 = vector.extract_strided_slice %94 {offsets = [0, 32], sizes = [32, 64], strides = [1, 1]} : vector<32x96xbf16> to vector<32x64xbf16>
    %102 = arith.truncf %22 : vector<128x32xf32> to vector<128x32xbf16>
    %cst_51 = arith.constant dense<0.000000e+00> : vector<128x64xf32>
    %103 = tpu.matmul %102, %101, %cst_51 {dimension_numbers = #tpu.dot_dimension_numbers<[1], [0], [0], [1], [0, 0, 1, 1], [], []>} : vector<128x32xbf16>, vector<32x64xbf16>, vector<128x64xf32> -> vector<128x64xf32>
    %104 = vector.extract_strided_slice %2 {offsets = [0, 32], sizes = [1, 64], strides = [1, 1]} : vector<1x96xf32> to vector<1x64xf32>
    %105 = vector.broadcast %104 : vector<1x64xf32> to vector<128x64xf32>
    %106 = arith.addf %103, %105 : vector<128x64xf32>
    %107 = vector.extract_strided_slice %106 {offsets = [0, 0], sizes = [128, 32], strides = [1, 1]} : vector<128x64xf32> to vector<128x32xf32>
    %108 = vector.extract_strided_slice %106 {offsets = [0, 32], sizes = [128, 32], strides = [1, 1]} : vector<128x64xf32> to vector<128x32xf32>
    %cst_52 = arith.constant 0.353553385 : f32
    %109 = vector.broadcast %cst_52 : f32 to vector<32x32xf32>
    %110 = arith.mulf %100, %109 : vector<32x32xf32>
    %111 = vector.shape_cast %110 : vector<32x32xf32> to vector<2x16x32xf32>
    %112 = vector.extract_strided_slice %111 {offsets = [0, 0, 0], sizes = [2, 16, 8], strides = [1, 1, 1]} : vector<2x16x32xf32> to vector<2x16x8xf32>
    %113 = vector.extract_strided_slice %111 {offsets = [0, 0, 8], sizes = [2, 16, 8], strides = [1, 1, 1]} : vector<2x16x32xf32> to vector<2x16x8xf32>
    %114 = vector.extract_strided_slice %111 {offsets = [0, 0, 16], sizes = [2, 16, 8], strides = [1, 1, 1]} : vector<2x16x32xf32> to vector<2x16x8xf32>
    %115 = vector.extract_strided_slice %111 {offsets = [0, 0, 24], sizes = [2, 16, 8], strides = [1, 1, 1]} : vector<2x16x32xf32> to vector<2x16x8xf32>
    %116 = tpu.concatenate %112, %113, %114, %115 in 0 : vector<2x16x8xf32>, vector<2x16x8xf32>, vector<2x16x8xf32>, vector<2x16x8xf32> -> vector<8x16x8xf32>
    %117 = vector.shape_cast %107 : vector<128x32xf32> to vector<2x64x32xf32>
    %118 = vector.extract_strided_slice %117 {offsets = [0, 0, 0], sizes = [2, 64, 8], strides = [1, 1, 1]} : vector<2x64x32xf32> to vector<2x64x8xf32>
    %119 = vector.extract_strided_slice %117 {offsets = [0, 0, 8], sizes = [2, 64, 8], strides = [1, 1, 1]} : vector<2x64x32xf32> to vector<2x64x8xf32>
    %120 = vector.extract_strided_slice %117 {offsets = [0, 0, 16], sizes = [2, 64, 8], strides = [1, 1, 1]} : vector<2x64x32xf32> to vector<2x64x8xf32>
    %121 = vector.extract_strided_slice %117 {offsets = [0, 0, 24], sizes = [2, 64, 8], strides = [1, 1, 1]} : vector<2x64x32xf32> to vector<2x64x8xf32>
    %122 = tpu.concatenate %118, %119, %120, %121 in 0 : vector<2x64x8xf32>, vector<2x64x8xf32>, vector<2x64x8xf32>, vector<2x64x8xf32> -> vector<8x64x8xf32>
    %123 = vector.shape_cast %108 : vector<128x32xf32> to vector<2x64x32xf32>
    %124 = vector.extract_strided_slice %123 {offsets = [0, 0, 0], sizes = [2, 64, 8], strides = [1, 1, 1]} : vector<2x64x32xf32> to vector<2x64x8xf32>
    %125 = vector.extract_strided_slice %123 {offsets = [0, 0, 8], sizes = [2, 64, 8], strides = [1, 1, 1]} : vector<2x64x32xf32> to vector<2x64x8xf32>
    %126 = vector.extract_strided_slice %123 {offsets = [0, 0, 16], sizes = [2, 64, 8], strides = [1, 1, 1]} : vector<2x64x32xf32> to vector<2x64x8xf32>
    %127 = vector.extract_strided_slice %123 {offsets = [0, 0, 24], sizes = [2, 64, 8], strides = [1, 1, 1]} : vector<2x64x32xf32> to vector<2x64x8xf32>
    %128 = tpu.concatenate %124, %125, %126, %127 in 0 : vector<2x64x8xf32>, vector<2x64x8xf32>, vector<2x64x8xf32>, vector<2x64x8xf32> -> vector<8x64x8xf32>
    %129 = arith.truncf %116 : vector<8x16x8xf32> to vector<8x16x8xbf16>
    %130 = arith.truncf %122 : vector<8x64x8xf32> to vector<8x64x8xbf16>
    "tpu.trace_start"() <{level = 10 : i32, message = "bqd,bkd->bqk"}> : () -> ()
    %cst_53 = arith.constant dense<0.000000e+00> : vector<8x16x64xf32>
    %131 = tpu.matmul %129, %130, %cst_53 {dimension_numbers = #tpu.dot_dimension_numbers<[2], [2], [1], [1], [0, 0, 0, 1, 1, 1], [0], [0]>} : vector<8x16x8xbf16>, vector<8x64x8xbf16>, vector<8x16x64xf32> -> vector<8x16x64xf32>
    "tpu.trace_stop"() : () -> ()
    %cst_54 = arith.constant dense<0xFF800000> : vector<8x16xf32>
    %132 = vector.multi_reduction <maximumf>, %131, %cst_54 [2] : vector<8x16x64xf32> to vector<8x16xf32>
    %133 = vector.shape_cast %132 : vector<8x16xf32> to vector<8x16x1xf32>
    %134 = vector.broadcast %133 : vector<8x16x1xf32> to vector<8x16x64xf32>
    %135 = arith.subf %131, %134 : vector<8x16x64xf32>
    %136 = math.exp %135 : vector<8x16x64xf32>
    %cst_55 = arith.constant dense<0.000000e+00> : vector<8x16xf32>
    %137 = vector.multi_reduction <add>, %136, %cst_55 [2] : vector<8x16x64xf32> to vector<8x16xf32>
    %138 = vector.shape_cast %137 : vector<8x16xf32> to vector<8x16x1xf32>
    %139 = tpu.reciprocal %138 {approx = true} : vector<8x16x1xf32> -> vector<8x16x1xf32>
    %140 = vector.broadcast %139 : vector<8x16x1xf32> to vector<8x16x64xf32>
    %141 = arith.mulf %136, %140 : vector<8x16x64xf32>
    %142 = arith.truncf %141 : vector<8x16x64xf32> to vector<8x16x64xbf16>
    %143 = arith.truncf %128 : vector<8x64x8xf32> to vector<8x64x8xbf16>
    "tpu.trace_start"() <{level = 10 : i32, message = "bqk,bkd->bqd"}> : () -> ()
    %cst_56 = arith.constant dense<0.000000e+00> : vector<8x16x8xf32>
    %144 = tpu.matmul %142, %143, %cst_56 {dimension_numbers = #tpu.dot_dimension_numbers<[2], [1], [1], [2], [0, 0, 0, 1, 1, 2], [0], [0]>} : vector<8x16x64xbf16>, vector<8x64x8xbf16>, vector<8x16x8xf32> -> vector<8x16x8xf32>
    "tpu.trace_stop"() : () -> ()
    %145 = vector.extract_strided_slice %144 {offsets = [0, 0, 0], sizes = [2, 16, 8], strides = [1, 1, 1]} : vector<8x16x8xf32> to vector<2x16x8xf32>
    %146 = vector.extract_strided_slice %144 {offsets = [2, 0, 0], sizes = [2, 16, 8], strides = [1, 1, 1]} : vector<8x16x8xf32> to vector<2x16x8xf32>
    %147 = vector.extract_strided_slice %144 {offsets = [4, 0, 0], sizes = [2, 16, 8], strides = [1, 1, 1]} : vector<8x16x8xf32> to vector<2x16x8xf32>
    %148 = vector.extract_strided_slice %144 {offsets = [6, 0, 0], sizes = [2, 16, 8], strides = [1, 1, 1]} : vector<8x16x8xf32> to vector<2x16x8xf32>
    %149 = tpu.concatenate %145, %146, %147, %148 in 2 : vector<2x16x8xf32>, vector<2x16x8xf32>, vector<2x16x8xf32>, vector<2x16x8xf32> -> vector<2x16x32xf32>
    %150 = vector.shape_cast %149 : vector<2x16x32xf32> to vector<32x32xf32>
    %c1_57 = arith.constant 1 : index
    %c0_58 = arith.constant 0 : index
    %c0_59 = arith.constant 0 : index
    %151 = vector.load %arg7[%c1_57, %c0_58, %c0_59] : memref<3x32x32xbf16, #tpu.memory_space<vmem>>, vector<1x32x32xbf16>
    %152 = vector.shape_cast %151 : vector<1x32x32xbf16> to vector<32x32xbf16>
    %153 = arith.truncf %150 : vector<32x32xf32> to vector<32x32xbf16>
    %cst_60 = arith.constant dense<0.000000e+00> : vector<32x32xf32>
    %154 = tpu.matmul %153, %152, %cst_60 {dimension_numbers = #tpu.dot_dimension_numbers<[1], [0], [0], [1], [0, 0, 1, 1], [], []>} : vector<32x32xbf16>, vector<32x32xbf16>, vector<32x32xf32> -> vector<32x32xf32>
    %155 = vector.broadcast %5 : vector<1x32xf32> to vector<32x32xf32>
    %156 = arith.addf %154, %155 : vector<32x32xf32>
    %c0_61 = arith.constant 0 : index
    %c0_62 = arith.constant 0 : index
    %c0_63 = arith.constant 0 : index
    %157 = vector.load %arg9[%c0_61, %c0_62, %c0_63] : memref<3x32x64xbf16, #tpu.memory_space<vmem>>, vector<1x32x64xbf16>
    %158 = vector.shape_cast %157 : vector<1x32x64xbf16> to vector<32x64xbf16>
    %159 = arith.truncf %156 : vector<32x32xf32> to vector<32x32xbf16>
    %cst_64 = arith.constant dense<0.000000e+00> : vector<32x64xf32>
    %160 = tpu.matmul %159, %158, %cst_64 {dimension_numbers = #tpu.dot_dimension_numbers<[1], [0], [0], [1], [0, 0, 1, 1], [], []>} : vector<32x32xbf16>, vector<32x64xbf16>, vector<32x64xf32> -> vector<32x64xf32>
    %161 = vector.broadcast %7 : vector<1x64xf32> to vector<32x64xf32>
    %162 = arith.addf %160, %161 : vector<32x64xf32>
    %cst_65 = arith.constant 0.000000e+00 : f32
    %163 = vector.broadcast %cst_65 : f32 to vector<32x64xf32>
    %164 = arith.cmpf ogt, %162, %163 : vector<32x64xf32>
    %cst_66 = arith.constant 0.000000e+00 : f32
    %165 = vector.broadcast %cst_66 : f32 to vector<32x64xf32>
    %166 = arith.minimumf %162, %165 : vector<32x64xf32>
    %167 = math.exp %166 : vector<32x64xf32>
    %cst_67 = arith.constant 1.000000e+00 : f32
    %168 = vector.broadcast %cst_67 : f32 to vector<32x64xf32>
    %169 = arith.subf %167, %168 : vector<32x64xf32>
    %cst_68 = arith.constant 1.67326319 : f32
    %170 = vector.broadcast %cst_68 : f32 to vector<32x64xf32>
    %171 = arith.mulf %170, %169 : vector<32x64xf32>
    %172 = arith.select %164, %162, %171 : vector<32x64xi1>, vector<32x64xf32>
    %cst_69 = arith.constant 1.05070102 : f32
    %173 = vector.broadcast %cst_69 : f32 to vector<32x64xf32>
    %174 = arith.mulf %173, %172 : vector<32x64xf32>
    %c0_70 = arith.constant 0 : index
    %c0_71 = arith.constant 0 : index
    %c0_72 = arith.constant 0 : index
    %175 = vector.load %arg11[%c0_70, %c0_71, %c0_72] : memref<3x64x32xbf16, #tpu.memory_space<vmem>>, vector<1x64x32xbf16>
    %176 = vector.shape_cast %175 : vector<1x64x32xbf16> to vector<64x32xbf16>
    %177 = arith.truncf %174 : vector<32x64xf32> to vector<32x64xbf16>
    %cst_73 = arith.constant dense<0.000000e+00> : vector<32x32xf32>
    %178 = tpu.matmul %177, %176, %cst_73 {dimension_numbers = #tpu.dot_dimension_numbers<[1], [0], [0], [1], [0, 0, 1, 1], [], []>} : vector<32x64xbf16>, vector<64x32xbf16>, vector<32x32xf32> -> vector<32x32xf32>
    %179 = vector.broadcast %10 : vector<1x32xf32> to vector<32x32xf32>
    %180 = arith.addf %178, %179 : vector<32x32xf32>
    %181 = arith.addf %180, %156 : vector<32x32xf32>
    %c0_74 = arith.constant 0 : index
    %c0_75 = arith.constant 0 : index
    %c0_76 = arith.constant 0 : index
    %182 = vector.load %arg5[%c0_74, %c0_75, %c0_76] : memref<3x32x96xbf16, #tpu.memory_space<vmem>>, vector<1x32x96xbf16>
    %183 = vector.shape_cast %182 : vector<1x32x96xbf16> to vector<32x96xbf16>
    %184 = arith.truncf %181 : vector<32x32xf32> to vector<32x32xbf16>
    %cst_77 = arith.constant dense<0.000000e+00> : vector<32x96xf32>
    %185 = tpu.matmul %184, %183, %cst_77 {dimension_numbers = #tpu.dot_dimension_numbers<[1], [0], [0], [1], [0, 0, 1, 1], [], []>} : vector<32x32xbf16>, vector<32x96xbf16>, vector<32x96xf32> -> vector<32x96xf32>
    %186 = vector.broadcast %1 : vector<1x96xf32> to vector<32x96xf32>
    %187 = arith.addf %185, %186 : vector<32x96xf32>
    %188 = vector.extract_strided_slice %187 {offsets = [0, 0], sizes = [32, 32], strides = [1, 1]} : vector<32x96xf32> to vector<32x32xf32>
    %189 = vector.extract_strided_slice %187 {offsets = [0, 32], sizes = [32, 32], strides = [1, 1]} : vector<32x96xf32> to vector<32x32xf32>
    %190 = vector.extract_strided_slice %187 {offsets = [0, 64], sizes = [32, 32], strides = [1, 1]} : vector<32x96xf32> to vector<32x32xf32>
    %cst_78 = arith.constant 0.353553385 : f32
    %191 = vector.broadcast %cst_78 : f32 to vector<32x32xf32>
    %192 = arith.mulf %188, %191 : vector<32x32xf32>
    %193 = vector.shape_cast %192 : vector<32x32xf32> to vector<2x16x32xf32>
    %194 = vector.extract_strided_slice %193 {offsets = [0, 0, 0], sizes = [2, 16, 8], strides = [1, 1, 1]} : vector<2x16x32xf32> to vector<2x16x8xf32>
    %195 = vector.extract_strided_slice %193 {offsets = [0, 0, 8], sizes = [2, 16, 8], strides = [1, 1, 1]} : vector<2x16x32xf32> to vector<2x16x8xf32>
    %196 = vector.extract_strided_slice %193 {offsets = [0, 0, 16], sizes = [2, 16, 8], strides = [1, 1, 1]} : vector<2x16x32xf32> to vector<2x16x8xf32>
    %197 = vector.extract_strided_slice %193 {offsets = [0, 0, 24], sizes = [2, 16, 8], strides = [1, 1, 1]} : vector<2x16x32xf32> to vector<2x16x8xf32>
    %198 = tpu.concatenate %194, %195, %196, %197 in 0 : vector<2x16x8xf32>, vector<2x16x8xf32>, vector<2x16x8xf32>, vector<2x16x8xf32> -> vector<8x16x8xf32>
    %199 = vector.shape_cast %189 : vector<32x32xf32> to vector<2x16x32xf32>
    %200 = vector.extract_strided_slice %199 {offsets = [0, 0, 0], sizes = [2, 16, 8], strides = [1, 1, 1]} : vector<2x16x32xf32> to vector<2x16x8xf32>
    %201 = vector.extract_strided_slice %199 {offsets = [0, 0, 8], sizes = [2, 16, 8], strides = [1, 1, 1]} : vector<2x16x32xf32> to vector<2x16x8xf32>
    %202 = vector.extract_strided_slice %199 {offsets = [0, 0, 16], sizes = [2, 16, 8], strides = [1, 1, 1]} : vector<2x16x32xf32> to vector<2x16x8xf32>
    %203 = vector.extract_strided_slice %199 {offsets = [0, 0, 24], sizes = [2, 16, 8], strides = [1, 1, 1]} : vector<2x16x32xf32> to vector<2x16x8xf32>
    %204 = tpu.concatenate %200, %201, %202, %203 in 0 : vector<2x16x8xf32>, vector<2x16x8xf32>, vector<2x16x8xf32>, vector<2x16x8xf32> -> vector<8x16x8xf32>
    %205 = vector.shape_cast %190 : vector<32x32xf32> to vector<2x16x32xf32>
    %206 = vector.extract_strided_slice %205 {offsets = [0, 0, 0], sizes = [2, 16, 8], strides = [1, 1, 1]} : vector<2x16x32xf32> to vector<2x16x8xf32>
    %207 = vector.extract_strided_slice %205 {offsets = [0, 0, 8], sizes = [2, 16, 8], strides = [1, 1, 1]} : vector<2x16x32xf32> to vector<2x16x8xf32>
    %208 = vector.extract_strided_slice %205 {offsets = [0, 0, 16], sizes = [2, 16, 8], strides = [1, 1, 1]} : vector<2x16x32xf32> to vector<2x16x8xf32>
    %209 = vector.extract_strided_slice %205 {offsets = [0, 0, 24], sizes = [2, 16, 8], strides = [1, 1, 1]} : vector<2x16x32xf32> to vector<2x16x8xf32>
    %210 = tpu.concatenate %206, %207, %208, %209 in 0 : vector<2x16x8xf32>, vector<2x16x8xf32>, vector<2x16x8xf32>, vector<2x16x8xf32> -> vector<8x16x8xf32>
    %211 = arith.truncf %198 : vector<8x16x8xf32> to vector<8x16x8xbf16>
    %212 = arith.truncf %204 : vector<8x16x8xf32> to vector<8x16x8xbf16>
    "tpu.trace_start"() <{level = 10 : i32, message = "bqd,bkd->bqk"}> : () -> ()
    %cst_79 = arith.constant dense<0.000000e+00> : vector<8x16x16xf32>
    %213 = tpu.matmul %211, %212, %cst_79 {dimension_numbers = #tpu.dot_dimension_numbers<[2], [2], [1], [1], [0, 0, 0, 1, 1, 1], [0], [0]>} : vector<8x16x8xbf16>, vector<8x16x8xbf16>, vector<8x16x16xf32> -> vector<8x16x16xf32>
    "tpu.trace_stop"() : () -> ()
    %cst_80 = arith.constant dense<0xFF800000> : vector<8x16xf32>
    %214 = vector.multi_reduction <maximumf>, %213, %cst_80 [2] : vector<8x16x16xf32> to vector<8x16xf32>
    %215 = vector.shape_cast %214 : vector<8x16xf32> to vector<8x16x1xf32>
    %216 = vector.broadcast %215 : vector<8x16x1xf32> to vector<8x16x16xf32>
    %217 = arith.subf %213, %216 : vector<8x16x16xf32>
    %218 = math.exp %217 : vector<8x16x16xf32>
    %cst_81 = arith.constant dense<0.000000e+00> : vector<8x16xf32>
    %219 = vector.multi_reduction <add>, %218, %cst_81 [2] : vector<8x16x16xf32> to vector<8x16xf32>
    %220 = vector.shape_cast %219 : vector<8x16xf32> to vector<8x16x1xf32>
    %221 = tpu.reciprocal %220 {approx = true} : vector<8x16x1xf32> -> vector<8x16x1xf32>
    %222 = vector.broadcast %221 : vector<8x16x1xf32> to vector<8x16x16xf32>
    %223 = arith.mulf %218, %222 : vector<8x16x16xf32>
    %224 = arith.truncf %223 : vector<8x16x16xf32> to vector<8x16x16xbf16>
    %225 = arith.truncf %210 : vector<8x16x8xf32> to vector<8x16x8xbf16>
    "tpu.trace_start"() <{level = 10 : i32, message = "bqk,bkd->bqd"}> : () -> ()
    %cst_82 = arith.constant dense<0.000000e+00> : vector<8x16x8xf32>
    %226 = tpu.matmul %224, %225, %cst_82 {dimension_numbers = #tpu.dot_dimension_numbers<[2], [1], [1], [2], [0, 0, 0, 1, 1, 2], [0], [0]>} : vector<8x16x16xbf16>, vector<8x16x8xbf16>, vector<8x16x8xf32> -> vector<8x16x8xf32>
    "tpu.trace_stop"() : () -> ()
    %227 = vector.extract_strided_slice %226 {offsets = [0, 0, 0], sizes = [2, 16, 8], strides = [1, 1, 1]} : vector<8x16x8xf32> to vector<2x16x8xf32>
    %228 = vector.extract_strided_slice %226 {offsets = [2, 0, 0], sizes = [2, 16, 8], strides = [1, 1, 1]} : vector<8x16x8xf32> to vector<2x16x8xf32>
    %229 = vector.extract_strided_slice %226 {offsets = [4, 0, 0], sizes = [2, 16, 8], strides = [1, 1, 1]} : vector<8x16x8xf32> to vector<2x16x8xf32>
    %230 = vector.extract_strided_slice %226 {offsets = [6, 0, 0], sizes = [2, 16, 8], strides = [1, 1, 1]} : vector<8x16x8xf32> to vector<2x16x8xf32>
    %231 = tpu.concatenate %227, %228, %229, %230 in 2 : vector<2x16x8xf32>, vector<2x16x8xf32>, vector<2x16x8xf32>, vector<2x16x8xf32> -> vector<2x16x32xf32>
    %232 = vector.shape_cast %231 : vector<2x16x32xf32> to vector<32x32xf32>
    %c0_83 = arith.constant 0 : index
    %c0_84 = arith.constant 0 : index
    %c0_85 = arith.constant 0 : index
    %233 = vector.load %arg7[%c0_83, %c0_84, %c0_85] : memref<3x32x32xbf16, #tpu.memory_space<vmem>>, vector<1x32x32xbf16>
    %234 = vector.shape_cast %233 : vector<1x32x32xbf16> to vector<32x32xbf16>
    %235 = arith.truncf %232 : vector<32x32xf32> to vector<32x32xbf16>
    %cst_86 = arith.constant dense<0.000000e+00> : vector<32x32xf32>
    %236 = tpu.matmul %235, %234, %cst_86 {dimension_numbers = #tpu.dot_dimension_numbers<[1], [0], [0], [1], [0, 0, 1, 1], [], []>} : vector<32x32xbf16>, vector<32x32xbf16>, vector<32x32xf32> -> vector<32x32xf32>
    %237 = vector.broadcast %4 : vector<1x32xf32> to vector<32x32xf32>
    %238 = arith.addf %236, %237 : vector<32x32xf32>
    %239 = arith.mulf %238, %238 : vector<32x32xf32>
    %cst_87 = arith.constant dense<0.000000e+00> : vector<32xf32>
    %240 = vector.multi_reduction <add>, %239, %cst_87 [1] : vector<32x32xf32> to vector<32xf32>
    %241 = vector.shape_cast %240 : vector<32xf32> to vector<32x1xf32>
    %cst_88 = arith.constant 3.200000e+01 : f32
    %242 = vector.broadcast %cst_88 : f32 to vector<32x1xf32>
    %243 = arith.divf %241, %242 : vector<32x1xf32>
    %cst_89 = arith.constant 9.99999997E-7 : f32
    %244 = vector.broadcast %cst_89 : f32 to vector<32x1xf32>
    %245 = arith.addf %243, %244 : vector<32x1xf32>
    %246 = math.rsqrt %245 : vector<32x1xf32>
    %247 = vector.broadcast %246 : vector<32x1xf32> to vector<32x32xf32>
    %248 = arith.mulf %238, %247 : vector<32x32xf32>
    %249 = arith.addf %248, %181 : vector<32x32xf32>
    %c1_90 = arith.constant 1 : index
    %c0_91 = arith.constant 0 : index
    %c0_92 = arith.constant 0 : index
    %250 = vector.load %arg5[%c1_90, %c0_91, %c0_92] : memref<3x32x96xbf16, #tpu.memory_space<vmem>>, vector<1x32x96xbf16>
    %251 = vector.shape_cast %250 : vector<1x32x96xbf16> to vector<32x96xbf16>
    %252 = vector.extract_strided_slice %251 {offsets = [0, 0], sizes = [32, 32], strides = [1, 1]} : vector<32x96xbf16> to vector<32x32xbf16>
    %253 = arith.truncf %249 : vector<32x32xf32> to vector<32x32xbf16>
    %cst_93 = arith.constant dense<0.000000e+00> : vector<32x32xf32>
    %254 = tpu.matmul %253, %252, %cst_93 {dimension_numbers = #tpu.dot_dimension_numbers<[1], [0], [0], [1], [0, 0, 1, 1], [], []>} : vector<32x32xbf16>, vector<32x32xbf16>, vector<32x32xf32> -> vector<32x32xf32>
    %255 = vector.extract_strided_slice %2 {offsets = [0, 0], sizes = [1, 32], strides = [1, 1]} : vector<1x96xf32> to vector<1x32xf32>
    %256 = vector.broadcast %255 : vector<1x32xf32> to vector<32x32xf32>
    %257 = arith.addf %254, %256 : vector<32x32xf32>
    %258 = vector.extract_strided_slice %251 {offsets = [0, 32], sizes = [32, 64], strides = [1, 1]} : vector<32x96xbf16> to vector<32x64xbf16>
    %259 = arith.truncf %22 : vector<128x32xf32> to vector<128x32xbf16>
    %cst_94 = arith.constant dense<0.000000e+00> : vector<128x64xf32>
    %260 = tpu.matmul %259, %258, %cst_94 {dimension_numbers = #tpu.dot_dimension_numbers<[1], [0], [0], [1], [0, 0, 1, 1], [], []>} : vector<128x32xbf16>, vector<32x64xbf16>, vector<128x64xf32> -> vector<128x64xf32>
    %261 = vector.extract_strided_slice %2 {offsets = [0, 32], sizes = [1, 64], strides = [1, 1]} : vector<1x96xf32> to vector<1x64xf32>
    %262 = vector.broadcast %261 : vector<1x64xf32> to vector<128x64xf32>
    %263 = arith.addf %260, %262 : vector<128x64xf32>
    %264 = vector.extract_strided_slice %263 {offsets = [0, 0], sizes = [128, 32], strides = [1, 1]} : vector<128x64xf32> to vector<128x32xf32>
    %265 = vector.extract_strided_slice %263 {offsets = [0, 32], sizes = [128, 32], strides = [1, 1]} : vector<128x64xf32> to vector<128x32xf32>
    %cst_95 = arith.constant 0.353553385 : f32
    %266 = vector.broadcast %cst_95 : f32 to vector<32x32xf32>
    %267 = arith.mulf %257, %266 : vector<32x32xf32>
    %268 = vector.shape_cast %267 : vector<32x32xf32> to vector<2x16x32xf32>
    %269 = vector.extract_strided_slice %268 {offsets = [0, 0, 0], sizes = [2, 16, 8], strides = [1, 1, 1]} : vector<2x16x32xf32> to vector<2x16x8xf32>
    %270 = vector.extract_strided_slice %268 {offsets = [0, 0, 8], sizes = [2, 16, 8], strides = [1, 1, 1]} : vector<2x16x32xf32> to vector<2x16x8xf32>
    %271 = vector.extract_strided_slice %268 {offsets = [0, 0, 16], sizes = [2, 16, 8], strides = [1, 1, 1]} : vector<2x16x32xf32> to vector<2x16x8xf32>
    %272 = vector.extract_strided_slice %268 {offsets = [0, 0, 24], sizes = [2, 16, 8], strides = [1, 1, 1]} : vector<2x16x32xf32> to vector<2x16x8xf32>
    %273 = tpu.concatenate %269, %270, %271, %272 in 0 : vector<2x16x8xf32>, vector<2x16x8xf32>, vector<2x16x8xf32>, vector<2x16x8xf32> -> vector<8x16x8xf32>
    %274 = vector.shape_cast %264 : vector<128x32xf32> to vector<2x64x32xf32>
    %275 = vector.extract_strided_slice %274 {offsets = [0, 0, 0], sizes = [2, 64, 8], strides = [1, 1, 1]} : vector<2x64x32xf32> to vector<2x64x8xf32>
    %276 = vector.extract_strided_slice %274 {offsets = [0, 0, 8], sizes = [2, 64, 8], strides = [1, 1, 1]} : vector<2x64x32xf32> to vector<2x64x8xf32>
    %277 = vector.extract_strided_slice %274 {offsets = [0, 0, 16], sizes = [2, 64, 8], strides = [1, 1, 1]} : vector<2x64x32xf32> to vector<2x64x8xf32>
    %278 = vector.extract_strided_slice %274 {offsets = [0, 0, 24], sizes = [2, 64, 8], strides = [1, 1, 1]} : vector<2x64x32xf32> to vector<2x64x8xf32>
    %279 = tpu.concatenate %275, %276, %277, %278 in 0 : vector<2x64x8xf32>, vector<2x64x8xf32>, vector<2x64x8xf32>, vector<2x64x8xf32> -> vector<8x64x8xf32>
    %280 = vector.shape_cast %265 : vector<128x32xf32> to vector<2x64x32xf32>
    %281 = vector.extract_strided_slice %280 {offsets = [0, 0, 0], sizes = [2, 64, 8], strides = [1, 1, 1]} : vector<2x64x32xf32> to vector<2x64x8xf32>
    %282 = vector.extract_strided_slice %280 {offsets = [0, 0, 8], sizes = [2, 64, 8], strides = [1, 1, 1]} : vector<2x64x32xf32> to vector<2x64x8xf32>
    %283 = vector.extract_strided_slice %280 {offsets = [0, 0, 16], sizes = [2, 64, 8], strides = [1, 1, 1]} : vector<2x64x32xf32> to vector<2x64x8xf32>
    %284 = vector.extract_strided_slice %280 {offsets = [0, 0, 24], sizes = [2, 64, 8], strides = [1, 1, 1]} : vector<2x64x32xf32> to vector<2x64x8xf32>
    %285 = tpu.concatenate %281, %282, %283, %284 in 0 : vector<2x64x8xf32>, vector<2x64x8xf32>, vector<2x64x8xf32>, vector<2x64x8xf32> -> vector<8x64x8xf32>
    %286 = arith.truncf %273 : vector<8x16x8xf32> to vector<8x16x8xbf16>
    %287 = arith.truncf %279 : vector<8x64x8xf32> to vector<8x64x8xbf16>
    "tpu.trace_start"() <{level = 10 : i32, message = "bqd,bkd->bqk"}> : () -> ()
    %cst_96 = arith.constant dense<0.000000e+00> : vector<8x16x64xf32>
    %288 = tpu.matmul %286, %287, %cst_96 {dimension_numbers = #tpu.dot_dimension_numbers<[2], [2], [1], [1], [0, 0, 0, 1, 1, 1], [0], [0]>} : vector<8x16x8xbf16>, vector<8x64x8xbf16>, vector<8x16x64xf32> -> vector<8x16x64xf32>
    "tpu.trace_stop"() : () -> ()
    %cst_97 = arith.constant dense<0xFF800000> : vector<8x16xf32>
    %289 = vector.multi_reduction <maximumf>, %288, %cst_97 [2] : vector<8x16x64xf32> to vector<8x16xf32>
    %290 = vector.shape_cast %289 : vector<8x16xf32> to vector<8x16x1xf32>
    %291 = vector.broadcast %290 : vector<8x16x1xf32> to vector<8x16x64xf32>
    %292 = arith.subf %288, %291 : vector<8x16x64xf32>
    %293 = math.exp %292 : vector<8x16x64xf32>
    %cst_98 = arith.constant dense<0.000000e+00> : vector<8x16xf32>
    %294 = vector.multi_reduction <add>, %293, %cst_98 [2] : vector<8x16x64xf32> to vector<8x16xf32>
    %295 = vector.shape_cast %294 : vector<8x16xf32> to vector<8x16x1xf32>
    %296 = tpu.reciprocal %295 {approx = true} : vector<8x16x1xf32> -> vector<8x16x1xf32>
    %297 = vector.broadcast %296 : vector<8x16x1xf32> to vector<8x16x64xf32>
    %298 = arith.mulf %293, %297 : vector<8x16x64xf32>
    %299 = arith.truncf %298 : vector<8x16x64xf32> to vector<8x16x64xbf16>
    %300 = arith.truncf %285 : vector<8x64x8xf32> to vector<8x64x8xbf16>
    "tpu.trace_start"() <{level = 10 : i32, message = "bqk,bkd->bqd"}> : () -> ()
    %cst_99 = arith.constant dense<0.000000e+00> : vector<8x16x8xf32>
    %301 = tpu.matmul %299, %300, %cst_99 {dimension_numbers = #tpu.dot_dimension_numbers<[2], [1], [1], [2], [0, 0, 0, 1, 1, 2], [0], [0]>} : vector<8x16x64xbf16>, vector<8x64x8xbf16>, vector<8x16x8xf32> -> vector<8x16x8xf32>
    "tpu.trace_stop"() : () -> ()
    %302 = vector.extract_strided_slice %301 {offsets = [0, 0, 0], sizes = [2, 16, 8], strides = [1, 1, 1]} : vector<8x16x8xf32> to vector<2x16x8xf32>
    %303 = vector.extract_strided_slice %301 {offsets = [2, 0, 0], sizes = [2, 16, 8], strides = [1, 1, 1]} : vector<8x16x8xf32> to vector<2x16x8xf32>
    %304 = vector.extract_strided_slice %301 {offsets = [4, 0, 0], sizes = [2, 16, 8], strides = [1, 1, 1]} : vector<8x16x8xf32> to vector<2x16x8xf32>
    %305 = vector.extract_strided_slice %301 {offsets = [6, 0, 0], sizes = [2, 16, 8], strides = [1, 1, 1]} : vector<8x16x8xf32> to vector<2x16x8xf32>
    %306 = tpu.concatenate %302, %303, %304, %305 in 2 : vector<2x16x8xf32>, vector<2x16x8xf32>, vector<2x16x8xf32>, vector<2x16x8xf32> -> vector<2x16x32xf32>
    %307 = vector.shape_cast %306 : vector<2x16x32xf32> to vector<32x32xf32>
    %c1_100 = arith.constant 1 : index
    %c0_101 = arith.constant 0 : index
    %c0_102 = arith.constant 0 : index
    %308 = vector.load %arg7[%c1_100, %c0_101, %c0_102] : memref<3x32x32xbf16, #tpu.memory_space<vmem>>, vector<1x32x32xbf16>
    %309 = vector.shape_cast %308 : vector<1x32x32xbf16> to vector<32x32xbf16>
    %310 = arith.truncf %307 : vector<32x32xf32> to vector<32x32xbf16>
    %cst_103 = arith.constant dense<0.000000e+00> : vector<32x32xf32>
    %311 = tpu.matmul %310, %309, %cst_103 {dimension_numbers = #tpu.dot_dimension_numbers<[1], [0], [0], [1], [0, 0, 1, 1], [], []>} : vector<32x32xbf16>, vector<32x32xbf16>, vector<32x32xf32> -> vector<32x32xf32>
    %312 = vector.broadcast %5 : vector<1x32xf32> to vector<32x32xf32>
    %313 = arith.addf %311, %312 : vector<32x32xf32>
    %c0_104 = arith.constant 0 : index
    %c0_105 = arith.constant 0 : index
    %c0_106 = arith.constant 0 : index
    %314 = vector.load %arg9[%c0_104, %c0_105, %c0_106] : memref<3x32x64xbf16, #tpu.memory_space<vmem>>, vector<1x32x64xbf16>
    %315 = vector.shape_cast %314 : vector<1x32x64xbf16> to vector<32x64xbf16>
    %316 = arith.truncf %313 : vector<32x32xf32> to vector<32x32xbf16>
    %cst_107 = arith.constant dense<0.000000e+00> : vector<32x64xf32>
    %317 = tpu.matmul %316, %315, %cst_107 {dimension_numbers = #tpu.dot_dimension_numbers<[1], [0], [0], [1], [0, 0, 1, 1], [], []>} : vector<32x32xbf16>, vector<32x64xbf16>, vector<32x64xf32> -> vector<32x64xf32>
    %318 = vector.broadcast %7 : vector<1x64xf32> to vector<32x64xf32>
    %319 = arith.addf %317, %318 : vector<32x64xf32>
    %cst_108 = arith.constant 0.000000e+00 : f32
    %320 = vector.broadcast %cst_108 : f32 to vector<32x64xf32>
    %321 = arith.cmpf ogt, %319, %320 : vector<32x64xf32>
    %cst_109 = arith.constant 0.000000e+00 : f32
    %322 = vector.broadcast %cst_109 : f32 to vector<32x64xf32>
    %323 = arith.minimumf %319, %322 : vector<32x64xf32>
    %324 = math.exp %323 : vector<32x64xf32>
    %cst_110 = arith.constant 1.000000e+00 : f32
    %325 = vector.broadcast %cst_110 : f32 to vector<32x64xf32>
    %326 = arith.subf %324, %325 : vector<32x64xf32>
    %cst_111 = arith.constant 1.67326319 : f32
    %327 = vector.broadcast %cst_111 : f32 to vector<32x64xf32>
    %328 = arith.mulf %327, %326 : vector<32x64xf32>
    %329 = arith.select %321, %319, %328 : vector<32x64xi1>, vector<32x64xf32>
    %cst_112 = arith.constant 1.05070102 : f32
    %330 = vector.broadcast %cst_112 : f32 to vector<32x64xf32>
    %331 = arith.mulf %330, %329 : vector<32x64xf32>
    %c0_113 = arith.constant 0 : index
    %c0_114 = arith.constant 0 : index
    %c0_115 = arith.constant 0 : index
    %332 = vector.load %arg11[%c0_113, %c0_114, %c0_115] : memref<3x64x32xbf16, #tpu.memory_space<vmem>>, vector<1x64x32xbf16>
    %333 = vector.shape_cast %332 : vector<1x64x32xbf16> to vector<64x32xbf16>
    %334 = arith.truncf %331 : vector<32x64xf32> to vector<32x64xbf16>
    %cst_116 = arith.constant dense<0.000000e+00> : vector<32x32xf32>
    %335 = tpu.matmul %334, %333, %cst_116 {dimension_numbers = #tpu.dot_dimension_numbers<[1], [0], [0], [1], [0, 0, 1, 1], [], []>} : vector<32x64xbf16>, vector<64x32xbf16>, vector<32x32xf32> -> vector<32x32xf32>
    %336 = vector.broadcast %10 : vector<1x32xf32> to vector<32x32xf32>
    %337 = arith.addf %335, %336 : vector<32x32xf32>
    %338 = arith.addf %337, %313 : vector<32x32xf32>
    %c2_117 = arith.constant 2 : index
    %c0_118 = arith.constant 0 : index
    %c0_119 = arith.constant 0 : index
    %339 = vector.load %arg5[%c2_117, %c0_118, %c0_119] : memref<3x32x96xbf16, #tpu.memory_space<vmem>>, vector<1x32x96xbf16>
    %340 = vector.shape_cast %339 : vector<1x32x96xbf16> to vector<32x96xbf16>
    %341 = vector.extract_strided_slice %340 {offsets = [0, 0], sizes = [32, 32], strides = [1, 1]} : vector<32x96xbf16> to vector<32x32xbf16>
    %342 = arith.truncf %22 : vector<128x32xf32> to vector<128x32xbf16>
    %cst_120 = arith.constant dense<0.000000e+00> : vector<128x32xf32>
    %343 = tpu.matmul %342, %341, %cst_120 {dimension_numbers = #tpu.dot_dimension_numbers<[1], [0], [0], [1], [0, 0, 1, 1], [], []>} : vector<128x32xbf16>, vector<32x32xbf16>, vector<128x32xf32> -> vector<128x32xf32>
    %344 = vector.extract_strided_slice %3 {offsets = [0, 0], sizes = [1, 32], strides = [1, 1]} : vector<1x96xf32> to vector<1x32xf32>
    %345 = vector.broadcast %344 : vector<1x32xf32> to vector<128x32xf32>
    %346 = arith.addf %343, %345 : vector<128x32xf32>
    %347 = vector.extract_strided_slice %340 {offsets = [0, 32], sizes = [32, 64], strides = [1, 1]} : vector<32x96xbf16> to vector<32x64xbf16>
    %348 = arith.truncf %338 : vector<32x32xf32> to vector<32x32xbf16>
    %cst_121 = arith.constant dense<0.000000e+00> : vector<32x64xf32>
    %349 = tpu.matmul %348, %347, %cst_121 {dimension_numbers = #tpu.dot_dimension_numbers<[1], [0], [0], [1], [0, 0, 1, 1], [], []>} : vector<32x32xbf16>, vector<32x64xbf16>, vector<32x64xf32> -> vector<32x64xf32>
    %350 = vector.extract_strided_slice %3 {offsets = [0, 32], sizes = [1, 64], strides = [1, 1]} : vector<1x96xf32> to vector<1x64xf32>
    %351 = vector.broadcast %350 : vector<1x64xf32> to vector<32x64xf32>
    %352 = arith.addf %349, %351 : vector<32x64xf32>
    %353 = vector.extract_strided_slice %352 {offsets = [0, 0], sizes = [32, 32], strides = [1, 1]} : vector<32x64xf32> to vector<32x32xf32>
    %354 = vector.extract_strided_slice %352 {offsets = [0, 32], sizes = [32, 32], strides = [1, 1]} : vector<32x64xf32> to vector<32x32xf32>
    %cst_122 = arith.constant 0.353553385 : f32
    %355 = vector.broadcast %cst_122 : f32 to vector<128x32xf32>
    %356 = arith.mulf %346, %355 : vector<128x32xf32>
    %357 = vector.shape_cast %356 : vector<128x32xf32> to vector<2x64x32xf32>
    %358 = vector.extract_strided_slice %357 {offsets = [0, 0, 0], sizes = [2, 64, 8], strides = [1, 1, 1]} : vector<2x64x32xf32> to vector<2x64x8xf32>
    %359 = vector.extract_strided_slice %357 {offsets = [0, 0, 8], sizes = [2, 64, 8], strides = [1, 1, 1]} : vector<2x64x32xf32> to vector<2x64x8xf32>
    %360 = vector.extract_strided_slice %357 {offsets = [0, 0, 16], sizes = [2, 64, 8], strides = [1, 1, 1]} : vector<2x64x32xf32> to vector<2x64x8xf32>
    %361 = vector.extract_strided_slice %357 {offsets = [0, 0, 24], sizes = [2, 64, 8], strides = [1, 1, 1]} : vector<2x64x32xf32> to vector<2x64x8xf32>
    %362 = tpu.concatenate %358, %359, %360, %361 in 0 : vector<2x64x8xf32>, vector<2x64x8xf32>, vector<2x64x8xf32>, vector<2x64x8xf32> -> vector<8x64x8xf32>
    %363 = vector.shape_cast %353 : vector<32x32xf32> to vector<2x16x32xf32>
    %364 = vector.extract_strided_slice %363 {offsets = [0, 0, 0], sizes = [2, 16, 8], strides = [1, 1, 1]} : vector<2x16x32xf32> to vector<2x16x8xf32>
    %365 = vector.extract_strided_slice %363 {offsets = [0, 0, 8], sizes = [2, 16, 8], strides = [1, 1, 1]} : vector<2x16x32xf32> to vector<2x16x8xf32>
    %366 = vector.extract_strided_slice %363 {offsets = [0, 0, 16], sizes = [2, 16, 8], strides = [1, 1, 1]} : vector<2x16x32xf32> to vector<2x16x8xf32>
    %367 = vector.extract_strided_slice %363 {offsets = [0, 0, 24], sizes = [2, 16, 8], strides = [1, 1, 1]} : vector<2x16x32xf32> to vector<2x16x8xf32>
    %368 = tpu.concatenate %364, %365, %366, %367 in 0 : vector<2x16x8xf32>, vector<2x16x8xf32>, vector<2x16x8xf32>, vector<2x16x8xf32> -> vector<8x16x8xf32>
    %369 = vector.shape_cast %354 : vector<32x32xf32> to vector<2x16x32xf32>
    %370 = vector.extract_strided_slice %369 {offsets = [0, 0, 0], sizes = [2, 16, 8], strides = [1, 1, 1]} : vector<2x16x32xf32> to vector<2x16x8xf32>
    %371 = vector.extract_strided_slice %369 {offsets = [0, 0, 8], sizes = [2, 16, 8], strides = [1, 1, 1]} : vector<2x16x32xf32> to vector<2x16x8xf32>
    %372 = vector.extract_strided_slice %369 {offsets = [0, 0, 16], sizes = [2, 16, 8], strides = [1, 1, 1]} : vector<2x16x32xf32> to vector<2x16x8xf32>
    %373 = vector.extract_strided_slice %369 {offsets = [0, 0, 24], sizes = [2, 16, 8], strides = [1, 1, 1]} : vector<2x16x32xf32> to vector<2x16x8xf32>
    %374 = tpu.concatenate %370, %371, %372, %373 in 0 : vector<2x16x8xf32>, vector<2x16x8xf32>, vector<2x16x8xf32>, vector<2x16x8xf32> -> vector<8x16x8xf32>
    %375 = arith.truncf %362 : vector<8x64x8xf32> to vector<8x64x8xbf16>
    %376 = arith.truncf %368 : vector<8x16x8xf32> to vector<8x16x8xbf16>
    "tpu.trace_start"() <{level = 10 : i32, message = "bqd,bkd->bqk"}> : () -> ()
    %cst_123 = arith.constant dense<0.000000e+00> : vector<8x64x16xf32>
    %377 = tpu.matmul %375, %376, %cst_123 {dimension_numbers = #tpu.dot_dimension_numbers<[2], [2], [1], [1], [0, 0, 0, 1, 1, 1], [0], [0]>} : vector<8x64x8xbf16>, vector<8x16x8xbf16>, vector<8x64x16xf32> -> vector<8x64x16xf32>
    "tpu.trace_stop"() : () -> ()
    %cst_124 = arith.constant dense<0xFF800000> : vector<8x64xf32>
    %378 = vector.multi_reduction <maximumf>, %377, %cst_124 [2] : vector<8x64x16xf32> to vector<8x64xf32>
    %379 = vector.shape_cast %378 : vector<8x64xf32> to vector<8x64x1xf32>
    %380 = vector.broadcast %379 : vector<8x64x1xf32> to vector<8x64x16xf32>
    %381 = arith.subf %377, %380 : vector<8x64x16xf32>
    %382 = math.exp %381 : vector<8x64x16xf32>
    %cst_125 = arith.constant dense<0.000000e+00> : vector<8x64xf32>
    %383 = vector.multi_reduction <add>, %382, %cst_125 [2] : vector<8x64x16xf32> to vector<8x64xf32>
    %384 = vector.shape_cast %383 : vector<8x64xf32> to vector<8x64x1xf32>
    %385 = tpu.reciprocal %384 {approx = true} : vector<8x64x1xf32> -> vector<8x64x1xf32>
    %386 = vector.broadcast %385 : vector<8x64x1xf32> to vector<8x64x16xf32>
    %387 = arith.mulf %382, %386 : vector<8x64x16xf32>
    %388 = arith.truncf %387 : vector<8x64x16xf32> to vector<8x64x16xbf16>
    %389 = arith.truncf %374 : vector<8x16x8xf32> to vector<8x16x8xbf16>
    "tpu.trace_start"() <{level = 10 : i32, message = "bqk,bkd->bqd"}> : () -> ()
    %cst_126 = arith.constant dense<0.000000e+00> : vector<8x64x8xf32>
    %390 = tpu.matmul %388, %389, %cst_126 {dimension_numbers = #tpu.dot_dimension_numbers<[2], [1], [1], [2], [0, 0, 0, 1, 1, 2], [0], [0]>} : vector<8x64x16xbf16>, vector<8x16x8xbf16>, vector<8x64x8xf32> -> vector<8x64x8xf32>
    "tpu.trace_stop"() : () -> ()
    %391 = vector.extract_strided_slice %390 {offsets = [0, 0, 0], sizes = [2, 64, 8], strides = [1, 1, 1]} : vector<8x64x8xf32> to vector<2x64x8xf32>
    %392 = vector.extract_strided_slice %390 {offsets = [2, 0, 0], sizes = [2, 64, 8], strides = [1, 1, 1]} : vector<8x64x8xf32> to vector<2x64x8xf32>
    %393 = vector.extract_strided_slice %390 {offsets = [4, 0, 0], sizes = [2, 64, 8], strides = [1, 1, 1]} : vector<8x64x8xf32> to vector<2x64x8xf32>
    %394 = vector.extract_strided_slice %390 {offsets = [6, 0, 0], sizes = [2, 64, 8], strides = [1, 1, 1]} : vector<8x64x8xf32> to vector<2x64x8xf32>
    %395 = tpu.concatenate %391, %392, %393, %394 in 2 : vector<2x64x8xf32>, vector<2x64x8xf32>, vector<2x64x8xf32>, vector<2x64x8xf32> -> vector<2x64x32xf32>
    %396 = vector.shape_cast %395 : vector<2x64x32xf32> to vector<128x32xf32>
    %c2_127 = arith.constant 2 : index
    %c0_128 = arith.constant 0 : index
    %c0_129 = arith.constant 0 : index
    %397 = vector.load %arg7[%c2_127, %c0_128, %c0_129] : memref<3x32x32xbf16, #tpu.memory_space<vmem>>, vector<1x32x32xbf16>
    %398 = vector.shape_cast %397 : vector<1x32x32xbf16> to vector<32x32xbf16>
    %399 = arith.truncf %396 : vector<128x32xf32> to vector<128x32xbf16>
    %cst_130 = arith.constant dense<0.000000e+00> : vector<128x32xf32>
    %400 = tpu.matmul %399, %398, %cst_130 {dimension_numbers = #tpu.dot_dimension_numbers<[1], [0], [0], [1], [0, 0, 1, 1], [], []>} : vector<128x32xbf16>, vector<32x32xbf16>, vector<128x32xf32> -> vector<128x32xf32>
    %401 = vector.broadcast %6 : vector<1x32xf32> to vector<128x32xf32>
    %402 = arith.addf %400, %401 : vector<128x32xf32>
    %403 = arith.mulf %402, %402 : vector<128x32xf32>
    %cst_131 = arith.constant dense<0.000000e+00> : vector<128xf32>
    %404 = vector.multi_reduction <add>, %403, %cst_131 [1] : vector<128x32xf32> to vector<128xf32>
    %405 = vector.shape_cast %404 : vector<128xf32> to vector<128x1xf32>
    %cst_132 = arith.constant 3.200000e+01 : f32
    %406 = vector.broadcast %cst_132 : f32 to vector<128x1xf32>
    %407 = arith.divf %405, %406 : vector<128x1xf32>
    %cst_133 = arith.constant 9.99999997E-7 : f32
    %408 = vector.broadcast %cst_133 : f32 to vector<128x1xf32>
    %409 = arith.addf %407, %408 : vector<128x1xf32>
    %410 = math.rsqrt %409 : vector<128x1xf32>
    %411 = vector.broadcast %410 : vector<128x1xf32> to vector<128x32xf32>
    %412 = arith.mulf %402, %411 : vector<128x32xf32>
    %413 = arith.addf %412, %20 : vector<128x32xf32>
    %c1_134 = arith.constant 1 : index
    %c0_135 = arith.constant 0 : index
    %c0_136 = arith.constant 0 : index
    %414 = vector.load %arg9[%c1_134, %c0_135, %c0_136] : memref<3x32x64xbf16, #tpu.memory_space<vmem>>, vector<1x32x64xbf16>
    %415 = vector.shape_cast %414 : vector<1x32x64xbf16> to vector<32x64xbf16>
    %416 = arith.truncf %413 : vector<128x32xf32> to vector<128x32xbf16>
    %cst_137 = arith.constant dense<0.000000e+00> : vector<128x64xf32>
    %417 = tpu.matmul %416, %415, %cst_137 {dimension_numbers = #tpu.dot_dimension_numbers<[1], [0], [0], [1], [0, 0, 1, 1], [], []>} : vector<128x32xbf16>, vector<32x64xbf16>, vector<128x64xf32> -> vector<128x64xf32>
    %418 = vector.broadcast %8 : vector<1x64xf32> to vector<128x64xf32>
    %419 = arith.addf %417, %418 : vector<128x64xf32>
    %cst_138 = arith.constant 0.000000e+00 : f32
    %420 = vector.broadcast %cst_138 : f32 to vector<128x64xf32>
    %421 = arith.cmpf ogt, %419, %420 : vector<128x64xf32>
    %cst_139 = arith.constant 0.000000e+00 : f32
    %422 = vector.broadcast %cst_139 : f32 to vector<128x64xf32>
    %423 = arith.minimumf %419, %422 : vector<128x64xf32>
    %424 = math.exp %423 : vector<128x64xf32>
    %cst_140 = arith.constant 1.000000e+00 : f32
    %425 = vector.broadcast %cst_140 : f32 to vector<128x64xf32>
    %426 = arith.subf %424, %425 : vector<128x64xf32>
    %cst_141 = arith.constant 1.67326319 : f32
    %427 = vector.broadcast %cst_141 : f32 to vector<128x64xf32>
    %428 = arith.mulf %427, %426 : vector<128x64xf32>
    %429 = arith.select %421, %419, %428 : vector<128x64xi1>, vector<128x64xf32>
    %cst_142 = arith.constant 1.05070102 : f32
    %430 = vector.broadcast %cst_142 : f32 to vector<128x64xf32>
    %431 = arith.mulf %430, %429 : vector<128x64xf32>
    %c1_143 = arith.constant 1 : index
    %c0_144 = arith.constant 0 : index
    %c0_145 = arith.constant 0 : index
    %432 = vector.load %arg11[%c1_143, %c0_144, %c0_145] : memref<3x64x32xbf16, #tpu.memory_space<vmem>>, vector<1x64x32xbf16>
    %433 = vector.shape_cast %432 : vector<1x64x32xbf16> to vector<64x32xbf16>
    %434 = arith.truncf %431 : vector<128x64xf32> to vector<128x64xbf16>
    %cst_146 = arith.constant dense<0.000000e+00> : vector<128x32xf32>
    %435 = tpu.matmul %434, %433, %cst_146 {dimension_numbers = #tpu.dot_dimension_numbers<[1], [0], [0], [1], [0, 0, 1, 1], [], []>} : vector<128x64xbf16>, vector<64x32xbf16>, vector<128x32xf32> -> vector<128x32xf32>
    %436 = vector.broadcast %11 : vector<1x32xf32> to vector<128x32xf32>
    %437 = arith.addf %435, %436 : vector<128x32xf32>
    %438 = vector.shape_cast %437 : vector<128x32xf32> to vector<2x64x32xf32>
    %c0_147 = arith.constant 0 : index
    %c0_148 = arith.constant 0 : index
    %c0_149 = arith.constant 0 : index
    %439 = vector.load %arg13[%c0_147, %c0_148, %c0_149] : memref<2x64x32xf32, #tpu.memory_space<vmem>>, vector<2x64x32xf32>
    tpu.vector_store %arg13[%c0_147, %c0_148, %c0_149], %438 {strides = array<i32>} : memref<2x64x32xf32, #tpu.memory_space<vmem>>, vector<2x64x32xf32>,
    %c2_150 = arith.constant 2 : index
    %c0_151 = arith.constant 0 : index
    %c0_152 = arith.constant 0 : index
    %440 = vector.load %arg9[%c2_150, %c0_151, %c0_152] : memref<3x32x64xbf16, #tpu.memory_space<vmem>>, vector<1x32x64xbf16>
    %441 = vector.shape_cast %440 : vector<1x32x64xbf16> to vector<32x64xbf16>
    %442 = arith.truncf %338 : vector<32x32xf32> to vector<32x32xbf16>
    %cst_153 = arith.constant dense<0.000000e+00> : vector<32x64xf32>
    %443 = tpu.matmul %442, %441, %cst_153 {dimension_numbers = #tpu.dot_dimension_numbers<[1], [0], [0], [1], [0, 0, 1, 1], [], []>} : vector<32x32xbf16>, vector<32x64xbf16>, vector<32x64xf32> -> vector<32x64xf32>
    %444 = vector.broadcast %9 : vector<1x64xf32> to vector<32x64xf32>
    %445 = arith.addf %443, %444 : vector<32x64xf32>
    %cst_154 = arith.constant 0.000000e+00 : f32
    %446 = vector.broadcast %cst_154 : f32 to vector<32x64xf32>
    %447 = arith.cmpf ogt, %445, %446 : vector<32x64xf32>
    %cst_155 = arith.constant 0.000000e+00 : f32
    %448 = vector.broadcast %cst_155 : f32 to vector<32x64xf32>
    %449 = arith.minimumf %445, %448 : vector<32x64xf32>
    %450 = math.exp %449 : vector<32x64xf32>
    %cst_156 = arith.constant 1.000000e+00 : f32
    %451 = vector.broadcast %cst_156 : f32 to vector<32x64xf32>
    %452 = arith.subf %450, %451 : vector<32x64xf32>
    %cst_157 = arith.constant 1.67326319 : f32
    %453 = vector.broadcast %cst_157 : f32 to vector<32x64xf32>
    %454 = arith.mulf %453, %452 : vector<32x64xf32>
    %455 = arith.select %447, %445, %454 : vector<32x64xi1>, vector<32x64xf32>
    %cst_158 = arith.constant 1.05070102 : f32
    %456 = vector.broadcast %cst_158 : f32 to vector<32x64xf32>
    %457 = arith.mulf %456, %455 : vector<32x64xf32>
    %c2_159 = arith.constant 2 : index
    %c0_160 = arith.constant 0 : index
    %c0_161 = arith.constant 0 : index
    %458 = vector.load %arg11[%c2_159, %c0_160, %c0_161] : memref<3x64x32xbf16, #tpu.memory_space<vmem>>, vector<1x64x32xbf16>
    %459 = vector.shape_cast %458 : vector<1x64x32xbf16> to vector<64x32xbf16>
    %460 = arith.truncf %457 : vector<32x64xf32> to vector<32x64xbf16>
    %cst_162 = arith.constant dense<0.000000e+00> : vector<32x32xf32>
    %461 = tpu.matmul %460, %459, %cst_162 {dimension_numbers = #tpu.dot_dimension_numbers<[1], [0], [0], [1], [0, 0, 1, 1], [], []>} : vector<32x64xbf16>, vector<64x32xbf16>, vector<32x32xf32> -> vector<32x32xf32>
    %462 = vector.broadcast %12 : vector<1x32xf32> to vector<32x32xf32>
    %463 = arith.addf %461, %462 : vector<32x32xf32>
    %464 = vector.shape_cast %463 : vector<32x32xf32> to vector<2x16x32xf32>
    %c0_163 = arith.constant 0 : index
    %c0_164 = arith.constant 0 : index
    %c0_165 = arith.constant 0 : index
    %465 = vector.load %arg14[%c0_163, %c0_164, %c0_165] : memref<2x16x32xf32, #tpu.memory_space<vmem>>, vector<2x16x32xf32>
    tpu.vector_store %arg14[%c0_163, %c0_164, %c0_165], %464 {strides = array<i32>} : memref<2x16x32xf32, #tpu.memory_space<vmem>>, vector<2x16x32xf32>,
    return
  }
  func.func @transform_0(%arg0: i32) -> (i32, i32, i32) {
    %c0_i32 = arith.constant 0 : i32
    %c0_i32_0 = arith.constant 0 : i32
    %c0_i32_1 = arith.constant 0 : i32
    return %arg0, %c0_i32, %c0_i32_0 : i32, i32, i32
  }
  func.func @transform_1(%arg0: i32) -> (i32, i32, i32) {
    %c0_i32 = arith.constant 0 : i32
    %c0_i32_0 = arith.constant 0 : i32
    %c0_i32_1 = arith.constant 0 : i32
    return %arg0, %c0_i32, %c0_i32_0 : i32, i32, i32
  }
  func.func @transform_2(%arg0: i32) -> (i32, i32) {
    %c0_i32 = arith.constant 0 : i32
    %c0_i32_0 = arith.constant 0 : i32
    %c0_i32_1 = arith.constant 0 : i32
    return %c0_i32, %c0_i32_0 : i32, i32
  }
  func.func @transform_3(%arg0: i32) -> (i32, i32) {
    %c0_i32 = arith.constant 0 : i32
    %c0_i32_0 = arith.constant 0 : i32
    %c0_i32_1 = arith.constant 0 : i32
    return %c0_i32, %c0_i32_0 : i32, i32
  }
  func.func @transform_4(%arg0: i32) -> (i32, i32, i32) {
    %c0_i32 = arith.constant 0 : i32
    %c0_i32_0 = arith.constant 0 : i32
    %c0_i32_1 = arith.constant 0 : i32
    %c0_i32_2 = arith.constant 0 : i32
    return %c0_i32, %c0_i32_0, %c0_i32_1 : i32, i32, i32
  }
  func.func @transform_5(%arg0: i32) -> (i32, i32) {
    %c0_i32 = arith.constant 0 : i32
    %c0_i32_0 = arith.constant 0 : i32
    %c0_i32_1 = arith.constant 0 : i32
    return %c0_i32, %c0_i32_0 : i32, i32
  }
  func.func @transform_6(%arg0: i32) -> (i32, i32, i32) {
    %c0_i32 = arith.constant 0 : i32
    %c0_i32_0 = arith.constant 0 : i32
    %c0_i32_1 = arith.constant 0 : i32
    %c0_i32_2 = arith.constant 0 : i32
    return %c0_i32, %c0_i32_0, %c0_i32_1 : i32, i32, i32
  }
  func.func @transform_7(%arg0: i32) -> (i32, i32) {
    %c0_i32 = arith.constant 0 : i32
    %c0_i32_0 = arith.constant 0 : i32
    %c0_i32_1 = arith.constant 0 : i32
    return %c0_i32, %c0_i32_0 : i32, i32
  }
  func.func @transform_8(%arg0: i32) -> (i32, i32, i32) {
    %c0_i32 = arith.constant 0 : i32
    %c0_i32_0 = arith.constant 0 : i32
    %c0_i32_1 = arith.constant 0 : i32
    %c0_i32_2 = arith.constant 0 : i32
    return %c0_i32, %c0_i32_0, %c0_i32_1 : i32, i32, i32
  }
  func.func @transform_9(%arg0: i32) -> (i32, i32) {
    %c0_i32 = arith.constant 0 : i32
    %c0_i32_0 = arith.constant 0 : i32
    %c0_i32_1 = arith.constant 0 : i32
    return %c0_i32, %c0_i32_0 : i32, i32
  }
  func.func @transform_10(%arg0: i32) -> (i32, i32, i32) {
    %c0_i32 = arith.constant 0 : i32
    %c0_i32_0 = arith.constant 0 : i32
    %c0_i32_1 = arith.constant 0 : i32
    %c0_i32_2 = arith.constant 0 : i32
    return %c0_i32, %c0_i32_0, %c0_i32_1 : i32, i32, i32
  }
  func.func @transform_11(%arg0: i32) -> (i32, i32) {
    %c0_i32 = arith.constant 0 : i32
    %c0_i32_0 = arith.constant 0 : i32
    %c0_i32_1 = arith.constant 0 : i32
    return %c0_i32, %c0_i32_0 : i32, i32
  }
  func.func @transform_12(%arg0: i32) -> (i32, i32, i32) {
    %c0_i32 = arith.constant 0 : i32
    %c0_i32_0 = arith.constant 0 : i32
    %c0_i32_1 = arith.constant 0 : i32
    return %arg0, %c0_i32, %c0_i32_0 : i32, i32, i32
  }
  func.func @transform_13(%arg0: i32) -> (i32, i32, i32) {
    %c0_i32 = arith.constant 0 : i32
    %c0_i32_0 = arith.constant 0 : i32
    %c0_i32_1 = arith.constant 0 : i32
    return %arg0, %c0_i32, %c0_i32_0 : i32, i32, i32
  }
}

</mosaic_0001>

<llo_original>
// kernel: bidirectional_attention_forward.1
$region0: #{bidirectional_attention_forward.1}
  #allocation0 [shape = 'u32[]', space=smem, size = 0x4, offset = 0x4, fixed_abs, tag = 'smem constant byte address 0x4 - core index']
  #allocation1 [shape = 'u32[144,128]{1,0:T(1,128)}', space=vmem, size = 0x12000, scoped, tag = 'internal scratch']
  %s0 = inlined_call_operand.vmem [shape: f32[2,64,32], index: 0, kind: input, shape index: {}]
  %s1 = inlined_call_operand.vmem [shape: f32[2,16,32], index: 1, kind: input, shape index: {}]
  %s2 = inlined_call_operand.vmem [shape: bf16[32,64], index: 2, kind: input, shape index: {}]
  %s3 = inlined_call_operand.vmem [shape: f32[1,64], index: 3, kind: input, shape index: {}]
  %s4 = inlined_call_operand.vmem [shape: bf16[3,32,96], index: 4, kind: input, shape index: {}]
  %s5 = inlined_call_operand.vmem [shape: f32[3,96], index: 5, kind: input, shape index: {}]
  %s6 = inlined_call_operand.vmem [shape: bf16[3,32,32], index: 6, kind: input, shape index: {}]
  %s7 = inlined_call_operand.vmem [shape: f32[3,32], index: 7, kind: input, shape index: {}]
  %s8 = inlined_call_operand.vmem [shape: bf16[3,32,64], index: 8, kind: input, shape index: {}]
  %s9 = inlined_call_operand.vmem [shape: f32[3,64], index: 9, kind: input, shape index: {}]
  %s10 = inlined_call_operand.vmem [shape: bf16[3,64,32], index: 10, kind: input, shape index: {}]
  %s11 = inlined_call_operand.vmem [shape: f32[3,32], index: 11, kind: input, shape index: {}]
  %s12 = inlined_call_operand.hbm [shape: f32[2,64,32], index: 12, kind: output, shape index: {0}]
  %s13 = inlined_call_operand.hbm [shape: f32[2,16,32], index: 13, kind: output, shape index: {1}]
  %14 = xla_tuple %s12, %s13
  %s15 = sld [smem:[#allocation0]]
  $region66: #{bidirectional_attention_forward.1} parent=0
    _
  %s17 = ssub.s32 1, %s15
  %s18 = scalar_select 0, %s17, %s15
  $region1: #{bidirectional_attention_forward.1} parent=0
    #allocation2 [shape = 'u8[65536]{0}', space=vmem, size = 0x10000, scoped, tag = 'output window, operand 0, single buffered']
    #allocation3 [shape = 's32[1]{0}', space=sflag, size = 0x4, scoped, tag = 'scoped memory for bidirectional_attention_forward.1']
    #allocation4 [shape = 'u8[16384]{0}', space=vmem, size = 0x4000, scoped, tag = 'output window, operand 1, single buffered']
    #allocation5 [shape = 's32[1]{0}', space=sflag, size = 0x4, scoped, tag = 'scoped memory for bidirectional_attention_forward.1']
    %19 = vsyncpa [#allocation3], 0
    %20 = vsyncpa [#allocation5], 0
    // Predicated region
    $region2: #{bidirectional_attention_forward.1} parent=1 // pred_check
      _
    $region3: #{bidirectional_attention_forward.1} parent=1 // pred_check_branch
      %22 = sbr.rel (0) target = $region5
    $region4: #{bidirectional_attention_forward.1} parent=1 // pred_region
      _
    $region5: #{bidirectional_attention_forward.1} parent=1 // pred_fallthru
      _
    // Predicated region
    $region6: #{bidirectional_attention_forward.1} parent=1 // pred_check
      _
    $region7: #{bidirectional_attention_forward.1} parent=1 // pred_check_branch
      %24 = sbr.rel (0) target = $region9
    $region8: #{bidirectional_attention_forward.1} parent=1 // pred_region
      _
    $region9: #{bidirectional_attention_forward.1} parent=1 // pred_fallthru
      _
    // Predicated region
    $region10: #{bidirectional_attention_forward.1} parent=1 // pred_check
      _
    $region11: #{bidirectional_attention_forward.1} parent=1 // pred_check_branch
      %26 = sbr.rel (0) target = $region13
    $region12: #{bidirectional_attention_forward.1} parent=1 // pred_region
      _
    $region13: #{bidirectional_attention_forward.1} parent=1 // pred_fallthru
      _
    // Predicated region
    $region14: #{bidirectional_attention_forward.1} parent=1 // pred_check
      _
    $region15: #{bidirectional_attention_forward.1} parent=1 // pred_check_branch
      %28 = sbr.rel (0) target = $region17
    $region16: #{bidirectional_attention_forward.1} parent=1 // pred_region
      _
    $region17: #{bidirectional_attention_forward.1} parent=1 // pred_fallthru
      _
    // Predicated region
    $region18: #{bidirectional_attention_forward.1} parent=1 // pred_check
      _
    $region19: #{bidirectional_attention_forward.1} parent=1 // pred_check_branch
      %30 = sbr.rel (0) target = $region21
    $region20: #{bidirectional_attention_forward.1} parent=1 // pred_region
      _
    $region21: #{bidirectional_attention_forward.1} parent=1 // pred_fallthru
      _
    // Predicated region
    $region22: #{bidirectional_attention_forward.1} parent=1 // pred_check
      _
    $region23: #{bidirectional_attention_forward.1} parent=1 // pred_check_branch
      %32 = sbr.rel (0) target = $region25
    $region24: #{bidirectional_attention_forward.1} parent=1 // pred_region
      _
    $region25: #{bidirectional_attention_forward.1} parent=1 // pred_fallthru
      _
    // Predicated region
    $region26: #{bidirectional_attention_forward.1} parent=1 // pred_check
      _
    $region27: #{bidirectional_attention_forward.1} parent=1 // pred_check_branch
      %34 = sbr.rel (0) target = $region29
    $region28: #{bidirectional_attention_forward.1} parent=1 // pred_region
      _
    $region29: #{bidirectional_attention_forward.1} parent=1 // pred_fallthru
      _
    // Predicated region
    $region30: #{bidirectional_attention_forward.1} parent=1 // pred_check
      _
    $region31: #{bidirectional_attention_forward.1} parent=1 // pred_check_branch
      %36 = sbr.rel (0) target = $region33
    $region32: #{bidirectional_attention_forward.1} parent=1 // pred_region
      _
    $region33: #{bidirectional_attention_forward.1} parent=1 // pred_fallthru
      _
    // Predicated region
    $region34: #{bidirectional_attention_forward.1} parent=1 // pred_check
      _
    $region35: #{bidirectional_attention_forward.1} parent=1 // pred_check_branch
      %38 = sbr.rel (0) target = $region37
    $region36: #{bidirectional_attention_forward.1} parent=1 // pred_region
      _
    $region37: #{bidirectional_attention_forward.1} parent=1 // pred_fallthru
      _
    // Predicated region
    $region38: #{bidirectional_attention_forward.1} parent=1 // pred_check
      _
    $region39: #{bidirectional_attention_forward.1} parent=1 // pred_check_branch
      %40 = sbr.rel (0) target = $region41
    $region40: #{bidirectional_attention_forward.1} parent=1 // pred_region
      _
    $region41: #{bidirectional_attention_forward.1} parent=1 // pred_fallthru
      _
    // Predicated region
    $region42: #{bidirectional_attention_forward.1} parent=1 // pred_check
      _
    $region43: #{bidirectional_attention_forward.1} parent=1 // pred_check_branch
      %42 = sbr.rel (0) target = $region45
    $region44: #{bidirectional_attention_forward.1} parent=1 // pred_region
      _
    $region45: #{bidirectional_attention_forward.1} parent=1 // pred_fallthru
      _
    // Predicated region
    $region46: #{bidirectional_attention_forward.1} parent=1 // pred_check
      _
    $region47: #{bidirectional_attention_forward.1} parent=1 // pred_check_branch
      %44 = sbr.rel (0) target = $region49
    $region48: #{bidirectional_attention_forward.1} parent=1 // pred_region
      _
    $region49: #{bidirectional_attention_forward.1} parent=1 // pred_fallthru
      _
    %v46 = vld [vmem:[%s3] sm:$0x1]
    %v47 = vld [vmem:[%s5] sm:$0x1]
    %v48 = vld [vmem:[%s5 + $0x1] sm:$0x1]
    %v49 = vld [vmem:[%s5 + $0x2] sm:$0x1]
    %v50 = vld [vmem:[%s7] sm:$0x1]
    %v51 = vld [vmem:[%s7 + $0x1] sm:$0x1]
    %v52 = vld [vmem:[%s7 + $0x2] sm:$0x1]
    %v53 = vld [vmem:[%s9] sm:$0x1]
    %v54 = vld [vmem:[%s9 + $0x1] sm:$0x1]
    %v55 = vld [vmem:[%s9 + $0x2] sm:$0x1]
    %v56 = vld [vmem:[%s11] sm:$0x1]
    %v57 = vld [vmem:[%s11 + $0x1] sm:$0x1]
    %v58 = vld [vmem:[%s11 + $0x2] sm:$0x1]
    %v59 = vld [vmem:[%s0] sm:$0xff]
    %v60 = vld [vmem:[%s0 + $0x8] sm:$0xff]
    %v61 = vld [vmem:[%s0 + $0x10] sm:$0xff]
    %v62 = vld [vmem:[%s0 + $0x18] sm:$0xff]
    %v63 = vld [vmem:[%s0 + $0x20] sm:$0xff]
    %v64 = vld [vmem:[%s0 + $0x28] sm:$0xff]
    %v65 = vld [vmem:[%s0 + $0x30] sm:$0xff]
    %v66 = vld [vmem:[%s0 + $0x38] sm:$0xff]
    %v67 = vld [vmem:[%s0 + $0x40] sm:$0xff]
    %v68 = vld [vmem:[%s0 + $0x48] sm:$0xff]
    %v69 = vld [vmem:[%s0 + $0x50] sm:$0xff]
    %v70 = vld [vmem:[%s0 + $0x58] sm:$0xff]
    %v71 = vld [vmem:[%s0 + $0x60] sm:$0xff]
    %v72 = vld [vmem:[%s0 + $0x68] sm:$0xff]
    %v73 = vld [vmem:[%s0 + $0x70] sm:$0xff]
    %v74 = vld [vmem:[%s0 + $0x78] sm:$0xff]
    %v75 = vld [vmem:[%s2] sm:$0xf]
    %v76 = vld [vmem:[%s2 + $0x4] sm:$0xf]
    %v77 = vld [vmem:[%s2 + $0x8] sm:$0xf]
    %v78 = vld [vmem:[%s2 + $0xc] sm:$0xf]
    %v79 = vpack.c.bf16 %v60, %v59
    %v80 = vpack.c.bf16 %v62, %v61
    %v81 = vpack.c.bf16 %v64, %v63
    %v82 = vpack.c.bf16 %v66, %v65
    %v83 = vpack.c.bf16 %v68, %v67
    %v84 = vpack.c.bf16 %v70, %v69
    %v85 = vpack.c.bf16 %v72, %v71
    %v86 = vpack.c.bf16 %v74, %v73
    %v88 = vlaneseq
    %v89 = vshrl.u32 %v88, 7
    %v90 = vsub.s32 0, %v89
    %v91 = vrot.slane %v46, %v90
    %v97 = vunpack.c.l.b16 %v75
    %v98 = vunpack.c.l.b16 %v76
    %v99 = vunpack.c.l.b16 %v77
    %v100 = vunpack.c.l.b16 %v78
    %v101 = vpack.c.b16 %v98, %v97
    %v102 = vpack.c.b16 %v100, %v99
    %vm105 = vcmask 261120
    %v107 = vsel %vm105, %v79, 0
    %v110 = vsel %vm105, %v80, 0
    %v113 = vsel %vm105, %v81, 0
    %v116 = vsel %vm105, %v82, 0
    %v119 = vsel %vm105, %v83, 0
    %v122 = vsel %vm105, %v84, 0
    %v125 = vsel %vm105, %v85, 0
    %v128 = vsel %vm105, %v86, 0
    %130 = vmatprep.subr.bf16.mxu0 0
    %131 = vmatpush1.bf16.msra.mxu0 %v101
    %132 = vmatprep.subr.bf16.mxu0 0
    %133 = vmatpush1.bf16.msra.mxu0 %v102
    %134 = vmatprep.subr.bf16.mxu0 0
    %135 = vmatpush1.bf16.msra.mxu0 0
    %136 = vmatprep.subr.bf16.mxu0 0
    %137 = vmatpush1.bf16.msra.mxu0 0
    %138 = vmatprep.subr.bf16.mxu0 0
    %139 = vmatpush1.bf16.msra.mxu0 0
    %140 = vmatprep.subr.bf16.mxu0 0
    %141 = vmatpush1.bf16.msra.mxu0 0
    %142 = vmatprep.subr.bf16.mxu0 0
    %143 = vmatpush1.bf16.msra.mxu0 0
    %144 = vmatprep.subr.bf16.mxu0 0
    %145 = vmatpush1.bf16.msra.mxu0 0
    %146 = vmatprep.subr.bf16.mxu0 0
    %147 = vmatpush1.bf16.msra.mxu0 0
    %148 = vmatprep.subr.bf16.mxu0 0
    %149 = vmatpush1.bf16.msra.mxu0 0
    %150 = vmatprep.subr.bf16.mxu0 0
    %151 = vmatpush1.bf16.msra.mxu0 0
    %152 = vmatprep.subr.bf16.mxu0 0
    %153 = vmatpush1.bf16.msra.mxu0 0
    %154 = vmatprep.subr.bf16.mxu0 0
    %155 = vmatpush1.bf16.msra.mxu0 0
    %156 = vmatprep.subr.bf16.mxu0 0
    %157 = vmatpush1.bf16.msra.mxu0 0
    %158 = vmatprep.subr.bf16.mxu0 0
    %159 = vmatpush1.bf16.msra.mxu0 0
    %160 = vmatprep.subr.bf16.mxu0 0
    %161 = vmatpush1.bf16.msra.mxu0 0
    %162 = vmatprep.mubr.bf16.mxu0 0
    %163 = vmatmul.mubr.bf16.gmra.mrb[0].mxu0 %v107
    %v164 = vpop.f32.mrb[0].mxu0
    %v165 = vadd.f32 %v91, %v164
    %v166 = vpop.f32.mrb[0].mxu0
    %v167 = vpop.f32.mrb[0].mxu0
    %v168 = vadd.f32 %v91, %v167
    %v169 = vpop.f32.mrb[0].mxu0
    %170 = vmatprep.mubr.bf16.mxu0 0
    %171 = vmatmul.mubr.bf16.gmra.mrb[0].mxu0 %v110
    %v172 = vpop.f32.mrb[0].mxu0
    %v173 = vadd.f32 %v91, %v172
    %v174 = vpop.f32.mrb[0].mxu0
    %v175 = vpop.f32.mrb[0].mxu0
    %v176 = vadd.f32 %v91, %v175
    %v177 = vpop.f32.mrb[0].mxu0
    %178 = vmatprep.mubr.bf16.mxu0 0
    %179 = vmatmul.mubr.bf16.gmra.mrb[0].mxu0 %v113
    %v180 = vpop.f32.mrb[0].mxu0
    %v181 = vadd.f32 %v91, %v180
    %v182 = vpop.f32.mrb[0].mxu0
    %v183 = vpop.f32.mrb[0].mxu0
    %v184 = vadd.f32 %v91, %v183
    %v185 = vpop.f32.mrb[0].mxu0
    %186 = vmatprep.mubr.bf16.mxu0 0
    %187 = vmatmul.mubr.bf16.gmra.mrb[0].mxu0 %v116
    %v188 = vpop.f32.mrb[0].mxu0
    %v189 = vadd.f32 %v91, %v188
    %v190 = vpop.f32.mrb[0].mxu0
    %v191 = vpop.f32.mrb[0].mxu0
    %v192 = vadd.f32 %v91, %v191
    %v193 = vpop.f32.mrb[0].mxu0
    %194 = vmatprep.mubr.bf16.mxu0 0
    %195 = vmatmul.mubr.bf16.gmra.mrb[0].mxu0 %v119
    %v196 = vpop.f32.mrb[0].mxu0
    %v197 = vadd.f32 %v91, %v196
    %v198 = vpop.f32.mrb[0].mxu0
    %v199 = vpop.f32.mrb[0].mxu0
    %v200 = vadd.f32 %v91, %v199
    %v201 = vpop.f32.mrb[0].mxu0
    %202 = vmatprep.mubr.bf16.mxu0 0
    %203 = vmatmul.mubr.bf16.gmra.mrb[0].mxu0 %v122
    %v204 = vpop.f32.mrb[0].mxu0
    %v205 = vadd.f32 %v91, %v204
    %v206 = vpop.f32.mrb[0].mxu0
    %v207 = vpop.f32.mrb[0].mxu0
    %v208 = vadd.f32 %v91, %v207
    %v209 = vpop.f32.mrb[0].mxu0
    %210 = vmatprep.mubr.bf16.mxu0 0
    %211 = vmatmul.mubr.bf16.gmra.mrb[0].mxu0 %v125
    %v212 = vpop.f32.mrb[0].mxu0
    %v213 = vadd.f32 %v91, %v212
    %v214 = vpop.f32.mrb[0].mxu0
    %v215 = vpop.f32.mrb[0].mxu0
    %v216 = vadd.f32 %v91, %v215
    %v217 = vpop.f32.mrb[0].mxu0
    %218 = vmatprep.mubr.bf16.mxu0 0
    %219 = vmatmul.mubr.bf16.gmra.mrb[0].mxu0 %v128
    %v220 = vpop.f32.mrb[0].mxu0
    %v221 = vadd.f32 %v91, %v220
    %v222 = vpop.f32.mrb[0].mxu0
    %v223 = vpop.f32.mrb[0].mxu0
    %v224 = vadd.f32 %v91, %v223
    %v225 = vpop.f32.mrb[0].mxu0
    %226 = vdwg.mxu0
    %243 = vrot.lane.b32.xlu0 %v165, 96
    %v244 = vpop.permute.xlu0 %243
    %245 = vrot.lane.b32.xlu0 %v168, 96
    %v246 = vpop.permute.xlu0 %245
    %247 = vrot.lane.b32.xlu0 %v173, 96
    %v248 = vpop.permute.xlu0 %247
    %249 = vrot.lane.b32.xlu0 %v176, 96
    %v250 = vpop.permute.xlu0 %249
    %251 = vrot.lane.b32.xlu0 %v181, 96
    %v252 = vpop.permute.xlu0 %251
    %253 = vrot.lane.b32.xlu0 %v184, 96
    %v254 = vpop.permute.xlu0 %253
    %255 = vrot.lane.b32.xlu0 %v189, 96
    %v256 = vpop.permute.xlu0 %255
    %257 = vrot.lane.b32.xlu0 %v192, 96
    %v258 = vpop.permute.xlu0 %257
    %259 = vrot.lane.b32.xlu0 %v197, 96
    %v260 = vpop.permute.xlu0 %259
    %261 = vrot.lane.b32.xlu0 %v200, 96
    %v262 = vpop.permute.xlu0 %261
    %263 = vrot.lane.b32.xlu0 %v205, 96
    %v264 = vpop.permute.xlu0 %263
    %265 = vrot.lane.b32.xlu0 %v208, 96
    %v266 = vpop.permute.xlu0 %265
    %267 = vrot.lane.b32.xlu0 %v213, 96
    %v268 = vpop.permute.xlu0 %267
    %269 = vrot.lane.b32.xlu0 %v216, 96
    %v270 = vpop.permute.xlu0 %269
    %271 = vrot.lane.b32.xlu0 %v221, 96
    %v272 = vpop.permute.xlu0 %271
    %273 = vrot.lane.b32.xlu0 %v224, 96
    %v274 = vpop.permute.xlu0 %273
    %v291 = vadd.f32 %v165, %v244
    %v292 = vadd.f32 %v168, %v246
    %v293 = vadd.f32 %v173, %v248
    %v294 = vadd.f32 %v176, %v250
    %v295 = vadd.f32 %v181, %v252
    %v296 = vadd.f32 %v184, %v254
    %v297 = vadd.f32 %v189, %v256
    %v298 = vadd.f32 %v192, %v258
    %v299 = vadd.f32 %v197, %v260
    %v300 = vadd.f32 %v200, %v262
    %v301 = vadd.f32 %v205, %v264
    %v302 = vadd.f32 %v208, %v266
    %v303 = vadd.f32 %v213, %v268
    %v304 = vadd.f32 %v216, %v270
    %v305 = vadd.f32 %v221, %v272
    %v306 = vadd.f32 %v224, %v274
    %v307 = vld [vmem:[%s1] sm:$0xff]
    %v308 = vld [vmem:[%s1 + $0x8] sm:$0xff]
    %v309 = vld [vmem:[%s1 + $0x10] sm:$0xff]
    %v310 = vld [vmem:[%s1 + $0x18] sm:$0xff]
    %v311 = vld [vmem:[%s4] sm:$0xf]
    %v312 = vld [vmem:[%s4 + $0x4] sm:$0xf]
    %v313 = vld [vmem:[%s4 + $0x8] sm:$0xf]
    %v314 = vld [vmem:[%s4 + $0xc] sm:$0xf]
    %v315 = vpack.c.bf16 %v308, %v307
    %v316 = vpack.c.bf16 %v310, %v309
    %v317 = vlaneseq
    %v318 = vshrl.u32 %v317, 7
    %v319 = vsub.s32 0, %v318
    %v320 = vrot.slane %v47, %v319
    %v325 = vunpack.c.l.b16 %v311
    %v326 = vunpack.c.l.b16 %v312
    %v327 = vunpack.c.l.b16 %v313
    %v328 = vunpack.c.l.b16 %v314
    %v329 = vpack.c.b16 %v326, %v325
    %v330 = vpack.c.b16 %v328, %v327
    %v334 = vsel %vm105, %v315, 0
    %v337 = vsel %vm105, %v316, 0
    %339 = vmatprep.subr.bf16.mxu0 0
    %340 = vmatpush1.bf16.msra.mxu0 %v329
    %341 = vmatprep.subr.bf16.mxu0 0
    %342 = vmatpush1.bf16.msra.mxu0 %v330
    %343 = vmatprep.subr.bf16.mxu0 0
    %344 = vmatpush1.bf16.msra.mxu0 0
    %345 = vmatprep.subr.bf16.mxu0 0
    %346 = vmatpush1.bf16.msra.mxu0 0
    %347 = vmatprep.subr.bf16.mxu0 0
    %348 = vmatpush1.bf16.msra.mxu0 0
    %349 = vmatprep.subr.bf16.mxu0 0
    %350 = vmatpush1.bf16.msra.mxu0 0
    %351 = vmatprep.subr.bf16.mxu0 0
    %352 = vmatpush1.bf16.msra.mxu0 0
    %353 = vmatprep.subr.bf16.mxu0 0
    %354 = vmatpush1.bf16.msra.mxu0 0
    %355 = vmatprep.subr.bf16.mxu0 0
    %356 = vmatpush1.bf16.msra.mxu0 0
    %357 = vmatprep.subr.bf16.mxu0 0
    %358 = vmatpush1.bf16.msra.mxu0 0
    %359 = vmatprep.subr.bf16.mxu0 0
    %360 = vmatpush1.bf16.msra.mxu0 0
    %361 = vmatprep.subr.bf16.mxu0 0
    %362 = vmatpush1.bf16.msra.mxu0 0
    %363 = vmatprep.subr.bf16.mxu0 0
    %364 = vmatpush1.bf16.msra.mxu0 0
    %365 = vmatprep.subr.bf16.mxu0 0
    %366 = vmatpush1.bf16.msra.mxu0 0
    %367 = vmatprep.subr.bf16.mxu0 0
    %368 = vmatpush1.bf16.msra.mxu0 0
    %369 = vmatprep.subr.bf16.mxu0 0
    %370 = vmatpush1.bf16.msra.mxu0 0
    %371 = vmatprep.mubr.bf16.mxu0 0
    %372 = vmatmul.mubr.bf16.gmra.mrb[0].mxu0 %v334
    %v373 = vpop.f32.mrb[0].mxu0
    %v374 = vadd.f32 %v320, %v373
    %v375 = vpop.f32.mrb[0].mxu0
    %v376 = vpop.f32.mrb[0].mxu0
    %v377 = vadd.f32 %v320, %v376
    %v378 = vpop.f32.mrb[0].mxu0
    %379 = vmatprep.mubr.bf16.mxu0 0
    %380 = vmatmul.mubr.bf16.gmra.mrb[0].mxu0 %v337
    %v381 = vpop.f32.mrb[0].mxu0
    %v382 = vadd.f32 %v320, %v381
    %v383 = vpop.f32.mrb[0].mxu0
    %v384 = vpop.f32.mrb[0].mxu0
    %v385 = vadd.f32 %v320, %v384
    %v386 = vpop.f32.mrb[0].mxu0
    %387 = vdwg.mxu0
    %v388 = vmul.f32 %v374, 0.35355338
    %v389 = vmul.f32 %v377, 0.35355338
    %v390 = vmul.f32 %v382, 0.35355338
    %v391 = vmul.f32 %v385, 0.35355338
    %396 = vrot.lane.b32.xlu0 %v388, 120
    %v397 = vpop.permute.xlu0 %396
    %398 = vrot.lane.b32.xlu0 %v389, 120
    %v399 = vpop.permute.xlu0 %398
    %400 = vrot.lane.b32.xlu0 %v390, 120
    %v401 = vpop.permute.xlu0 %400
    %402 = vrot.lane.b32.xlu0 %v391, 120
    %v403 = vpop.permute.xlu0 %402
    %408 = vrot.lane.b32.xlu0 %v388, 112
    %v409 = vpop.permute.xlu0 %408
    %410 = vrot.lane.b32.xlu0 %v389, 112
    %v411 = vpop.permute.xlu0 %410
    %412 = vrot.lane.b32.xlu0 %v390, 112
    %v413 = vpop.permute.xlu0 %412
    %414 = vrot.lane.b32.xlu0 %v391, 112
    %v415 = vpop.permute.xlu0 %414
    %420 = vrot.lane.b32.xlu0 %v388, 104
    %v421 = vpop.permute.xlu0 %420
    %422 = vrot.lane.b32.xlu0 %v389, 104
    %v423 = vpop.permute.xlu0 %422
    %424 = vrot.lane.b32.xlu0 %v390, 104
    %v425 = vpop.permute.xlu0 %424
    %426 = vrot.lane.b32.xlu0 %v391, 104
    %v427 = vpop.permute.xlu0 %426
    %436 = vrot.lane.b32.xlu0 %v374, 120
    %v437 = vpop.permute.xlu0 %436
    %438 = vrot.lane.b32.xlu0 %v377, 120
    %v439 = vpop.permute.xlu0 %438
    %440 = vrot.lane.b32.xlu0 %v382, 120
    %v441 = vpop.permute.xlu0 %440
    %442 = vrot.lane.b32.xlu0 %v385, 120
    %v443 = vpop.permute.xlu0 %442
    %448 = vrot.lane.b32.xlu0 %v374, 112
    %v449 = vpop.permute.xlu0 %448
    %450 = vrot.lane.b32.xlu0 %v377, 112
    %v451 = vpop.permute.xlu0 %450
    %452 = vrot.lane.b32.xlu0 %v382, 112
    %v453 = vpop.permute.xlu0 %452
    %454 = vrot.lane.b32.xlu0 %v385, 112
    %v455 = vpop.permute.xlu0 %454
    %460 = vrot.lane.b32.xlu0 %v374, 104
    %v461 = vpop.permute.xlu0 %460
    %462 = vrot.lane.b32.xlu0 %v377, 104
    %v463 = vpop.permute.xlu0 %462
    %464 = vrot.lane.b32.xlu0 %v382, 104
    %v465 = vpop.permute.xlu0 %464
    %466 = vrot.lane.b32.xlu0 %v385, 104
    %v467 = vpop.permute.xlu0 %466
    %v472 = vpack.c.bf16 %v389, %v388
    %v473 = vpack.c.bf16 %v391, %v390
    %v474 = vpack.c.bf16 %v399, %v397
    %v475 = vpack.c.bf16 %v403, %v401
    %v476 = vpack.c.bf16 %v411, %v409
    %v477 = vpack.c.bf16 %v415, %v413
    %v478 = vpack.c.bf16 %v423, %v421
    %v479 = vpack.c.bf16 %v427, %v425
    %v480 = vpack.c.bf16 %v377, %v374
    %v481 = vpack.c.bf16 %v385, %v382
    %v482 = vpack.c.bf16 %v439, %v437
    %v483 = vpack.c.bf16 %v443, %v441
    %v484 = vpack.c.bf16 %v451, %v449
    %v485 = vpack.c.bf16 %v455, %v453
    %v486 = vpack.c.bf16 %v463, %v461
    %v487 = vpack.c.bf16 %v467, %v465
    %489 = vrot.lane.b32.xlu0 %v480, 96
    %v490 = vpop.permute.xlu0 %489
    %vm491 = vcmask 64512
    %v493 = vsel %vm491, %v472, 0
    %v496 = vsel %vm491, %v490, 0
    %498 = vmatprep.subr.bf16.mxu0 0
    %499 = vmatpush1.bf16.xpose.msra.mxu0 %v496
    %500 = vmatprep.subr.bf16.mxu0 0
    %501 = vmatpush1.bf16.xpose.msra.mxu0 0
    %502 = vmatprep.subr.bf16.mxu0 0
    %503 = vmatpush1.bf16.xpose.msra.mxu0 0
    %504 = vmatprep.subr.bf16.mxu0 0
    %505 = vmatpush1.bf16.xpose.msra.mxu0 0
    %506 = vmatprep.subr.bf16.mxu0 0
    %507 = vmatpush1.bf16.xpose.msra.mxu0 0
    %508 = vmatprep.subr.bf16.mxu0 0
    %509 = vmatpush1.bf16.xpose.msra.mxu0 0
    %510 = vmatprep.subr.bf16.mxu0 0
    %511 = vmatpush1.bf16.xpose.msra.mxu0 0
    %512 = vmatprep.subr.bf16.mxu0 0
    %513 = vmatpush1.bf16.xpose.msra.mxu0 0
    %514 = vmatprep.subr.bf16.mxu0 0
    %515 = vmatpush1.bf16.xpose.msra.mxu0 0
    %516 = vmatprep.subr.bf16.mxu0 0
    %517 = vmatpush1.bf16.xpose.msra.mxu0 0
    %518 = vmatprep.subr.bf16.mxu0 0
    %519 = vmatpush1.bf16.xpose.msra.mxu0 0
    %520 = vmatprep.subr.bf16.mxu0 0
    %521 = vmatpush1.bf16.xpose.msra.mxu0 0
    %522 = vmatprep.subr.bf16.mxu0 0
    %523 = vmatpush1.bf16.xpose.msra.mxu0 0
    %524 = vmatprep.subr.bf16.mxu0 0
    %525 = vmatpush1.bf16.xpose.msra.mxu0 0
    %526 = vmatprep.subr.bf16.mxu0 0
    %527 = vmatpush1.bf16.xpose.msra.mxu0 0
    %528 = vmatprep.subr.bf16.mxu0 0
    %529 = vmatpush1.bf16.xpose.msra.mxu0 0
    %530 = vmatprep.mubr.bf16.mxu0 0
    %531 = vmatmul.mubr.bf16.gmra.mrb[0].mxu0 %v493
    %v532 = vpop.f32.mrb[0].mxu0
    %v533 = vadd.f32 0.0, %v532
    %v534 = vpop.f32.mrb[0].mxu0
    %v535 = vpop.f32.mrb[0].mxu0
    %v536 = vadd.f32 0.0, %v535
    %v537 = vpop.f32.mrb[0].mxu0
    %538 = vdwg.mxu0
    %540 = vrot.lane.b32.xlu0 %v481, 96
    %v541 = vpop.permute.xlu0 %540
    %v543 = vsel %vm491, %v473, 0
    %v546 = vsel %vm491, %v541, 0
    %548 = vmatprep.subr.bf16.mxu0 0
    %549 = vmatpush1.bf16.xpose.msra.mxu0 %v546
    %550 = vmatprep.subr.bf16.mxu0 0
    %551 = vmatpush1.bf16.xpose.msra.mxu0 0
    %552 = vmatprep.subr.bf16.mxu0 0
    %553 = vmatpush1.bf16.xpose.msra.mxu0 0
    %554 = vmatprep.subr.bf16.mxu0 0
    %555 = vmatpush1.bf16.xpose.msra.mxu0 0
    %556 = vmatprep.subr.bf16.mxu0 0
    %557 = vmatpush1.bf16.xpose.msra.mxu0 0
    %558 = vmatprep.subr.bf16.mxu0 0
    %559 = vmatpush1.bf16.xpose.msra.mxu0 0
    %560 = vmatprep.subr.bf16.mxu0 0
    %561 = vmatpush1.bf16.xpose.msra.mxu0 0
    %562 = vmatprep.subr.bf16.mxu0 0
    %563 = vmatpush1.bf16.xpose.msra.mxu0 0
    %564 = vmatprep.subr.bf16.mxu0 0
    %565 = vmatpush1.bf16.xpose.msra.mxu0 0
    %566 = vmatprep.subr.bf16.mxu0 0
    %567 = vmatpush1.bf16.xpose.msra.mxu0 0
    %568 = vmatprep.subr.bf16.mxu0 0
    %569 = vmatpush1.bf16.xpose.msra.mxu0 0
    %570 = vmatprep.subr.bf16.mxu0 0
    %571 = vmatpush1.bf16.xpose.msra.mxu0 0
    %572 = vmatprep.subr.bf16.mxu0 0
    %573 = vmatpush1.bf16.xpose.msra.mxu0 0
    %574 = vmatprep.subr.bf16.mxu0 0
    %575 = vmatpush1.bf16.xpose.msra.mxu0 0
    %576 = vmatprep.subr.bf16.mxu0 0
    %577 = vmatpush1.bf16.xpose.msra.mxu0 0
    %578 = vmatprep.subr.bf16.mxu0 0
    %579 = vmatpush1.bf16.xpose.msra.mxu0 0
    %580 = vmatprep.mubr.bf16.mxu0 0
    %581 = vmatmul.mubr.bf16.gmra.mrb[0].mxu0 %v543
    %v582 = vpop.f32.mrb[0].mxu0
    %v583 = vadd.f32 0.0, %v582
    %v584 = vpop.f32.mrb[0].mxu0
    %v585 = vpop.f32.mrb[0].mxu0
    %v586 = vadd.f32 0.0, %v585
    %v587 = vpop.f32.mrb[0].mxu0
    %588 = vdwg.mxu0
    %590 = vrot.lane.b32.xlu0 %v482, 96
    %v591 = vpop.permute.xlu0 %590
    %v593 = vsel %vm491, %v474, 0
    %v596 = vsel %vm491, %v591, 0
    %598 = vmatprep.subr.bf16.mxu0 0
    %599 = vmatpush1.bf16.xpose.msra.mxu0 %v596
    %600 = vmatprep.subr.bf16.mxu0 0
    %601 = vmatpush1.bf16.xpose.msra.mxu0 0
    %602 = vmatprep.subr.bf16.mxu0 0
    %603 = vmatpush1.bf16.xpose.msra.mxu0 0
    %604 = vmatprep.subr.bf16.mxu0 0
    %605 = vmatpush1.bf16.xpose.msra.mxu0 0
    %606 = vmatprep.subr.bf16.mxu0 0
    %607 = vmatpush1.bf16.xpose.msra.mxu0 0
    %608 = vmatprep.subr.bf16.mxu0 0
    %609 = vmatpush1.bf16.xpose.msra.mxu0 0
    %610 = vmatprep.subr.bf16.mxu0 0
    %611 = vmatpush1.bf16.xpose.msra.mxu0 0
    %612 = vmatprep.subr.bf16.mxu0 0
    %613 = vmatpush1.bf16.xpose.msra.mxu0 0
    %614 = vmatprep.subr.bf16.mxu0 0
    %615 = vmatpush1.bf16.xpose.msra.mxu0 0
    %616 = vmatprep.subr.bf16.mxu0 0
    %617 = vmatpush1.bf16.xpose.msra.mxu0 0
    %618 = vmatprep.subr.bf16.mxu0 0
    %619 = vmatpush1.bf16.xpose.msra.mxu0 0
    %620 = vmatprep.subr.bf16.mxu0 0
    %621 = vmatpush1.bf16.xpose.msra.mxu0 0
    %622 = vmatprep.subr.bf16.mxu0 0
    %623 = vmatpush1.bf16.xpose.msra.mxu0 0
    %624 = vmatprep.subr.bf16.mxu0 0
    %625 = vmatpush1.bf16.xpose.msra.mxu0 0
    %626 = vmatprep.subr.bf16.mxu0 0
    %627 = vmatpush1.bf16.xpose.msra.mxu0 0
    %628 = vmatprep.subr.bf16.mxu0 0
    %629 = vmatpush1.bf16.xpose.msra.mxu0 0
    %630 = vmatprep.mubr.bf16.mxu0 0
    %631 = vmatmul.mubr.bf16.gmra.mrb[0].mxu0 %v593
    %v632 = vpop.f32.mrb[0].mxu0
    %v633 = vadd.f32 0.0, %v632
    %v634 = vpop.f32.mrb[0].mxu0
    %v635 = vpop.f32.mrb[0].mxu0
    %v636 = vadd.f32 0.0, %v635
    %v637 = vpop.f32.mrb[0].mxu0
    %638 = vdwg.mxu0
    %640 = vrot.lane.b32.xlu0 %v483, 96
    %v641 = vpop.permute.xlu0 %640
    %v643 = vsel %vm491, %v475, 0
    %v646 = vsel %vm491, %v641, 0
    %648 = vmatprep.subr.bf16.mxu0 0
    %649 = vmatpush1.bf16.xpose.msra.mxu0 %v646
    %650 = vmatprep.subr.bf16.mxu0 0
    %651 = vmatpush1.bf16.xpose.msra.mxu0 0
    %652 = vmatprep.subr.bf16.mxu0 0
    %653 = vmatpush1.bf16.xpose.msra.mxu0 0
    %654 = vmatprep.subr.bf16.mxu0 0
    %655 = vmatpush1.bf16.xpose.msra.mxu0 0
    %656 = vmatprep.subr.bf16.mxu0 0
    %657 = vmatpush1.bf16.xpose.msra.mxu0 0
    %658 = vmatprep.subr.bf16.mxu0 0
    %659 = vmatpush1.bf16.xpose.msra.mxu0 0
    %660 = vmatprep.subr.bf16.mxu0 0
    %661 = vmatpush1.bf16.xpose.msra.mxu0 0
    %662 = vmatprep.subr.bf16.mxu0 0
    %663 = vmatpush1.bf16.xpose.msra.mxu0 0
    %664 = vmatprep.subr.bf16.mxu0 0
    %665 = vmatpush1.bf16.xpose.msra.mxu0 0
    %666 = vmatprep.subr.bf16.mxu0 0
    %667 = vmatpush1.bf16.xpose.msra.mxu0 0
    %668 = vmatprep.subr.bf16.mxu0 0
    %669 = vmatpush1.bf16.xpose.msra.mxu0 0
    %670 = vmatprep.subr.bf16.mxu0 0
    %671 = vmatpush1.bf16.xpose.msra.mxu0 0
    %672 = vmatprep.subr.bf16.mxu0 0
    %673 = vmatpush1.bf16.xpose.msra.mxu0 0
    %674 = vmatprep.subr.bf16.mxu0 0
    %675 = vmatpush1.bf16.xpose.msra.mxu0 0
    %676 = vmatprep.subr.bf16.mxu0 0
    %677 = vmatpush1.bf16.xpose.msra.mxu0 0
    %678 = vmatprep.subr.bf16.mxu0 0
    %679 = vmatpush1.bf16.xpose.msra.mxu0 0
    %680 = vmatprep.mubr.bf16.mxu0 0
    %681 = vmatmul.mubr.bf16.gmra.mrb[0].mxu0 %v643
    %v682 = vpop.f32.mrb[0].mxu0
    %v683 = vadd.f32 0.0, %v682
    %v684 = vpop.f32.mrb[0].mxu0
    %v685 = vpop.f32.mrb[0].mxu0
    %v686 = vadd.f32 0.0, %v685
    %v687 = vpop.f32.mrb[0].mxu0
    %688 = vdwg.mxu0
    %690 = vrot.lane.b32.xlu0 %v484, 96
    %v691 = vpop.permute.xlu0 %690
    %v693 = vsel %vm491, %v476, 0
    %v696 = vsel %vm491, %v691, 0
    %698 = vmatprep.subr.bf16.mxu0 0
    %699 = vmatpush1.bf16.xpose.msra.mxu0 %v696
    %700 = vmatprep.subr.bf16.mxu0 0
    %701 = vmatpush1.bf16.xpose.msra.mxu0 0
    %702 = vmatprep.subr.bf16.mxu0 0
    %703 = vmatpush1.bf16.xpose.msra.mxu0 0
    %704 = vmatprep.subr.bf16.mxu0 0
    %705 = vmatpush1.bf16.xpose.msra.mxu0 0
    %706 = vmatprep.subr.bf16.mxu0 0
    %707 = vmatpush1.bf16.xpose.msra.mxu0 0
    %708 = vmatprep.subr.bf16.mxu0 0
    %709 = vmatpush1.bf16.xpose.msra.mxu0 0
    %710 = vmatprep.subr.bf16.mxu0 0
    %711 = vmatpush1.bf16.xpose.msra.mxu0 0
    %712 = vmatprep.subr.bf16.mxu0 0
    %713 = vmatpush1.bf16.xpose.msra.mxu0 0
    %714 = vmatprep.subr.bf16.mxu0 0
    %715 = vmatpush1.bf16.xpose.msra.mxu0 0
    %716 = vmatprep.subr.bf16.mxu0 0
    %717 = vmatpush1.bf16.xpose.msra.mxu0 0
    %718 = vmatprep.subr.bf16.mxu0 0
    %719 = vmatpush1.bf16.xpose.msra.mxu0 0
    %720 = vmatprep.subr.bf16.mxu0 0
    %721 = vmatpush1.bf16.xpose.msra.mxu0 0
    %722 = vmatprep.subr.bf16.mxu0 0
    %723 = vmatpush1.bf16.xpose.msra.mxu0 0
    %724 = vmatprep.subr.bf16.mxu0 0
    %725 = vmatpush1.bf16.xpose.msra.mxu0 0
    %726 = vmatprep.subr.bf16.mxu0 0
    %727 = vmatpush1.bf16.xpose.msra.mxu0 0
    %728 = vmatprep.subr.bf16.mxu0 0
    %729 = vmatpush1.bf16.xpose.msra.mxu0 0
    %730 = vmatprep.mubr.bf16.mxu0 0
    %731 = vmatmul.mubr.bf16.gmra.mrb[0].mxu0 %v693
    %v732 = vpop.f32.mrb[0].mxu0
    %v733 = vadd.f32 0.0, %v732
    %v734 = vpop.f32.mrb[0].mxu0
    %v735 = vpop.f32.mrb[0].mxu0
    %v736 = vadd.f32 0.0, %v735
    %v737 = vpop.f32.mrb[0].mxu0
    %738 = vdwg.mxu0
    %740 = vrot.lane.b32.xlu0 %v485, 96
    %v741 = vpop.permute.xlu0 %740
    %v743 = vsel %vm491, %v477, 0
    %v746 = vsel %vm491, %v741, 0
    %748 = vmatprep.subr.bf16.mxu0 0
    %749 = vmatpush1.bf16.xpose.msra.mxu0 %v746
    %750 = vmatprep.subr.bf16.mxu0 0
    %751 = vmatpush1.bf16.xpose.msra.mxu0 0
    %752 = vmatprep.subr.bf16.mxu0 0
    %753 = vmatpush1.bf16.xpose.msra.mxu0 0
    %754 = vmatprep.subr.bf16.mxu0 0
    %755 = vmatpush1.bf16.xpose.msra.mxu0 0
    %756 = vmatprep.subr.bf16.mxu0 0
    %757 = vmatpush1.bf16.xpose.msra.mxu0 0
    %758 = vmatprep.subr.bf16.mxu0 0
    %759 = vmatpush1.bf16.xpose.msra.mxu0 0
    %760 = vmatprep.subr.bf16.mxu0 0
    %761 = vmatpush1.bf16.xpose.msra.mxu0 0
    %762 = vmatprep.subr.bf16.mxu0 0
    %763 = vmatpush1.bf16.xpose.msra.mxu0 0
    %764 = vmatprep.subr.bf16.mxu0 0
    %765 = vmatpush1.bf16.xpose.msra.mxu0 0
    %766 = vmatprep.subr.bf16.mxu0 0
    %767 = vmatpush1.bf16.xpose.msra.mxu0 0
    %768 = vmatprep.subr.bf16.mxu0 0
    %769 = vmatpush1.bf16.xpose.msra.mxu0 0
    %770 = vmatprep.subr.bf16.mxu0 0
    %771 = vmatpush1.bf16.xpose.msra.mxu0 0
    %772 = vmatprep.subr.bf16.mxu0 0
    %773 = vmatpush1.bf16.xpose.msra.mxu0 0
    %774 = vmatprep.subr.bf16.mxu0 0
    %775 = vmatpush1.bf16.xpose.msra.mxu0 0
    %776 = vmatprep.subr.bf16.mxu0 0
    %777 = vmatpush1.bf16.xpose.msra.mxu0 0
    %778 = vmatprep.subr.bf16.mxu0 0
    %779 = vmatpush1.bf16.xpose.msra.mxu0 0
    %780 = vmatprep.mubr.bf16.mxu0 0
    %781 = vmatmul.mubr.bf16.gmra.mrb[0].mxu0 %v743
    %v782 = vpop.f32.mrb[0].mxu0
    %v783 = vadd.f32 0.0, %v782
    %v784 = vpop.f32.mrb[0].mxu0
    %v785 = vpop.f32.mrb[0].mxu0
    %v786 = vadd.f32 0.0, %v785
    %v787 = vpop.f32.mrb[0].mxu0
    %788 = vdwg.mxu0
    %790 = vrot.lane.b32.xlu0 %v486, 96
    %v791 = vpop.permute.xlu0 %790
    %v793 = vsel %vm491, %v478, 0
    %v796 = vsel %vm491, %v791, 0
    %798 = vmatprep.subr.bf16.mxu0 0
    %799 = vmatpush1.bf16.xpose.msra.mxu0 %v796
    %800 = vmatprep.subr.bf16.mxu0 0
    %801 = vmatpush1.bf16.xpose.msra.mxu0 0
    %802 = vmatprep.subr.bf16.mxu0 0
    %803 = vmatpush1.bf16.xpose.msra.mxu0 0
    %804 = vmatprep.subr.bf16.mxu0 0
    %805 = vmatpush1.bf16.xpose.msra.mxu0 0
    %806 = vmatprep.subr.bf16.mxu0 0
    %807 = vmatpush1.bf16.xpose.msra.mxu0 0
    %808 = vmatprep.subr.bf16.mxu0 0
    %809 = vmatpush1.bf16.xpose.msra.mxu0 0
    %810 = vmatprep.subr.bf16.mxu0 0
    %811 = vmatpush1.bf16.xpose.msra.mxu0 0
    %812 = vmatprep.subr.bf16.mxu0 0
    %813 = vmatpush1.bf16.xpose.msra.mxu0 0
    %814 = vmatprep.subr.bf16.mxu0 0
    %815 = vmatpush1.bf16.xpose.msra.mxu0 0
    %816 = vmatprep.subr.bf16.mxu0 0
    %817 = vmatpush1.bf16.xpose.msra.mxu0 0
    %818 = vmatprep.subr.bf16.mxu0 0
    %819 = vmatpush1.bf16.xpose.msra.mxu0 0
    %820 = vmatprep.subr.bf16.mxu0 0
    %821 = vmatpush1.bf16.xpose.msra.mxu0 0
    %822 = vmatprep.subr.bf16.mxu0 0
    %823 = vmatpush1.bf16.xpose.msra.mxu0 0
    %824 = vmatprep.subr.bf16.mxu0 0
    %825 = vmatpush1.bf16.xpose.msra.mxu0 0
    %826 = vmatprep.subr.bf16.mxu0 0
    %827 = vmatpush1.bf16.xpose.msra.mxu0 0
    %828 = vmatprep.subr.bf16.mxu0 0
    %829 = vmatpush1.bf16.xpose.msra.mxu0 0
    %830 = vmatprep.mubr.bf16.mxu0 0
    %831 = vmatmul.mubr.bf16.gmra.mrb[0].mxu0 %v793
    %v832 = vpop.f32.mrb[0].mxu0
    %v833 = vadd.f32 0.0, %v832
    %v834 = vpop.f32.mrb[0].mxu0
    %v835 = vpop.f32.mrb[0].mxu0
    %v836 = vadd.f32 0.0, %v835
    %v837 = vpop.f32.mrb[0].mxu0
    %838 = vdwg.mxu0
    %840 = vrot.lane.b32.xlu0 %v487, 96
    %v841 = vpop.permute.xlu0 %840
    %v843 = vsel %vm491, %v479, 0
    %v846 = vsel %vm491, %v841, 0
    %848 = vmatprep.subr.bf16.mxu0 0
    %849 = vmatpush1.bf16.xpose.msra.mxu0 %v846
    %850 = vmatprep.subr.bf16.mxu0 0
    %851 = vmatpush1.bf16.xpose.msra.mxu0 0
    %852 = vmatprep.subr.bf16.mxu0 0
    %853 = vmatpush1.bf16.xpose.msra.mxu0 0
    %854 = vmatprep.subr.bf16.mxu0 0
    %855 = vmatpush1.bf16.xpose.msra.mxu0 0
    %856 = vmatprep.subr.bf16.mxu0 0
    %857 = vmatpush1.bf16.xpose.msra.mxu0 0
    %858 = vmatprep.subr.bf16.mxu0 0
    %859 = vmatpush1.bf16.xpose.msra.mxu0 0
    %860 = vmatprep.subr.bf16.mxu0 0
    %861 = vmatpush1.bf16.xpose.msra.mxu0 0
    %862 = vmatprep.subr.bf16.mxu0 0
    %863 = vmatpush1.bf16.xpose.msra.mxu0 0
    %864 = vmatprep.subr.bf16.mxu0 0
    %865 = vmatpush1.bf16.xpose.msra.mxu0 0
    %866 = vmatprep.subr.bf16.mxu0 0
    %867 = vmatpush1.bf16.xpose.msra.mxu0 0
    %868 = vmatprep.subr.bf16.mxu0 0
    %869 = vmatpush1.bf16.xpose.msra.mxu0 0
    %870 = vmatprep.subr.bf16.mxu0 0
    %871 = vmatpush1.bf16.xpose.msra.mxu0 0
    %872 = vmatprep.subr.bf16.mxu0 0
    %873 = vmatpush1.bf16.xpose.msra.mxu0 0
    %874 = vmatprep.subr.bf16.mxu0 0
    %875 = vmatpush1.bf16.xpose.msra.mxu0 0
    %876 = vmatprep.subr.bf16.mxu0 0
    %877 = vmatpush1.bf16.xpose.msra.mxu0 0
    %878 = vmatprep.subr.bf16.mxu0 0
    %879 = vmatpush1.bf16.xpose.msra.mxu0 0
    %880 = vmatprep.mubr.bf16.mxu0 0
    %881 = vmatmul.mubr.bf16.gmra.mrb[0].mxu0 %v843
    %v882 = vpop.f32.mrb[0].mxu0
    %v883 = vadd.f32 0.0, %v882
    %v884 = vpop.f32.mrb[0].mxu0
    %v885 = vpop.f32.mrb[0].mxu0
    %v886 = vadd.f32 0.0, %v885
    %v887 = vpop.f32.mrb[0].mxu0
    %888 = vdwg.mxu0
    %vm889 = vcmask 130048
    %v890 = vsel %vm889, %v533, -inf
    %891 = vmax.xlane.f32.xlu0 %v890
    %v892 = vpop.xlane.xlu0 %891
    %v893 = vsel %vm889, %v536, -inf
    %894 = vmax.xlane.f32.xlu0 %v893
    %v895 = vpop.xlane.xlu0 %894
    %v896 = vsel %vm889, %v583, -inf
    %897 = vmax.xlane.f32.xlu0 %v896
    %v898 = vpop.xlane.xlu0 %897
    %v899 = vsel %vm889, %v586, -inf
    %900 = vmax.xlane.f32.xlu0 %v899
    %v901 = vpop.xlane.xlu0 %900
    %v902 = vsel %vm889, %v633, -inf
    %903 = vmax.xlane.f32.xlu0 %v902
    %v904 = vpop.xlane.xlu0 %903
    %v905 = vsel %vm889, %v636, -inf
    %906 = vmax.xlane.f32.xlu0 %v905
    %v907 = vpop.xlane.xlu0 %906
    %v908 = vsel %vm889, %v683, -inf
    %909 = vmax.xlane.f32.xlu0 %v908
    %v910 = vpop.xlane.xlu0 %909
    %v911 = vsel %vm889, %v686, -inf
    %912 = vmax.xlane.f32.xlu0 %v911
    %v913 = vpop.xlane.xlu0 %912
    %v914 = vsel %vm889, %v733, -inf
    %915 = vmax.xlane.f32.xlu0 %v914
    %v916 = vpop.xlane.xlu0 %915
    %v917 = vsel %vm889, %v736, -inf
    %918 = vmax.xlane.f32.xlu0 %v917
    %v919 = vpop.xlane.xlu0 %918
    %v920 = vsel %vm889, %v783, -inf
    %921 = vmax.xlane.f32.xlu0 %v920
    %v922 = vpop.xlane.xlu0 %921
    %v923 = vsel %vm889, %v786, -inf
    %924 = vmax.xlane.f32.xlu0 %v923
    %v925 = vpop.xlane.xlu0 %924
    %v926 = vsel %vm889, %v833, -inf
    %927 = vmax.xlane.f32.xlu0 %v926
    %v928 = vpop.xlane.xlu0 %927
    %v929 = vsel %vm889, %v836, -inf
    %930 = vmax.xlane.f32.xlu0 %v929
    %v931 = vpop.xlane.xlu0 %930
    %v932 = vsel %vm889, %v883, -inf
    %933 = vmax.xlane.f32.xlu0 %v932
    %v934 = vpop.xlane.xlu0 %933
    %v935 = vsel %vm889, %v886, -inf
    %936 = vmax.xlane.f32.xlu0 %v935
    %v937 = vpop.xlane.xlu0 %936
    %v938 = vsub.f32 %v533, %v892
    %v939 = vsub.f32 %v536, %v895
    %v940 = vsub.f32 %v583, %v898
    %v941 = vsub.f32 %v586, %v901
    %v942 = vsub.f32 %v633, %v904
    %v943 = vsub.f32 %v636, %v907
    %v944 = vsub.f32 %v683, %v910
    %v945 = vsub.f32 %v686, %v913
    %v946 = vsub.f32 %v733, %v916
    %v947 = vsub.f32 %v736, %v919
    %v948 = vsub.f32 %v783, %v922
    %v949 = vsub.f32 %v786, %v925
    %v950 = vsub.f32 %v833, %v928
    %v951 = vsub.f32 %v836, %v931
    %v952 = vsub.f32 %v883, %v934
    %v953 = vsub.f32 %v886, %v937
    %v954 = vmul.f32 %v938, 1.442695
    %v955 = vpow.pop %v954
    %v956 = vmul.f32 %v939, 1.442695
    %v957 = vpow.pop %v956
    %v958 = vmul.f32 %v940, 1.442695
    %v959 = vpow.pop %v958
    %v960 = vmul.f32 %v941, 1.442695
    %v961 = vpow.pop %v960
    %v962 = vmul.f32 %v942, 1.442695
    %v963 = vpow.pop %v962
    %v964 = vmul.f32 %v943, 1.442695
    %v965 = vpow.pop %v964
    %v966 = vmul.f32 %v944, 1.442695
    %v967 = vpow.pop %v966
    %v968 = vmul.f32 %v945, 1.442695
    %v969 = vpow.pop %v968
    %v970 = vmul.f32 %v946, 1.442695
    %v971 = vpow.pop %v970
    %v972 = vmul.f32 %v947, 1.442695
    %v973 = vpow.pop %v972
    %v974 = vmul.f32 %v948, 1.442695
    %v975 = vpow.pop %v974
    %v976 = vmul.f32 %v949, 1.442695
    %v977 = vpow.pop %v976
    %v978 = vmul.f32 %v950, 1.442695
    %v979 = vpow.pop %v978
    %v980 = vmul.f32 %v951, 1.442695
    %v981 = vpow.pop %v980
    %v982 = vmul.f32 %v952, 1.442695
    %v983 = vpow.pop %v982
    %v984 = vmul.f32 %v953, 1.442695
    %v985 = vpow.pop %v984
    %v986 = vsel %vm889, %v955, 0.0
    %987 = vadd.xlane.f32.xlu0 %v986
    %v988 = vpop.xlane.xlu0 %987
    %v989 = vsel %vm889, %v957, 0.0
    %990 = vadd.xlane.f32.xlu0 %v989
    %v991 = vpop.xlane.xlu0 %990
    %v992 = vsel %vm889, %v959, 0.0
    %993 = vadd.xlane.f32.xlu0 %v992
    %v994 = vpop.xlane.xlu0 %993
    %v995 = vsel %vm889, %v961, 0.0
    %996 = vadd.xlane.f32.xlu0 %v995
    %v997 = vpop.xlane.xlu0 %996
    %v998 = vsel %vm889, %v963, 0.0
    %999 = vadd.xlane.f32.xlu0 %v998
    %v1000 = vpop.xlane.xlu0 %999
    %v1001 = vsel %vm889, %v965, 0.0
    %1002 = vadd.xlane.f32.xlu0 %v1001
    %v1003 = vpop.xlane.xlu0 %1002
    %v1004 = vsel %vm889, %v967, 0.0
    %1005 = vadd.xlane.f32.xlu0 %v1004
    %v1006 = vpop.xlane.xlu0 %1005
    %v1007 = vsel %vm889, %v969, 0.0
    %1008 = vadd.xlane.f32.xlu0 %v1007
    %v1009 = vpop.xlane.xlu0 %1008
    %v1010 = vsel %vm889, %v971, 0.0
    %1011 = vadd.xlane.f32.xlu0 %v1010
    %v1012 = vpop.xlane.xlu0 %1011
    %v1013 = vsel %vm889, %v973, 0.0
    %1014 = vadd.xlane.f32.xlu0 %v1013
    %v1015 = vpop.xlane.xlu0 %1014
    %v1016 = vsel %vm889, %v975, 0.0
    %1017 = vadd.xlane.f32.xlu0 %v1016
    %v1018 = vpop.xlane.xlu0 %1017
    %v1019 = vsel %vm889, %v977, 0.0
    %1020 = vadd.xlane.f32.xlu0 %v1019
    %v1021 = vpop.xlane.xlu0 %1020
    %v1022 = vsel %vm889, %v979, 0.0
    %1023 = vadd.xlane.f32.xlu0 %v1022
    %v1024 = vpop.xlane.xlu0 %1023
    %v1025 = vsel %vm889, %v981, 0.0
    %1026 = vadd.xlane.f32.xlu0 %v1025
    %v1027 = vpop.xlane.xlu0 %1026
    %v1028 = vsel %vm889, %v983, 0.0
    %1029 = vadd.xlane.f32.xlu0 %v1028
    %v1030 = vpop.xlane.xlu0 %1029
    %v1031 = vsel %vm889, %v985, 0.0
    %1032 = vadd.xlane.f32.xlu0 %v1031
    %v1033 = vpop.xlane.xlu0 %1032
    %v1034 = vrcp.pop %v988
    %v1035 = vrcp.pop %v991
    %v1036 = vrcp.pop %v994
    %v1037 = vrcp.pop %v997
    %v1038 = vrcp.pop %v1000
    %v1039 = vrcp.pop %v1003
    %v1040 = vrcp.pop %v1006
    %v1041 = vrcp.pop %v1009
    %v1042 = vrcp.pop %v1012
    %v1043 = vrcp.pop %v1015
    %v1044 = vrcp.pop %v1018
    %v1045 = vrcp.pop %v1021
    %v1046 = vrcp.pop %v1024
    %v1047 = vrcp.pop %v1027
    %v1048 = vrcp.pop %v1030
    %v1049 = vrcp.pop %v1033
    %v1050 = vmul.f32 %v955, %v1034
    %v1051 = vmul.f32 %v957, %v1035
    %v1052 = vmul.f32 %v959, %v1036
    %v1053 = vmul.f32 %v961, %v1037
    %v1054 = vmul.f32 %v963, %v1038
    %v1055 = vmul.f32 %v965, %v1039
    %v1056 = vmul.f32 %v967, %v1040
    %v1057 = vmul.f32 %v969, %v1041
    %v1058 = vmul.f32 %v971, %v1042
    %v1059 = vmul.f32 %v973, %v1043
    %v1060 = vmul.f32 %v975, %v1044
    %v1061 = vmul.f32 %v977, %v1045
    %v1062 = vmul.f32 %v979, %v1046
    %v1063 = vmul.f32 %v981, %v1047
    %v1064 = vmul.f32 %v983, %v1048
    %v1065 = vmul.f32 %v985, %v1049
    %v1066 = vpack.c.bf16 %v1051, %v1050
    %v1067 = vpack.c.bf16 %v1053, %v1052
    %v1068 = vpack.c.bf16 %v1055, %v1054
    %v1069 = vpack.c.bf16 %v1057, %v1056
    %v1070 = vpack.c.bf16 %v1059, %v1058
    %v1071 = vpack.c.bf16 %v1061, %v1060
    %v1072 = vpack.c.bf16 %v1063, %v1062
    %v1073 = vpack.c.bf16 %v1065, %v1064
    %1074 = vrot.lane.b32.xlu0 %v480, 64
    %v1075 = vpop.permute.xlu0 %1074
    %v1078 = vsel %vm889, %v1066, 0
    %1080 = vmatprep.subr.bf16.mxu0 0
    %1081 = vmatpush1.bf16.msra.mxu0 %v1075
    %1082 = vmatprep.subr.bf16.mxu0 0
    %1083 = vmatpush1.bf16.msra.mxu0 0
    %1084 = vmatprep.subr.bf16.mxu0 0
    %1085 = vmatpush1.bf16.msra.mxu0 0
    %1086 = vmatprep.subr.bf16.mxu0 0
    %1087 = vmatpush1.bf16.msra.mxu0 0
    %1088 = vmatprep.subr.bf16.mxu0 0
    %1089 = vmatpush1.bf16.msra.mxu0 0
    %1090 = vmatprep.subr.bf16.mxu0 0
    %1091 = vmatpush1.bf16.msra.mxu0 0
    %1092 = vmatprep.subr.bf16.mxu0 0
    %1093 = vmatpush1.bf16.msra.mxu0 0
    %1094 = vmatprep.subr.bf16.mxu0 0
    %1095 = vmatpush1.bf16.msra.mxu0 0
    %1096 = vmatprep.subr.bf16.mxu0 0
    %1097 = vmatpush1.bf16.msra.mxu0 0
    %1098 = vmatprep.subr.bf16.mxu0 0
    %1099 = vmatpush1.bf16.msra.mxu0 0
    %1100 = vmatprep.subr.bf16.mxu0 0
    %1101 = vmatpush1.bf16.msra.mxu0 0
    %1102 = vmatprep.subr.bf16.mxu0 0
    %1103 = vmatpush1.bf16.msra.mxu0 0
    %1104 = vmatprep.subr.bf16.mxu0 0
    %1105 = vmatpush1.bf16.msra.mxu0 0
    %1106 = vmatprep.subr.bf16.mxu0 0
    %1107 = vmatpush1.bf16.msra.mxu0 0
    %1108 = vmatprep.subr.bf16.mxu0 0
    %1109 = vmatpush1.bf16.msra.mxu0 0
    %1110 = vmatprep.subr.bf16.mxu0 0
    %1111 = vmatpush1.bf16.msra.mxu0 0
    %1112 = vmatprep.mubr.bf16.mxu0 0
    %1113 = vmatmul.mubr.bf16.gmra.mrb[0].mxu0 %v1078
    %v1114 = vpop.f32.mrb[0].mxu0
    %v1115 = vadd.f32 0.0, %v1114
    %v1116 = vpop.f32.mrb[0].mxu0
    %v1117 = vpop.f32.mrb[0].mxu0
    %v1118 = vadd.f32 0.0, %v1117
    %v1119 = vpop.f32.mrb[0].mxu0
    %1120 = vdwg.mxu0
    %1121 = vrot.lane.b32.xlu0 %v481, 64
    %v1122 = vpop.permute.xlu0 %1121
    %v1125 = vsel %vm889, %v1067, 0
    %1127 = vmatprep.subr.bf16.mxu0 0
    %1128 = vmatpush1.bf16.msra.mxu0 %v1122
    %1129 = vmatprep.subr.bf16.mxu0 0
    %1130 = vmatpush1.bf16.msra.mxu0 0
    %1131 = vmatprep.subr.bf16.mxu0 0
    %1132 = vmatpush1.bf16.msra.mxu0 0
    %1133 = vmatprep.subr.bf16.mxu0 0
    %1134 = vmatpush1.bf16.msra.mxu0 0
    %1135 = vmatprep.subr.bf16.mxu0 0
    %1136 = vmatpush1.bf16.msra.mxu0 0
    %1137 = vmatprep.subr.bf16.mxu0 0
    %1138 = vmatpush1.bf16.msra.mxu0 0
    %1139 = vmatprep.subr.bf16.mxu0 0
    %1140 = vmatpush1.bf16.msra.mxu0 0
    %1141 = vmatprep.subr.bf16.mxu0 0
    %1142 = vmatpush1.bf16.msra.mxu0 0
    %1143 = vmatprep.subr.bf16.mxu0 0
    %1144 = vmatpush1.bf16.msra.mxu0 0
    %1145 = vmatprep.subr.bf16.mxu0 0
    %1146 = vmatpush1.bf16.msra.mxu0 0
    %1147 = vmatprep.subr.bf16.mxu0 0
    %1148 = vmatpush1.bf16.msra.mxu0 0
    %1149 = vmatprep.subr.bf16.mxu0 0
    %1150 = vmatpush1.bf16.msra.mxu0 0
    %1151 = vmatprep.subr.bf16.mxu0 0
    %1152 = vmatpush1.bf16.msra.mxu0 0
    %1153 = vmatprep.subr.bf16.mxu0 0
    %1154 = vmatpush1.bf16.msra.mxu0 0
    %1155 = vmatprep.subr.bf16.mxu0 0
    %1156 = vmatpush1.bf16.msra.mxu0 0
    %1157 = vmatprep.subr.bf16.mxu0 0
    %1158 = vmatpush1.bf16.msra.mxu0 0
    %1159 = vmatprep.mubr.bf16.mxu0 0
    %1160 = vmatmul.mubr.bf16.gmra.mrb[0].mxu0 %v1125
    %v1161 = vpop.f32.mrb[0].mxu0
    %v1162 = vadd.f32 0.0, %v1161
    %v1163 = vpop.f32.mrb[0].mxu0
    %v1164 = vpop.f32.mrb[0].mxu0
    %v1165 = vadd.f32 0.0, %v1164
    %v1166 = vpop.f32.mrb[0].mxu0
    %1167 = vdwg.mxu0
    %1168 = vrot.lane.b32.xlu0 %v482, 64
    %v1169 = vpop.permute.xlu0 %1168
    %v1172 = vsel %vm889, %v1068, 0
    %1174 = vmatprep.subr.bf16.mxu0 0
    %1175 = vmatpush1.bf16.msra.mxu0 %v1169
    %1176 = vmatprep.subr.bf16.mxu0 0
    %1177 = vmatpush1.bf16.msra.mxu0 0
    %1178 = vmatprep.subr.bf16.mxu0 0
    %1179 = vmatpush1.bf16.msra.mxu0 0
    %1180 = vmatprep.subr.bf16.mxu0 0
    %1181 = vmatpush1.bf16.msra.mxu0 0
    %1182 = vmatprep.subr.bf16.mxu0 0
    %1183 = vmatpush1.bf16.msra.mxu0 0
    %1184 = vmatprep.subr.bf16.mxu0 0
    %1185 = vmatpush1.bf16.msra.mxu0 0
    %1186 = vmatprep.subr.bf16.mxu0 0
    %1187 = vmatpush1.bf16.msra.mxu0 0
    %1188 = vmatprep.subr.bf16.mxu0 0
    %1189 = vmatpush1.bf16.msra.mxu0 0
    %1190 = vmatprep.subr.bf16.mxu0 0
    %1191 = vmatpush1.bf16.msra.mxu0 0
    %1192 = vmatprep.subr.bf16.mxu0 0
    %1193 = vmatpush1.bf16.msra.mxu0 0
    %1194 = vmatprep.subr.bf16.mxu0 0
    %1195 = vmatpush1.bf16.msra.mxu0 0
    %1196 = vmatprep.subr.bf16.mxu0 0
    %1197 = vmatpush1.bf16.msra.mxu0 0
    %1198 = vmatprep.subr.bf16.mxu0 0
    %1199 = vmatpush1.bf16.msra.mxu0 0
    %1200 = vmatprep.subr.bf16.mxu0 0
    %1201 = vmatpush1.bf16.msra.mxu0 0
    %1202 = vmatprep.subr.bf16.mxu0 0
    %1203 = vmatpush1.bf16.msra.mxu0 0
    %1204 = vmatprep.subr.bf16.mxu0 0
    %1205 = vmatpush1.bf16.msra.mxu0 0
    %1206 = vmatprep.mubr.bf16.mxu0 0
    %1207 = vmatmul.mubr.bf16.gmra.mrb[0].mxu0 %v1172
    %v1208 = vpop.f32.mrb[0].mxu0
    %v1209 = vadd.f32 0.0, %v1208
    %v1210 = vpop.f32.mrb[0].mxu0
    %v1211 = vpop.f32.mrb[0].mxu0
    %v1212 = vadd.f32 0.0, %v1211
    %v1213 = vpop.f32.mrb[0].mxu0
    %1214 = vdwg.mxu0
    %1215 = vrot.lane.b32.xlu0 %v483, 64
    %v1216 = vpop.permute.xlu0 %1215
    %v1219 = vsel %vm889, %v1069, 0
    %1221 = vmatprep.subr.bf16.mxu0 0
    %1222 = vmatpush1.bf16.msra.mxu0 %v1216
    %1223 = vmatprep.subr.bf16.mxu0 0
    %1224 = vmatpush1.bf16.msra.mxu0 0
    %1225 = vmatprep.subr.bf16.mxu0 0
    %1226 = vmatpush1.bf16.msra.mxu0 0
    %1227 = vmatprep.subr.bf16.mxu0 0
    %1228 = vmatpush1.bf16.msra.mxu0 0
    %1229 = vmatprep.subr.bf16.mxu0 0
    %1230 = vmatpush1.bf16.msra.mxu0 0
    %1231 = vmatprep.subr.bf16.mxu0 0
    %1232 = vmatpush1.bf16.msra.mxu0 0
    %1233 = vmatprep.subr.bf16.mxu0 0
    %1234 = vmatpush1.bf16.msra.mxu0 0
    %1235 = vmatprep.subr.bf16.mxu0 0
    %1236 = vmatpush1.bf16.msra.mxu0 0
    %1237 = vmatprep.subr.bf16.mxu0 0
    %1238 = vmatpush1.bf16.msra.mxu0 0
    %1239 = vmatprep.subr.bf16.mxu0 0
    %1240 = vmatpush1.bf16.msra.mxu0 0
    %1241 = vmatprep.subr.bf16.mxu0 0
    %1242 = vmatpush1.bf16.msra.mxu0 0
    %1243 = vmatprep.subr.bf16.mxu0 0
    %1244 = vmatpush1.bf16.msra.mxu0 0
    %1245 = vmatprep.subr.bf16.mxu0 0
    %1246 = vmatpush1.bf16.msra.mxu0 0
    %1247 = vmatprep.subr.bf16.mxu0 0
    %1248 = vmatpush1.bf16.msra.mxu0 0
    %1249 = vmatprep.subr.bf16.mxu0 0
    %1250 = vmatpush1.bf16.msra.mxu0 0
    %1251 = vmatprep.subr.bf16.mxu0 0
    %1252 = vmatpush1.bf16.msra.mxu0 0
    %1253 = vmatprep.mubr.bf16.mxu0 0
    %1254 = vmatmul.mubr.bf16.gmra.mrb[0].mxu0 %v1219
    %v1255 = vpop.f32.mrb[0].mxu0
    %v1256 = vadd.f32 0.0, %v1255
    %v1257 = vpop.f32.mrb[0].mxu0
    %v1258 = vpop.f32.mrb[0].mxu0
    %v1259 = vadd.f32 0.0, %v1258
    %v1260 = vpop.f32.mrb[0].mxu0
    %1261 = vdwg.mxu0
    %1262 = vrot.lane.b32.xlu0 %v484, 64
    %v1263 = vpop.permute.xlu0 %1262
    %v1266 = vsel %vm889, %v1070, 0
    %1268 = vmatprep.subr.bf16.mxu0 0
    %1269 = vmatpush1.bf16.msra.mxu0 %v1263
    %1270 = vmatprep.subr.bf16.mxu0 0
    %1271 = vmatpush1.bf16.msra.mxu0 0
    %1272 = vmatprep.subr.bf16.mxu0 0
    %1273 = vmatpush1.bf16.msra.mxu0 0
    %1274 = vmatprep.subr.bf16.mxu0 0
    %1275 = vmatpush1.bf16.msra.mxu0 0
    %1276 = vmatprep.subr.bf16.mxu0 0
    %1277 = vmatpush1.bf16.msra.mxu0 0
    %1278 = vmatprep.subr.bf16.mxu0 0
    %1279 = vmatpush1.bf16.msra.mxu0 0
    %1280 = vmatprep.subr.bf16.mxu0 0
    %1281 = vmatpush1.bf16.msra.mxu0 0
    %1282 = vmatprep.subr.bf16.mxu0 0
    %1283 = vmatpush1.bf16.msra.mxu0 0
    %1284 = vmatprep.subr.bf16.mxu0 0
    %1285 = vmatpush1.bf16.msra.mxu0 0
    %1286 = vmatprep.subr.bf16.mxu0 0
    %1287 = vmatpush1.bf16.msra.mxu0 0
    %1288 = vmatprep.subr.bf16.mxu0 0
    %1289 = vmatpush1.bf16.msra.mxu0 0
    %1290 = vmatprep.subr.bf16.mxu0 0
    %1291 = vmatpush1.bf16.msra.mxu0 0
    %1292 = vmatprep.subr.bf16.mxu0 0
    %1293 = vmatpush1.bf16.msra.mxu0 0
    %1294 = vmatprep.subr.bf16.mxu0 0
    %1295 = vmatpush1.bf16.msra.mxu0 0
    %1296 = vmatprep.subr.bf16.mxu0 0
    %1297 = vmatpush1.bf16.msra.mxu0 0
    %1298 = vmatprep.subr.bf16.mxu0 0
    %1299 = vmatpush1.bf16.msra.mxu0 0
    %1300 = vmatprep.mubr.bf16.mxu0 0
    %1301 = vmatmul.mubr.bf16.gmra.mrb[0].mxu0 %v1266
    %v1302 = vpop.f32.mrb[0].mxu0
    %v1303 = vadd.f32 0.0, %v1302
    %v1304 = vpop.f32.mrb[0].mxu0
    %v1305 = vpop.f32.mrb[0].mxu0
    %v1306 = vadd.f32 0.0, %v1305
    %v1307 = vpop.f32.mrb[0].mxu0
    %1308 = vdwg.mxu0
    %1309 = vrot.lane.b32.xlu0 %v485, 64
    %v1310 = vpop.permute.xlu0 %1309
    %v1313 = vsel %vm889, %v1071, 0
    %1315 = vmatprep.subr.bf16.mxu0 0
    %1316 = vmatpush1.bf16.msra.mxu0 %v1310
    %1317 = vmatprep.subr.bf16.mxu0 0
    %1318 = vmatpush1.bf16.msra.mxu0 0
    %1319 = vmatprep.subr.bf16.mxu0 0
    %1320 = vmatpush1.bf16.msra.mxu0 0
    %1321 = vmatprep.subr.bf16.mxu0 0
    %1322 = vmatpush1.bf16.msra.mxu0 0
    %1323 = vmatprep.subr.bf16.mxu0 0
    %1324 = vmatpush1.bf16.msra.mxu0 0
    %1325 = vmatprep.subr.bf16.mxu0 0
    %1326 = vmatpush1.bf16.msra.mxu0 0
    %1327 = vmatprep.subr.bf16.mxu0 0
    %1328 = vmatpush1.bf16.msra.mxu0 0
    %1329 = vmatprep.subr.bf16.mxu0 0
    %1330 = vmatpush1.bf16.msra.mxu0 0
    %1331 = vmatprep.subr.bf16.mxu0 0
    %1332 = vmatpush1.bf16.msra.mxu0 0
    %1333 = vmatprep.subr.bf16.mxu0 0
    %1334 = vmatpush1.bf16.msra.mxu0 0
    %1335 = vmatprep.subr.bf16.mxu0 0
    %1336 = vmatpush1.bf16.msra.mxu0 0
    %1337 = vmatprep.subr.bf16.mxu0 0
    %1338 = vmatpush1.bf16.msra.mxu0 0
    %1339 = vmatprep.subr.bf16.mxu0 0
    %1340 = vmatpush1.bf16.msra.mxu0 0
    %1341 = vmatprep.subr.bf16.mxu0 0
    %1342 = vmatpush1.bf16.msra.mxu0 0
    %1343 = vmatprep.subr.bf16.mxu0 0
    %1344 = vmatpush1.bf16.msra.mxu0 0
    %1345 = vmatprep.subr.bf16.mxu0 0
    %1346 = vmatpush1.bf16.msra.mxu0 0
    %1347 = vmatprep.mubr.bf16.mxu0 0
    %1348 = vmatmul.mubr.bf16.gmra.mrb[0].mxu0 %v1313
    %v1349 = vpop.f32.mrb[0].mxu0
    %v1350 = vadd.f32 0.0, %v1349
    %v1351 = vpop.f32.mrb[0].mxu0
    %v1352 = vpop.f32.mrb[0].mxu0
    %v1353 = vadd.f32 0.0, %v1352
    %v1354 = vpop.f32.mrb[0].mxu0
    %1355 = vdwg.mxu0
    %1356 = vrot.lane.b32.xlu0 %v486, 64
    %v1357 = vpop.permute.xlu0 %1356
    %v1360 = vsel %vm889, %v1072, 0
    %1362 = vmatprep.subr.bf16.mxu0 0
    %1363 = vmatpush1.bf16.msra.mxu0 %v1357
    %1364 = vmatprep.subr.bf16.mxu0 0
    %1365 = vmatpush1.bf16.msra.mxu0 0
    %1366 = vmatprep.subr.bf16.mxu0 0
    %1367 = vmatpush1.bf16.msra.mxu0 0
    %1368 = vmatprep.subr.bf16.mxu0 0
    %1369 = vmatpush1.bf16.msra.mxu0 0
    %1370 = vmatprep.subr.bf16.mxu0 0
    %1371 = vmatpush1.bf16.msra.mxu0 0
    %1372 = vmatprep.subr.bf16.mxu0 0
    %1373 = vmatpush1.bf16.msra.mxu0 0
    %1374 = vmatprep.subr.bf16.mxu0 0
    %1375 = vmatpush1.bf16.msra.mxu0 0
    %1376 = vmatprep.subr.bf16.mxu0 0
    %1377 = vmatpush1.bf16.msra.mxu0 0
    %1378 = vmatprep.subr.bf16.mxu0 0
    %1379 = vmatpush1.bf16.msra.mxu0 0
    %1380 = vmatprep.subr.bf16.mxu0 0
    %1381 = vmatpush1.bf16.msra.mxu0 0
    %1382 = vmatprep.subr.bf16.mxu0 0
    %1383 = vmatpush1.bf16.msra.mxu0 0
    %1384 = vmatprep.subr.bf16.mxu0 0
    %1385 = vmatpush1.bf16.msra.mxu0 0
    %1386 = vmatprep.subr.bf16.mxu0 0
    %1387 = vmatpush1.bf16.msra.mxu0 0
    %1388 = vmatprep.subr.bf16.mxu0 0
    %1389 = vmatpush1.bf16.msra.mxu0 0
    %1390 = vmatprep.subr.bf16.mxu0 0
    %1391 = vmatpush1.bf16.msra.mxu0 0
    %1392 = vmatprep.subr.bf16.mxu0 0
    %1393 = vmatpush1.bf16.msra.mxu0 0
    %1394 = vmatprep.mubr.bf16.mxu0 0
    %1395 = vmatmul.mubr.bf16.gmra.mrb[0].mxu0 %v1360
    %v1396 = vpop.f32.mrb[0].mxu0
    %v1397 = vadd.f32 0.0, %v1396
    %v1398 = vpop.f32.mrb[0].mxu0
    %v1399 = vpop.f32.mrb[0].mxu0
    %v1400 = vadd.f32 0.0, %v1399
    %v1401 = vpop.f32.mrb[0].mxu0
    %1402 = vdwg.mxu0
    %1403 = vrot.lane.b32.xlu0 %v487, 64
    %v1404 = vpop.permute.xlu0 %1403
    %v1407 = vsel %vm889, %v1073, 0
    %1409 = vmatprep.subr.bf16.mxu0 0
    %1410 = vmatpush1.bf16.msra.mxu0 %v1404
    %1411 = vmatprep.subr.bf16.mxu0 0
    %1412 = vmatpush1.bf16.msra.mxu0 0
    %1413 = vmatprep.subr.bf16.mxu0 0
    %1414 = vmatpush1.bf16.msra.mxu0 0
    %1415 = vmatprep.subr.bf16.mxu0 0
    %1416 = vmatpush1.bf16.msra.mxu0 0
    %1417 = vmatprep.subr.bf16.mxu0 0
    %1418 = vmatpush1.bf16.msra.mxu0 0
    %1419 = vmatprep.subr.bf16.mxu0 0
    %1420 = vmatpush1.bf16.msra.mxu0 0
    %1421 = vmatprep.subr.bf16.mxu0 0
    %1422 = vmatpush1.bf16.msra.mxu0 0
    %1423 = vmatprep.subr.bf16.mxu0 0
    %1424 = vmatpush1.bf16.msra.mxu0 0
    %1425 = vmatprep.subr.bf16.mxu0 0
    %1426 = vmatpush1.bf16.msra.mxu0 0
    %1427 = vmatprep.subr.bf16.mxu0 0
    %1428 = vmatpush1.bf16.msra.mxu0 0
    %1429 = vmatprep.subr.bf16.mxu0 0
    %1430 = vmatpush1.bf16.msra.mxu0 0
    %1431 = vmatprep.subr.bf16.mxu0 0
    %1432 = vmatpush1.bf16.msra.mxu0 0
    %1433 = vmatprep.subr.bf16.mxu0 0
    %1434 = vmatpush1.bf16.msra.mxu0 0
    %1435 = vmatprep.subr.bf16.mxu0 0
    %1436 = vmatpush1.bf16.msra.mxu0 0
    %1437 = vmatprep.subr.bf16.mxu0 0
    %1438 = vmatpush1.bf16.msra.mxu0 0
    %1439 = vmatprep.subr.bf16.mxu0 0
    %1440 = vmatpush1.bf16.msra.mxu0 0
    %1441 = vmatprep.mubr.bf16.mxu0 0
    %1442 = vmatmul.mubr.bf16.gmra.mrb[0].mxu0 %v1407
    %v1443 = vpop.f32.mrb[0].mxu0
    %v1444 = vadd.f32 0.0, %v1443
    %v1445 = vpop.f32.mrb[0].mxu0
    %v1446 = vpop.f32.mrb[0].mxu0
    %v1447 = vadd.f32 0.0, %v1446
    %v1448 = vpop.f32.mrb[0].mxu0
    %1449 = vdwg.mxu0
    %1454 = vrot.lane.b32.xlu0 %v1209, 8
    %v1455 = vpop.permute.xlu0 %1454
    %1456 = vrot.lane.b32.xlu0 %v1212, 8
    %v1457 = vpop.permute.xlu0 %1456
    %1458 = vrot.lane.b32.xlu0 %v1256, 8
    %v1459 = vpop.permute.xlu0 %1458
    %1460 = vrot.lane.b32.xlu0 %v1259, 8
    %v1461 = vpop.permute.xlu0 %1460
    %1470 = vrot.lane.b32.xlu0 %v1303, 16
    %v1471 = vpop.permute.xlu0 %1470
    %1472 = vrot.lane.b32.xlu0 %v1306, 16
    %v1473 = vpop.permute.xlu0 %1472
    %1474 = vrot.lane.b32.xlu0 %v1350, 16
    %v1475 = vpop.permute.xlu0 %1474
    %1476 = vrot.lane.b32.xlu0 %v1353, 16
    %v1477 = vpop.permute.xlu0 %1476
    %1486 = vrot.lane.b32.xlu0 %v1397, 24
    %v1487 = vpop.permute.xlu0 %1486
    %1488 = vrot.lane.b32.xlu0 %v1400, 24
    %v1489 = vpop.permute.xlu0 %1488
    %1490 = vrot.lane.b32.xlu0 %v1444, 24
    %v1491 = vpop.permute.xlu0 %1490
    %1492 = vrot.lane.b32.xlu0 %v1447, 24
    %v1493 = vpop.permute.xlu0 %1492
    %v1498 = vsel %vm491, %v1115, %v1455
    %v1499 = vsel %vm491, %v1118, %v1457
    %v1500 = vsel %vm491, %v1162, %v1459
    %v1501 = vsel %vm491, %v1165, %v1461
    %v1502 = vsel %vm889, %v1498, %v1471
    %v1503 = vsel %vm889, %v1499, %v1473
    %v1504 = vsel %vm889, %v1500, %v1475
    %v1505 = vsel %vm889, %v1501, %v1477
    %vm1506 = vcmask 195584
    %v1507 = vsel %vm1506, %v1502, %v1487
    %v1508 = vsel %vm1506, %v1503, %v1489
    %v1509 = vsel %vm1506, %v1504, %v1491
    %v1510 = vsel %vm1506, %v1505, %v1493
    %v1511 = vld [vmem:[%s6] sm:$0xf]
    %v1512 = vld [vmem:[%s6 + $0x4] sm:$0xf]
    %v1513 = vld [vmem:[%s6 + $0x8] sm:$0xf]
    %v1514 = vld [vmem:[%s6 + $0xc] sm:$0xf]
    %v1515 = vpack.c.bf16 %v1508, %v1507
    %v1516 = vpack.c.bf16 %v1510, %v1509
    %v1517 = vlaneseq
    %v1518 = vshrl.u32 %v1517, 7
    %v1519 = vsub.s32 0, %v1518
    %v1520 = vrot.slane %v50, %v1519
    %v1525 = vunpack.c.l.b16 %v1511
    %v1526 = vunpack.c.l.b16 %v1512
    %v1527 = vunpack.c.l.b16 %v1513
    %v1528 = vunpack.c.l.b16 %v1514
    %v1529 = vpack.c.b16 %v1526, %v1525
    %v1530 = vpack.c.b16 %v1528, %v1527
    %v1534 = vsel %vm105, %v1515, 0
    %v1537 = vsel %vm105, %v1516, 0
    %1539 = vmatprep.subr.bf16.mxu0 0
    %1540 = vmatpush1.bf16.msra.mxu0 %v1529
    %1541 = vmatprep.subr.bf16.mxu0 0
    %1542 = vmatpush1.bf16.msra.mxu0 %v1530
    %1543 = vmatprep.subr.bf16.mxu0 0
    %1544 = vmatpush1.bf16.msra.mxu0 0
    %1545 = vmatprep.subr.bf16.mxu0 0
    %1546 = vmatpush1.bf16.msra.mxu0 0
    %1547 = vmatprep.subr.bf16.mxu0 0
    %1548 = vmatpush1.bf16.msra.mxu0 0
    %1549 = vmatprep.subr.bf16.mxu0 0
    %1550 = vmatpush1.bf16.msra.mxu0 0
    %1551 = vmatprep.subr.bf16.mxu0 0
    %1552 = vmatpush1.bf16.msra.mxu0 0
    %1553 = vmatprep.subr.bf16.mxu0 0
    %1554 = vmatpush1.bf16.msra.mxu0 0
    %1555 = vmatprep.subr.bf16.mxu0 0
    %1556 = vmatpush1.bf16.msra.mxu0 0
    %1557 = vmatprep.subr.bf16.mxu0 0
    %1558 = vmatpush1.bf16.msra.mxu0 0
    %1559 = vmatprep.subr.bf16.mxu0 0
    %1560 = vmatpush1.bf16.msra.mxu0 0
    %1561 = vmatprep.subr.bf16.mxu0 0
    %1562 = vmatpush1.bf16.msra.mxu0 0
    %1563 = vmatprep.subr.bf16.mxu0 0
    %1564 = vmatpush1.bf16.msra.mxu0 0
    %1565 = vmatprep.subr.bf16.mxu0 0
    %1566 = vmatpush1.bf16.msra.mxu0 0
    %1567 = vmatprep.subr.bf16.mxu0 0
    %1568 = vmatpush1.bf16.msra.mxu0 0
    %1569 = vmatprep.subr.bf16.mxu0 0
    %1570 = vmatpush1.bf16.msra.mxu0 0
    %1571 = vmatprep.mubr.bf16.mxu0 0
    %1572 = vmatmul.mubr.bf16.gmra.mrb[0].mxu0 %v1534
    %v1573 = vpop.f32.mrb[0].mxu0
    %v1574 = vadd.f32 %v1520, %v1573
    %v1575 = vpop.f32.mrb[0].mxu0
    %v1576 = vpop.f32.mrb[0].mxu0
    %v1577 = vadd.f32 %v1520, %v1576
    %v1578 = vpop.f32.mrb[0].mxu0
    %1579 = vmatprep.mubr.bf16.mxu0 0
    %1580 = vmatmul.mubr.bf16.gmra.mrb[0].mxu0 %v1537
    %v1581 = vpop.f32.mrb[0].mxu0
    %v1582 = vadd.f32 %v1520, %v1581
    %v1583 = vpop.f32.mrb[0].mxu0
    %v1584 = vpop.f32.mrb[0].mxu0
    %v1585 = vadd.f32 %v1520, %v1584
    %v1586 = vpop.f32.mrb[0].mxu0
    %1587 = vdwg.mxu0
    %v1588 = vmul.f32 %v1574, %v1574
    %v1589 = vmul.f32 %v1577, %v1577
    %v1590 = vmul.f32 %v1582, %v1582
    %v1591 = vmul.f32 %v1585, %v1585
    %v1592 = vsel %vm105, %v1588, 0.0
    %1593 = vadd.xlane.f32.xlu0 %v1592
    %v1594 = vpop.xlane.xlu0 %1593
    %v1595 = vsel %vm105, %v1589, 0.0
    %1596 = vadd.xlane.f32.xlu0 %v1595
    %v1597 = vpop.xlane.xlu0 %1596
    %v1598 = vsel %vm105, %v1590, 0.0
    %1599 = vadd.xlane.f32.xlu0 %v1598
    %v1600 = vpop.xlane.xlu0 %1599
    %v1601 = vsel %vm105, %v1591, 0.0
    %1602 = vadd.xlane.f32.xlu0 %v1601
    %v1603 = vpop.xlane.xlu0 %1602
    %v1604 = vrcp.pop 32.0
    %v1605 = vmul.f32 %v1594, %v1604
    %v1606 = vmul.f32 %v1597, %v1604
    %v1607 = vmul.f32 %v1600, %v1604
    %v1608 = vmul.f32 %v1603, %v1604
    %v1609 = vadd.f32 %v1605, 1e-06
    %v1610 = vadd.f32 %v1606, 1e-06
    %v1611 = vadd.f32 %v1607, 1e-06
    %v1612 = vadd.f32 %v1608, 1e-06
    %v1613 = vrsqrt.pop %v1609
    %v1614 = vrsqrt.pop %v1610
    %v1615 = vrsqrt.pop %v1611
    %v1616 = vrsqrt.pop %v1612
    %v1617 = vmul.f32 %v1574, %v1613
    %v1618 = vmul.f32 %v1577, %v1614
    %v1619 = vmul.f32 %v1582, %v1615
    %v1620 = vmul.f32 %v1585, %v1616
    %v1621 = vadd.f32 %v1617, %v307
    %v1622 = vadd.f32 %v1618, %v308
    %v1623 = vadd.f32 %v1619, %v309
    %v1624 = vadd.f32 %v1620, %v310
    %s1625 = scalar_lea.vmem %s4, 16
    %v1626 = vld [vmem:[%s1625] sm:$0xf]
    %v1627 = vld [vmem:[%s1625 + $0x4] sm:$0xf]
    %v1628 = vld [vmem:[%s1625 + $0x8] sm:$0xf]
    %v1629 = vld [vmem:[%s1625 + $0xc] sm:$0xf]
    %v1630 = vpack.c.bf16 %v1622, %v1621
    %v1631 = vpack.c.bf16 %v1624, %v1623
    %v1632 = vlaneseq
    %v1633 = vshrl.u32 %v1632, 7
    %v1634 = vsub.s32 0, %v1633
    %v1635 = vrot.slane %v48, %v1634
    %v1640 = vunpack.c.l.b16 %v1626
    %v1641 = vunpack.c.l.b16 %v1627
    %v1642 = vunpack.c.l.b16 %v1628
    %v1643 = vunpack.c.l.b16 %v1629
    %v1644 = vpack.c.b16 %v1641, %v1640
    %v1645 = vpack.c.b16 %v1643, %v1642
    %v1649 = vsel %vm105, %v1630, 0
    %v1652 = vsel %vm105, %v1631, 0
    %1654 = vmatprep.subr.bf16.mxu0 0
    %1655 = vmatpush1.bf16.msra.mxu0 %v1644
    %1656 = vmatprep.subr.bf16.mxu0 0
    %1657 = vmatpush1.bf16.msra.mxu0 %v1645
    %1658 = vmatprep.subr.bf16.mxu0 0
    %1659 = vmatpush1.bf16.msra.mxu0 0
    %1660 = vmatprep.subr.bf16.mxu0 0
    %1661 = vmatpush1.bf16.msra.mxu0 0
    %1662 = vmatprep.subr.bf16.mxu0 0
    %1663 = vmatpush1.bf16.msra.mxu0 0
    %1664 = vmatprep.subr.bf16.mxu0 0
    %1665 = vmatpush1.bf16.msra.mxu0 0
    %1666 = vmatprep.subr.bf16.mxu0 0
    %1667 = vmatpush1.bf16.msra.mxu0 0
    %1668 = vmatprep.subr.bf16.mxu0 0
    %1669 = vmatpush1.bf16.msra.mxu0 0
    %1670 = vmatprep.subr.bf16.mxu0 0
    %1671 = vmatpush1.bf16.msra.mxu0 0
    %1672 = vmatprep.subr.bf16.mxu0 0
    %1673 = vmatpush1.bf16.msra.mxu0 0
    %1674 = vmatprep.subr.bf16.mxu0 0
    %1675 = vmatpush1.bf16.msra.mxu0 0
    %1676 = vmatprep.subr.bf16.mxu0 0
    %1677 = vmatpush1.bf16.msra.mxu0 0
    %1678 = vmatprep.subr.bf16.mxu0 0
    %1679 = vmatpush1.bf16.msra.mxu0 0
    %1680 = vmatprep.subr.bf16.mxu0 0
    %1681 = vmatpush1.bf16.msra.mxu0 0
    %1682 = vmatprep.subr.bf16.mxu0 0
    %1683 = vmatpush1.bf16.msra.mxu0 0
    %1684 = vmatprep.subr.bf16.mxu0 0
    %1685 = vmatpush1.bf16.msra.mxu0 0
    %1686 = vmatprep.mubr.bf16.mxu0 0
    %1687 = vmatmul.mubr.bf16.gmra.mrb[0].mxu0 %v1649
    %v1688 = vpop.f32.mrb[0].mxu0
    %v1689 = vadd.f32 %v1635, %v1688
    %v1690 = vpop.f32.mrb[0].mxu0
    %v1691 = vpop.f32.mrb[0].mxu0
    %v1692 = vadd.f32 %v1635, %v1691
    %v1693 = vpop.f32.mrb[0].mxu0
    %1694 = vmatprep.mubr.bf16.mxu0 0
    %1695 = vmatmul.mubr.bf16.gmra.mrb[0].mxu0 %v1652
    %v1696 = vpop.f32.mrb[0].mxu0
    %v1697 = vadd.f32 %v1635, %v1696
    %v1698 = vpop.f32.mrb[0].mxu0
    %v1699 = vpop.f32.mrb[0].mxu0
    %v1700 = vadd.f32 %v1635, %v1699
    %v1701 = vpop.f32.mrb[0].mxu0
    %1702 = vdwg.mxu0
    %v1703 = vpack.c.bf16 %v292, %v291
    %v1704 = vpack.c.bf16 %v294, %v293
    %v1705 = vpack.c.bf16 %v296, %v295
    %v1706 = vpack.c.bf16 %v298, %v297
    %v1707 = vpack.c.bf16 %v300, %v299
    %v1708 = vpack.c.bf16 %v302, %v301
    %v1709 = vpack.c.bf16 %v304, %v303
    %v1710 = vpack.c.bf16 %v306, %v305
    %1711 = vrot.lane.b32.xlu0 %v1644, 96
    %v1712 = vpop.permute.xlu0 %1711
    %1713 = vrot.lane.b32.xlu0 %v1645, 96
    %v1714 = vpop.permute.xlu0 %1713
    %1718 = vrot.lane.b32.xlu0 %v1635, 96
    %v1719 = vpop.permute.xlu0 %1718
    %v1722 = vsel %vm105, %v1703, 0
    %v1725 = vsel %vm105, %v1704, 0
    %v1728 = vsel %vm105, %v1705, 0
    %v1731 = vsel %vm105, %v1706, 0
    %v1734 = vsel %vm105, %v1707, 0
    %v1737 = vsel %vm105, %v1708, 0
    %v1740 = vsel %vm105, %v1709, 0
    %v1743 = vsel %vm105, %v1710, 0
    %1745 = vmatprep.subr.bf16.mxu0 0
    %1746 = vmatpush1.bf16.msra.mxu0 %v1712
    %1747 = vmatprep.subr.bf16.mxu0 0
    %1748 = vmatpush1.bf16.msra.mxu0 %v1714
    %1749 = vmatprep.subr.bf16.mxu0 0
    %1750 = vmatpush1.bf16.msra.mxu0 0
    %1751 = vmatprep.subr.bf16.mxu0 0
    %1752 = vmatpush1.bf16.msra.mxu0 0
    %1753 = vmatprep.subr.bf16.mxu0 0
    %1754 = vmatpush1.bf16.msra.mxu0 0
    %1755 = vmatprep.subr.bf16.mxu0 0
    %1756 = vmatpush1.bf16.msra.mxu0 0
    %1757 = vmatprep.subr.bf16.mxu0 0
    %1758 = vmatpush1.bf16.msra.mxu0 0
    %1759 = vmatprep.subr.bf16.mxu0 0
    %1760 = vmatpush1.bf16.msra.mxu0 0
    %1761 = vmatprep.subr.bf16.mxu0 0
    %1762 = vmatpush1.bf16.msra.mxu0 0
    %1763 = vmatprep.subr.bf16.mxu0 0
    %1764 = vmatpush1.bf16.msra.mxu0 0
    %1765 = vmatprep.subr.bf16.mxu0 0
    %1766 = vmatpush1.bf16.msra.mxu0 0
    %1767 = vmatprep.subr.bf16.mxu0 0
    %1768 = vmatpush1.bf16.msra.mxu0 0
    %1769 = vmatprep.subr.bf16.mxu0 0
    %1770 = vmatpush1.bf16.msra.mxu0 0
    %1771 = vmatprep.subr.bf16.mxu0 0
    %1772 = vmatpush1.bf16.msra.mxu0 0
    %1773 = vmatprep.subr.bf16.mxu0 0
    %1774 = vmatpush1.bf16.msra.mxu0 0
    %1775 = vmatprep.subr.bf16.mxu0 0
    %1776 = vmatpush1.bf16.msra.mxu0 0
    %1777 = vmatprep.mubr.bf16.mxu0 0
    %1778 = vmatmul.mubr.bf16.gmra.mrb[0].mxu0 %v1722
    %v1779 = vpop.f32.mrb[0].mxu0
    %v1780 = vadd.f32 %v1719, %v1779
    %v1781 = vpop.f32.mrb[0].mxu0
    %v1782 = vpop.f32.mrb[0].mxu0
    %v1783 = vadd.f32 %v1719, %v1782
    %v1784 = vpop.f32.mrb[0].mxu0
    %1785 = vmatprep.mubr.bf16.mxu0 0
    %1786 = vmatmul.mubr.bf16.gmra.mrb[0].mxu0 %v1725
    %v1787 = vpop.f32.mrb[0].mxu0
    %v1788 = vadd.f32 %v1719, %v1787
    %v1789 = vpop.f32.mrb[0].mxu0
    %v1790 = vpop.f32.mrb[0].mxu0
    %v1791 = vadd.f32 %v1719, %v1790
    %v1792 = vpop.f32.mrb[0].mxu0
    %1793 = vmatprep.mubr.bf16.mxu0 0
    %1794 = vmatmul.mubr.bf16.gmra.mrb[0].mxu0 %v1728
    %v1795 = vpop.f32.mrb[0].mxu0
    %v1796 = vadd.f32 %v1719, %v1795
    %v1797 = vpop.f32.mrb[0].mxu0
    %v1798 = vpop.f32.mrb[0].mxu0
    %v1799 = vadd.f32 %v1719, %v1798
    %v1800 = vpop.f32.mrb[0].mxu0
    %1801 = vmatprep.mubr.bf16.mxu0 0
    %1802 = vmatmul.mubr.bf16.gmra.mrb[0].mxu0 %v1731
    %v1803 = vpop.f32.mrb[0].mxu0
    %v1804 = vadd.f32 %v1719, %v1803
    %v1805 = vpop.f32.mrb[0].mxu0
    %v1806 = vpop.f32.mrb[0].mxu0
    %v1807 = vadd.f32 %v1719, %v1806
    %v1808 = vpop.f32.mrb[0].mxu0
    %1809 = vmatprep.mubr.bf16.mxu0 0
    %1810 = vmatmul.mubr.bf16.gmra.mrb[0].mxu0 %v1734
    %v1811 = vpop.f32.mrb[0].mxu0
    %v1812 = vadd.f32 %v1719, %v1811
    %v1813 = vpop.f32.mrb[0].mxu0
    %v1814 = vpop.f32.mrb[0].mxu0
    %v1815 = vadd.f32 %v1719, %v1814
    %v1816 = vpop.f32.mrb[0].mxu0
    %1817 = vmatprep.mubr.bf16.mxu0 0
    %1818 = vmatmul.mubr.bf16.gmra.mrb[0].mxu0 %v1737
    %v1819 = vpop.f32.mrb[0].mxu0
    %v1820 = vadd.f32 %v1719, %v1819
    %v1821 = vpop.f32.mrb[0].mxu0
    %v1822 = vpop.f32.mrb[0].mxu0
    %v1823 = vadd.f32 %v1719, %v1822
    %v1824 = vpop.f32.mrb[0].mxu0
    %1825 = vmatprep.mubr.bf16.mxu0 0
    %1826 = vmatmul.mubr.bf16.gmra.mrb[0].mxu0 %v1740
    %v1827 = vpop.f32.mrb[0].mxu0
    %v1828 = vadd.f32 %v1719, %v1827
    %v1829 = vpop.f32.mrb[0].mxu0
    %v1830 = vpop.f32.mrb[0].mxu0
    %v1831 = vadd.f32 %v1719, %v1830
    %v1832 = vpop.f32.mrb[0].mxu0
    %1833 = vmatprep.mubr.bf16.mxu0 0
    %1834 = vmatmul.mubr.bf16.gmra.mrb[0].mxu0 %v1743
    %v1835 = vpop.f32.mrb[0].mxu0
    %v1836 = vadd.f32 %v1719, %v1835
    %v1837 = vpop.f32.mrb[0].mxu0
    %v1838 = vpop.f32.mrb[0].mxu0
    %v1839 = vadd.f32 %v1719, %v1838
    %v1840 = vpop.f32.mrb[0].mxu0
    %1841 = vdwg.mxu0
    %v1842 = vmul.f32 %v1689, 0.35355338
    %v1843 = vmul.f32 %v1692, 0.35355338
    %v1844 = vmul.f32 %v1697, 0.35355338
    %v1845 = vmul.f32 %v1700, 0.35355338
    %1850 = vrot.lane.b32.xlu0 %v1842, 120
    %v1851 = vpop.permute.xlu0 %1850
    %1852 = vrot.lane.b32.xlu0 %v1843, 120
    %v1853 = vpop.permute.xlu0 %1852
    %1854 = vrot.lane.b32.xlu0 %v1844, 120
    %v1855 = vpop.permute.xlu0 %1854
    %1856 = vrot.lane.b32.xlu0 %v1845, 120
    %v1857 = vpop.permute.xlu0 %1856
    %1862 = vrot.lane.b32.xlu0 %v1842, 112
    %v1863 = vpop.permute.xlu0 %1862
    %1864 = vrot.lane.b32.xlu0 %v1843, 112
    %v1865 = vpop.permute.xlu0 %1864
    %1866 = vrot.lane.b32.xlu0 %v1844, 112
    %v1867 = vpop.permute.xlu0 %1866
    %1868 = vrot.lane.b32.xlu0 %v1845, 112
    %v1869 = vpop.permute.xlu0 %1868
    %1874 = vrot.lane.b32.xlu0 %v1842, 104
    %v1875 = vpop.permute.xlu0 %1874
    %1876 = vrot.lane.b32.xlu0 %v1843, 104
    %v1877 = vpop.permute.xlu0 %1876
    %1878 = vrot.lane.b32.xlu0 %v1844, 104
    %v1879 = vpop.permute.xlu0 %1878
    %1880 = vrot.lane.b32.xlu0 %v1845, 104
    %v1881 = vpop.permute.xlu0 %1880
    %1902 = vrot.lane.b32.xlu0 %v1780, 120
    %v1903 = vpop.permute.xlu0 %1902
    %1904 = vrot.lane.b32.xlu0 %v1783, 120
    %v1905 = vpop.permute.xlu0 %1904
    %1906 = vrot.lane.b32.xlu0 %v1788, 120
    %v1907 = vpop.permute.xlu0 %1906
    %1908 = vrot.lane.b32.xlu0 %v1791, 120
    %v1909 = vpop.permute.xlu0 %1908
    %1910 = vrot.lane.b32.xlu0 %v1796, 120
    %v1911 = vpop.permute.xlu0 %1910
    %1912 = vrot.lane.b32.xlu0 %v1799, 120
    %v1913 = vpop.permute.xlu0 %1912
    %1914 = vrot.lane.b32.xlu0 %v1804, 120
    %v1915 = vpop.permute.xlu0 %1914
    %1916 = vrot.lane.b32.xlu0 %v1807, 120
    %v1917 = vpop.permute.xlu0 %1916
    %1918 = vrot.lane.b32.xlu0 %v1812, 120
    %v1919 = vpop.permute.xlu0 %1918
    %1920 = vrot.lane.b32.xlu0 %v1815, 120
    %v1921 = vpop.permute.xlu0 %1920
    %1922 = vrot.lane.b32.xlu0 %v1820, 120
    %v1923 = vpop.permute.xlu0 %1922
    %1924 = vrot.lane.b32.xlu0 %v1823, 120
    %v1925 = vpop.permute.xlu0 %1924
    %1926 = vrot.lane.b32.xlu0 %v1828, 120
    %v1927 = vpop.permute.xlu0 %1926
    %1928 = vrot.lane.b32.xlu0 %v1831, 120
    %v1929 = vpop.permute.xlu0 %1928
    %1930 = vrot.lane.b32.xlu0 %v1836, 120
    %v1931 = vpop.permute.xlu0 %1930
    %1932 = vrot.lane.b32.xlu0 %v1839, 120
    %v1933 = vpop.permute.xlu0 %1932
    %1950 = vrot.lane.b32.xlu0 %v1780, 112
    %v1951 = vpop.permute.xlu0 %1950
    %1952 = vrot.lane.b32.xlu0 %v1783, 112
    %v1953 = vpop.permute.xlu0 %1952
    %1954 = vrot.lane.b32.xlu0 %v1788, 112
    %v1955 = vpop.permute.xlu0 %1954
    %1956 = vrot.lane.b32.xlu0 %v1791, 112
    %v1957 = vpop.permute.xlu0 %1956
    %1958 = vrot.lane.b32.xlu0 %v1796, 112
    %v1959 = vpop.permute.xlu0 %1958
    %1960 = vrot.lane.b32.xlu0 %v1799, 112
    %v1961 = vpop.permute.xlu0 %1960
    %1962 = vrot.lane.b32.xlu0 %v1804, 112
    %v1963 = vpop.permute.xlu0 %1962
    %1964 = vrot.lane.b32.xlu0 %v1807, 112
    %v1965 = vpop.permute.xlu0 %1964
    %1966 = vrot.lane.b32.xlu0 %v1812, 112
    %v1967 = vpop.permute.xlu0 %1966
    %1968 = vrot.lane.b32.xlu0 %v1815, 112
    %v1969 = vpop.permute.xlu0 %1968
    %1970 = vrot.lane.b32.xlu0 %v1820, 112
    %v1971 = vpop.permute.xlu0 %1970
    %1972 = vrot.lane.b32.xlu0 %v1823, 112
    %v1973 = vpop.permute.xlu0 %1972
    %1974 = vrot.lane.b32.xlu0 %v1828, 112
    %v1975 = vpop.permute.xlu0 %1974
    %1976 = vrot.lane.b32.xlu0 %v1831, 112
    %v1977 = vpop.permute.xlu0 %1976
    %1978 = vrot.lane.b32.xlu0 %v1836, 112
    %v1979 = vpop.permute.xlu0 %1978
    %1980 = vrot.lane.b32.xlu0 %v1839, 112
    %v1981 = vpop.permute.xlu0 %1980
    %1998 = vrot.lane.b32.xlu0 %v1780, 104
    %v1999 = vpop.permute.xlu0 %1998
    %2000 = vrot.lane.b32.xlu0 %v1783, 104
    %v2001 = vpop.permute.xlu0 %2000
    %2002 = vrot.lane.b32.xlu0 %v1788, 104
    %v2003 = vpop.permute.xlu0 %2002
    %2004 = vrot.lane.b32.xlu0 %v1791, 104
    %v2005 = vpop.permute.xlu0 %2004
    %2006 = vrot.lane.b32.xlu0 %v1796, 104
    %v2007 = vpop.permute.xlu0 %2006
    %2008 = vrot.lane.b32.xlu0 %v1799, 104
    %v2009 = vpop.permute.xlu0 %2008
    %2010 = vrot.lane.b32.xlu0 %v1804, 104
    %v2011 = vpop.permute.xlu0 %2010
    %2012 = vrot.lane.b32.xlu0 %v1807, 104
    %v2013 = vpop.permute.xlu0 %2012
    %2014 = vrot.lane.b32.xlu0 %v1812, 104
    %v2015 = vpop.permute.xlu0 %2014
    %2016 = vrot.lane.b32.xlu0 %v1815, 104
    %v2017 = vpop.permute.xlu0 %2016
    %2018 = vrot.lane.b32.xlu0 %v1820, 104
    %v2019 = vpop.permute.xlu0 %2018
    %2020 = vrot.lane.b32.xlu0 %v1823, 104
    %v2021 = vpop.permute.xlu0 %2020
    %2022 = vrot.lane.b32.xlu0 %v1828, 104
    %v2023 = vpop.permute.xlu0 %2022
    %2024 = vrot.lane.b32.xlu0 %v1831, 104
    %v2025 = vpop.permute.xlu0 %2024
    %2026 = vrot.lane.b32.xlu0 %v1836, 104
    %v2027 = vpop.permute.xlu0 %2026
    %2028 = vrot.lane.b32.xlu0 %v1839, 104
    %v2029 = vpop.permute.xlu0 %2028
    %v2046 = vpack.c.bf16 %v1843, %v1842
    %v2047 = vpack.c.bf16 %v1845, %v1844
    %v2048 = vpack.c.bf16 %v1853, %v1851
    %v2049 = vpack.c.bf16 %v1857, %v1855
    %v2050 = vpack.c.bf16 %v1865, %v1863
    %v2051 = vpack.c.bf16 %v1869, %v1867
    %v2052 = vpack.c.bf16 %v1877, %v1875
    %v2053 = vpack.c.bf16 %v1881, %v1879
    %v2054 = vpack.c.bf16 %v1783, %v1780
    %v2055 = vpack.c.bf16 %v1791, %v1788
    %v2056 = vpack.c.bf16 %v1799, %v1796
    %v2057 = vpack.c.bf16 %v1807, %v1804
    %v2058 = vpack.c.bf16 %v1815, %v1812
    %v2059 = vpack.c.bf16 %v1823, %v1820
    %v2060 = vpack.c.bf16 %v1831, %v1828
    %v2061 = vpack.c.bf16 %v1839, %v1836
    %v2062 = vpack.c.bf16 %v1905, %v1903
    %v2063 = vpack.c.bf16 %v1909, %v1907
    %v2064 = vpack.c.bf16 %v1913, %v1911
    %v2065 = vpack.c.bf16 %v1917, %v1915
    %v2066 = vpack.c.bf16 %v1921, %v1919
    %v2067 = vpack.c.bf16 %v1925, %v1923
    %v2068 = vpack.c.bf16 %v1929, %v1927
    %v2069 = vpack.c.bf16 %v1933, %v1931
    %v2070 = vpack.c.bf16 %v1953, %v1951
    %v2071 = vpack.c.bf16 %v1957, %v1955
    %v2072 = vpack.c.bf16 %v1961, %v1959
    %v2073 = vpack.c.bf16 %v1965, %v1963
    %v2074 = vpack.c.bf16 %v1969, %v1967
    %v2075 = vpack.c.bf16 %v1973, %v1971
    %v2076 = vpack.c.bf16 %v1977, %v1975
    %v2077 = vpack.c.bf16 %v1981, %v1979
    %v2078 = vpack.c.bf16 %v2001, %v1999
    %v2079 = vpack.c.bf16 %v2005, %v2003
    %v2080 = vpack.c.bf16 %v2009, %v2007
    %v2081 = vpack.c.bf16 %v2013, %v2011
    %v2082 = vpack.c.bf16 %v2017, %v2015
    %v2083 = vpack.c.bf16 %v2021, %v2019
    %v2084 = vpack.c.bf16 %v2025, %v2023
    %v2085 = vpack.c.bf16 %v2029, %v2027
    %v2087 = vsel %vm491, %v2046, 0
    %v2090 = vsel %vm491, %v2054, 0
    %v2093 = vsel %vm491, %v2055, 0
    %v2096 = vsel %vm491, %v2056, 0
    %v2099 = vsel %vm491, %v2057, 0
    %2101 = vmatprep.subr.bf16.mxu0 0
    %2102 = vmatpush1.bf16.xpose.msra.mxu0 %v2090
    %2103 = vmatprep.subr.bf16.mxu0 0
    %2104 = vmatpush1.bf16.xpose.msra.mxu0 %v2093
    %2105 = vmatprep.subr.bf16.mxu0 0
    %2106 = vmatpush1.bf16.xpose.msra.mxu0 %v2096
    %2107 = vmatprep.subr.bf16.mxu0 0
    %2108 = vmatpush1.bf16.xpose.msra.mxu0 %v2099
    %2109 = vmatprep.subr.bf16.mxu0 0
    %2110 = vmatpush1.bf16.xpose.msra.mxu0 0
    %2111 = vmatprep.subr.bf16.mxu0 0
    %2112 = vmatpush1.bf16.xpose.msra.mxu0 0
    %2113 = vmatprep.subr.bf16.mxu0 0
    %2114 = vmatpush1.bf16.xpose.msra.mxu0 0
    %2115 = vmatprep.subr.bf16.mxu0 0
    %2116 = vmatpush1.bf16.xpose.msra.mxu0 0
    %2117 = vmatprep.subr.bf16.mxu0 0
    %2118 = vmatpush1.bf16.xpose.msra.mxu0 0
    %2119 = vmatprep.subr.bf16.mxu0 0
    %2120 = vmatpush1.bf16.xpose.msra.mxu0 0
    %2121 = vmatprep.subr.bf16.mxu0 0
    %2122 = vmatpush1.bf16.xpose.msra.mxu0 0
    %2123 = vmatprep.subr.bf16.mxu0 0
    %2124 = vmatpush1.bf16.xpose.msra.mxu0 0
    %2125 = vmatprep.subr.bf16.mxu0 0
    %2126 = vmatpush1.bf16.xpose.msra.mxu0 0
    %2127 = vmatprep.subr.bf16.mxu0 0
    %2128 = vmatpush1.bf16.xpose.msra.mxu0 0
    %2129 = vmatprep.subr.bf16.mxu0 0
    %2130 = vmatpush1.bf16.xpose.msra.mxu0 0
    %2131 = vmatprep.subr.bf16.mxu0 0
    %2132 = vmatpush1.bf16.xpose.msra.mxu0 0
    %2133 = vmatprep.mubr.bf16.mxu0 0
    %2134 = vmatmul.mubr.bf16.gmra.mrb[0].mxu0 %v2087
    %v2135 = vpop.f32.mrb[0].mxu0
    %v2136 = vadd.f32 0.0, %v2135
    %v2137 = vpop.f32.mrb[0].mxu0
    %v2138 = vpop.f32.mrb[0].mxu0
    %v2139 = vadd.f32 0.0, %v2138
    %v2140 = vpop.f32.mrb[0].mxu0
    %2141 = vdwg.mxu0
    %v2143 = vsel %vm491, %v2047, 0
    %v2146 = vsel %vm491, %v2058, 0
    %v2149 = vsel %vm491, %v2059, 0
    %v2152 = vsel %vm491, %v2060, 0
    %v2155 = vsel %vm491, %v2061, 0
    %2157 = vmatprep.subr.bf16.mxu0 0
    %2158 = vmatpush1.bf16.xpose.msra.mxu0 %v2146
    %2159 = vmatprep.subr.bf16.mxu0 0
    %2160 = vmatpush1.bf16.xpose.msra.mxu0 %v2149
    %2161 = vmatprep.subr.bf16.mxu0 0
    %2162 = vmatpush1.bf16.xpose.msra.mxu0 %v2152
    %2163 = vmatprep.subr.bf16.mxu0 0
    %2164 = vmatpush1.bf16.xpose.msra.mxu0 %v2155
    %2165 = vmatprep.subr.bf16.mxu0 0
    %2166 = vmatpush1.bf16.xpose.msra.mxu0 0
    %2167 = vmatprep.subr.bf16.mxu0 0
    %2168 = vmatpush1.bf16.xpose.msra.mxu0 0
    %2169 = vmatprep.subr.bf16.mxu0 0
    %2170 = vmatpush1.bf16.xpose.msra.mxu0 0
    %2171 = vmatprep.subr.bf16.mxu0 0
    %2172 = vmatpush1.bf16.xpose.msra.mxu0 0
    %2173 = vmatprep.subr.bf16.mxu0 0
    %2174 = vmatpush1.bf16.xpose.msra.mxu0 0
    %2175 = vmatprep.subr.bf16.mxu0 0
    %2176 = vmatpush1.bf16.xpose.msra.mxu0 0
    %2177 = vmatprep.subr.bf16.mxu0 0
    %2178 = vmatpush1.bf16.xpose.msra.mxu0 0
    %2179 = vmatprep.subr.bf16.mxu0 0
    %2180 = vmatpush1.bf16.xpose.msra.mxu0 0
    %2181 = vmatprep.subr.bf16.mxu0 0
    %2182 = vmatpush1.bf16.xpose.msra.mxu0 0
    %2183 = vmatprep.subr.bf16.mxu0 0
    %2184 = vmatpush1.bf16.xpose.msra.mxu0 0
    %2185 = vmatprep.subr.bf16.mxu0 0
    %2186 = vmatpush1.bf16.xpose.msra.mxu0 0
    %2187 = vmatprep.subr.bf16.mxu0 0
    %2188 = vmatpush1.bf16.xpose.msra.mxu0 0
    %2189 = vmatprep.mubr.bf16.mxu0 0
    %2190 = vmatmul.mubr.bf16.gmra.mrb[0].mxu0 %v2143
    %v2191 = vpop.f32.mrb[0].mxu0
    %v2192 = vadd.f32 0.0, %v2191
    %v2193 = vpop.f32.mrb[0].mxu0
    %v2194 = vpop.f32.mrb[0].mxu0
    %v2195 = vadd.f32 0.0, %v2194
    %v2196 = vpop.f32.mrb[0].mxu0
    %2197 = vdwg.mxu0
    %v2199 = vsel %vm491, %v2048, 0
    %v2202 = vsel %vm491, %v2062, 0
    %v2205 = vsel %vm491, %v2063, 0
    %v2208 = vsel %vm491, %v2064, 0
    %v2211 = vsel %vm491, %v2065, 0
    %2213 = vmatprep.subr.bf16.mxu0 0
    %2214 = vmatpush1.bf16.xpose.msra.mxu0 %v2202
    %2215 = vmatprep.subr.bf16.mxu0 0
    %2216 = vmatpush1.bf16.xpose.msra.mxu0 %v2205
    %2217 = vmatprep.subr.bf16.mxu0 0
    %2218 = vmatpush1.bf16.xpose.msra.mxu0 %v2208
    %2219 = vmatprep.subr.bf16.mxu0 0
    %2220 = vmatpush1.bf16.xpose.msra.mxu0 %v2211
    %2221 = vmatprep.subr.bf16.mxu0 0
    %2222 = vmatpush1.bf16.xpose.msra.mxu0 0
    %2223 = vmatprep.subr.bf16.mxu0 0
    %2224 = vmatpush1.bf16.xpose.msra.mxu0 0
    %2225 = vmatprep.subr.bf16.mxu0 0
    %2226 = vmatpush1.bf16.xpose.msra.mxu0 0
    %2227 = vmatprep.subr.bf16.mxu0 0
    %2228 = vmatpush1.bf16.xpose.msra.mxu0 0
    %2229 = vmatprep.subr.bf16.mxu0 0
    %2230 = vmatpush1.bf16.xpose.msra.mxu0 0
    %2231 = vmatprep.subr.bf16.mxu0 0
    %2232 = vmatpush1.bf16.xpose.msra.mxu0 0
    %2233 = vmatprep.subr.bf16.mxu0 0
    %2234 = vmatpush1.bf16.xpose.msra.mxu0 0
    %2235 = vmatprep.subr.bf16.mxu0 0
    %2236 = vmatpush1.bf16.xpose.msra.mxu0 0
    %2237 = vmatprep.subr.bf16.mxu0 0
    %2238 = vmatpush1.bf16.xpose.msra.mxu0 0
    %2239 = vmatprep.subr.bf16.mxu0 0
    %2240 = vmatpush1.bf16.xpose.msra.mxu0 0
    %2241 = vmatprep.subr.bf16.mxu0 0
    %2242 = vmatpush1.bf16.xpose.msra.mxu0 0
    %2243 = vmatprep.subr.bf16.mxu0 0
    %2244 = vmatpush1.bf16.xpose.msra.mxu0 0
    %2245 = vmatprep.mubr.bf16.mxu0 0
    %2246 = vmatmul.mubr.bf16.gmra.mrb[0].mxu0 %v2199
    %v2247 = vpop.f32.mrb[0].mxu0
    %v2248 = vadd.f32 0.0, %v2247
    %v2249 = vpop.f32.mrb[0].mxu0
    %v2250 = vpop.f32.mrb[0].mxu0
    %v2251 = vadd.f32 0.0, %v2250
    %v2252 = vpop.f32.mrb[0].mxu0
    %2253 = vdwg.mxu0
    %v2255 = vsel %vm491, %v2049, 0
    %v2258 = vsel %vm491, %v2066, 0
    %v2261 = vsel %vm491, %v2067, 0
    %v2264 = vsel %vm491, %v2068, 0
    %v2267 = vsel %vm491, %v2069, 0
    %2269 = vmatprep.subr.bf16.mxu0 0
    %2270 = vmatpush1.bf16.xpose.msra.mxu0 %v2258
    %2271 = vmatprep.subr.bf16.mxu0 0
    %2272 = vmatpush1.bf16.xpose.msra.mxu0 %v2261
    %2273 = vmatprep.subr.bf16.mxu0 0
    %2274 = vmatpush1.bf16.xpose.msra.mxu0 %v2264
    %2275 = vmatprep.subr.bf16.mxu0 0
    %2276 = vmatpush1.bf16.xpose.msra.mxu0 %v2267
    %2277 = vmatprep.subr.bf16.mxu0 0
    %2278 = vmatpush1.bf16.xpose.msra.mxu0 0
    %2279 = vmatprep.subr.bf16.mxu0 0
    %2280 = vmatpush1.bf16.xpose.msra.mxu0 0
    %2281 = vmatprep.subr.bf16.mxu0 0
    %2282 = vmatpush1.bf16.xpose.msra.mxu0 0
    %2283 = vmatprep.subr.bf16.mxu0 0
    %2284 = vmatpush1.bf16.xpose.msra.mxu0 0
    %2285 = vmatprep.subr.bf16.mxu0 0
    %2286 = vmatpush1.bf16.xpose.msra.mxu0 0
    %2287 = vmatprep.subr.bf16.mxu0 0
    %2288 = vmatpush1.bf16.xpose.msra.mxu0 0
    %2289 = vmatprep.subr.bf16.mxu0 0
    %2290 = vmatpush1.bf16.xpose.msra.mxu0 0
    %2291 = vmatprep.subr.bf16.mxu0 0
    %2292 = vmatpush1.bf16.xpose.msra.mxu0 0
    %2293 = vmatprep.subr.bf16.mxu0 0
    %2294 = vmatpush1.bf16.xpose.msra.mxu0 0
    %2295 = vmatprep.subr.bf16.mxu0 0
    %2296 = vmatpush1.bf16.xpose.msra.mxu0 0
    %2297 = vmatprep.subr.bf16.mxu0 0
    %2298 = vmatpush1.bf16.xpose.msra.mxu0 0
    %2299 = vmatprep.subr.bf16.mxu0 0
    %2300 = vmatpush1.bf16.xpose.msra.mxu0 0
    %2301 = vmatprep.mubr.bf16.mxu0 0
    %2302 = vmatmul.mubr.bf16.gmra.mrb[0].mxu0 %v2255
    %v2303 = vpop.f32.mrb[0].mxu0
    %v2304 = vadd.f32 0.0, %v2303
    %v2305 = vpop.f32.mrb[0].mxu0
    %v2306 = vpop.f32.mrb[0].mxu0
    %v2307 = vadd.f32 0.0, %v2306
    %v2308 = vpop.f32.mrb[0].mxu0
    %2309 = vdwg.mxu0
    %v2311 = vsel %vm491, %v2050, 0
    %v2314 = vsel %vm491, %v2070, 0
    %v2317 = vsel %vm491, %v2071, 0
    %v2320 = vsel %vm491, %v2072, 0
    %v2323 = vsel %vm491, %v2073, 0
    %2325 = vmatprep.subr.bf16.mxu0 0
    %2326 = vmatpush1.bf16.xpose.msra.mxu0 %v2314
    %2327 = vmatprep.subr.bf16.mxu0 0
    %2328 = vmatpush1.bf16.xpose.msra.mxu0 %v2317
    %2329 = vmatprep.subr.bf16.mxu0 0
    %2330 = vmatpush1.bf16.xpose.msra.mxu0 %v2320
    %2331 = vmatprep.subr.bf16.mxu0 0
    %2332 = vmatpush1.bf16.xpose.msra.mxu0 %v2323
    %2333 = vmatprep.subr.bf16.mxu0 0
    %2334 = vmatpush1.bf16.xpose.msra.mxu0 0
    %2335 = vmatprep.subr.bf16.mxu0 0
    %2336 = vmatpush1.bf16.xpose.msra.mxu0 0
    %2337 = vmatprep.subr.bf16.mxu0 0
    %2338 = vmatpush1.bf16.xpose.msra.mxu0 0
    %2339 = vmatprep.subr.bf16.mxu0 0
    %2340 = vmatpush1.bf16.xpose.msra.mxu0 0
    %2341 = vmatprep.subr.bf16.mxu0 0
    %2342 = vmatpush1.bf16.xpose.msra.mxu0 0
    %2343 = vmatprep.subr.bf16.mxu0 0
    %2344 = vmatpush1.bf16.xpose.msra.mxu0 0
    %2345 = vmatprep.subr.bf16.mxu0 0
    %2346 = vmatpush1.bf16.xpose.msra.mxu0 0
    %2347 = vmatprep.subr.bf16.mxu0 0
    %2348 = vmatpush1.bf16.xpose.msra.mxu0 0
    %2349 = vmatprep.subr.bf16.mxu0 0
    %2350 = vmatpush1.bf16.xpose.msra.mxu0 0
    %2351 = vmatprep.subr.bf16.mxu0 0
    %2352 = vmatpush1.bf16.xpose.msra.mxu0 0
    %2353 = vmatprep.subr.bf16.mxu0 0
    %2354 = vmatpush1.bf16.xpose.msra.mxu0 0
    %2355 = vmatprep.subr.bf16.mxu0 0
    %2356 = vmatpush1.bf16.xpose.msra.mxu0 0
    %2357 = vmatprep.mubr.bf16.mxu0 0
    %2358 = vmatmul.mubr.bf16.gmra.mrb[0].mxu0 %v2311
    %v2359 = vpop.f32.mrb[0].mxu0
    %v2360 = vadd.f32 0.0, %v2359
    %v2361 = vpop.f32.mrb[0].mxu0
    %v2362 = vpop.f32.mrb[0].mxu0
    %v2363 = vadd.f32 0.0, %v2362
    %v2364 = vpop.f32.mrb[0].mxu0
    %2365 = vdwg.mxu0
    %v2367 = vsel %vm491, %v2051, 0
    %v2370 = vsel %vm491, %v2074, 0
    %v2373 = vsel %vm491, %v2075, 0
    %v2376 = vsel %vm491, %v2076, 0
    %v2379 = vsel %vm491, %v2077, 0
    %2381 = vmatprep.subr.bf16.mxu0 0
    %2382 = vmatpush1.bf16.xpose.msra.mxu0 %v2370
    %2383 = vmatprep.subr.bf16.mxu0 0
    %2384 = vmatpush1.bf16.xpose.msra.mxu0 %v2373
    %2385 = vmatprep.subr.bf16.mxu0 0
    %2386 = vmatpush1.bf16.xpose.msra.mxu0 %v2376
    %2387 = vmatprep.subr.bf16.mxu0 0
    %2388 = vmatpush1.bf16.xpose.msra.mxu0 %v2379
    %2389 = vmatprep.subr.bf16.mxu0 0
    %2390 = vmatpush1.bf16.xpose.msra.mxu0 0
    %2391 = vmatprep.subr.bf16.mxu0 0
    %2392 = vmatpush1.bf16.xpose.msra.mxu0 0
    %2393 = vmatprep.subr.bf16.mxu0 0
    %2394 = vmatpush1.bf16.xpose.msra.mxu0 0
    %2395 = vmatprep.subr.bf16.mxu0 0
    %2396 = vmatpush1.bf16.xpose.msra.mxu0 0
    %2397 = vmatprep.subr.bf16.mxu0 0
    %2398 = vmatpush1.bf16.xpose.msra.mxu0 0
    %2399 = vmatprep.subr.bf16.mxu0 0
    %2400 = vmatpush1.bf16.xpose.msra.mxu0 0
    %2401 = vmatprep.subr.bf16.mxu0 0
    %2402 = vmatpush1.bf16.xpose.msra.mxu0 0
    %2403 = vmatprep.subr.bf16.mxu0 0
    %2404 = vmatpush1.bf16.xpose.msra.mxu0 0
    %2405 = vmatprep.subr.bf16.mxu0 0
    %2406 = vmatpush1.bf16.xpose.msra.mxu0 0
    %2407 = vmatprep.subr.bf16.mxu0 0
    %2408 = vmatpush1.bf16.xpose.msra.mxu0 0
    %2409 = vmatprep.subr.bf16.mxu0 0
    %2410 = vmatpush1.bf16.xpose.msra.mxu0 0
    %2411 = vmatprep.subr.bf16.mxu0 0
    %2412 = vmatpush1.bf16.xpose.msra.mxu0 0
    %2413 = vmatprep.mubr.bf16.mxu0 0
    %2414 = vmatmul.mubr.bf16.gmra.mrb[0].mxu0 %v2367
    %v2415 = vpop.f32.mrb[0].mxu0
    %v2416 = vadd.f32 0.0, %v2415
    %v2417 = vpop.f32.mrb[0].mxu0
    %v2418 = vpop.f32.mrb[0].mxu0
    %v2419 = vadd.f32 0.0, %v2418
    %v2420 = vpop.f32.mrb[0].mxu0
    %2421 = vdwg.mxu0
    %v2423 = vsel %vm491, %v2052, 0
    %v2426 = vsel %vm491, %v2078, 0
    %v2429 = vsel %vm491, %v2079, 0
    %v2432 = vsel %vm491, %v2080, 0
    %v2435 = vsel %vm491, %v2081, 0
    %2437 = vmatprep.subr.bf16.mxu0 0
    %2438 = vmatpush1.bf16.xpose.msra.mxu0 %v2426
    %2439 = vmatprep.subr.bf16.mxu0 0
    %2440 = vmatpush1.bf16.xpose.msra.mxu0 %v2429
    %2441 = vmatprep.subr.bf16.mxu0 0
    %2442 = vmatpush1.bf16.xpose.msra.mxu0 %v2432
    %2443 = vmatprep.subr.bf16.mxu0 0
    %2444 = vmatpush1.bf16.xpose.msra.mxu0 %v2435
    %2445 = vmatprep.subr.bf16.mxu0 0
    %2446 = vmatpush1.bf16.xpose.msra.mxu0 0
    %2447 = vmatprep.subr.bf16.mxu0 0
    %2448 = vmatpush1.bf16.xpose.msra.mxu0 0
    %2449 = vmatprep.subr.bf16.mxu0 0
    %2450 = vmatpush1.bf16.xpose.msra.mxu0 0
    %2451 = vmatprep.subr.bf16.mxu0 0
    %2452 = vmatpush1.bf16.xpose.msra.mxu0 0
    %2453 = vmatprep.subr.bf16.mxu0 0
    %2454 = vmatpush1.bf16.xpose.msra.mxu0 0
    %2455 = vmatprep.subr.bf16.mxu0 0
    %2456 = vmatpush1.bf16.xpose.msra.mxu0 0
    %2457 = vmatprep.subr.bf16.mxu0 0
    %2458 = vmatpush1.bf16.xpose.msra.mxu0 0
    %2459 = vmatprep.subr.bf16.mxu0 0
    %2460 = vmatpush1.bf16.xpose.msra.mxu0 0
    %2461 = vmatprep.subr.bf16.mxu0 0
    %2462 = vmatpush1.bf16.xpose.msra.mxu0 0
    %2463 = vmatprep.subr.bf16.mxu0 0
    %2464 = vmatpush1.bf16.xpose.msra.mxu0 0
    %2465 = vmatprep.subr.bf16.mxu0 0
    %2466 = vmatpush1.bf16.xpose.msra.mxu0 0
    %2467 = vmatprep.subr.bf16.mxu0 0
    %2468 = vmatpush1.bf16.xpose.msra.mxu0 0
    %2469 = vmatprep.mubr.bf16.mxu0 0
    %2470 = vmatmul.mubr.bf16.gmra.mrb[0].mxu0 %v2423
    %v2471 = vpop.f32.mrb[0].mxu0
    %v2472 = vadd.f32 0.0, %v2471
    %v2473 = vpop.f32.mrb[0].mxu0
    %v2474 = vpop.f32.mrb[0].mxu0
    %v2475 = vadd.f32 0.0, %v2474
    %v2476 = vpop.f32.mrb[0].mxu0
    %2477 = vdwg.mxu0
    %v2479 = vsel %vm491, %v2053, 0
    %v2482 = vsel %vm491, %v2082, 0
    %v2485 = vsel %vm491, %v2083, 0
    %v2488 = vsel %vm491, %v2084, 0
    %v2491 = vsel %vm491, %v2085, 0
    %2493 = vmatprep.subr.bf16.mxu0 0
    %2494 = vmatpush1.bf16.xpose.msra.mxu0 %v2482
    %2495 = vmatprep.subr.bf16.mxu0 0
    %2496 = vmatpush1.bf16.xpose.msra.mxu0 %v2485
    %2497 = vmatprep.subr.bf16.mxu0 0
    %2498 = vmatpush1.bf16.xpose.msra.mxu0 %v2488
    %2499 = vmatprep.subr.bf16.mxu0 0
    %2500 = vmatpush1.bf16.xpose.msra.mxu0 %v2491
    %2501 = vmatprep.subr.bf16.mxu0 0
    %2502 = vmatpush1.bf16.xpose.msra.mxu0 0
    %2503 = vmatprep.subr.bf16.mxu0 0
    %2504 = vmatpush1.bf16.xpose.msra.mxu0 0
    %2505 = vmatprep.subr.bf16.mxu0 0
    %2506 = vmatpush1.bf16.xpose.msra.mxu0 0
    %2507 = vmatprep.subr.bf16.mxu0 0
    %2508 = vmatpush1.bf16.xpose.msra.mxu0 0
    %2509 = vmatprep.subr.bf16.mxu0 0
    %2510 = vmatpush1.bf16.xpose.msra.mxu0 0
    %2511 = vmatprep.subr.bf16.mxu0 0
    %2512 = vmatpush1.bf16.xpose.msra.mxu0 0
    %2513 = vmatprep.subr.bf16.mxu0 0
    %2514 = vmatpush1.bf16.xpose.msra.mxu0 0
    %2515 = vmatprep.subr.bf16.mxu0 0
    %2516 = vmatpush1.bf16.xpose.msra.mxu0 0
    %2517 = vmatprep.subr.bf16.mxu0 0
    %2518 = vmatpush1.bf16.xpose.msra.mxu0 0
    %2519 = vmatprep.subr.bf16.mxu0 0
    %2520 = vmatpush1.bf16.xpose.msra.mxu0 0
    %2521 = vmatprep.subr.bf16.mxu0 0
    %2522 = vmatpush1.bf16.xpose.msra.mxu0 0
    %2523 = vmatprep.subr.bf16.mxu0 0
    %2524 = vmatpush1.bf16.xpose.msra.mxu0 0
    %2525 = vmatprep.mubr.bf16.mxu0 0
    %2526 = vmatmul.mubr.bf16.gmra.mrb[0].mxu0 %v2479
    %v2527 = vpop.f32.mrb[0].mxu0
    %v2528 = vadd.f32 0.0, %v2527
    %v2529 = vpop.f32.mrb[0].mxu0
    %v2530 = vpop.f32.mrb[0].mxu0
    %v2531 = vadd.f32 0.0, %v2530
    %v2532 = vpop.f32.mrb[0].mxu0
    %2533 = vdwg.mxu0
    %vm2534 = vcmask 523264
    %v2535 = vsel %vm2534, %v2136, -inf
    %2536 = vmax.xlane.f32.xlu0 %v2535
    %v2537 = vpop.xlane.xlu0 %2536
    %v2538 = vsel %vm2534, %v2139, -inf
    %2539 = vmax.xlane.f32.xlu0 %v2538
    %v2540 = vpop.xlane.xlu0 %2539
    %v2541 = vsel %vm2534, %v2192, -inf
    %2542 = vmax.xlane.f32.xlu0 %v2541
    %v2543 = vpop.xlane.xlu0 %2542
    %v2544 = vsel %vm2534, %v2195, -inf
    %2545 = vmax.xlane.f32.xlu0 %v2544
    %v2546 = vpop.xlane.xlu0 %2545
    %v2547 = vsel %vm2534, %v2248, -inf
    %2548 = vmax.xlane.f32.xlu0 %v2547
    %v2549 = vpop.xlane.xlu0 %2548
    %v2550 = vsel %vm2534, %v2251, -inf
    %2551 = vmax.xlane.f32.xlu0 %v2550
    %v2552 = vpop.xlane.xlu0 %2551
    %v2553 = vsel %vm2534, %v2304, -inf
    %2554 = vmax.xlane.f32.xlu0 %v2553
    %v2555 = vpop.xlane.xlu0 %2554
    %v2556 = vsel %vm2534, %v2307, -inf
    %2557 = vmax.xlane.f32.xlu0 %v2556
    %v2558 = vpop.xlane.xlu0 %2557
    %v2559 = vsel %vm2534, %v2360, -inf
    %2560 = vmax.xlane.f32.xlu0 %v2559
    %v2561 = vpop.xlane.xlu0 %2560
    %v2562 = vsel %vm2534, %v2363, -inf
    %2563 = vmax.xlane.f32.xlu0 %v2562
    %v2564 = vpop.xlane.xlu0 %2563
    %v2565 = vsel %vm2534, %v2416, -inf
    %2566 = vmax.xlane.f32.xlu0 %v2565
    %v2567 = vpop.xlane.xlu0 %2566
    %v2568 = vsel %vm2534, %v2419, -inf
    %2569 = vmax.xlane.f32.xlu0 %v2568
    %v2570 = vpop.xlane.xlu0 %2569
    %v2571 = vsel %vm2534, %v2472, -inf
    %2572 = vmax.xlane.f32.xlu0 %v2571
    %v2573 = vpop.xlane.xlu0 %2572
    %v2574 = vsel %vm2534, %v2475, -inf
    %2575 = vmax.xlane.f32.xlu0 %v2574
    %v2576 = vpop.xlane.xlu0 %2575
    %v2577 = vsel %vm2534, %v2528, -inf
    %2578 = vmax.xlane.f32.xlu0 %v2577
    %v2579 = vpop.xlane.xlu0 %2578
    %v2580 = vsel %vm2534, %v2531, -inf
    %2581 = vmax.xlane.f32.xlu0 %v2580
    %v2582 = vpop.xlane.xlu0 %2581
    %v2583 = vsub.f32 %v2136, %v2537
    %v2584 = vsub.f32 %v2139, %v2540
    %v2585 = vsub.f32 %v2192, %v2543
    %v2586 = vsub.f32 %v2195, %v2546
    %v2587 = vsub.f32 %v2248, %v2549
    %v2588 = vsub.f32 %v2251, %v2552
    %v2589 = vsub.f32 %v2304, %v2555
    %v2590 = vsub.f32 %v2307, %v2558
    %v2591 = vsub.f32 %v2360, %v2561
    %v2592 = vsub.f32 %v2363, %v2564
    %v2593 = vsub.f32 %v2416, %v2567
    %v2594 = vsub.f32 %v2419, %v2570
    %v2595 = vsub.f32 %v2472, %v2573
    %v2596 = vsub.f32 %v2475, %v2576
    %v2597 = vsub.f32 %v2528, %v2579
    %v2598 = vsub.f32 %v2531, %v2582
    %v2599 = vmul.f32 %v2583, 1.442695
    %v2600 = vpow.pop %v2599
    %v2601 = vmul.f32 %v2584, 1.442695
    %v2602 = vpow.pop %v2601
    %v2603 = vmul.f32 %v2585, 1.442695
    %v2604 = vpow.pop %v2603
    %v2605 = vmul.f32 %v2586, 1.442695
    %v2606 = vpow.pop %v2605
    %v2607 = vmul.f32 %v2587, 1.442695
    %v2608 = vpow.pop %v2607
    %v2609 = vmul.f32 %v2588, 1.442695
    %v2610 = vpow.pop %v2609
    %v2611 = vmul.f32 %v2589, 1.442695
    %v2612 = vpow.pop %v2611
    %v2613 = vmul.f32 %v2590, 1.442695
    %v2614 = vpow.pop %v2613
    %v2615 = vmul.f32 %v2591, 1.442695
    %v2616 = vpow.pop %v2615
    %v2617 = vmul.f32 %v2592, 1.442695
    %v2618 = vpow.pop %v2617
    %v2619 = vmul.f32 %v2593, 1.442695
    %v2620 = vpow.pop %v2619
    %v2621 = vmul.f32 %v2594, 1.442695
    %v2622 = vpow.pop %v2621
    %v2623 = vmul.f32 %v2595, 1.442695
    %v2624 = vpow.pop %v2623
    %v2625 = vmul.f32 %v2596, 1.442695
    %v2626 = vpow.pop %v2625
    %v2627 = vmul.f32 %v2597, 1.442695
    %v2628 = vpow.pop %v2627
    %v2629 = vmul.f32 %v2598, 1.442695
    %v2630 = vpow.pop %v2629
    %v2631 = vsel %vm2534, %v2600, 0.0
    %2632 = vadd.xlane.f32.xlu0 %v2631
    %v2633 = vpop.xlane.xlu0 %2632
    %v2634 = vsel %vm2534, %v2602, 0.0
    %2635 = vadd.xlane.f32.xlu0 %v2634
    %v2636 = vpop.xlane.xlu0 %2635
    %v2637 = vsel %vm2534, %v2604, 0.0
    %2638 = vadd.xlane.f32.xlu0 %v2637
    %v2639 = vpop.xlane.xlu0 %2638
    %v2640 = vsel %vm2534, %v2606, 0.0
    %2641 = vadd.xlane.f32.xlu0 %v2640
    %v2642 = vpop.xlane.xlu0 %2641
    %v2643 = vsel %vm2534, %v2608, 0.0
    %2644 = vadd.xlane.f32.xlu0 %v2643
    %v2645 = vpop.xlane.xlu0 %2644
    %v2646 = vsel %vm2534, %v2610, 0.0
    %2647 = vadd.xlane.f32.xlu0 %v2646
    %v2648 = vpop.xlane.xlu0 %2647
    %v2649 = vsel %vm2534, %v2612, 0.0
    %2650 = vadd.xlane.f32.xlu0 %v2649
    %v2651 = vpop.xlane.xlu0 %2650
    %v2652 = vsel %vm2534, %v2614, 0.0
    %2653 = vadd.xlane.f32.xlu0 %v2652
    %v2654 = vpop.xlane.xlu0 %2653
    %v2655 = vsel %vm2534, %v2616, 0.0
    %2656 = vadd.xlane.f32.xlu0 %v2655
    %v2657 = vpop.xlane.xlu0 %2656
    %v2658 = vsel %vm2534, %v2618, 0.0
    %2659 = vadd.xlane.f32.xlu0 %v2658
    %v2660 = vpop.xlane.xlu0 %2659
    %v2661 = vsel %vm2534, %v2620, 0.0
    %2662 = vadd.xlane.f32.xlu0 %v2661
    %v2663 = vpop.xlane.xlu0 %2662
    %v2664 = vsel %vm2534, %v2622, 0.0
    %2665 = vadd.xlane.f32.xlu0 %v2664
    %v2666 = vpop.xlane.xlu0 %2665
    %v2667 = vsel %vm2534, %v2624, 0.0
    %2668 = vadd.xlane.f32.xlu0 %v2667
    %v2669 = vpop.xlane.xlu0 %2668
    %v2670 = vsel %vm2534, %v2626, 0.0
    %2671 = vadd.xlane.f32.xlu0 %v2670
    %v2672 = vpop.xlane.xlu0 %2671
    %v2673 = vsel %vm2534, %v2628, 0.0
    %2674 = vadd.xlane.f32.xlu0 %v2673
    %v2675 = vpop.xlane.xlu0 %2674
    %v2676 = vsel %vm2534, %v2630, 0.0
    %2677 = vadd.xlane.f32.xlu0 %v2676
    %v2678 = vpop.xlane.xlu0 %2677
    %v2679 = vrcp.pop %v2633
    %v2680 = vrcp.pop %v2636
    %v2681 = vrcp.pop %v2639
    %v2682 = vrcp.pop %v2642
    %v2683 = vrcp.pop %v2645
    %v2684 = vrcp.pop %v2648
    %v2685 = vrcp.pop %v2651
    %v2686 = vrcp.pop %v2654
    %v2687 = vrcp.pop %v2657
    %v2688 = vrcp.pop %v2660
    %v2689 = vrcp.pop %v2663
    %v2690 = vrcp.pop %v2666
    %v2691 = vrcp.pop %v2669
    %v2692 = vrcp.pop %v2672
    %v2693 = vrcp.pop %v2675
    %v2694 = vrcp.pop %v2678
    %v2695 = vmul.f32 %v2600, %v2679
    %v2696 = vmul.f32 %v2602, %v2680
    %v2697 = vmul.f32 %v2604, %v2681
    %v2698 = vmul.f32 %v2606, %v2682
    %v2699 = vmul.f32 %v2608, %v2683
    %v2700 = vmul.f32 %v2610, %v2684
    %v2701 = vmul.f32 %v2612, %v2685
    %v2702 = vmul.f32 %v2614, %v2686
    %v2703 = vmul.f32 %v2616, %v2687
    %v2704 = vmul.f32 %v2618, %v2688
    %v2705 = vmul.f32 %v2620, %v2689
    %v2706 = vmul.f32 %v2622, %v2690
    %v2707 = vmul.f32 %v2624, %v2691
    %v2708 = vmul.f32 %v2626, %v2692
    %v2709 = vmul.f32 %v2628, %v2693
    %v2710 = vmul.f32 %v2630, %v2694
    %v2711 = vpack.c.bf16 %v2696, %v2695
    %v2712 = vpack.c.bf16 %v2698, %v2697
    %v2713 = vpack.c.bf16 %v2700, %v2699
    %v2714 = vpack.c.bf16 %v2702, %v2701
    %v2715 = vpack.c.bf16 %v2704, %v2703
    %v2716 = vpack.c.bf16 %v2706, %v2705
    %v2717 = vpack.c.bf16 %v2708, %v2707
    %v2718 = vpack.c.bf16 %v2710, %v2709
    %2723 = vrot.lane.b32.xlu0 %v2054, 96
    %v2724 = vpop.permute.xlu0 %2723
    %2725 = vrot.lane.b32.xlu0 %v2055, 96
    %v2726 = vpop.permute.xlu0 %2725
    %2727 = vrot.lane.b32.xlu0 %v2056, 96
    %v2728 = vpop.permute.xlu0 %2727
    %2729 = vrot.lane.b32.xlu0 %v2057, 96
    %v2730 = vpop.permute.xlu0 %2729
    %v2736 = vsel %vm2534, %v2711, 0
    %2738 = vmatprep.subr.bf16.mxu0 0
    %2739 = vmatpush1.bf16.msra.mxu0 %v2724
    %2740 = vmatprep.subr.bf16.mxu0 0
    %2741 = vmatpush1.bf16.msra.mxu0 %v2726
    %2742 = vmatprep.subr.bf16.mxu0 0
    %2743 = vmatpush1.bf16.msra.mxu0 %v2728
    %2744 = vmatprep.subr.bf16.mxu0 0
    %2745 = vmatpush1.bf16.msra.mxu0 %v2730
    %2746 = vmatprep.subr.bf16.mxu0 0
    %2747 = vmatpush1.bf16.msra.mxu0 0
    %2748 = vmatprep.subr.bf16.mxu0 0
    %2749 = vmatpush1.bf16.msra.mxu0 0
    %2750 = vmatprep.subr.bf16.mxu0 0
    %2751 = vmatpush1.bf16.msra.mxu0 0
    %2752 = vmatprep.subr.bf16.mxu0 0
    %2753 = vmatpush1.bf16.msra.mxu0 0
    %2754 = vmatprep.subr.bf16.mxu0 0
    %2755 = vmatpush1.bf16.msra.mxu0 0
    %2756 = vmatprep.subr.bf16.mxu0 0
    %2757 = vmatpush1.bf16.msra.mxu0 0
    %2758 = vmatprep.subr.bf16.mxu0 0
    %2759 = vmatpush1.bf16.msra.mxu0 0
    %2760 = vmatprep.subr.bf16.mxu0 0
    %2761 = vmatpush1.bf16.msra.mxu0 0
    %2762 = vmatprep.subr.bf16.mxu0 0
    %2763 = vmatpush1.bf16.msra.mxu0 0
    %2764 = vmatprep.subr.bf16.mxu0 0
    %2765 = vmatpush1.bf16.msra.mxu0 0
    %2766 = vmatprep.subr.bf16.mxu0 0
    %2767 = vmatpush1.bf16.msra.mxu0 0
    %2768 = vmatprep.subr.bf16.mxu0 0
    %2769 = vmatpush1.bf16.msra.mxu0 0
    %2770 = vmatprep.mubr.bf16.mxu0 0
    %2771 = vmatmul.mubr.bf16.gmra.mrb[0].mxu0 %v2736
    %v2772 = vpop.f32.mrb[0].mxu0
    %v2773 = vadd.f32 0.0, %v2772
    %v2774 = vpop.f32.mrb[0].mxu0
    %v2775 = vpop.f32.mrb[0].mxu0
    %v2776 = vadd.f32 0.0, %v2775
    %v2777 = vpop.f32.mrb[0].mxu0
    %2778 = vdwg.mxu0
    %2783 = vrot.lane.b32.xlu0 %v2058, 96
    %v2784 = vpop.permute.xlu0 %2783
    %2785 = vrot.lane.b32.xlu0 %v2059, 96
    %v2786 = vpop.permute.xlu0 %2785
    %2787 = vrot.lane.b32.xlu0 %v2060, 96
    %v2788 = vpop.permute.xlu0 %2787
    %2789 = vrot.lane.b32.xlu0 %v2061, 96
    %v2790 = vpop.permute.xlu0 %2789
    %v2796 = vsel %vm2534, %v2712, 0
    %2798 = vmatprep.subr.bf16.mxu0 0
    %2799 = vmatpush1.bf16.msra.mxu0 %v2784
    %2800 = vmatprep.subr.bf16.mxu0 0
    %2801 = vmatpush1.bf16.msra.mxu0 %v2786
    %2802 = vmatprep.subr.bf16.mxu0 0
    %2803 = vmatpush1.bf16.msra.mxu0 %v2788
    %2804 = vmatprep.subr.bf16.mxu0 0
    %2805 = vmatpush1.bf16.msra.mxu0 %v2790
    %2806 = vmatprep.subr.bf16.mxu0 0
    %2807 = vmatpush1.bf16.msra.mxu0 0
    %2808 = vmatprep.subr.bf16.mxu0 0
    %2809 = vmatpush1.bf16.msra.mxu0 0
    %2810 = vmatprep.subr.bf16.mxu0 0
    %2811 = vmatpush1.bf16.msra.mxu0 0
    %2812 = vmatprep.subr.bf16.mxu0 0
    %2813 = vmatpush1.bf16.msra.mxu0 0
    %2814 = vmatprep.subr.bf16.mxu0 0
    %2815 = vmatpush1.bf16.msra.mxu0 0
    %2816 = vmatprep.subr.bf16.mxu0 0
    %2817 = vmatpush1.bf16.msra.mxu0 0
    %2818 = vmatprep.subr.bf16.mxu0 0
    %2819 = vmatpush1.bf16.msra.mxu0 0
    %2820 = vmatprep.subr.bf16.mxu0 0
    %2821 = vmatpush1.bf16.msra.mxu0 0
    %2822 = vmatprep.subr.bf16.mxu0 0
    %2823 = vmatpush1.bf16.msra.mxu0 0
    %2824 = vmatprep.subr.bf16.mxu0 0
    %2825 = vmatpush1.bf16.msra.mxu0 0
    %2826 = vmatprep.subr.bf16.mxu0 0
    %2827 = vmatpush1.bf16.msra.mxu0 0
    %2828 = vmatprep.subr.bf16.mxu0 0
    %2829 = vmatpush1.bf16.msra.mxu0 0
    %2830 = vmatprep.mubr.bf16.mxu0 0
    %2831 = vmatmul.mubr.bf16.gmra.mrb[0].mxu0 %v2796
    %v2832 = vpop.f32.mrb[0].mxu0
    %v2833 = vadd.f32 0.0, %v2832
    %v2834 = vpop.f32.mrb[0].mxu0
    %v2835 = vpop.f32.mrb[0].mxu0
    %v2836 = vadd.f32 0.0, %v2835
    %v2837 = vpop.f32.mrb[0].mxu0
    %2838 = vdwg.mxu0
    %2843 = vrot.lane.b32.xlu0 %v2062, 96
    %v2844 = vpop.permute.xlu0 %2843
    %2845 = vrot.lane.b32.xlu0 %v2063, 96
    %v2846 = vpop.permute.xlu0 %2845
    %2847 = vrot.lane.b32.xlu0 %v2064, 96
    %v2848 = vpop.permute.xlu0 %2847
    %2849 = vrot.lane.b32.xlu0 %v2065, 96
    %v2850 = vpop.permute.xlu0 %2849
    %v2856 = vsel %vm2534, %v2713, 0
    %2858 = vmatprep.subr.bf16.mxu0 0
    %2859 = vmatpush1.bf16.msra.mxu0 %v2844
    %2860 = vmatprep.subr.bf16.mxu0 0
    %2861 = vmatpush1.bf16.msra.mxu0 %v2846
    %2862 = vmatprep.subr.bf16.mxu0 0
    %2863 = vmatpush1.bf16.msra.mxu0 %v2848
    %2864 = vmatprep.subr.bf16.mxu0 0
    %2865 = vmatpush1.bf16.msra.mxu0 %v2850
    %2866 = vmatprep.subr.bf16.mxu0 0
    %2867 = vmatpush1.bf16.msra.mxu0 0
    %2868 = vmatprep.subr.bf16.mxu0 0
    %2869 = vmatpush1.bf16.msra.mxu0 0
    %2870 = vmatprep.subr.bf16.mxu0 0
    %2871 = vmatpush1.bf16.msra.mxu0 0
    %2872 = vmatprep.subr.bf16.mxu0 0
    %2873 = vmatpush1.bf16.msra.mxu0 0
    %2874 = vmatprep.subr.bf16.mxu0 0
    %2875 = vmatpush1.bf16.msra.mxu0 0
    %2876 = vmatprep.subr.bf16.mxu0 0
    %2877 = vmatpush1.bf16.msra.mxu0 0
    %2878 = vmatprep.subr.bf16.mxu0 0
    %2879 = vmatpush1.bf16.msra.mxu0 0
    %2880 = vmatprep.subr.bf16.mxu0 0
    %2881 = vmatpush1.bf16.msra.mxu0 0
    %2882 = vmatprep.subr.bf16.mxu0 0
    %2883 = vmatpush1.bf16.msra.mxu0 0
    %2884 = vmatprep.subr.bf16.mxu0 0
    %2885 = vmatpush1.bf16.msra.mxu0 0
    %2886 = vmatprep.subr.bf16.mxu0 0
    %2887 = vmatpush1.bf16.msra.mxu0 0
    %2888 = vmatprep.subr.bf16.mxu0 0
    %2889 = vmatpush1.bf16.msra.mxu0 0
    %2890 = vmatprep.mubr.bf16.mxu0 0
    %2891 = vmatmul.mubr.bf16.gmra.mrb[0].mxu0 %v2856
    %v2892 = vpop.f32.mrb[0].mxu0
    %v2893 = vadd.f32 0.0, %v2892
    %v2894 = vpop.f32.mrb[0].mxu0
    %v2895 = vpop.f32.mrb[0].mxu0
    %v2896 = vadd.f32 0.0, %v2895
    %v2897 = vpop.f32.mrb[0].mxu0
    %2898 = vdwg.mxu0
    %2903 = vrot.lane.b32.xlu0 %v2066, 96
    %v2904 = vpop.permute.xlu0 %2903
    %2905 = vrot.lane.b32.xlu0 %v2067, 96
    %v2906 = vpop.permute.xlu0 %2905
    %2907 = vrot.lane.b32.xlu0 %v2068, 96
    %v2908 = vpop.permute.xlu0 %2907
    %2909 = vrot.lane.b32.xlu0 %v2069, 96
    %v2910 = vpop.permute.xlu0 %2909
    %v2916 = vsel %vm2534, %v2714, 0
    %2918 = vmatprep.subr.bf16.mxu0 0
    %2919 = vmatpush1.bf16.msra.mxu0 %v2904
    %2920 = vmatprep.subr.bf16.mxu0 0
    %2921 = vmatpush1.bf16.msra.mxu0 %v2906
    %2922 = vmatprep.subr.bf16.mxu0 0
    %2923 = vmatpush1.bf16.msra.mxu0 %v2908
    %2924 = vmatprep.subr.bf16.mxu0 0
    %2925 = vmatpush1.bf16.msra.mxu0 %v2910
    %2926 = vmatprep.subr.bf16.mxu0 0
    %2927 = vmatpush1.bf16.msra.mxu0 0
    %2928 = vmatprep.subr.bf16.mxu0 0
    %2929 = vmatpush1.bf16.msra.mxu0 0
    %2930 = vmatprep.subr.bf16.mxu0 0
    %2931 = vmatpush1.bf16.msra.mxu0 0
    %2932 = vmatprep.subr.bf16.mxu0 0
    %2933 = vmatpush1.bf16.msra.mxu0 0
    %2934 = vmatprep.subr.bf16.mxu0 0
    %2935 = vmatpush1.bf16.msra.mxu0 0
    %2936 = vmatprep.subr.bf16.mxu0 0
    %2937 = vmatpush1.bf16.msra.mxu0 0
    %2938 = vmatprep.subr.bf16.mxu0 0
    %2939 = vmatpush1.bf16.msra.mxu0 0
    %2940 = vmatprep.subr.bf16.mxu0 0
    %2941 = vmatpush1.bf16.msra.mxu0 0
    %2942 = vmatprep.subr.bf16.mxu0 0
    %2943 = vmatpush1.bf16.msra.mxu0 0
    %2944 = vmatprep.subr.bf16.mxu0 0
    %2945 = vmatpush1.bf16.msra.mxu0 0
    %2946 = vmatprep.subr.bf16.mxu0 0
    %2947 = vmatpush1.bf16.msra.mxu0 0
    %2948 = vmatprep.subr.bf16.mxu0 0
    %2949 = vmatpush1.bf16.msra.mxu0 0
    %2950 = vmatprep.mubr.bf16.mxu0 0
    %2951 = vmatmul.mubr.bf16.gmra.mrb[0].mxu0 %v2916
    %v2952 = vpop.f32.mrb[0].mxu0
    %v2953 = vadd.f32 0.0, %v2952
    %v2954 = vpop.f32.mrb[0].mxu0
    %v2955 = vpop.f32.mrb[0].mxu0
    %v2956 = vadd.f32 0.0, %v2955
    %v2957 = vpop.f32.mrb[0].mxu0
    %2958 = vdwg.mxu0
    %2963 = vrot.lane.b32.xlu0 %v2070, 96
    %v2964 = vpop.permute.xlu0 %2963
    %2965 = vrot.lane.b32.xlu0 %v2071, 96
    %v2966 = vpop.permute.xlu0 %2965
    %2967 = vrot.lane.b32.xlu0 %v2072, 96
    %v2968 = vpop.permute.xlu0 %2967
    %2969 = vrot.lane.b32.xlu0 %v2073, 96
    %v2970 = vpop.permute.xlu0 %2969
    %v2976 = vsel %vm2534, %v2715, 0
    %2978 = vmatprep.subr.bf16.mxu0 0
    %2979 = vmatpush1.bf16.msra.mxu0 %v2964
    %2980 = vmatprep.subr.bf16.mxu0 0
    %2981 = vmatpush1.bf16.msra.mxu0 %v2966
    %2982 = vmatprep.subr.bf16.mxu0 0
    %2983 = vmatpush1.bf16.msra.mxu0 %v2968
    %2984 = vmatprep.subr.bf16.mxu0 0
    %2985 = vmatpush1.bf16.msra.mxu0 %v2970
    %2986 = vmatprep.subr.bf16.mxu0 0
    %2987 = vmatpush1.bf16.msra.mxu0 0
    %2988 = vmatprep.subr.bf16.mxu0 0
    %2989 = vmatpush1.bf16.msra.mxu0 0
    %2990 = vmatprep.subr.bf16.mxu0 0
    %2991 = vmatpush1.bf16.msra.mxu0 0
    %2992 = vmatprep.subr.bf16.mxu0 0
    %2993 = vmatpush1.bf16.msra.mxu0 0
    %2994 = vmatprep.subr.bf16.mxu0 0
    %2995 = vmatpush1.bf16.msra.mxu0 0
    %2996 = vmatprep.subr.bf16.mxu0 0
    %2997 = vmatpush1.bf16.msra.mxu0 0
    %2998 = vmatprep.subr.bf16.mxu0 0
    %2999 = vmatpush1.bf16.msra.mxu0 0
    %3000 = vmatprep.subr.bf16.mxu0 0
    %3001 = vmatpush1.bf16.msra.mxu0 0
    %3002 = vmatprep.subr.bf16.mxu0 0
    %3003 = vmatpush1.bf16.msra.mxu0 0
    %3004 = vmatprep.subr.bf16.mxu0 0
    %3005 = vmatpush1.bf16.msra.mxu0 0
    %3006 = vmatprep.subr.bf16.mxu0 0
    %3007 = vmatpush1.bf16.msra.mxu0 0
    %3008 = vmatprep.subr.bf16.mxu0 0
    %3009 = vmatpush1.bf16.msra.mxu0 0
    %3010 = vmatprep.mubr.bf16.mxu0 0
    %3011 = vmatmul.mubr.bf16.gmra.mrb[0].mxu0 %v2976
    %v3012 = vpop.f32.mrb[0].mxu0
    %v3013 = vadd.f32 0.0, %v3012
    %v3014 = vpop.f32.mrb[0].mxu0
    %v3015 = vpop.f32.mrb[0].mxu0
    %v3016 = vadd.f32 0.0, %v3015
    %v3017 = vpop.f32.mrb[0].mxu0
    %3018 = vdwg.mxu0
    %3023 = vrot.lane.b32.xlu0 %v2074, 96
    %v3024 = vpop.permute.xlu0 %3023
    %3025 = vrot.lane.b32.xlu0 %v2075, 96
    %v3026 = vpop.permute.xlu0 %3025
    %3027 = vrot.lane.b32.xlu0 %v2076, 96
    %v3028 = vpop.permute.xlu0 %3027
    %3029 = vrot.lane.b32.xlu0 %v2077, 96
    %v3030 = vpop.permute.xlu0 %3029
    %v3036 = vsel %vm2534, %v2716, 0
    %3038 = vmatprep.subr.bf16.mxu0 0
    %3039 = vmatpush1.bf16.msra.mxu0 %v3024
    %3040 = vmatprep.subr.bf16.mxu0 0
    %3041 = vmatpush1.bf16.msra.mxu0 %v3026
    %3042 = vmatprep.subr.bf16.mxu0 0
    %3043 = vmatpush1.bf16.msra.mxu0 %v3028
    %3044 = vmatprep.subr.bf16.mxu0 0
    %3045 = vmatpush1.bf16.msra.mxu0 %v3030
    %3046 = vmatprep.subr.bf16.mxu0 0
    %3047 = vmatpush1.bf16.msra.mxu0 0
    %3048 = vmatprep.subr.bf16.mxu0 0
    %3049 = vmatpush1.bf16.msra.mxu0 0
    %3050 = vmatprep.subr.bf16.mxu0 0
    %3051 = vmatpush1.bf16.msra.mxu0 0
    %3052 = vmatprep.subr.bf16.mxu0 0
    %3053 = vmatpush1.bf16.msra.mxu0 0
    %3054 = vmatprep.subr.bf16.mxu0 0
    %3055 = vmatpush1.bf16.msra.mxu0 0
    %3056 = vmatprep.subr.bf16.mxu0 0
    %3057 = vmatpush1.bf16.msra.mxu0 0
    %3058 = vmatprep.subr.bf16.mxu0 0
    %3059 = vmatpush1.bf16.msra.mxu0 0
    %3060 = vmatprep.subr.bf16.mxu0 0
    %3061 = vmatpush1.bf16.msra.mxu0 0
    %3062 = vmatprep.subr.bf16.mxu0 0
    %3063 = vmatpush1.bf16.msra.mxu0 0
    %3064 = vmatprep.subr.bf16.mxu0 0
    %3065 = vmatpush1.bf16.msra.mxu0 0
    %3066 = vmatprep.subr.bf16.mxu0 0
    %3067 = vmatpush1.bf16.msra.mxu0 0
    %3068 = vmatprep.subr.bf16.mxu0 0
    %3069 = vmatpush1.bf16.msra.mxu0 0
    %3070 = vmatprep.mubr.bf16.mxu0 0
    %3071 = vmatmul.mubr.bf16.gmra.mrb[0].mxu0 %v3036
    %v3072 = vpop.f32.mrb[0].mxu0
    %v3073 = vadd.f32 0.0, %v3072
    %v3074 = vpop.f32.mrb[0].mxu0
    %v3075 = vpop.f32.mrb[0].mxu0
    %v3076 = vadd.f32 0.0, %v3075
    %v3077 = vpop.f32.mrb[0].mxu0
    %3078 = vdwg.mxu0
    %3083 = vrot.lane.b32.xlu0 %v2078, 96
    %v3084 = vpop.permute.xlu0 %3083
    %3085 = vrot.lane.b32.xlu0 %v2079, 96
    %v3086 = vpop.permute.xlu0 %3085
    %3087 = vrot.lane.b32.xlu0 %v2080, 96
    %v3088 = vpop.permute.xlu0 %3087
    %3089 = vrot.lane.b32.xlu0 %v2081, 96
    %v3090 = vpop.permute.xlu0 %3089
    %v3096 = vsel %vm2534, %v2717, 0
    %3098 = vmatprep.subr.bf16.mxu0 0
    %3099 = vmatpush1.bf16.msra.mxu0 %v3084
    %3100 = vmatprep.subr.bf16.mxu0 0
    %3101 = vmatpush1.bf16.msra.mxu0 %v3086
    %3102 = vmatprep.subr.bf16.mxu0 0
    %3103 = vmatpush1.bf16.msra.mxu0 %v3088
    %3104 = vmatprep.subr.bf16.mxu0 0
    %3105 = vmatpush1.bf16.msra.mxu0 %v3090
    %3106 = vmatprep.subr.bf16.mxu0 0
    %3107 = vmatpush1.bf16.msra.mxu0 0
    %3108 = vmatprep.subr.bf16.mxu0 0
    %3109 = vmatpush1.bf16.msra.mxu0 0
    %3110 = vmatprep.subr.bf16.mxu0 0
    %3111 = vmatpush1.bf16.msra.mxu0 0
    %3112 = vmatprep.subr.bf16.mxu0 0
    %3113 = vmatpush1.bf16.msra.mxu0 0
    %3114 = vmatprep.subr.bf16.mxu0 0
    %3115 = vmatpush1.bf16.msra.mxu0 0
    %3116 = vmatprep.subr.bf16.mxu0 0
    %3117 = vmatpush1.bf16.msra.mxu0 0
    %3118 = vmatprep.subr.bf16.mxu0 0
    %3119 = vmatpush1.bf16.msra.mxu0 0
    %3120 = vmatprep.subr.bf16.mxu0 0
    %3121 = vmatpush1.bf16.msra.mxu0 0
    %3122 = vmatprep.subr.bf16.mxu0 0
    %3123 = vmatpush1.bf16.msra.mxu0 0
    %3124 = vmatprep.subr.bf16.mxu0 0
    %3125 = vmatpush1.bf16.msra.mxu0 0
    %3126 = vmatprep.subr.bf16.mxu0 0
    %3127 = vmatpush1.bf16.msra.mxu0 0
    %3128 = vmatprep.subr.bf16.mxu0 0
    %3129 = vmatpush1.bf16.msra.mxu0 0
    %3130 = vmatprep.mubr.bf16.mxu0 0
    %3131 = vmatmul.mubr.bf16.gmra.mrb[0].mxu0 %v3096
    %v3132 = vpop.f32.mrb[0].mxu0
    %v3133 = vadd.f32 0.0, %v3132
    %v3134 = vpop.f32.mrb[0].mxu0
    %v3135 = vpop.f32.mrb[0].mxu0
    %v3136 = vadd.f32 0.0, %v3135
    %v3137 = vpop.f32.mrb[0].mxu0
    %3138 = vdwg.mxu0
    %3143 = vrot.lane.b32.xlu0 %v2082, 96
    %v3144 = vpop.permute.xlu0 %3143
    %3145 = vrot.lane.b32.xlu0 %v2083, 96
    %v3146 = vpop.permute.xlu0 %3145
    %3147 = vrot.lane.b32.xlu0 %v2084, 96
    %v3148 = vpop.permute.xlu0 %3147
    %3149 = vrot.lane.b32.xlu0 %v2085, 96
    %v3150 = vpop.permute.xlu0 %3149
    %v3156 = vsel %vm2534, %v2718, 0
    %3158 = vmatprep.subr.bf16.mxu0 0
    %3159 = vmatpush1.bf16.msra.mxu0 %v3144
    %3160 = vmatprep.subr.bf16.mxu0 0
    %3161 = vmatpush1.bf16.msra.mxu0 %v3146
    %3162 = vmatprep.subr.bf16.mxu0 0
    %3163 = vmatpush1.bf16.msra.mxu0 %v3148
    %3164 = vmatprep.subr.bf16.mxu0 0
    %3165 = vmatpush1.bf16.msra.mxu0 %v3150
    %3166 = vmatprep.subr.bf16.mxu0 0
    %3167 = vmatpush1.bf16.msra.mxu0 0
    %3168 = vmatprep.subr.bf16.mxu0 0
    %3169 = vmatpush1.bf16.msra.mxu0 0
    %3170 = vmatprep.subr.bf16.mxu0 0
    %3171 = vmatpush1.bf16.msra.mxu0 0
    %3172 = vmatprep.subr.bf16.mxu0 0
    %3173 = vmatpush1.bf16.msra.mxu0 0
    %3174 = vmatprep.subr.bf16.mxu0 0
    %3175 = vmatpush1.bf16.msra.mxu0 0
    %3176 = vmatprep.subr.bf16.mxu0 0
    %3177 = vmatpush1.bf16.msra.mxu0 0
    %3178 = vmatprep.subr.bf16.mxu0 0
    %3179 = vmatpush1.bf16.msra.mxu0 0
    %3180 = vmatprep.subr.bf16.mxu0 0
    %3181 = vmatpush1.bf16.msra.mxu0 0
    %3182 = vmatprep.subr.bf16.mxu0 0
    %3183 = vmatpush1.bf16.msra.mxu0 0
    %3184 = vmatprep.subr.bf16.mxu0 0
    %3185 = vmatpush1.bf16.msra.mxu0 0
    %3186 = vmatprep.subr.bf16.mxu0 0
    %3187 = vmatpush1.bf16.msra.mxu0 0
    %3188 = vmatprep.subr.bf16.mxu0 0
    %3189 = vmatpush1.bf16.msra.mxu0 0
    %3190 = vmatprep.mubr.bf16.mxu0 0
    %3191 = vmatmul.mubr.bf16.gmra.mrb[0].mxu0 %v3156
    %v3192 = vpop.f32.mrb[0].mxu0
    %v3193 = vadd.f32 0.0, %v3192
    %v3194 = vpop.f32.mrb[0].mxu0
    %v3195 = vpop.f32.mrb[0].mxu0
    %v3196 = vadd.f32 0.0, %v3195
    %v3197 = vpop.f32.mrb[0].mxu0
    %3198 = vdwg.mxu0
    %3203 = vrot.lane.b32.xlu0 %v2893, 8
    %v3204 = vpop.permute.xlu0 %3203
    %3205 = vrot.lane.b32.xlu0 %v2896, 8
    %v3206 = vpop.permute.xlu0 %3205
    %3207 = vrot.lane.b32.xlu0 %v2953, 8
    %v3208 = vpop.permute.xlu0 %3207
    %3209 = vrot.lane.b32.xlu0 %v2956, 8
    %v3210 = vpop.permute.xlu0 %3209
    %3219 = vrot.lane.b32.xlu0 %v3013, 16
    %v3220 = vpop.permute.xlu0 %3219
    %3221 = vrot.lane.b32.xlu0 %v3016, 16
    %v3222 = vpop.permute.xlu0 %3221
    %3223 = vrot.lane.b32.xlu0 %v3073, 16
    %v3224 = vpop.permute.xlu0 %3223
    %3225 = vrot.lane.b32.xlu0 %v3076, 16
    %v3226 = vpop.permute.xlu0 %3225
    %3235 = vrot.lane.b32.xlu0 %v3133, 24
    %v3236 = vpop.permute.xlu0 %3235
    %3237 = vrot.lane.b32.xlu0 %v3136, 24
    %v3238 = vpop.permute.xlu0 %3237
    %3239 = vrot.lane.b32.xlu0 %v3193, 24
    %v3240 = vpop.permute.xlu0 %3239
    %3241 = vrot.lane.b32.xlu0 %v3196, 24
    %v3242 = vpop.permute.xlu0 %3241
    %v3247 = vsel %vm491, %v2773, %v3204
    %v3248 = vsel %vm491, %v2776, %v3206
    %v3249 = vsel %vm491, %v2833, %v3208
    %v3250 = vsel %vm491, %v2836, %v3210
    %v3251 = vsel %vm889, %v3247, %v3220
    %v3252 = vsel %vm889, %v3248, %v3222
    %v3253 = vsel %vm889, %v3249, %v3224
    %v3254 = vsel %vm889, %v3250, %v3226
    %v3255 = vsel %vm1506, %v3251, %v3236
    %v3256 = vsel %vm1506, %v3252, %v3238
    %v3257 = vsel %vm1506, %v3253, %v3240
    %v3258 = vsel %vm1506, %v3254, %v3242
    %s3259 = scalar_lea.vmem %s6, 16
    %v3260 = vld [vmem:[%s3259] sm:$0xf]
    %v3261 = vld [vmem:[%s3259 + $0x4] sm:$0xf]
    %v3262 = vld [vmem:[%s3259 + $0x8] sm:$0xf]
    %v3263 = vld [vmem:[%s3259 + $0xc] sm:$0xf]
    %v3264 = vpack.c.bf16 %v3256, %v3255
    %v3265 = vpack.c.bf16 %v3258, %v3257
    %v3266 = vlaneseq
    %v3267 = vshrl.u32 %v3266, 7
    %v3268 = vsub.s32 0, %v3267
    %v3269 = vrot.slane %v51, %v3268
    %v3274 = vunpack.c.l.b16 %v3260
    %v3275 = vunpack.c.l.b16 %v3261
    %v3276 = vunpack.c.l.b16 %v3262
    %v3277 = vunpack.c.l.b16 %v3263
    %v3278 = vpack.c.b16 %v3275, %v3274
    %v3279 = vpack.c.b16 %v3277, %v3276
    %v3283 = vsel %vm105, %v3264, 0
    %v3286 = vsel %vm105, %v3265, 0
    %3288 = vmatprep.subr.bf16.mxu0 0
    %3289 = vmatpush1.bf16.msra.mxu0 %v3278
    %3290 = vmatprep.subr.bf16.mxu0 0
    %3291 = vmatpush1.bf16.msra.mxu0 %v3279
    %3292 = vmatprep.subr.bf16.mxu0 0
    %3293 = vmatpush1.bf16.msra.mxu0 0
    %3294 = vmatprep.subr.bf16.mxu0 0
    %3295 = vmatpush1.bf16.msra.mxu0 0
    %3296 = vmatprep.subr.bf16.mxu0 0
    %3297 = vmatpush1.bf16.msra.mxu0 0
    %3298 = vmatprep.subr.bf16.mxu0 0
    %3299 = vmatpush1.bf16.msra.mxu0 0
    %3300 = vmatprep.subr.bf16.mxu0 0
    %3301 = vmatpush1.bf16.msra.mxu0 0
    %3302 = vmatprep.subr.bf16.mxu0 0
    %3303 = vmatpush1.bf16.msra.mxu0 0
    %3304 = vmatprep.subr.bf16.mxu0 0
    %3305 = vmatpush1.bf16.msra.mxu0 0
    %3306 = vmatprep.subr.bf16.mxu0 0
    %3307 = vmatpush1.bf16.msra.mxu0 0
    %3308 = vmatprep.subr.bf16.mxu0 0
    %3309 = vmatpush1.bf16.msra.mxu0 0
    %3310 = vmatprep.subr.bf16.mxu0 0
    %3311 = vmatpush1.bf16.msra.mxu0 0
    %3312 = vmatprep.subr.bf16.mxu0 0
    %3313 = vmatpush1.bf16.msra.mxu0 0
    %3314 = vmatprep.subr.bf16.mxu0 0
    %3315 = vmatpush1.bf16.msra.mxu0 0
    %3316 = vmatprep.subr.bf16.mxu0 0
    %3317 = vmatpush1.bf16.msra.mxu0 0
    %3318 = vmatprep.subr.bf16.mxu0 0
    %3319 = vmatpush1.bf16.msra.mxu0 0
    %3320 = vmatprep.mubr.bf16.mxu0 0
    %3321 = vmatmul.mubr.bf16.gmra.mrb[0].mxu0 %v3283
    %v3322 = vpop.f32.mrb[0].mxu0
    %v3323 = vadd.f32 %v3269, %v3322
    %v3324 = vpop.f32.mrb[0].mxu0
    %v3325 = vpop.f32.mrb[0].mxu0
    %v3326 = vadd.f32 %v3269, %v3325
    %v3327 = vpop.f32.mrb[0].mxu0
    %3328 = vmatprep.mubr.bf16.mxu0 0
    %3329 = vmatmul.mubr.bf16.gmra.mrb[0].mxu0 %v3286
    %v3330 = vpop.f32.mrb[0].mxu0
    %v3331 = vadd.f32 %v3269, %v3330
    %v3332 = vpop.f32.mrb[0].mxu0
    %v3333 = vpop.f32.mrb[0].mxu0
    %v3334 = vadd.f32 %v3269, %v3333
    %v3335 = vpop.f32.mrb[0].mxu0
    %3336 = vdwg.mxu0
    %v3337 = vld [vmem:[%s8] sm:$0xf]
    %v3338 = vld [vmem:[%s8 + $0x4] sm:$0xf]
    %v3339 = vld [vmem:[%s8 + $0x8] sm:$0xf]
    %v3340 = vld [vmem:[%s8 + $0xc] sm:$0xf]
    %v3341 = vpack.c.bf16 %v3326, %v3323
    %v3342 = vpack.c.bf16 %v3334, %v3331
    %v3343 = vlaneseq
    %v3344 = vshrl.u32 %v3343, 7
    %v3345 = vsub.s32 0, %v3344
    %v3346 = vrot.slane %v53, %v3345
    %v3351 = vunpack.c.l.b16 %v3337
    %v3352 = vunpack.c.l.b16 %v3338
    %v3353 = vunpack.c.l.b16 %v3339
    %v3354 = vunpack.c.l.b16 %v3340
    %v3355 = vpack.c.b16 %v3352, %v3351
    %v3356 = vpack.c.b16 %v3354, %v3353
    %v3360 = vsel %vm105, %v3341, 0
    %v3363 = vsel %vm105, %v3342, 0
    %3365 = vmatprep.subr.bf16.mxu0 0
    %3366 = vmatpush1.bf16.msra.mxu0 %v3355
    %3367 = vmatprep.subr.bf16.mxu0 0
    %3368 = vmatpush1.bf16.msra.mxu0 %v3356
    %3369 = vmatprep.subr.bf16.mxu0 0
    %3370 = vmatpush1.bf16.msra.mxu0 0
    %3371 = vmatprep.subr.bf16.mxu0 0
    %3372 = vmatpush1.bf16.msra.mxu0 0
    %3373 = vmatprep.subr.bf16.mxu0 0
    %3374 = vmatpush1.bf16.msra.mxu0 0
    %3375 = vmatprep.subr.bf16.mxu0 0
    %3376 = vmatpush1.bf16.msra.mxu0 0
    %3377 = vmatprep.subr.bf16.mxu0 0
    %3378 = vmatpush1.bf16.msra.mxu0 0
    %3379 = vmatprep.subr.bf16.mxu0 0
    %3380 = vmatpush1.bf16.msra.mxu0 0
    %3381 = vmatprep.subr.bf16.mxu0 0
    %3382 = vmatpush1.bf16.msra.mxu0 0
    %3383 = vmatprep.subr.bf16.mxu0 0
    %3384 = vmatpush1.bf16.msra.mxu0 0
    %3385 = vmatprep.subr.bf16.mxu0 0
    %3386 = vmatpush1.bf16.msra.mxu0 0
    %3387 = vmatprep.subr.bf16.mxu0 0
    %3388 = vmatpush1.bf16.msra.mxu0 0
    %3389 = vmatprep.subr.bf16.mxu0 0
    %3390 = vmatpush1.bf16.msra.mxu0 0
    %3391 = vmatprep.subr.bf16.mxu0 0
    %3392 = vmatpush1.bf16.msra.mxu0 0
    %3393 = vmatprep.subr.bf16.mxu0 0
    %3394 = vmatpush1.bf16.msra.mxu0 0
    %3395 = vmatprep.subr.bf16.mxu0 0
    %3396 = vmatpush1.bf16.msra.mxu0 0
    %3397 = vmatprep.mubr.bf16.mxu0 0
    %3398 = vmatmul.mubr.bf16.gmra.mrb[0].mxu0 %v3360
    %v3399 = vpop.f32.mrb[0].mxu0
    %v3400 = vadd.f32 %v3346, %v3399
    %v3401 = vpop.f32.mrb[0].mxu0
    %v3402 = vpop.f32.mrb[0].mxu0
    %v3403 = vadd.f32 %v3346, %v3402
    %v3404 = vpop.f32.mrb[0].mxu0
    %3405 = vmatprep.mubr.bf16.mxu0 0
    %3406 = vmatmul.mubr.bf16.gmra.mrb[0].mxu0 %v3363
    %v3407 = vpop.f32.mrb[0].mxu0
    %v3408 = vadd.f32 %v3346, %v3407
    %v3409 = vpop.f32.mrb[0].mxu0
    %v3410 = vpop.f32.mrb[0].mxu0
    %v3411 = vadd.f32 %v3346, %v3410
    %v3412 = vpop.f32.mrb[0].mxu0
    %3413 = vdwg.mxu0
    %vm3414 = vcmp.gt.f32.partialorder %v3400, 0.0
    %vm3415 = vcmp.gt.f32.partialorder %v3403, 0.0
    %vm3416 = vcmp.gt.f32.partialorder %v3408, 0.0
    %vm3417 = vcmp.gt.f32.partialorder %v3411, 0.0
    %v3418 = vmin.f32 %v3400, 0.0
    %v3419 = vmin.f32 %v3403, 0.0
    %v3420 = vmin.f32 %v3408, 0.0
    %v3421 = vmin.f32 %v3411, 0.0
    %v3422 = vmul.f32 %v3418, 1.442695
    %v3423 = vpow.pop %v3422
    %v3424 = vmul.f32 %v3419, 1.442695
    %v3425 = vpow.pop %v3424
    %v3426 = vmul.f32 %v3420, 1.442695
    %v3427 = vpow.pop %v3426
    %v3428 = vmul.f32 %v3421, 1.442695
    %v3429 = vpow.pop %v3428
    %v3430 = vsub.f32 %v3423, 1.0
    %v3431 = vsub.f32 %v3425, 1.0
    %v3432 = vsub.f32 %v3427, 1.0
    %v3433 = vsub.f32 %v3429, 1.0
    %v3434 = vmul.f32 %v3430, 1.6732632
    %v3435 = vmul.f32 %v3431, 1.6732632
    %v3436 = vmul.f32 %v3432, 1.6732632
    %v3437 = vmul.f32 %v3433, 1.6732632
    %v3438 = vsel %vm3414, %v3400, %v3434
    %v3439 = vsel %vm3415, %v3403, %v3435
    %v3440 = vsel %vm3416, %v3408, %v3436
    %v3441 = vsel %vm3417, %v3411, %v3437
    %v3442 = vmul.f32 %v3438, 1.050701
    %v3443 = vmul.f32 %v3439, 1.050701
    %v3444 = vmul.f32 %v3440, 1.050701
    %v3445 = vmul.f32 %v3441, 1.050701
    %v3446 = vld [vmem:[%s10] sm:$0xf]
    %v3447 = vld [vmem:[%s10 + $0x4] sm:$0xf]
    %v3448 = vld [vmem:[%s10 + $0x8] sm:$0xf]
    %v3449 = vld [vmem:[%s10 + $0xc] sm:$0xf]
    %v3450 = vld [vmem:[%s10 + $0x10] sm:$0xf]
    %v3451 = vld [vmem:[%s10 + $0x14] sm:$0xf]
    %v3452 = vld [vmem:[%s10 + $0x18] sm:$0xf]
    %v3453 = vld [vmem:[%s10 + $0x1c] sm:$0xf]
    %v3454 = vpack.c.bf16 %v3443, %v3442
    %v3455 = vpack.c.bf16 %v3445, %v3444
    %v3456 = vlaneseq
    %v3457 = vshrl.u32 %v3456, 7
    %v3458 = vsub.s32 0, %v3457
    %v3459 = vrot.slane %v56, %v3458
    %v3468 = vunpack.c.l.b16 %v3446
    %v3469 = vunpack.c.l.b16 %v3447
    %v3470 = vunpack.c.l.b16 %v3448
    %v3471 = vunpack.c.l.b16 %v3449
    %v3472 = vunpack.c.l.b16 %v3450
    %v3473 = vunpack.c.l.b16 %v3451
    %v3474 = vunpack.c.l.b16 %v3452
    %v3475 = vunpack.c.l.b16 %v3453
    %v3476 = vpack.c.b16 %v3469, %v3468
    %v3477 = vpack.c.b16 %v3471, %v3470
    %v3478 = vpack.c.b16 %v3473, %v3472
    %v3479 = vpack.c.b16 %v3475, %v3474
    %v3485 = vsel %vm2534, %v3454, 0
    %v3488 = vsel %vm2534, %v3455, 0
    %3490 = vmatprep.subr.bf16.mxu0 0
    %3491 = vmatpush1.bf16.msra.mxu0 %v3476
    %3492 = vmatprep.subr.bf16.mxu0 0
    %3493 = vmatpush1.bf16.msra.mxu0 %v3477
    %3494 = vmatprep.subr.bf16.mxu0 0
    %3495 = vmatpush1.bf16.msra.mxu0 %v3478
    %3496 = vmatprep.subr.bf16.mxu0 0
    %3497 = vmatpush1.bf16.msra.mxu0 %v3479
    %3498 = vmatprep.subr.bf16.mxu0 0
    %3499 = vmatpush1.bf16.msra.mxu0 0
    %3500 = vmatprep.subr.bf16.mxu0 0
    %3501 = vmatpush1.bf16.msra.mxu0 0
    %3502 = vmatprep.subr.bf16.mxu0 0
    %3503 = vmatpush1.bf16.msra.mxu0 0
    %3504 = vmatprep.subr.bf16.mxu0 0
    %3505 = vmatpush1.bf16.msra.mxu0 0
    %3506 = vmatprep.subr.bf16.mxu0 0
    %3507 = vmatpush1.bf16.msra.mxu0 0
    %3508 = vmatprep.subr.bf16.mxu0 0
    %3509 = vmatpush1.bf16.msra.mxu0 0
    %3510 = vmatprep.subr.bf16.mxu0 0
    %3511 = vmatpush1.bf16.msra.mxu0 0
    %3512 = vmatprep.subr.bf16.mxu0 0
    %3513 = vmatpush1.bf16.msra.mxu0 0
    %3514 = vmatprep.subr.bf16.mxu0 0
    %3515 = vmatpush1.bf16.msra.mxu0 0
    %3516 = vmatprep.subr.bf16.mxu0 0
    %3517 = vmatpush1.bf16.msra.mxu0 0
    %3518 = vmatprep.subr.bf16.mxu0 0
    %3519 = vmatpush1.bf16.msra.mxu0 0
    %3520 = vmatprep.subr.bf16.mxu0 0
    %3521 = vmatpush1.bf16.msra.mxu0 0
    %3522 = vmatprep.mubr.bf16.mxu0 0
    %3523 = vmatmul.mubr.bf16.gmra.mrb[0].mxu0 %v3485
    %v3524 = vpop.f32.mrb[0].mxu0
    %v3525 = vadd.f32 %v3459, %v3524
    %v3526 = vpop.f32.mrb[0].mxu0
    %v3527 = vpop.f32.mrb[0].mxu0
    %v3528 = vadd.f32 %v3459, %v3527
    %v3529 = vpop.f32.mrb[0].mxu0
    %3530 = vmatprep.mubr.bf16.mxu0 0
    %3531 = vmatmul.mubr.bf16.gmra.mrb[0].mxu0 %v3488
    %v3532 = vpop.f32.mrb[0].mxu0
    %v3533 = vadd.f32 %v3459, %v3532
    %v3534 = vpop.f32.mrb[0].mxu0
    %v3535 = vpop.f32.mrb[0].mxu0
    %v3536 = vadd.f32 %v3459, %v3535
    %v3537 = vpop.f32.mrb[0].mxu0
    %3538 = vdwg.mxu0
    %v3539 = vadd.f32 %v3525, %v3323
    %v3540 = vadd.f32 %v3528, %v3326
    %v3541 = vadd.f32 %v3533, %v3331
    %v3542 = vadd.f32 %v3536, %v3334
    %v3543 = vld [vmem:[%s4] sm:$0xf]
    %v3544 = vld [vmem:[%s4 + $0x4] sm:$0xf]
    %v3545 = vld [vmem:[%s4 + $0x8] sm:$0xf]
    %v3546 = vld [vmem:[%s4 + $0xc] sm:$0xf]
    %v3547 = vpack.c.bf16 %v3540, %v3539
    %v3548 = vpack.c.bf16 %v3542, %v3541
    %v3553 = vunpack.c.l.b16 %v3543
    %v3554 = vunpack.c.l.b16 %v3544
    %v3555 = vunpack.c.l.b16 %v3545
    %v3556 = vunpack.c.l.b16 %v3546
    %v3557 = vpack.c.b16 %v3554, %v3553
    %v3558 = vpack.c.b16 %v3556, %v3555
    %v3562 = vsel %vm105, %v3547, 0
    %v3565 = vsel %vm105, %v3548, 0
    %3567 = vmatprep.subr.bf16.mxu0 0
    %3568 = vmatpush1.bf16.msra.mxu0 %v3557
    %3569 = vmatprep.subr.bf16.mxu0 0
    %3570 = vmatpush1.bf16.msra.mxu0 %v3558
    %3571 = vmatprep.subr.bf16.mxu0 0
    %3572 = vmatpush1.bf16.msra.mxu0 0
    %3573 = vmatprep.subr.bf16.mxu0 0
    %3574 = vmatpush1.bf16.msra.mxu0 0
    %3575 = vmatprep.subr.bf16.mxu0 0
    %3576 = vmatpush1.bf16.msra.mxu0 0
    %3577 = vmatprep.subr.bf16.mxu0 0
    %3578 = vmatpush1.bf16.msra.mxu0 0
    %3579 = vmatprep.subr.bf16.mxu0 0
    %3580 = vmatpush1.bf16.msra.mxu0 0
    %3581 = vmatprep.subr.bf16.mxu0 0
    %3582 = vmatpush1.bf16.msra.mxu0 0
    %3583 = vmatprep.subr.bf16.mxu0 0
    %3584 = vmatpush1.bf16.msra.mxu0 0
    %3585 = vmatprep.subr.bf16.mxu0 0
    %3586 = vmatpush1.bf16.msra.mxu0 0
    %3587 = vmatprep.subr.bf16.mxu0 0
    %3588 = vmatpush1.bf16.msra.mxu0 0
    %3589 = vmatprep.subr.bf16.mxu0 0
    %3590 = vmatpush1.bf16.msra.mxu0 0
    %3591 = vmatprep.subr.bf16.mxu0 0
    %3592 = vmatpush1.bf16.msra.mxu0 0
    %3593 = vmatprep.subr.bf16.mxu0 0
    %3594 = vmatpush1.bf16.msra.mxu0 0
    %3595 = vmatprep.subr.bf16.mxu0 0
    %3596 = vmatpush1.bf16.msra.mxu0 0
    %3597 = vmatprep.subr.bf16.mxu0 0
    %3598 = vmatpush1.bf16.msra.mxu0 0
    %3599 = vmatprep.mubr.bf16.mxu0 0
    %3600 = vmatmul.mubr.bf16.gmra.mrb[0].mxu0 %v3562
    %v3601 = vpop.f32.mrb[0].mxu0
    %v3602 = vadd.f32 %v320, %v3601
    %v3603 = vpop.f32.mrb[0].mxu0
    %v3604 = vpop.f32.mrb[0].mxu0
    %v3605 = vadd.f32 %v320, %v3604
    %v3606 = vpop.f32.mrb[0].mxu0
    %3607 = vmatprep.mubr.bf16.mxu0 0
    %3608 = vmatmul.mubr.bf16.gmra.mrb[0].mxu0 %v3565
    %v3609 = vpop.f32.mrb[0].mxu0
    %v3610 = vadd.f32 %v320, %v3609
    %v3611 = vpop.f32.mrb[0].mxu0
    %v3612 = vpop.f32.mrb[0].mxu0
    %v3613 = vadd.f32 %v320, %v3612
    %v3614 = vpop.f32.mrb[0].mxu0
    %3615 = vdwg.mxu0
    %v3616 = vmul.f32 %v3602, 0.35355338
    %v3617 = vmul.f32 %v3605, 0.35355338
    %v3618 = vmul.f32 %v3610, 0.35355338
    %v3619 = vmul.f32 %v3613, 0.35355338
    %3624 = vrot.lane.b32.xlu0 %v3616, 120
    %v3625 = vpop.permute.xlu0 %3624
    %3626 = vrot.lane.b32.xlu0 %v3617, 120
    %v3627 = vpop.permute.xlu0 %3626
    %3628 = vrot.lane.b32.xlu0 %v3618, 120
    %v3629 = vpop.permute.xlu0 %3628
    %3630 = vrot.lane.b32.xlu0 %v3619, 120
    %v3631 = vpop.permute.xlu0 %3630
    %3636 = vrot.lane.b32.xlu0 %v3616, 112
    %v3637 = vpop.permute.xlu0 %3636
    %3638 = vrot.lane.b32.xlu0 %v3617, 112
    %v3639 = vpop.permute.xlu0 %3638
    %3640 = vrot.lane.b32.xlu0 %v3618, 112
    %v3641 = vpop.permute.xlu0 %3640
    %3642 = vrot.lane.b32.xlu0 %v3619, 112
    %v3643 = vpop.permute.xlu0 %3642
    %3648 = vrot.lane.b32.xlu0 %v3616, 104
    %v3649 = vpop.permute.xlu0 %3648
    %3650 = vrot.lane.b32.xlu0 %v3617, 104
    %v3651 = vpop.permute.xlu0 %3650
    %3652 = vrot.lane.b32.xlu0 %v3618, 104
    %v3653 = vpop.permute.xlu0 %3652
    %3654 = vrot.lane.b32.xlu0 %v3619, 104
    %v3655 = vpop.permute.xlu0 %3654
    %3664 = vrot.lane.b32.xlu0 %v3602, 120
    %v3665 = vpop.permute.xlu0 %3664
    %3666 = vrot.lane.b32.xlu0 %v3605, 120
    %v3667 = vpop.permute.xlu0 %3666
    %3668 = vrot.lane.b32.xlu0 %v3610, 120
    %v3669 = vpop.permute.xlu0 %3668
    %3670 = vrot.lane.b32.xlu0 %v3613, 120
    %v3671 = vpop.permute.xlu0 %3670
    %3676 = vrot.lane.b32.xlu0 %v3602, 112
    %v3677 = vpop.permute.xlu0 %3676
    %3678 = vrot.lane.b32.xlu0 %v3605, 112
    %v3679 = vpop.permute.xlu0 %3678
    %3680 = vrot.lane.b32.xlu0 %v3610, 112
    %v3681 = vpop.permute.xlu0 %3680
    %3682 = vrot.lane.b32.xlu0 %v3613, 112
    %v3683 = vpop.permute.xlu0 %3682
    %3688 = vrot.lane.b32.xlu0 %v3602, 104
    %v3689 = vpop.permute.xlu0 %3688
    %3690 = vrot.lane.b32.xlu0 %v3605, 104
    %v3691 = vpop.permute.xlu0 %3690
    %3692 = vrot.lane.b32.xlu0 %v3610, 104
    %v3693 = vpop.permute.xlu0 %3692
    %3694 = vrot.lane.b32.xlu0 %v3613, 104
    %v3695 = vpop.permute.xlu0 %3694
    %v3700 = vpack.c.bf16 %v3617, %v3616
    %v3701 = vpack.c.bf16 %v3619, %v3618
    %v3702 = vpack.c.bf16 %v3627, %v3625
    %v3703 = vpack.c.bf16 %v3631, %v3629
    %v3704 = vpack.c.bf16 %v3639, %v3637
    %v3705 = vpack.c.bf16 %v3643, %v3641
    %v3706 = vpack.c.bf16 %v3651, %v3649
    %v3707 = vpack.c.bf16 %v3655, %v3653
    %v3708 = vpack.c.bf16 %v3605, %v3602
    %v3709 = vpack.c.bf16 %v3613, %v3610
    %v3710 = vpack.c.bf16 %v3667, %v3665
    %v3711 = vpack.c.bf16 %v3671, %v3669
    %v3712 = vpack.c.bf16 %v3679, %v3677
    %v3713 = vpack.c.bf16 %v3683, %v3681
    %v3714 = vpack.c.bf16 %v3691, %v3689
    %v3715 = vpack.c.bf16 %v3695, %v3693
    %3717 = vrot.lane.b32.xlu0 %v3708, 96
    %v3718 = vpop.permute.xlu0 %3717
    %v3720 = vsel %vm491, %v3700, 0
    %v3723 = vsel %vm491, %v3718, 0
    %3725 = vmatprep.subr.bf16.mxu0 0
    %3726 = vmatpush1.bf16.xpose.msra.mxu0 %v3723
    %3727 = vmatprep.subr.bf16.mxu0 0
    %3728 = vmatpush1.bf16.xpose.msra.mxu0 0
    %3729 = vmatprep.subr.bf16.mxu0 0
    %3730 = vmatpush1.bf16.xpose.msra.mxu0 0
    %3731 = vmatprep.subr.bf16.mxu0 0
    %3732 = vmatpush1.bf16.xpose.msra.mxu0 0
    %3733 = vmatprep.subr.bf16.mxu0 0
    %3734 = vmatpush1.bf16.xpose.msra.mxu0 0
    %3735 = vmatprep.subr.bf16.mxu0 0
    %3736 = vmatpush1.bf16.xpose.msra.mxu0 0
    %3737 = vmatprep.subr.bf16.mxu0 0
    %3738 = vmatpush1.bf16.xpose.msra.mxu0 0
    %3739 = vmatprep.subr.bf16.mxu0 0
    %3740 = vmatpush1.bf16.xpose.msra.mxu0 0
    %3741 = vmatprep.subr.bf16.mxu0 0
    %3742 = vmatpush1.bf16.xpose.msra.mxu0 0
    %3743 = vmatprep.subr.bf16.mxu0 0
    %3744 = vmatpush1.bf16.xpose.msra.mxu0 0
    %3745 = vmatprep.subr.bf16.mxu0 0
    %3746 = vmatpush1.bf16.xpose.msra.mxu0 0
    %3747 = vmatprep.subr.bf16.mxu0 0
    %3748 = vmatpush1.bf16.xpose.msra.mxu0 0
    %3749 = vmatprep.subr.bf16.mxu0 0
    %3750 = vmatpush1.bf16.xpose.msra.mxu0 0
    %3751 = vmatprep.subr.bf16.mxu0 0
    %3752 = vmatpush1.bf16.xpose.msra.mxu0 0
    %3753 = vmatprep.subr.bf16.mxu0 0
    %3754 = vmatpush1.bf16.xpose.msra.mxu0 0
    %3755 = vmatprep.subr.bf16.mxu0 0
    %3756 = vmatpush1.bf16.xpose.msra.mxu0 0
    %3757 = vmatprep.mubr.bf16.mxu0 0
    %3758 = vmatmul.mubr.bf16.gmra.mrb[0].mxu0 %v3720
    %v3759 = vpop.f32.mrb[0].mxu0
    %v3760 = vadd.f32 0.0, %v3759
    %v3761 = vpop.f32.mrb[0].mxu0
    %v3762 = vpop.f32.mrb[0].mxu0
    %v3763 = vadd.f32 0.0, %v3762
    %v3764 = vpop.f32.mrb[0].mxu0
    %3765 = vdwg.mxu0
    %3767 = vrot.lane.b32.xlu0 %v3709, 96
    %v3768 = vpop.permute.xlu0 %3767
    %v3770 = vsel %vm491, %v3701, 0
    %v3773 = vsel %vm491, %v3768, 0
    %3775 = vmatprep.subr.bf16.mxu0 0
    %3776 = vmatpush1.bf16.xpose.msra.mxu0 %v3773
    %3777 = vmatprep.subr.bf16.mxu0 0
    %3778 = vmatpush1.bf16.xpose.msra.mxu0 0
    %3779 = vmatprep.subr.bf16.mxu0 0
    %3780 = vmatpush1.bf16.xpose.msra.mxu0 0
    %3781 = vmatprep.subr.bf16.mxu0 0
    %3782 = vmatpush1.bf16.xpose.msra.mxu0 0
    %3783 = vmatprep.subr.bf16.mxu0 0
    %3784 = vmatpush1.bf16.xpose.msra.mxu0 0
    %3785 = vmatprep.subr.bf16.mxu0 0
    %3786 = vmatpush1.bf16.xpose.msra.mxu0 0
    %3787 = vmatprep.subr.bf16.mxu0 0
    %3788 = vmatpush1.bf16.xpose.msra.mxu0 0
    %3789 = vmatprep.subr.bf16.mxu0 0
    %3790 = vmatpush1.bf16.xpose.msra.mxu0 0
    %3791 = vmatprep.subr.bf16.mxu0 0
    %3792 = vmatpush1.bf16.xpose.msra.mxu0 0
    %3793 = vmatprep.subr.bf16.mxu0 0
    %3794 = vmatpush1.bf16.xpose.msra.mxu0 0
    %3795 = vmatprep.subr.bf16.mxu0 0
    %3796 = vmatpush1.bf16.xpose.msra.mxu0 0
    %3797 = vmatprep.subr.bf16.mxu0 0
    %3798 = vmatpush1.bf16.xpose.msra.mxu0 0
    %3799 = vmatprep.subr.bf16.mxu0 0
    %3800 = vmatpush1.bf16.xpose.msra.mxu0 0
    %3801 = vmatprep.subr.bf16.mxu0 0
    %3802 = vmatpush1.bf16.xpose.msra.mxu0 0
    %3803 = vmatprep.subr.bf16.mxu0 0
    %3804 = vmatpush1.bf16.xpose.msra.mxu0 0
    %3805 = vmatprep.subr.bf16.mxu0 0
    %3806 = vmatpush1.bf16.xpose.msra.mxu0 0
    %3807 = vmatprep.mubr.bf16.mxu0 0
    %3808 = vmatmul.mubr.bf16.gmra.mrb[0].mxu0 %v3770
    %v3809 = vpop.f32.mrb[0].mxu0
    %v3810 = vadd.f32 0.0, %v3809
    %v3811 = vpop.f32.mrb[0].mxu0
    %v3812 = vpop.f32.mrb[0].mxu0
    %v3813 = vadd.f32 0.0, %v3812
    %v3814 = vpop.f32.mrb[0].mxu0
    %3815 = vdwg.mxu0
    %3817 = vrot.lane.b32.xlu0 %v3710, 96
    %v3818 = vpop.permute.xlu0 %3817
    %v3820 = vsel %vm491, %v3702, 0
    %v3823 = vsel %vm491, %v3818, 0
    %3825 = vmatprep.subr.bf16.mxu0 0
    %3826 = vmatpush1.bf16.xpose.msra.mxu0 %v3823
    %3827 = vmatprep.subr.bf16.mxu0 0
    %3828 = vmatpush1.bf16.xpose.msra.mxu0 0
    %3829 = vmatprep.subr.bf16.mxu0 0
    %3830 = vmatpush1.bf16.xpose.msra.mxu0 0
    %3831 = vmatprep.subr.bf16.mxu0 0
    %3832 = vmatpush1.bf16.xpose.msra.mxu0 0
    %3833 = vmatprep.subr.bf16.mxu0 0
    %3834 = vmatpush1.bf16.xpose.msra.mxu0 0
    %3835 = vmatprep.subr.bf16.mxu0 0
    %3836 = vmatpush1.bf16.xpose.msra.mxu0 0
    %3837 = vmatprep.subr.bf16.mxu0 0
    %3838 = vmatpush1.bf16.xpose.msra.mxu0 0
    %3839 = vmatprep.subr.bf16.mxu0 0
    %3840 = vmatpush1.bf16.xpose.msra.mxu0 0
    %3841 = vmatprep.subr.bf16.mxu0 0
    %3842 = vmatpush1.bf16.xpose.msra.mxu0 0
    %3843 = vmatprep.subr.bf16.mxu0 0
    %3844 = vmatpush1.bf16.xpose.msra.mxu0 0
    %3845 = vmatprep.subr.bf16.mxu0 0
    %3846 = vmatpush1.bf16.xpose.msra.mxu0 0
    %3847 = vmatprep.subr.bf16.mxu0 0
    %3848 = vmatpush1.bf16.xpose.msra.mxu0 0
    %3849 = vmatprep.subr.bf16.mxu0 0
    %3850 = vmatpush1.bf16.xpose.msra.mxu0 0
    %3851 = vmatprep.subr.bf16.mxu0 0
    %3852 = vmatpush1.bf16.xpose.msra.mxu0 0
    %3853 = vmatprep.subr.bf16.mxu0 0
    %3854 = vmatpush1.bf16.xpose.msra.mxu0 0
    %3855 = vmatprep.subr.bf16.mxu0 0
    %3856 = vmatpush1.bf16.xpose.msra.mxu0 0
    %3857 = vmatprep.mubr.bf16.mxu0 0
    %3858 = vmatmul.mubr.bf16.gmra.mrb[0].mxu0 %v3820
    %v3859 = vpop.f32.mrb[0].mxu0
    %v3860 = vadd.f32 0.0, %v3859
    %v3861 = vpop.f32.mrb[0].mxu0
    %v3862 = vpop.f32.mrb[0].mxu0
    %v3863 = vadd.f32 0.0, %v3862
    %v3864 = vpop.f32.mrb[0].mxu0
    %3865 = vdwg.mxu0
    %3867 = vrot.lane.b32.xlu0 %v3711, 96
    %v3868 = vpop.permute.xlu0 %3867
    %v3870 = vsel %vm491, %v3703, 0
    %v3873 = vsel %vm491, %v3868, 0
    %3875 = vmatprep.subr.bf16.mxu0 0
    %3876 = vmatpush1.bf16.xpose.msra.mxu0 %v3873
    %3877 = vmatprep.subr.bf16.mxu0 0
    %3878 = vmatpush1.bf16.xpose.msra.mxu0 0
    %3879 = vmatprep.subr.bf16.mxu0 0
    %3880 = vmatpush1.bf16.xpose.msra.mxu0 0
    %3881 = vmatprep.subr.bf16.mxu0 0
    %3882 = vmatpush1.bf16.xpose.msra.mxu0 0
    %3883 = vmatprep.subr.bf16.mxu0 0
    %3884 = vmatpush1.bf16.xpose.msra.mxu0 0
    %3885 = vmatprep.subr.bf16.mxu0 0
    %3886 = vmatpush1.bf16.xpose.msra.mxu0 0
    %3887 = vmatprep.subr.bf16.mxu0 0
    %3888 = vmatpush1.bf16.xpose.msra.mxu0 0
    %3889 = vmatprep.subr.bf16.mxu0 0
    %3890 = vmatpush1.bf16.xpose.msra.mxu0 0
    %3891 = vmatprep.subr.bf16.mxu0 0
    %3892 = vmatpush1.bf16.xpose.msra.mxu0 0
    %3893 = vmatprep.subr.bf16.mxu0 0
    %3894 = vmatpush1.bf16.xpose.msra.mxu0 0
    %3895 = vmatprep.subr.bf16.mxu0 0
    %3896 = vmatpush1.bf16.xpose.msra.mxu0 0
    %3897 = vmatprep.subr.bf16.mxu0 0
    %3898 = vmatpush1.bf16.xpose.msra.mxu0 0
    %3899 = vmatprep.subr.bf16.mxu0 0
    %3900 = vmatpush1.bf16.xpose.msra.mxu0 0
    %3901 = vmatprep.subr.bf16.mxu0 0
    %3902 = vmatpush1.bf16.xpose.msra.mxu0 0
    %3903 = vmatprep.subr.bf16.mxu0 0
    %3904 = vmatpush1.bf16.xpose.msra.mxu0 0
    %3905 = vmatprep.subr.bf16.mxu0 0
    %3906 = vmatpush1.bf16.xpose.msra.mxu0 0
    %3907 = vmatprep.mubr.bf16.mxu0 0
    %3908 = vmatmul.mubr.bf16.gmra.mrb[0].mxu0 %v3870
    %v3909 = vpop.f32.mrb[0].mxu0
    %v3910 = vadd.f32 0.0, %v3909
    %v3911 = vpop.f32.mrb[0].mxu0
    %v3912 = vpop.f32.mrb[0].mxu0
    %v3913 = vadd.f32 0.0, %v3912
    %v3914 = vpop.f32.mrb[0].mxu0
    %3915 = vdwg.mxu0
    %3917 = vrot.lane.b32.xlu0 %v3712, 96
    %v3918 = vpop.permute.xlu0 %3917
    %v3920 = vsel %vm491, %v3704, 0
    %v3923 = vsel %vm491, %v3918, 0
    %3925 = vmatprep.subr.bf16.mxu0 0
    %3926 = vmatpush1.bf16.xpose.msra.mxu0 %v3923
    %3927 = vmatprep.subr.bf16.mxu0 0
    %3928 = vmatpush1.bf16.xpose.msra.mxu0 0
    %3929 = vmatprep.subr.bf16.mxu0 0
    %3930 = vmatpush1.bf16.xpose.msra.mxu0 0
    %3931 = vmatprep.subr.bf16.mxu0 0
    %3932 = vmatpush1.bf16.xpose.msra.mxu0 0
    %3933 = vmatprep.subr.bf16.mxu0 0
    %3934 = vmatpush1.bf16.xpose.msra.mxu0 0
    %3935 = vmatprep.subr.bf16.mxu0 0
    %3936 = vmatpush1.bf16.xpose.msra.mxu0 0
    %3937 = vmatprep.subr.bf16.mxu0 0
    %3938 = vmatpush1.bf16.xpose.msra.mxu0 0
    %3939 = vmatprep.subr.bf16.mxu0 0
    %3940 = vmatpush1.bf16.xpose.msra.mxu0 0
    %3941 = vmatprep.subr.bf16.mxu0 0
    %3942 = vmatpush1.bf16.xpose.msra.mxu0 0
    %3943 = vmatprep.subr.bf16.mxu0 0
    %3944 = vmatpush1.bf16.xpose.msra.mxu0 0
    %3945 = vmatprep.subr.bf16.mxu0 0
    %3946 = vmatpush1.bf16.xpose.msra.mxu0 0
    %3947 = vmatprep.subr.bf16.mxu0 0
    %3948 = vmatpush1.bf16.xpose.msra.mxu0 0
    %3949 = vmatprep.subr.bf16.mxu0 0
    %3950 = vmatpush1.bf16.xpose.msra.mxu0 0
    %3951 = vmatprep.subr.bf16.mxu0 0
    %3952 = vmatpush1.bf16.xpose.msra.mxu0 0
    %3953 = vmatprep.subr.bf16.mxu0 0
    %3954 = vmatpush1.bf16.xpose.msra.mxu0 0
    %3955 = vmatprep.subr.bf16.mxu0 0
    %3956 = vmatpush1.bf16.xpose.msra.mxu0 0
    %3957 = vmatprep.mubr.bf16.mxu0 0
    %3958 = vmatmul.mubr.bf16.gmra.mrb[0].mxu0 %v3920
    %v3959 = vpop.f32.mrb[0].mxu0
    %v3960 = vadd.f32 0.0, %v3959
    %v3961 = vpop.f32.mrb[0].mxu0
    %v3962 = vpop.f32.mrb[0].mxu0
    %v3963 = vadd.f32 0.0, %v3962
    %v3964 = vpop.f32.mrb[0].mxu0
    %3965 = vdwg.mxu0
    %3967 = vrot.lane.b32.xlu0 %v3713, 96
    %v3968 = vpop.permute.xlu0 %3967
    %v3970 = vsel %vm491, %v3705, 0
    %v3973 = vsel %vm491, %v3968, 0
    %3975 = vmatprep.subr.bf16.mxu0 0
    %3976 = vmatpush1.bf16.xpose.msra.mxu0 %v3973
    %3977 = vmatprep.subr.bf16.mxu0 0
    %3978 = vmatpush1.bf16.xpose.msra.mxu0 0
    %3979 = vmatprep.subr.bf16.mxu0 0
    %3980 = vmatpush1.bf16.xpose.msra.mxu0 0
    %3981 = vmatprep.subr.bf16.mxu0 0
    %3982 = vmatpush1.bf16.xpose.msra.mxu0 0
    %3983 = vmatprep.subr.bf16.mxu0 0
    %3984 = vmatpush1.bf16.xpose.msra.mxu0 0
    %3985 = vmatprep.subr.bf16.mxu0 0
    %3986 = vmatpush1.bf16.xpose.msra.mxu0 0
    %3987 = vmatprep.subr.bf16.mxu0 0
    %3988 = vmatpush1.bf16.xpose.msra.mxu0 0
    %3989 = vmatprep.subr.bf16.mxu0 0
    %3990 = vmatpush1.bf16.xpose.msra.mxu0 0
    %3991 = vmatprep.subr.bf16.mxu0 0
    %3992 = vmatpush1.bf16.xpose.msra.mxu0 0
    %3993 = vmatprep.subr.bf16.mxu0 0
    %3994 = vmatpush1.bf16.xpose.msra.mxu0 0
    %3995 = vmatprep.subr.bf16.mxu0 0
    %3996 = vmatpush1.bf16.xpose.msra.mxu0 0
    %3997 = vmatprep.subr.bf16.mxu0 0
    %3998 = vmatpush1.bf16.xpose.msra.mxu0 0
    %3999 = vmatprep.subr.bf16.mxu0 0
    %4000 = vmatpush1.bf16.xpose.msra.mxu0 0
    %4001 = vmatprep.subr.bf16.mxu0 0
    %4002 = vmatpush1.bf16.xpose.msra.mxu0 0
    %4003 = vmatprep.subr.bf16.mxu0 0
    %4004 = vmatpush1.bf16.xpose.msra.mxu0 0
    %4005 = vmatprep.subr.bf16.mxu0 0
    %4006 = vmatpush1.bf16.xpose.msra.mxu0 0
    %4007 = vmatprep.mubr.bf16.mxu0 0
    %4008 = vmatmul.mubr.bf16.gmra.mrb[0].mxu0 %v3970
    %v4009 = vpop.f32.mrb[0].mxu0
    %v4010 = vadd.f32 0.0, %v4009
    %v4011 = vpop.f32.mrb[0].mxu0
    %v4012 = vpop.f32.mrb[0].mxu0
    %v4013 = vadd.f32 0.0, %v4012
    %v4014 = vpop.f32.mrb[0].mxu0
    %4015 = vdwg.mxu0
    %4017 = vrot.lane.b32.xlu0 %v3714, 96
    %v4018 = vpop.permute.xlu0 %4017
    %v4020 = vsel %vm491, %v3706, 0
    %v4023 = vsel %vm491, %v4018, 0
    %4025 = vmatprep.subr.bf16.mxu0 0
    %4026 = vmatpush1.bf16.xpose.msra.mxu0 %v4023
    %4027 = vmatprep.subr.bf16.mxu0 0
    %4028 = vmatpush1.bf16.xpose.msra.mxu0 0
    %4029 = vmatprep.subr.bf16.mxu0 0
    %4030 = vmatpush1.bf16.xpose.msra.mxu0 0
    %4031 = vmatprep.subr.bf16.mxu0 0
    %4032 = vmatpush1.bf16.xpose.msra.mxu0 0
    %4033 = vmatprep.subr.bf16.mxu0 0
    %4034 = vmatpush1.bf16.xpose.msra.mxu0 0
    %4035 = vmatprep.subr.bf16.mxu0 0
    %4036 = vmatpush1.bf16.xpose.msra.mxu0 0
    %4037 = vmatprep.subr.bf16.mxu0 0
    %4038 = vmatpush1.bf16.xpose.msra.mxu0 0
    %4039 = vmatprep.subr.bf16.mxu0 0
    %4040 = vmatpush1.bf16.xpose.msra.mxu0 0
    %4041 = vmatprep.subr.bf16.mxu0 0
    %4042 = vmatpush1.bf16.xpose.msra.mxu0 0
    %4043 = vmatprep.subr.bf16.mxu0 0
    %4044 = vmatpush1.bf16.xpose.msra.mxu0 0
    %4045 = vmatprep.subr.bf16.mxu0 0
    %4046 = vmatpush1.bf16.xpose.msra.mxu0 0
    %4047 = vmatprep.subr.bf16.mxu0 0
    %4048 = vmatpush1.bf16.xpose.msra.mxu0 0
    %4049 = vmatprep.subr.bf16.mxu0 0
    %4050 = vmatpush1.bf16.xpose.msra.mxu0 0
    %4051 = vmatprep.subr.bf16.mxu0 0
    %4052 = vmatpush1.bf16.xpose.msra.mxu0 0
    %4053 = vmatprep.subr.bf16.mxu0 0
    %4054 = vmatpush1.bf16.xpose.msra.mxu0 0
    %4055 = vmatprep.subr.bf16.mxu0 0
    %4056 = vmatpush1.bf16.xpose.msra.mxu0 0
    %4057 = vmatprep.mubr.bf16.mxu0 0
    %4058 = vmatmul.mubr.bf16.gmra.mrb[0].mxu0 %v4020
    %v4059 = vpop.f32.mrb[0].mxu0
    %v4060 = vadd.f32 0.0, %v4059
    %v4061 = vpop.f32.mrb[0].mxu0
    %v4062 = vpop.f32.mrb[0].mxu0
    %v4063 = vadd.f32 0.0, %v4062
    %v4064 = vpop.f32.mrb[0].mxu0
    %4065 = vdwg.mxu0
    %4067 = vrot.lane.b32.xlu0 %v3715, 96
    %v4068 = vpop.permute.xlu0 %4067
    %v4070 = vsel %vm491, %v3707, 0
    %v4073 = vsel %vm491, %v4068, 0
    %4075 = vmatprep.subr.bf16.mxu0 0
    %4076 = vmatpush1.bf16.xpose.msra.mxu0 %v4073
    %4077 = vmatprep.subr.bf16.mxu0 0
    %4078 = vmatpush1.bf16.xpose.msra.mxu0 0
    %4079 = vmatprep.subr.bf16.mxu0 0
    %4080 = vmatpush1.bf16.xpose.msra.mxu0 0
    %4081 = vmatprep.subr.bf16.mxu0 0
    %4082 = vmatpush1.bf16.xpose.msra.mxu0 0
    %4083 = vmatprep.subr.bf16.mxu0 0
    %4084 = vmatpush1.bf16.xpose.msra.mxu0 0
    %4085 = vmatprep.subr.bf16.mxu0 0
    %4086 = vmatpush1.bf16.xpose.msra.mxu0 0
    %4087 = vmatprep.subr.bf16.mxu0 0
    %4088 = vmatpush1.bf16.xpose.msra.mxu0 0
    %4089 = vmatprep.subr.bf16.mxu0 0
    %4090 = vmatpush1.bf16.xpose.msra.mxu0 0
    %4091 = vmatprep.subr.bf16.mxu0 0
    %4092 = vmatpush1.bf16.xpose.msra.mxu0 0
    %4093 = vmatprep.subr.bf16.mxu0 0
    %4094 = vmatpush1.bf16.xpose.msra.mxu0 0
    %4095 = vmatprep.subr.bf16.mxu0 0
    %4096 = vmatpush1.bf16.xpose.msra.mxu0 0
    %4097 = vmatprep.subr.bf16.mxu0 0
    %4098 = vmatpush1.bf16.xpose.msra.mxu0 0
    %4099 = vmatprep.subr.bf16.mxu0 0
    %4100 = vmatpush1.bf16.xpose.msra.mxu0 0
    %4101 = vmatprep.subr.bf16.mxu0 0
    %4102 = vmatpush1.bf16.xpose.msra.mxu0 0
    %4103 = vmatprep.subr.bf16.mxu0 0
    %4104 = vmatpush1.bf16.xpose.msra.mxu0 0
    %4105 = vmatprep.subr.bf16.mxu0 0
    %4106 = vmatpush1.bf16.xpose.msra.mxu0 0
    %4107 = vmatprep.mubr.bf16.mxu0 0
    %4108 = vmatmul.mubr.bf16.gmra.mrb[0].mxu0 %v4070
    %v4109 = vpop.f32.mrb[0].mxu0
    %v4110 = vadd.f32 0.0, %v4109
    %v4111 = vpop.f32.mrb[0].mxu0
    %v4112 = vpop.f32.mrb[0].mxu0
    %v4113 = vadd.f32 0.0, %v4112
    %v4114 = vpop.f32.mrb[0].mxu0
    %4115 = vdwg.mxu0
    %v4116 = vsel %vm889, %v3760, -inf
    %4117 = vmax.xlane.f32.xlu0 %v4116
    %v4118 = vpop.xlane.xlu0 %4117
    %v4119 = vsel %vm889, %v3763, -inf
    %4120 = vmax.xlane.f32.xlu0 %v4119
    %v4121 = vpop.xlane.xlu0 %4120
    %v4122 = vsel %vm889, %v3810, -inf
    %4123 = vmax.xlane.f32.xlu0 %v4122
    %v4124 = vpop.xlane.xlu0 %4123
    %v4125 = vsel %vm889, %v3813, -inf
    %4126 = vmax.xlane.f32.xlu0 %v4125
    %v4127 = vpop.xlane.xlu0 %4126
    %v4128 = vsel %vm889, %v3860, -inf
    %4129 = vmax.xlane.f32.xlu0 %v4128
    %v4130 = vpop.xlane.xlu0 %4129
    %v4131 = vsel %vm889, %v3863, -inf
    %4132 = vmax.xlane.f32.xlu0 %v4131
    %v4133 = vpop.xlane.xlu0 %4132
    %v4134 = vsel %vm889, %v3910, -inf
    %4135 = vmax.xlane.f32.xlu0 %v4134
    %v4136 = vpop.xlane.xlu0 %4135
    %v4137 = vsel %vm889, %v3913, -inf
    %4138 = vmax.xlane.f32.xlu0 %v4137
    %v4139 = vpop.xlane.xlu0 %4138
    %v4140 = vsel %vm889, %v3960, -inf
    %4141 = vmax.xlane.f32.xlu0 %v4140
    %v4142 = vpop.xlane.xlu0 %4141
    %v4143 = vsel %vm889, %v3963, -inf
    %4144 = vmax.xlane.f32.xlu0 %v4143
    %v4145 = vpop.xlane.xlu0 %4144
    %v4146 = vsel %vm889, %v4010, -inf
    %4147 = vmax.xlane.f32.xlu0 %v4146
    %v4148 = vpop.xlane.xlu0 %4147
    %v4149 = vsel %vm889, %v4013, -inf
    %4150 = vmax.xlane.f32.xlu0 %v4149
    %v4151 = vpop.xlane.xlu0 %4150
    %v4152 = vsel %vm889, %v4060, -inf
    %4153 = vmax.xlane.f32.xlu0 %v4152
    %v4154 = vpop.xlane.xlu0 %4153
    %v4155 = vsel %vm889, %v4063, -inf
    %4156 = vmax.xlane.f32.xlu0 %v4155
    %v4157 = vpop.xlane.xlu0 %4156
    %v4158 = vsel %vm889, %v4110, -inf
    %4159 = vmax.xlane.f32.xlu0 %v4158
    %v4160 = vpop.xlane.xlu0 %4159
    %v4161 = vsel %vm889, %v4113, -inf
    %4162 = vmax.xlane.f32.xlu0 %v4161
    %v4163 = vpop.xlane.xlu0 %4162
    %v4164 = vsub.f32 %v3760, %v4118
    %v4165 = vsub.f32 %v3763, %v4121
    %v4166 = vsub.f32 %v3810, %v4124
    %v4167 = vsub.f32 %v3813, %v4127
    %v4168 = vsub.f32 %v3860, %v4130
    %v4169 = vsub.f32 %v3863, %v4133
    %v4170 = vsub.f32 %v3910, %v4136
    %v4171 = vsub.f32 %v3913, %v4139
    %v4172 = vsub.f32 %v3960, %v4142
    %v4173 = vsub.f32 %v3963, %v4145
    %v4174 = vsub.f32 %v4010, %v4148
    %v4175 = vsub.f32 %v4013, %v4151
    %v4176 = vsub.f32 %v4060, %v4154
    %v4177 = vsub.f32 %v4063, %v4157
    %v4178 = vsub.f32 %v4110, %v4160
    %v4179 = vsub.f32 %v4113, %v4163
    %v4180 = vmul.f32 %v4164, 1.442695
    %v4181 = vpow.pop %v4180
    %v4182 = vmul.f32 %v4165, 1.442695
    %v4183 = vpow.pop %v4182
    %v4184 = vmul.f32 %v4166, 1.442695
    %v4185 = vpow.pop %v4184
    %v4186 = vmul.f32 %v4167, 1.442695
    %v4187 = vpow.pop %v4186
    %v4188 = vmul.f32 %v4168, 1.442695
    %v4189 = vpow.pop %v4188
    %v4190 = vmul.f32 %v4169, 1.442695
    %v4191 = vpow.pop %v4190
    %v4192 = vmul.f32 %v4170, 1.442695
    %v4193 = vpow.pop %v4192
    %v4194 = vmul.f32 %v4171, 1.442695
    %v4195 = vpow.pop %v4194
    %v4196 = vmul.f32 %v4172, 1.442695
    %v4197 = vpow.pop %v4196
    %v4198 = vmul.f32 %v4173, 1.442695
    %v4199 = vpow.pop %v4198
    %v4200 = vmul.f32 %v4174, 1.442695
    %v4201 = vpow.pop %v4200
    %v4202 = vmul.f32 %v4175, 1.442695
    %v4203 = vpow.pop %v4202
    %v4204 = vmul.f32 %v4176, 1.442695
    %v4205 = vpow.pop %v4204
    %v4206 = vmul.f32 %v4177, 1.442695
    %v4207 = vpow.pop %v4206
    %v4208 = vmul.f32 %v4178, 1.442695
    %v4209 = vpow.pop %v4208
    %v4210 = vmul.f32 %v4179, 1.442695
    %v4211 = vpow.pop %v4210
    %v4212 = vsel %vm889, %v4181, 0.0
    %4213 = vadd.xlane.f32.xlu0 %v4212
    %v4214 = vpop.xlane.xlu0 %4213
    %v4215 = vsel %vm889, %v4183, 0.0
    %4216 = vadd.xlane.f32.xlu0 %v4215
    %v4217 = vpop.xlane.xlu0 %4216
    %v4218 = vsel %vm889, %v4185, 0.0
    %4219 = vadd.xlane.f32.xlu0 %v4218
    %v4220 = vpop.xlane.xlu0 %4219
    %v4221 = vsel %vm889, %v4187, 0.0
    %4222 = vadd.xlane.f32.xlu0 %v4221
    %v4223 = vpop.xlane.xlu0 %4222
    %v4224 = vsel %vm889, %v4189, 0.0
    %4225 = vadd.xlane.f32.xlu0 %v4224
    %v4226 = vpop.xlane.xlu0 %4225
    %v4227 = vsel %vm889, %v4191, 0.0
    %4228 = vadd.xlane.f32.xlu0 %v4227
    %v4229 = vpop.xlane.xlu0 %4228
    %v4230 = vsel %vm889, %v4193, 0.0
    %4231 = vadd.xlane.f32.xlu0 %v4230
    %v4232 = vpop.xlane.xlu0 %4231
    %v4233 = vsel %vm889, %v4195, 0.0
    %4234 = vadd.xlane.f32.xlu0 %v4233
    %v4235 = vpop.xlane.xlu0 %4234
    %v4236 = vsel %vm889, %v4197, 0.0
    %4237 = vadd.xlane.f32.xlu0 %v4236
    %v4238 = vpop.xlane.xlu0 %4237
    %v4239 = vsel %vm889, %v4199, 0.0
    %4240 = vadd.xlane.f32.xlu0 %v4239
    %v4241 = vpop.xlane.xlu0 %4240
    %v4242 = vsel %vm889, %v4201, 0.0
    %4243 = vadd.xlane.f32.xlu0 %v4242
    %v4244 = vpop.xlane.xlu0 %4243
    %v4245 = vsel %vm889, %v4203, 0.0
    %4246 = vadd.xlane.f32.xlu0 %v4245
    %v4247 = vpop.xlane.xlu0 %4246
    %v4248 = vsel %vm889, %v4205, 0.0
    %4249 = vadd.xlane.f32.xlu0 %v4248
    %v4250 = vpop.xlane.xlu0 %4249
    %v4251 = vsel %vm889, %v4207, 0.0
    %4252 = vadd.xlane.f32.xlu0 %v4251
    %v4253 = vpop.xlane.xlu0 %4252
    %v4254 = vsel %vm889, %v4209, 0.0
    %4255 = vadd.xlane.f32.xlu0 %v4254
    %v4256 = vpop.xlane.xlu0 %4255
    %v4257 = vsel %vm889, %v4211, 0.0
    %4258 = vadd.xlane.f32.xlu0 %v4257
    %v4259 = vpop.xlane.xlu0 %4258
    %v4260 = vrcp.pop %v4214
    %v4261 = vrcp.pop %v4217
    %v4262 = vrcp.pop %v4220
    %v4263 = vrcp.pop %v4223
    %v4264 = vrcp.pop %v4226
    %v4265 = vrcp.pop %v4229
    %v4266 = vrcp.pop %v4232
    %v4267 = vrcp.pop %v4235
    %v4268 = vrcp.pop %v4238
    %v4269 = vrcp.pop %v4241
    %v4270 = vrcp.pop %v4244
    %v4271 = vrcp.pop %v4247
    %v4272 = vrcp.pop %v4250
    %v4273 = vrcp.pop %v4253
    %v4274 = vrcp.pop %v4256
    %v4275 = vrcp.pop %v4259
    %v4276 = vmul.f32 %v4181, %v4260
    %v4277 = vmul.f32 %v4183, %v4261
    %v4278 = vmul.f32 %v4185, %v4262
    %v4279 = vmul.f32 %v4187, %v4263
    %v4280 = vmul.f32 %v4189, %v4264
    %v4281 = vmul.f32 %v4191, %v4265
    %v4282 = vmul.f32 %v4193, %v4266
    %v4283 = vmul.f32 %v4195, %v4267
    %v4284 = vmul.f32 %v4197, %v4268
    %v4285 = vmul.f32 %v4199, %v4269
    %v4286 = vmul.f32 %v4201, %v4270
    %v4287 = vmul.f32 %v4203, %v4271
    %v4288 = vmul.f32 %v4205, %v4272
    %v4289 = vmul.f32 %v4207, %v4273
    %v4290 = vmul.f32 %v4209, %v4274
    %v4291 = vmul.f32 %v4211, %v4275
    %v4292 = vpack.c.bf16 %v4277, %v4276
    %v4293 = vpack.c.bf16 %v4279, %v4278
    %v4294 = vpack.c.bf16 %v4281, %v4280
    %v4295 = vpack.c.bf16 %v4283, %v4282
    %v4296 = vpack.c.bf16 %v4285, %v4284
    %v4297 = vpack.c.bf16 %v4287, %v4286
    %v4298 = vpack.c.bf16 %v4289, %v4288
    %v4299 = vpack.c.bf16 %v4291, %v4290
    %4300 = vrot.lane.b32.xlu0 %v3708, 64
    %v4301 = vpop.permute.xlu0 %4300
    %v4304 = vsel %vm889, %v4292, 0
    %4306 = vmatprep.subr.bf16.mxu0 0
    %4307 = vmatpush1.bf16.msra.mxu0 %v4301
    %4308 = vmatprep.subr.bf16.mxu0 0
    %4309 = vmatpush1.bf16.msra.mxu0 0
    %4310 = vmatprep.subr.bf16.mxu0 0
    %4311 = vmatpush1.bf16.msra.mxu0 0
    %4312 = vmatprep.subr.bf16.mxu0 0
    %4313 = vmatpush1.bf16.msra.mxu0 0
    %4314 = vmatprep.subr.bf16.mxu0 0
    %4315 = vmatpush1.bf16.msra.mxu0 0
    %4316 = vmatprep.subr.bf16.mxu0 0
    %4317 = vmatpush1.bf16.msra.mxu0 0
    %4318 = vmatprep.subr.bf16.mxu0 0
    %4319 = vmatpush1.bf16.msra.mxu0 0
    %4320 = vmatprep.subr.bf16.mxu0 0
    %4321 = vmatpush1.bf16.msra.mxu0 0
    %4322 = vmatprep.subr.bf16.mxu0 0
    %4323 = vmatpush1.bf16.msra.mxu0 0
    %4324 = vmatprep.subr.bf16.mxu0 0
    %4325 = vmatpush1.bf16.msra.mxu0 0
    %4326 = vmatprep.subr.bf16.mxu0 0
    %4327 = vmatpush1.bf16.msra.mxu0 0
    %4328 = vmatprep.subr.bf16.mxu0 0
    %4329 = vmatpush1.bf16.msra.mxu0 0
    %4330 = vmatprep.subr.bf16.mxu0 0
    %4331 = vmatpush1.bf16.msra.mxu0 0
    %4332 = vmatprep.subr.bf16.mxu0 0
    %4333 = vmatpush1.bf16.msra.mxu0 0
    %4334 = vmatprep.subr.bf16.mxu0 0
    %4335 = vmatpush1.bf16.msra.mxu0 0
    %4336 = vmatprep.subr.bf16.mxu0 0
    %4337 = vmatpush1.bf16.msra.mxu0 0
    %4338 = vmatprep.mubr.bf16.mxu0 0
    %4339 = vmatmul.mubr.bf16.gmra.mrb[0].mxu0 %v4304
    %v4340 = vpop.f32.mrb[0].mxu0
    %v4341 = vadd.f32 0.0, %v4340
    %v4342 = vpop.f32.mrb[0].mxu0
    %v4343 = vpop.f32.mrb[0].mxu0
    %v4344 = vadd.f32 0.0, %v4343
    %v4345 = vpop.f32.mrb[0].mxu0
    %4346 = vdwg.mxu0
    %4347 = vrot.lane.b32.xlu0 %v3709, 64
    %v4348 = vpop.permute.xlu0 %4347
    %v4351 = vsel %vm889, %v4293, 0
    %4353 = vmatprep.subr.bf16.mxu0 0
    %4354 = vmatpush1.bf16.msra.mxu0 %v4348
    %4355 = vmatprep.subr.bf16.mxu0 0
    %4356 = vmatpush1.bf16.msra.mxu0 0
    %4357 = vmatprep.subr.bf16.mxu0 0
    %4358 = vmatpush1.bf16.msra.mxu0 0
    %4359 = vmatprep.subr.bf16.mxu0 0
    %4360 = vmatpush1.bf16.msra.mxu0 0
    %4361 = vmatprep.subr.bf16.mxu0 0
    %4362 = vmatpush1.bf16.msra.mxu0 0
    %4363 = vmatprep.subr.bf16.mxu0 0
    %4364 = vmatpush1.bf16.msra.mxu0 0
    %4365 = vmatprep.subr.bf16.mxu0 0
    %4366 = vmatpush1.bf16.msra.mxu0 0
    %4367 = vmatprep.subr.bf16.mxu0 0
    %4368 = vmatpush1.bf16.msra.mxu0 0
    %4369 = vmatprep.subr.bf16.mxu0 0
    %4370 = vmatpush1.bf16.msra.mxu0 0
    %4371 = vmatprep.subr.bf16.mxu0 0
    %4372 = vmatpush1.bf16.msra.mxu0 0
    %4373 = vmatprep.subr.bf16.mxu0 0
    %4374 = vmatpush1.bf16.msra.mxu0 0
    %4375 = vmatprep.subr.bf16.mxu0 0
    %4376 = vmatpush1.bf16.msra.mxu0 0
    %4377 = vmatprep.subr.bf16.mxu0 0
    %4378 = vmatpush1.bf16.msra.mxu0 0
    %4379 = vmatprep.subr.bf16.mxu0 0
    %4380 = vmatpush1.bf16.msra.mxu0 0
    %4381 = vmatprep.subr.bf16.mxu0 0
    %4382 = vmatpush1.bf16.msra.mxu0 0
    %4383 = vmatprep.subr.bf16.mxu0 0
    %4384 = vmatpush1.bf16.msra.mxu0 0
    %4385 = vmatprep.mubr.bf16.mxu0 0
    %4386 = vmatmul.mubr.bf16.gmra.mrb[0].mxu0 %v4351
    %v4387 = vpop.f32.mrb[0].mxu0
    %v4388 = vadd.f32 0.0, %v4387
    %v4389 = vpop.f32.mrb[0].mxu0
    %v4390 = vpop.f32.mrb[0].mxu0
    %v4391 = vadd.f32 0.0, %v4390
    %v4392 = vpop.f32.mrb[0].mxu0
    %4393 = vdwg.mxu0
    %4394 = vrot.lane.b32.xlu0 %v3710, 64
    %v4395 = vpop.permute.xlu0 %4394
    %v4398 = vsel %vm889, %v4294, 0
    %4400 = vmatprep.subr.bf16.mxu0 0
    %4401 = vmatpush1.bf16.msra.mxu0 %v4395
    %4402 = vmatprep.subr.bf16.mxu0 0
    %4403 = vmatpush1.bf16.msra.mxu0 0
    %4404 = vmatprep.subr.bf16.mxu0 0
    %4405 = vmatpush1.bf16.msra.mxu0 0
    %4406 = vmatprep.subr.bf16.mxu0 0
    %4407 = vmatpush1.bf16.msra.mxu0 0
    %4408 = vmatprep.subr.bf16.mxu0 0
    %4409 = vmatpush1.bf16.msra.mxu0 0
    %4410 = vmatprep.subr.bf16.mxu0 0
    %4411 = vmatpush1.bf16.msra.mxu0 0
    %4412 = vmatprep.subr.bf16.mxu0 0
    %4413 = vmatpush1.bf16.msra.mxu0 0
    %4414 = vmatprep.subr.bf16.mxu0 0
    %4415 = vmatpush1.bf16.msra.mxu0 0
    %4416 = vmatprep.subr.bf16.mxu0 0
    %4417 = vmatpush1.bf16.msra.mxu0 0
    %4418 = vmatprep.subr.bf16.mxu0 0
    %4419 = vmatpush1.bf16.msra.mxu0 0
    %4420 = vmatprep.subr.bf16.mxu0 0
    %4421 = vmatpush1.bf16.msra.mxu0 0
    %4422 = vmatprep.subr.bf16.mxu0 0
    %4423 = vmatpush1.bf16.msra.mxu0 0
    %4424 = vmatprep.subr.bf16.mxu0 0
    %4425 = vmatpush1.bf16.msra.mxu0 0
    %4426 = vmatprep.subr.bf16.mxu0 0
    %4427 = vmatpush1.bf16.msra.mxu0 0
    %4428 = vmatprep.subr.bf16.mxu0 0
    %4429 = vmatpush1.bf16.msra.mxu0 0
    %4430 = vmatprep.subr.bf16.mxu0 0
    %4431 = vmatpush1.bf16.msra.mxu0 0
    %4432 = vmatprep.mubr.bf16.mxu0 0
    %4433 = vmatmul.mubr.bf16.gmra.mrb[0].mxu0 %v4398
    %v4434 = vpop.f32.mrb[0].mxu0
    %v4435 = vadd.f32 0.0, %v4434
    %v4436 = vpop.f32.mrb[0].mxu0
    %v4437 = vpop.f32.mrb[0].mxu0
    %v4438 = vadd.f32 0.0, %v4437
    %v4439 = vpop.f32.mrb[0].mxu0
    %4440 = vdwg.mxu0
    %4441 = vrot.lane.b32.xlu0 %v3711, 64
    %v4442 = vpop.permute.xlu0 %4441
    %v4445 = vsel %vm889, %v4295, 0
    %4447 = vmatprep.subr.bf16.mxu0 0
    %4448 = vmatpush1.bf16.msra.mxu0 %v4442
    %4449 = vmatprep.subr.bf16.mxu0 0
    %4450 = vmatpush1.bf16.msra.mxu0 0
    %4451 = vmatprep.subr.bf16.mxu0 0
    %4452 = vmatpush1.bf16.msra.mxu0 0
    %4453 = vmatprep.subr.bf16.mxu0 0
    %4454 = vmatpush1.bf16.msra.mxu0 0
    %4455 = vmatprep.subr.bf16.mxu0 0
    %4456 = vmatpush1.bf16.msra.mxu0 0
    %4457 = vmatprep.subr.bf16.mxu0 0
    %4458 = vmatpush1.bf16.msra.mxu0 0
    %4459 = vmatprep.subr.bf16.mxu0 0
    %4460 = vmatpush1.bf16.msra.mxu0 0
    %4461 = vmatprep.subr.bf16.mxu0 0
    %4462 = vmatpush1.bf16.msra.mxu0 0
    %4463 = vmatprep.subr.bf16.mxu0 0
    %4464 = vmatpush1.bf16.msra.mxu0 0
    %4465 = vmatprep.subr.bf16.mxu0 0
    %4466 = vmatpush1.bf16.msra.mxu0 0
    %4467 = vmatprep.subr.bf16.mxu0 0
    %4468 = vmatpush1.bf16.msra.mxu0 0
    %4469 = vmatprep.subr.bf16.mxu0 0
    %4470 = vmatpush1.bf16.msra.mxu0 0
    %4471 = vmatprep.subr.bf16.mxu0 0
    %4472 = vmatpush1.bf16.msra.mxu0 0
    %4473 = vmatprep.subr.bf16.mxu0 0
    %4474 = vmatpush1.bf16.msra.mxu0 0
    %4475 = vmatprep.subr.bf16.mxu0 0
    %4476 = vmatpush1.bf16.msra.mxu0 0
    %4477 = vmatprep.subr.bf16.mxu0 0
    %4478 = vmatpush1.bf16.msra.mxu0 0
    %4479 = vmatprep.mubr.bf16.mxu0 0
    %4480 = vmatmul.mubr.bf16.gmra.mrb[0].mxu0 %v4445
    %v4481 = vpop.f32.mrb[0].mxu0
    %v4482 = vadd.f32 0.0, %v4481
    %v4483 = vpop.f32.mrb[0].mxu0
    %v4484 = vpop.f32.mrb[0].mxu0
    %v4485 = vadd.f32 0.0, %v4484
    %v4486 = vpop.f32.mrb[0].mxu0
    %4487 = vdwg.mxu0
    %4488 = vrot.lane.b32.xlu0 %v3712, 64
    %v4489 = vpop.permute.xlu0 %4488
    %v4492 = vsel %vm889, %v4296, 0
    %4494 = vmatprep.subr.bf16.mxu0 0
    %4495 = vmatpush1.bf16.msra.mxu0 %v4489
    %4496 = vmatprep.subr.bf16.mxu0 0
    %4497 = vmatpush1.bf16.msra.mxu0 0
    %4498 = vmatprep.subr.bf16.mxu0 0
    %4499 = vmatpush1.bf16.msra.mxu0 0
    %4500 = vmatprep.subr.bf16.mxu0 0
    %4501 = vmatpush1.bf16.msra.mxu0 0
    %4502 = vmatprep.subr.bf16.mxu0 0
    %4503 = vmatpush1.bf16.msra.mxu0 0
    %4504 = vmatprep.subr.bf16.mxu0 0
    %4505 = vmatpush1.bf16.msra.mxu0 0
    %4506 = vmatprep.subr.bf16.mxu0 0
    %4507 = vmatpush1.bf16.msra.mxu0 0
    %4508 = vmatprep.subr.bf16.mxu0 0
    %4509 = vmatpush1.bf16.msra.mxu0 0
    %4510 = vmatprep.subr.bf16.mxu0 0
    %4511 = vmatpush1.bf16.msra.mxu0 0
    %4512 = vmatprep.subr.bf16.mxu0 0
    %4513 = vmatpush1.bf16.msra.mxu0 0
    %4514 = vmatprep.subr.bf16.mxu0 0
    %4515 = vmatpush1.bf16.msra.mxu0 0
    %4516 = vmatprep.subr.bf16.mxu0 0
    %4517 = vmatpush1.bf16.msra.mxu0 0
    %4518 = vmatprep.subr.bf16.mxu0 0
    %4519 = vmatpush1.bf16.msra.mxu0 0
    %4520 = vmatprep.subr.bf16.mxu0 0
    %4521 = vmatpush1.bf16.msra.mxu0 0
    %4522 = vmatprep.subr.bf16.mxu0 0
    %4523 = vmatpush1.bf16.msra.mxu0 0
    %4524 = vmatprep.subr.bf16.mxu0 0
    %4525 = vmatpush1.bf16.msra.mxu0 0
    %4526 = vmatprep.mubr.bf16.mxu0 0
    %4527 = vmatmul.mubr.bf16.gmra.mrb[0].mxu0 %v4492
    %v4528 = vpop.f32.mrb[0].mxu0
    %v4529 = vadd.f32 0.0, %v4528
    %v4530 = vpop.f32.mrb[0].mxu0
    %v4531 = vpop.f32.mrb[0].mxu0
    %v4532 = vadd.f32 0.0, %v4531
    %v4533 = vpop.f32.mrb[0].mxu0
    %4534 = vdwg.mxu0
    %4535 = vrot.lane.b32.xlu0 %v3713, 64
    %v4536 = vpop.permute.xlu0 %4535
    %v4539 = vsel %vm889, %v4297, 0
    %4541 = vmatprep.subr.bf16.mxu0 0
    %4542 = vmatpush1.bf16.msra.mxu0 %v4536
    %4543 = vmatprep.subr.bf16.mxu0 0
    %4544 = vmatpush1.bf16.msra.mxu0 0
    %4545 = vmatprep.subr.bf16.mxu0 0
    %4546 = vmatpush1.bf16.msra.mxu0 0
    %4547 = vmatprep.subr.bf16.mxu0 0
    %4548 = vmatpush1.bf16.msra.mxu0 0
    %4549 = vmatprep.subr.bf16.mxu0 0
    %4550 = vmatpush1.bf16.msra.mxu0 0
    %4551 = vmatprep.subr.bf16.mxu0 0
    %4552 = vmatpush1.bf16.msra.mxu0 0
    %4553 = vmatprep.subr.bf16.mxu0 0
    %4554 = vmatpush1.bf16.msra.mxu0 0
    %4555 = vmatprep.subr.bf16.mxu0 0
    %4556 = vmatpush1.bf16.msra.mxu0 0
    %4557 = vmatprep.subr.bf16.mxu0 0
    %4558 = vmatpush1.bf16.msra.mxu0 0
    %4559 = vmatprep.subr.bf16.mxu0 0
    %4560 = vmatpush1.bf16.msra.mxu0 0
    %4561 = vmatprep.subr.bf16.mxu0 0
    %4562 = vmatpush1.bf16.msra.mxu0 0
    %4563 = vmatprep.subr.bf16.mxu0 0
    %4564 = vmatpush1.bf16.msra.mxu0 0
    %4565 = vmatprep.subr.bf16.mxu0 0
    %4566 = vmatpush1.bf16.msra.mxu0 0
    %4567 = vmatprep.subr.bf16.mxu0 0
    %4568 = vmatpush1.bf16.msra.mxu0 0
    %4569 = vmatprep.subr.bf16.mxu0 0
    %4570 = vmatpush1.bf16.msra.mxu0 0
    %4571 = vmatprep.subr.bf16.mxu0 0
    %4572 = vmatpush1.bf16.msra.mxu0 0
    %4573 = vmatprep.mubr.bf16.mxu0 0
    %4574 = vmatmul.mubr.bf16.gmra.mrb[0].mxu0 %v4539
    %v4575 = vpop.f32.mrb[0].mxu0
    %v4576 = vadd.f32 0.0, %v4575
    %v4577 = vpop.f32.mrb[0].mxu0
    %v4578 = vpop.f32.mrb[0].mxu0
    %v4579 = vadd.f32 0.0, %v4578
    %v4580 = vpop.f32.mrb[0].mxu0
    %4581 = vdwg.mxu0
    %4582 = vrot.lane.b32.xlu0 %v3714, 64
    %v4583 = vpop.permute.xlu0 %4582
    %v4586 = vsel %vm889, %v4298, 0
    %4588 = vmatprep.subr.bf16.mxu0 0
    %4589 = vmatpush1.bf16.msra.mxu0 %v4583
    %4590 = vmatprep.subr.bf16.mxu0 0
    %4591 = vmatpush1.bf16.msra.mxu0 0
    %4592 = vmatprep.subr.bf16.mxu0 0
    %4593 = vmatpush1.bf16.msra.mxu0 0
    %4594 = vmatprep.subr.bf16.mxu0 0
    %4595 = vmatpush1.bf16.msra.mxu0 0
    %4596 = vmatprep.subr.bf16.mxu0 0
    %4597 = vmatpush1.bf16.msra.mxu0 0
    %4598 = vmatprep.subr.bf16.mxu0 0
    %4599 = vmatpush1.bf16.msra.mxu0 0
    %4600 = vmatprep.subr.bf16.mxu0 0
    %4601 = vmatpush1.bf16.msra.mxu0 0
    %4602 = vmatprep.subr.bf16.mxu0 0
    %4603 = vmatpush1.bf16.msra.mxu0 0
    %4604 = vmatprep.subr.bf16.mxu0 0
    %4605 = vmatpush1.bf16.msra.mxu0 0
    %4606 = vmatprep.subr.bf16.mxu0 0
    %4607 = vmatpush1.bf16.msra.mxu0 0
    %4608 = vmatprep.subr.bf16.mxu0 0
    %4609 = vmatpush1.bf16.msra.mxu0 0
    %4610 = vmatprep.subr.bf16.mxu0 0
    %4611 = vmatpush1.bf16.msra.mxu0 0
    %4612 = vmatprep.subr.bf16.mxu0 0
    %4613 = vmatpush1.bf16.msra.mxu0 0
    %4614 = vmatprep.subr.bf16.mxu0 0
    %4615 = vmatpush1.bf16.msra.mxu0 0
    %4616 = vmatprep.subr.bf16.mxu0 0
    %4617 = vmatpush1.bf16.msra.mxu0 0
    %4618 = vmatprep.subr.bf16.mxu0 0
    %4619 = vmatpush1.bf16.msra.mxu0 0
    %4620 = vmatprep.mubr.bf16.mxu0 0
    %4621 = vmatmul.mubr.bf16.gmra.mrb[0].mxu0 %v4586
    %v4622 = vpop.f32.mrb[0].mxu0
    %v4623 = vadd.f32 0.0, %v4622
    %v4624 = vpop.f32.mrb[0].mxu0
    %v4625 = vpop.f32.mrb[0].mxu0
    %v4626 = vadd.f32 0.0, %v4625
    %v4627 = vpop.f32.mrb[0].mxu0
    %4628 = vdwg.mxu0
    %4629 = vrot.lane.b32.xlu0 %v3715, 64
    %v4630 = vpop.permute.xlu0 %4629
    %v4633 = vsel %vm889, %v4299, 0
    %4635 = vmatprep.subr.bf16.mxu0 0
    %4636 = vmatpush1.bf16.msra.mxu0 %v4630
    %4637 = vmatprep.subr.bf16.mxu0 0
    %4638 = vmatpush1.bf16.msra.mxu0 0
    %4639 = vmatprep.subr.bf16.mxu0 0
    %4640 = vmatpush1.bf16.msra.mxu0 0
    %4641 = vmatprep.subr.bf16.mxu0 0
    %4642 = vmatpush1.bf16.msra.mxu0 0
    %4643 = vmatprep.subr.bf16.mxu0 0
    %4644 = vmatpush1.bf16.msra.mxu0 0
    %4645 = vmatprep.subr.bf16.mxu0 0
    %4646 = vmatpush1.bf16.msra.mxu0 0
    %4647 = vmatprep.subr.bf16.mxu0 0
    %4648 = vmatpush1.bf16.msra.mxu0 0
    %4649 = vmatprep.subr.bf16.mxu0 0
    %4650 = vmatpush1.bf16.msra.mxu0 0
    %4651 = vmatprep.subr.bf16.mxu0 0
    %4652 = vmatpush1.bf16.msra.mxu0 0
    %4653 = vmatprep.subr.bf16.mxu0 0
    %4654 = vmatpush1.bf16.msra.mxu0 0
    %4655 = vmatprep.subr.bf16.mxu0 0
    %4656 = vmatpush1.bf16.msra.mxu0 0
    %4657 = vmatprep.subr.bf16.mxu0 0
    %4658 = vmatpush1.bf16.msra.mxu0 0
    %4659 = vmatprep.subr.bf16.mxu0 0
    %4660 = vmatpush1.bf16.msra.mxu0 0
    %4661 = vmatprep.subr.bf16.mxu0 0
    %4662 = vmatpush1.bf16.msra.mxu0 0
    %4663 = vmatprep.subr.bf16.mxu0 0
    %4664 = vmatpush1.bf16.msra.mxu0 0
    %4665 = vmatprep.subr.bf16.mxu0 0
    %4666 = vmatpush1.bf16.msra.mxu0 0
    %4667 = vmatprep.mubr.bf16.mxu0 0
    %4668 = vmatmul.mubr.bf16.gmra.mrb[0].mxu0 %v4633
    %v4669 = vpop.f32.mrb[0].mxu0
    %v4670 = vadd.f32 0.0, %v4669
    %v4671 = vpop.f32.mrb[0].mxu0
    %v4672 = vpop.f32.mrb[0].mxu0
    %v4673 = vadd.f32 0.0, %v4672
    %v4674 = vpop.f32.mrb[0].mxu0
    %4675 = vdwg.mxu0
    %4680 = vrot.lane.b32.xlu0 %v4435, 8
    %v4681 = vpop.permute.xlu0 %4680
    %4682 = vrot.lane.b32.xlu0 %v4438, 8
    %v4683 = vpop.permute.xlu0 %4682
    %4684 = vrot.lane.b32.xlu0 %v4482, 8
    %v4685 = vpop.permute.xlu0 %4684
    %4686 = vrot.lane.b32.xlu0 %v4485, 8
    %v4687 = vpop.permute.xlu0 %4686
    %4696 = vrot.lane.b32.xlu0 %v4529, 16
    %v4697 = vpop.permute.xlu0 %4696
    %4698 = vrot.lane.b32.xlu0 %v4532, 16
    %v4699 = vpop.permute.xlu0 %4698
    %4700 = vrot.lane.b32.xlu0 %v4576, 16
    %v4701 = vpop.permute.xlu0 %4700
    %4702 = vrot.lane.b32.xlu0 %v4579, 16
    %v4703 = vpop.permute.xlu0 %4702
    %4712 = vrot.lane.b32.xlu0 %v4623, 24
    %v4713 = vpop.permute.xlu0 %4712
    %4714 = vrot.lane.b32.xlu0 %v4626, 24
    %v4715 = vpop.permute.xlu0 %4714
    %4716 = vrot.lane.b32.xlu0 %v4670, 24
    %v4717 = vpop.permute.xlu0 %4716
    %4718 = vrot.lane.b32.xlu0 %v4673, 24
    %v4719 = vpop.permute.xlu0 %4718
    %v4724 = vsel %vm491, %v4341, %v4681
    %v4725 = vsel %vm491, %v4344, %v4683
    %v4726 = vsel %vm491, %v4388, %v4685
    %v4727 = vsel %vm491, %v4391, %v4687
    %v4728 = vsel %vm889, %v4724, %v4697
    %v4729 = vsel %vm889, %v4725, %v4699
    %v4730 = vsel %vm889, %v4726, %v4701
    %v4731 = vsel %vm889, %v4727, %v4703
    %v4732 = vsel %vm1506, %v4728, %v4713
    %v4733 = vsel %vm1506, %v4729, %v4715
    %v4734 = vsel %vm1506, %v4730, %v4717
    %v4735 = vsel %vm1506, %v4731, %v4719
    %v4736 = vld [vmem:[%s6] sm:$0xf]
    %v4737 = vld [vmem:[%s6 + $0x4] sm:$0xf]
    %v4738 = vld [vmem:[%s6 + $0x8] sm:$0xf]
    %v4739 = vld [vmem:[%s6 + $0xc] sm:$0xf]
    %v4740 = vpack.c.bf16 %v4733, %v4732
    %v4741 = vpack.c.bf16 %v4735, %v4734
    %v4746 = vunpack.c.l.b16 %v4736
    %v4747 = vunpack.c.l.b16 %v4737
    %v4748 = vunpack.c.l.b16 %v4738
    %v4749 = vunpack.c.l.b16 %v4739
    %v4750 = vpack.c.b16 %v4747, %v4746
    %v4751 = vpack.c.b16 %v4749, %v4748
    %v4755 = vsel %vm105, %v4740, 0
    %v4758 = vsel %vm105, %v4741, 0
    %4760 = vmatprep.subr.bf16.mxu0 0
    %4761 = vmatpush1.bf16.msra.mxu0 %v4750
    %4762 = vmatprep.subr.bf16.mxu0 0
    %4763 = vmatpush1.bf16.msra.mxu0 %v4751
    %4764 = vmatprep.subr.bf16.mxu0 0
    %4765 = vmatpush1.bf16.msra.mxu0 0
    %4766 = vmatprep.subr.bf16.mxu0 0
    %4767 = vmatpush1.bf16.msra.mxu0 0
    %4768 = vmatprep.subr.bf16.mxu0 0
    %4769 = vmatpush1.bf16.msra.mxu0 0
    %4770 = vmatprep.subr.bf16.mxu0 0
    %4771 = vmatpush1.bf16.msra.mxu0 0
    %4772 = vmatprep.subr.bf16.mxu0 0
    %4773 = vmatpush1.bf16.msra.mxu0 0
    %4774 = vmatprep.subr.bf16.mxu0 0
    %4775 = vmatpush1.bf16.msra.mxu0 0
    %4776 = vmatprep.subr.bf16.mxu0 0
    %4777 = vmatpush1.bf16.msra.mxu0 0
    %4778 = vmatprep.subr.bf16.mxu0 0
    %4779 = vmatpush1.bf16.msra.mxu0 0
    %4780 = vmatprep.subr.bf16.mxu0 0
    %4781 = vmatpush1.bf16.msra.mxu0 0
    %4782 = vmatprep.subr.bf16.mxu0 0
    %4783 = vmatpush1.bf16.msra.mxu0 0
    %4784 = vmatprep.subr.bf16.mxu0 0
    %4785 = vmatpush1.bf16.msra.mxu0 0
    %4786 = vmatprep.subr.bf16.mxu0 0
    %4787 = vmatpush1.bf16.msra.mxu0 0
    %4788 = vmatprep.subr.bf16.mxu0 0
    %4789 = vmatpush1.bf16.msra.mxu0 0
    %4790 = vmatprep.subr.bf16.mxu0 0
    %4791 = vmatpush1.bf16.msra.mxu0 0
    %4792 = vmatprep.mubr.bf16.mxu0 0
    %4793 = vmatmul.mubr.bf16.gmra.mrb[0].mxu0 %v4755
    %v4794 = vpop.f32.mrb[0].mxu0
    %v4795 = vadd.f32 %v1520, %v4794
    %v4796 = vpop.f32.mrb[0].mxu0
    %v4797 = vpop.f32.mrb[0].mxu0
    %v4798 = vadd.f32 %v1520, %v4797
    %v4799 = vpop.f32.mrb[0].mxu0
    %4800 = vmatprep.mubr.bf16.mxu0 0
    %4801 = vmatmul.mubr.bf16.gmra.mrb[0].mxu0 %v4758
    %v4802 = vpop.f32.mrb[0].mxu0
    %v4803 = vadd.f32 %v1520, %v4802
    %v4804 = vpop.f32.mrb[0].mxu0
    %v4805 = vpop.f32.mrb[0].mxu0
    %v4806 = vadd.f32 %v1520, %v4805
    %v4807 = vpop.f32.mrb[0].mxu0
    %4808 = vdwg.mxu0
    %v4809 = vmul.f32 %v4795, %v4795
    %v4810 = vmul.f32 %v4798, %v4798
    %v4811 = vmul.f32 %v4803, %v4803
    %v4812 = vmul.f32 %v4806, %v4806
    %v4813 = vsel %vm105, %v4809, 0.0
    %4814 = vadd.xlane.f32.xlu0 %v4813
    %v4815 = vpop.xlane.xlu0 %4814
    %v4816 = vsel %vm105, %v4810, 0.0
    %4817 = vadd.xlane.f32.xlu0 %v4816
    %v4818 = vpop.xlane.xlu0 %4817
    %v4819 = vsel %vm105, %v4811, 0.0
    %4820 = vadd.xlane.f32.xlu0 %v4819
    %v4821 = vpop.xlane.xlu0 %4820
    %v4822 = vsel %vm105, %v4812, 0.0
    %4823 = vadd.xlane.f32.xlu0 %v4822
    %v4824 = vpop.xlane.xlu0 %4823
    %v4825 = vmul.f32 %v4815, %v1604
    %v4826 = vmul.f32 %v4818, %v1604
    %v4827 = vmul.f32 %v4821, %v1604
    %v4828 = vmul.f32 %v4824, %v1604
    %v4829 = vadd.f32 %v4825, 1e-06
    %v4830 = vadd.f32 %v4826, 1e-06
    %v4831 = vadd.f32 %v4827, 1e-06
    %v4832 = vadd.f32 %v4828, 1e-06
    %v4833 = vrsqrt.pop %v4829
    %v4834 = vrsqrt.pop %v4830
    %v4835 = vrsqrt.pop %v4831
    %v4836 = vrsqrt.pop %v4832
    %v4837 = vmul.f32 %v4795, %v4833
    %v4838 = vmul.f32 %v4798, %v4834
    %v4839 = vmul.f32 %v4803, %v4835
    %v4840 = vmul.f32 %v4806, %v4836
    %v4841 = vadd.f32 %v4837, %v3539
    %v4842 = vadd.f32 %v4838, %v3540
    %v4843 = vadd.f32 %v4839, %v3541
    %v4844 = vadd.f32 %v4840, %v3542
    %v4845 = vld [vmem:[%s1625] sm:$0xf]
    %v4846 = vld [vmem:[%s1625 + $0x4] sm:$0xf]
    %v4847 = vld [vmem:[%s1625 + $0x8] sm:$0xf]
    %v4848 = vld [vmem:[%s1625 + $0xc] sm:$0xf]
    %v4849 = vpack.c.bf16 %v4842, %v4841
    %v4850 = vpack.c.bf16 %v4844, %v4843
    %v4855 = vunpack.c.l.b16 %v4845
    %v4856 = vunpack.c.l.b16 %v4846
    %v4857 = vunpack.c.l.b16 %v4847
    %v4858 = vunpack.c.l.b16 %v4848
    %v4859 = vpack.c.b16 %v4856, %v4855
    %v4860 = vpack.c.b16 %v4858, %v4857
    %v4864 = vsel %vm105, %v4849, 0
    %v4867 = vsel %vm105, %v4850, 0
    %4869 = vmatprep.subr.bf16.mxu0 0
    %4870 = vmatpush1.bf16.msra.mxu0 %v4859
    %4871 = vmatprep.subr.bf16.mxu0 0
    %4872 = vmatpush1.bf16.msra.mxu0 %v4860
    %4873 = vmatprep.subr.bf16.mxu0 0
    %4874 = vmatpush1.bf16.msra.mxu0 0
    %4875 = vmatprep.subr.bf16.mxu0 0
    %4876 = vmatpush1.bf16.msra.mxu0 0
    %4877 = vmatprep.subr.bf16.mxu0 0
    %4878 = vmatpush1.bf16.msra.mxu0 0
    %4879 = vmatprep.subr.bf16.mxu0 0
    %4880 = vmatpush1.bf16.msra.mxu0 0
    %4881 = vmatprep.subr.bf16.mxu0 0
    %4882 = vmatpush1.bf16.msra.mxu0 0
    %4883 = vmatprep.subr.bf16.mxu0 0
    %4884 = vmatpush1.bf16.msra.mxu0 0
    %4885 = vmatprep.subr.bf16.mxu0 0
    %4886 = vmatpush1.bf16.msra.mxu0 0
    %4887 = vmatprep.subr.bf16.mxu0 0
    %4888 = vmatpush1.bf16.msra.mxu0 0
    %4889 = vmatprep.subr.bf16.mxu0 0
    %4890 = vmatpush1.bf16.msra.mxu0 0
    %4891 = vmatprep.subr.bf16.mxu0 0
    %4892 = vmatpush1.bf16.msra.mxu0 0
    %4893 = vmatprep.subr.bf16.mxu0 0
    %4894 = vmatpush1.bf16.msra.mxu0 0
    %4895 = vmatprep.subr.bf16.mxu0 0
    %4896 = vmatpush1.bf16.msra.mxu0 0
    %4897 = vmatprep.subr.bf16.mxu0 0
    %4898 = vmatpush1.bf16.msra.mxu0 0
    %4899 = vmatprep.subr.bf16.mxu0 0
    %4900 = vmatpush1.bf16.msra.mxu0 0
    %4901 = vmatprep.mubr.bf16.mxu0 0
    %4902 = vmatmul.mubr.bf16.gmra.mrb[0].mxu0 %v4864
    %v4903 = vpop.f32.mrb[0].mxu0
    %v4904 = vadd.f32 %v1635, %v4903
    %v4905 = vpop.f32.mrb[0].mxu0
    %v4906 = vpop.f32.mrb[0].mxu0
    %v4907 = vadd.f32 %v1635, %v4906
    %v4908 = vpop.f32.mrb[0].mxu0
    %4909 = vmatprep.mubr.bf16.mxu0 0
    %4910 = vmatmul.mubr.bf16.gmra.mrb[0].mxu0 %v4867
    %v4911 = vpop.f32.mrb[0].mxu0
    %v4912 = vadd.f32 %v1635, %v4911
    %v4913 = vpop.f32.mrb[0].mxu0
    %v4914 = vpop.f32.mrb[0].mxu0
    %v4915 = vadd.f32 %v1635, %v4914
    %v4916 = vpop.f32.mrb[0].mxu0
    %4917 = vdwg.mxu0
    %4918 = vrot.lane.b32.xlu0 %v4859, 96
    %v4919 = vpop.permute.xlu0 %4918
    %4920 = vrot.lane.b32.xlu0 %v4860, 96
    %v4921 = vpop.permute.xlu0 %4920
    %4924 = vmatprep.subr.bf16.mxu0 0
    %4925 = vmatpush1.bf16.msra.mxu0 %v4919
    %4926 = vmatprep.subr.bf16.mxu0 0
    %4927 = vmatpush1.bf16.msra.mxu0 %v4921
    %4928 = vmatprep.subr.bf16.mxu0 0
    %4929 = vmatpush1.bf16.msra.mxu0 0
    %4930 = vmatprep.subr.bf16.mxu0 0
    %4931 = vmatpush1.bf16.msra.mxu0 0
    %4932 = vmatprep.subr.bf16.mxu0 0
    %4933 = vmatpush1.bf16.msra.mxu0 0
    %4934 = vmatprep.subr.bf16.mxu0 0
    %4935 = vmatpush1.bf16.msra.mxu0 0
    %4936 = vmatprep.subr.bf16.mxu0 0
    %4937 = vmatpush1.bf16.msra.mxu0 0
    %4938 = vmatprep.subr.bf16.mxu0 0
    %4939 = vmatpush1.bf16.msra.mxu0 0
    %4940 = vmatprep.subr.bf16.mxu0 0
    %4941 = vmatpush1.bf16.msra.mxu0 0
    %4942 = vmatprep.subr.bf16.mxu0 0
    %4943 = vmatpush1.bf16.msra.mxu0 0
    %4944 = vmatprep.subr.bf16.mxu0 0
    %4945 = vmatpush1.bf16.msra.mxu0 0
    %4946 = vmatprep.subr.bf16.mxu0 0
    %4947 = vmatpush1.bf16.msra.mxu0 0
    %4948 = vmatprep.subr.bf16.mxu0 0
    %4949 = vmatpush1.bf16.msra.mxu0 0
    %4950 = vmatprep.subr.bf16.mxu0 0
    %4951 = vmatpush1.bf16.msra.mxu0 0
    %4952 = vmatprep.subr.bf16.mxu0 0
    %4953 = vmatpush1.bf16.msra.mxu0 0
    %4954 = vmatprep.subr.bf16.mxu0 0
    %4955 = vmatpush1.bf16.msra.mxu0 0
    %4956 = vmatprep.mubr.bf16.mxu0 0
    %4957 = vmatmul.mubr.bf16.gmra.mrb[0].mxu0 %v1722
    %v4958 = vpop.f32.mrb[0].mxu0
    %v4959 = vadd.f32 %v1719, %v4958
    %v4960 = vpop.f32.mrb[0].mxu0
    %v4961 = vpop.f32.mrb[0].mxu0
    %v4962 = vadd.f32 %v1719, %v4961
    %v4963 = vpop.f32.mrb[0].mxu0
    %4964 = vmatprep.mubr.bf16.mxu0 0
    %4965 = vmatmul.mubr.bf16.gmra.mrb[0].mxu0 %v1725
    %v4966 = vpop.f32.mrb[0].mxu0
    %v4967 = vadd.f32 %v1719, %v4966
    %v4968 = vpop.f32.mrb[0].mxu0
    %v4969 = vpop.f32.mrb[0].mxu0
    %v4970 = vadd.f32 %v1719, %v4969
    %v4971 = vpop.f32.mrb[0].mxu0
    %4972 = vmatprep.mubr.bf16.mxu0 0
    %4973 = vmatmul.mubr.bf16.gmra.mrb[0].mxu0 %v1728
    %v4974 = vpop.f32.mrb[0].mxu0
    %v4975 = vadd.f32 %v1719, %v4974
    %v4976 = vpop.f32.mrb[0].mxu0
    %v4977 = vpop.f32.mrb[0].mxu0
    %v4978 = vadd.f32 %v1719, %v4977
    %v4979 = vpop.f32.mrb[0].mxu0
    %4980 = vmatprep.mubr.bf16.mxu0 0
    %4981 = vmatmul.mubr.bf16.gmra.mrb[0].mxu0 %v1731
    %v4982 = vpop.f32.mrb[0].mxu0
    %v4983 = vadd.f32 %v1719, %v4982
    %v4984 = vpop.f32.mrb[0].mxu0
    %v4985 = vpop.f32.mrb[0].mxu0
    %v4986 = vadd.f32 %v1719, %v4985
    %v4987 = vpop.f32.mrb[0].mxu0
    %4988 = vmatprep.mubr.bf16.mxu0 0
    %4989 = vmatmul.mubr.bf16.gmra.mrb[0].mxu0 %v1734
    %v4990 = vpop.f32.mrb[0].mxu0
    %v4991 = vadd.f32 %v1719, %v4990
    %v4992 = vpop.f32.mrb[0].mxu0
    %v4993 = vpop.f32.mrb[0].mxu0
    %v4994 = vadd.f32 %v1719, %v4993
    %v4995 = vpop.f32.mrb[0].mxu0
    %4996 = vmatprep.mubr.bf16.mxu0 0
    %4997 = vmatmul.mubr.bf16.gmra.mrb[0].mxu0 %v1737
    %v4998 = vpop.f32.mrb[0].mxu0
    %v4999 = vadd.f32 %v1719, %v4998
    %v5000 = vpop.f32.mrb[0].mxu0
    %v5001 = vpop.f32.mrb[0].mxu0
    %v5002 = vadd.f32 %v1719, %v5001
    %v5003 = vpop.f32.mrb[0].mxu0
    %5004 = vmatprep.mubr.bf16.mxu0 0
    %5005 = vmatmul.mubr.bf16.gmra.mrb[0].mxu0 %v1740
    %v5006 = vpop.f32.mrb[0].mxu0
    %v5007 = vadd.f32 %v1719, %v5006
    %v5008 = vpop.f32.mrb[0].mxu0
    %v5009 = vpop.f32.mrb[0].mxu0
    %v5010 = vadd.f32 %v1719, %v5009
    %v5011 = vpop.f32.mrb[0].mxu0
    %5012 = vmatprep.mubr.bf16.mxu0 0
    %5013 = vmatmul.mubr.bf16.gmra.mrb[0].mxu0 %v1743
    %v5014 = vpop.f32.mrb[0].mxu0
    %v5015 = vadd.f32 %v1719, %v5014
    %v5016 = vpop.f32.mrb[0].mxu0
    %v5017 = vpop.f32.mrb[0].mxu0
    %v5018 = vadd.f32 %v1719, %v5017
    %v5019 = vpop.f32.mrb[0].mxu0
    %5020 = vdwg.mxu0
    %v5021 = vmul.f32 %v4904, 0.35355338
    %v5022 = vmul.f32 %v4907, 0.35355338
    %v5023 = vmul.f32 %v4912, 0.35355338
    %v5024 = vmul.f32 %v4915, 0.35355338
    %5029 = vrot.lane.b32.xlu0 %v5021, 120
    %v5030 = vpop.permute.xlu0 %5029
    %5031 = vrot.lane.b32.xlu0 %v5022, 120
    %v5032 = vpop.permute.xlu0 %5031
    %5033 = vrot.lane.b32.xlu0 %v5023, 120
    %v5034 = vpop.permute.xlu0 %5033
    %5035 = vrot.lane.b32.xlu0 %v5024, 120
    %v5036 = vpop.permute.xlu0 %5035
    %5041 = vrot.lane.b32.xlu0 %v5021, 112
    %v5042 = vpop.permute.xlu0 %5041
    %5043 = vrot.lane.b32.xlu0 %v5022, 112
    %v5044 = vpop.permute.xlu0 %5043
    %5045 = vrot.lane.b32.xlu0 %v5023, 112
    %v5046 = vpop.permute.xlu0 %5045
    %5047 = vrot.lane.b32.xlu0 %v5024, 112
    %v5048 = vpop.permute.xlu0 %5047
    %5053 = vrot.lane.b32.xlu0 %v5021, 104
    %v5054 = vpop.permute.xlu0 %5053
    %5055 = vrot.lane.b32.xlu0 %v5022, 104
    %v5056 = vpop.permute.xlu0 %5055
    %5057 = vrot.lane.b32.xlu0 %v5023, 104
    %v5058 = vpop.permute.xlu0 %5057
    %5059 = vrot.lane.b32.xlu0 %v5024, 104
    %v5060 = vpop.permute.xlu0 %5059
    %5081 = vrot.lane.b32.xlu0 %v4959, 120
    %v5082 = vpop.permute.xlu0 %5081
    %5083 = vrot.lane.b32.xlu0 %v4962, 120
    %v5084 = vpop.permute.xlu0 %5083
    %5085 = vrot.lane.b32.xlu0 %v4967, 120
    %v5086 = vpop.permute.xlu0 %5085
    %5087 = vrot.lane.b32.xlu0 %v4970, 120
    %v5088 = vpop.permute.xlu0 %5087
    %5089 = vrot.lane.b32.xlu0 %v4975, 120
    %v5090 = vpop.permute.xlu0 %5089
    %5091 = vrot.lane.b32.xlu0 %v4978, 120
    %v5092 = vpop.permute.xlu0 %5091
    %5093 = vrot.lane.b32.xlu0 %v4983, 120
    %v5094 = vpop.permute.xlu0 %5093
    %5095 = vrot.lane.b32.xlu0 %v4986, 120
    %v5096 = vpop.permute.xlu0 %5095
    %5097 = vrot.lane.b32.xlu0 %v4991, 120
    %v5098 = vpop.permute.xlu0 %5097
    %5099 = vrot.lane.b32.xlu0 %v4994, 120
    %v5100 = vpop.permute.xlu0 %5099
    %5101 = vrot.lane.b32.xlu0 %v4999, 120
    %v5102 = vpop.permute.xlu0 %5101
    %5103 = vrot.lane.b32.xlu0 %v5002, 120
    %v5104 = vpop.permute.xlu0 %5103
    %5105 = vrot.lane.b32.xlu0 %v5007, 120
    %v5106 = vpop.permute.xlu0 %5105
    %5107 = vrot.lane.b32.xlu0 %v5010, 120
    %v5108 = vpop.permute.xlu0 %5107
    %5109 = vrot.lane.b32.xlu0 %v5015, 120
    %v5110 = vpop.permute.xlu0 %5109
    %5111 = vrot.lane.b32.xlu0 %v5018, 120
    %v5112 = vpop.permute.xlu0 %5111
    %5129 = vrot.lane.b32.xlu0 %v4959, 112
    %v5130 = vpop.permute.xlu0 %5129
    %5131 = vrot.lane.b32.xlu0 %v4962, 112
    %v5132 = vpop.permute.xlu0 %5131
    %5133 = vrot.lane.b32.xlu0 %v4967, 112
    %v5134 = vpop.permute.xlu0 %5133
    %5135 = vrot.lane.b32.xlu0 %v4970, 112
    %v5136 = vpop.permute.xlu0 %5135
    %5137 = vrot.lane.b32.xlu0 %v4975, 112
    %v5138 = vpop.permute.xlu0 %5137
    %5139 = vrot.lane.b32.xlu0 %v4978, 112
    %v5140 = vpop.permute.xlu0 %5139
    %5141 = vrot.lane.b32.xlu0 %v4983, 112
    %v5142 = vpop.permute.xlu0 %5141
    %5143 = vrot.lane.b32.xlu0 %v4986, 112
    %v5144 = vpop.permute.xlu0 %5143
    %5145 = vrot.lane.b32.xlu0 %v4991, 112
    %v5146 = vpop.permute.xlu0 %5145
    %5147 = vrot.lane.b32.xlu0 %v4994, 112
    %v5148 = vpop.permute.xlu0 %5147
    %5149 = vrot.lane.b32.xlu0 %v4999, 112
    %v5150 = vpop.permute.xlu0 %5149
    %5151 = vrot.lane.b32.xlu0 %v5002, 112
    %v5152 = vpop.permute.xlu0 %5151
    %5153 = vrot.lane.b32.xlu0 %v5007, 112
    %v5154 = vpop.permute.xlu0 %5153
    %5155 = vrot.lane.b32.xlu0 %v5010, 112
    %v5156 = vpop.permute.xlu0 %5155
    %5157 = vrot.lane.b32.xlu0 %v5015, 112
    %v5158 = vpop.permute.xlu0 %5157
    %5159 = vrot.lane.b32.xlu0 %v5018, 112
    %v5160 = vpop.permute.xlu0 %5159
    %5177 = vrot.lane.b32.xlu0 %v4959, 104
    %v5178 = vpop.permute.xlu0 %5177
    %5179 = vrot.lane.b32.xlu0 %v4962, 104
    %v5180 = vpop.permute.xlu0 %5179
    %5181 = vrot.lane.b32.xlu0 %v4967, 104
    %v5182 = vpop.permute.xlu0 %5181
    %5183 = vrot.lane.b32.xlu0 %v4970, 104
    %v5184 = vpop.permute.xlu0 %5183
    %5185 = vrot.lane.b32.xlu0 %v4975, 104
    %v5186 = vpop.permute.xlu0 %5185
    %5187 = vrot.lane.b32.xlu0 %v4978, 104
    %v5188 = vpop.permute.xlu0 %5187
    %5189 = vrot.lane.b32.xlu0 %v4983, 104
    %v5190 = vpop.permute.xlu0 %5189
    %5191 = vrot.lane.b32.xlu0 %v4986, 104
    %v5192 = vpop.permute.xlu0 %5191
    %5193 = vrot.lane.b32.xlu0 %v4991, 104
    %v5194 = vpop.permute.xlu0 %5193
    %5195 = vrot.lane.b32.xlu0 %v4994, 104
    %v5196 = vpop.permute.xlu0 %5195
    %5197 = vrot.lane.b32.xlu0 %v4999, 104
    %v5198 = vpop.permute.xlu0 %5197
    %5199 = vrot.lane.b32.xlu0 %v5002, 104
    %v5200 = vpop.permute.xlu0 %5199
    %5201 = vrot.lane.b32.xlu0 %v5007, 104
    %v5202 = vpop.permute.xlu0 %5201
    %5203 = vrot.lane.b32.xlu0 %v5010, 104
    %v5204 = vpop.permute.xlu0 %5203
    %5205 = vrot.lane.b32.xlu0 %v5015, 104
    %v5206 = vpop.permute.xlu0 %5205
    %5207 = vrot.lane.b32.xlu0 %v5018, 104
    %v5208 = vpop.permute.xlu0 %5207
    %v5225 = vpack.c.bf16 %v5022, %v5021
    %v5226 = vpack.c.bf16 %v5024, %v5023
    %v5227 = vpack.c.bf16 %v5032, %v5030
    %v5228 = vpack.c.bf16 %v5036, %v5034
    %v5229 = vpack.c.bf16 %v5044, %v5042
    %v5230 = vpack.c.bf16 %v5048, %v5046
    %v5231 = vpack.c.bf16 %v5056, %v5054
    %v5232 = vpack.c.bf16 %v5060, %v5058
    %v5233 = vpack.c.bf16 %v4962, %v4959
    %v5234 = vpack.c.bf16 %v4970, %v4967
    %v5235 = vpack.c.bf16 %v4978, %v4975
    %v5236 = vpack.c.bf16 %v4986, %v4983
    %v5237 = vpack.c.bf16 %v4994, %v4991
    %v5238 = vpack.c.bf16 %v5002, %v4999
    %v5239 = vpack.c.bf16 %v5010, %v5007
    %v5240 = vpack.c.bf16 %v5018, %v5015
    %v5241 = vpack.c.bf16 %v5084, %v5082
    %v5242 = vpack.c.bf16 %v5088, %v5086
    %v5243 = vpack.c.bf16 %v5092, %v5090
    %v5244 = vpack.c.bf16 %v5096, %v5094
    %v5245 = vpack.c.bf16 %v5100, %v5098
    %v5246 = vpack.c.bf16 %v5104, %v5102
    %v5247 = vpack.c.bf16 %v5108, %v5106
    %v5248 = vpack.c.bf16 %v5112, %v5110
    %v5249 = vpack.c.bf16 %v5132, %v5130
    %v5250 = vpack.c.bf16 %v5136, %v5134
    %v5251 = vpack.c.bf16 %v5140, %v5138
    %v5252 = vpack.c.bf16 %v5144, %v5142
    %v5253 = vpack.c.bf16 %v5148, %v5146
    %v5254 = vpack.c.bf16 %v5152, %v5150
    %v5255 = vpack.c.bf16 %v5156, %v5154
    %v5256 = vpack.c.bf16 %v5160, %v5158
    %v5257 = vpack.c.bf16 %v5180, %v5178
    %v5258 = vpack.c.bf16 %v5184, %v5182
    %v5259 = vpack.c.bf16 %v5188, %v5186
    %v5260 = vpack.c.bf16 %v5192, %v5190
    %v5261 = vpack.c.bf16 %v5196, %v5194
    %v5262 = vpack.c.bf16 %v5200, %v5198
    %v5263 = vpack.c.bf16 %v5204, %v5202
    %v5264 = vpack.c.bf16 %v5208, %v5206
    %v5266 = vsel %vm491, %v5225, 0
    %v5269 = vsel %vm491, %v5233, 0
    %v5272 = vsel %vm491, %v5234, 0
    %v5275 = vsel %vm491, %v5235, 0
    %v5278 = vsel %vm491, %v5236, 0
    %5280 = vmatprep.subr.bf16.mxu0 0
    %5281 = vmatpush1.bf16.xpose.msra.mxu0 %v5269
    %5282 = vmatprep.subr.bf16.mxu0 0
    %5283 = vmatpush1.bf16.xpose.msra.mxu0 %v5272
    %5284 = vmatprep.subr.bf16.mxu0 0
    %5285 = vmatpush1.bf16.xpose.msra.mxu0 %v5275
    %5286 = vmatprep.subr.bf16.mxu0 0
    %5287 = vmatpush1.bf16.xpose.msra.mxu0 %v5278
    %5288 = vmatprep.subr.bf16.mxu0 0
    %5289 = vmatpush1.bf16.xpose.msra.mxu0 0
    %5290 = vmatprep.subr.bf16.mxu0 0
    %5291 = vmatpush1.bf16.xpose.msra.mxu0 0
    %5292 = vmatprep.subr.bf16.mxu0 0
    %5293 = vmatpush1.bf16.xpose.msra.mxu0 0
    %5294 = vmatprep.subr.bf16.mxu0 0
    %5295 = vmatpush1.bf16.xpose.msra.mxu0 0
    %5296 = vmatprep.subr.bf16.mxu0 0
    %5297 = vmatpush1.bf16.xpose.msra.mxu0 0
    %5298 = vmatprep.subr.bf16.mxu0 0
    %5299 = vmatpush1.bf16.xpose.msra.mxu0 0
    %5300 = vmatprep.subr.bf16.mxu0 0
    %5301 = vmatpush1.bf16.xpose.msra.mxu0 0
    %5302 = vmatprep.subr.bf16.mxu0 0
    %5303 = vmatpush1.bf16.xpose.msra.mxu0 0
    %5304 = vmatprep.subr.bf16.mxu0 0
    %5305 = vmatpush1.bf16.xpose.msra.mxu0 0
    %5306 = vmatprep.subr.bf16.mxu0 0
    %5307 = vmatpush1.bf16.xpose.msra.mxu0 0
    %5308 = vmatprep.subr.bf16.mxu0 0
    %5309 = vmatpush1.bf16.xpose.msra.mxu0 0
    %5310 = vmatprep.subr.bf16.mxu0 0
    %5311 = vmatpush1.bf16.xpose.msra.mxu0 0
    %5312 = vmatprep.mubr.bf16.mxu0 0
    %5313 = vmatmul.mubr.bf16.gmra.mrb[0].mxu0 %v5266
    %v5314 = vpop.f32.mrb[0].mxu0
    %v5315 = vadd.f32 0.0, %v5314
    %v5316 = vpop.f32.mrb[0].mxu0
    %v5317 = vpop.f32.mrb[0].mxu0
    %v5318 = vadd.f32 0.0, %v5317
    %v5319 = vpop.f32.mrb[0].mxu0
    %5320 = vdwg.mxu0
    %v5322 = vsel %vm491, %v5226, 0
    %v5325 = vsel %vm491, %v5237, 0
    %v5328 = vsel %vm491, %v5238, 0
    %v5331 = vsel %vm491, %v5239, 0
    %v5334 = vsel %vm491, %v5240, 0
    %5336 = vmatprep.subr.bf16.mxu0 0
    %5337 = vmatpush1.bf16.xpose.msra.mxu0 %v5325
    %5338 = vmatprep.subr.bf16.mxu0 0
    %5339 = vmatpush1.bf16.xpose.msra.mxu0 %v5328
    %5340 = vmatprep.subr.bf16.mxu0 0
    %5341 = vmatpush1.bf16.xpose.msra.mxu0 %v5331
    %5342 = vmatprep.subr.bf16.mxu0 0
    %5343 = vmatpush1.bf16.xpose.msra.mxu0 %v5334
    %5344 = vmatprep.subr.bf16.mxu0 0
    %5345 = vmatpush1.bf16.xpose.msra.mxu0 0
    %5346 = vmatprep.subr.bf16.mxu0 0
    %5347 = vmatpush1.bf16.xpose.msra.mxu0 0
    %5348 = vmatprep.subr.bf16.mxu0 0
    %5349 = vmatpush1.bf16.xpose.msra.mxu0 0
    %5350 = vmatprep.subr.bf16.mxu0 0
    %5351 = vmatpush1.bf16.xpose.msra.mxu0 0
    %5352 = vmatprep.subr.bf16.mxu0 0
    %5353 = vmatpush1.bf16.xpose.msra.mxu0 0
    %5354 = vmatprep.subr.bf16.mxu0 0
    %5355 = vmatpush1.bf16.xpose.msra.mxu0 0
    %5356 = vmatprep.subr.bf16.mxu0 0
    %5357 = vmatpush1.bf16.xpose.msra.mxu0 0
    %5358 = vmatprep.subr.bf16.mxu0 0
    %5359 = vmatpush1.bf16.xpose.msra.mxu0 0
    %5360 = vmatprep.subr.bf16.mxu0 0
    %5361 = vmatpush1.bf16.xpose.msra.mxu0 0
    %5362 = vmatprep.subr.bf16.mxu0 0
    %5363 = vmatpush1.bf16.xpose.msra.mxu0 0
    %5364 = vmatprep.subr.bf16.mxu0 0
    %5365 = vmatpush1.bf16.xpose.msra.mxu0 0
    %5366 = vmatprep.subr.bf16.mxu0 0
    %5367 = vmatpush1.bf16.xpose.msra.mxu0 0
    %5368 = vmatprep.mubr.bf16.mxu0 0
    %5369 = vmatmul.mubr.bf16.gmra.mrb[0].mxu0 %v5322
    %v5370 = vpop.f32.mrb[0].mxu0
    %v5371 = vadd.f32 0.0, %v5370
    %v5372 = vpop.f32.mrb[0].mxu0
    %v5373 = vpop.f32.mrb[0].mxu0
    %v5374 = vadd.f32 0.0, %v5373
    %v5375 = vpop.f32.mrb[0].mxu0
    %5376 = vdwg.mxu0
    %v5378 = vsel %vm491, %v5227, 0
    %v5381 = vsel %vm491, %v5241, 0
    %v5384 = vsel %vm491, %v5242, 0
    %v5387 = vsel %vm491, %v5243, 0
    %v5390 = vsel %vm491, %v5244, 0
    %5392 = vmatprep.subr.bf16.mxu0 0
    %5393 = vmatpush1.bf16.xpose.msra.mxu0 %v5381
    %5394 = vmatprep.subr.bf16.mxu0 0
    %5395 = vmatpush1.bf16.xpose.msra.mxu0 %v5384
    %5396 = vmatprep.subr.bf16.mxu0 0
    %5397 = vmatpush1.bf16.xpose.msra.mxu0 %v5387
    %5398 = vmatprep.subr.bf16.mxu0 0
    %5399 = vmatpush1.bf16.xpose.msra.mxu0 %v5390
    %5400 = vmatprep.subr.bf16.mxu0 0
    %5401 = vmatpush1.bf16.xpose.msra.mxu0 0
    %5402 = vmatprep.subr.bf16.mxu0 0
    %5403 = vmatpush1.bf16.xpose.msra.mxu0 0
    %5404 = vmatprep.subr.bf16.mxu0 0
    %5405 = vmatpush1.bf16.xpose.msra.mxu0 0
    %5406 = vmatprep.subr.bf16.mxu0 0
    %5407 = vmatpush1.bf16.xpose.msra.mxu0 0
    %5408 = vmatprep.subr.bf16.mxu0 0
    %5409 = vmatpush1.bf16.xpose.msra.mxu0 0
    %5410 = vmatprep.subr.bf16.mxu0 0
    %5411 = vmatpush1.bf16.xpose.msra.mxu0 0
    %5412 = vmatprep.subr.bf16.mxu0 0
    %5413 = vmatpush1.bf16.xpose.msra.mxu0 0
    %5414 = vmatprep.subr.bf16.mxu0 0
    %5415 = vmatpush1.bf16.xpose.msra.mxu0 0
    %5416 = vmatprep.subr.bf16.mxu0 0
    %5417 = vmatpush1.bf16.xpose.msra.mxu0 0
    %5418 = vmatprep.subr.bf16.mxu0 0
    %5419 = vmatpush1.bf16.xpose.msra.mxu0 0
    %5420 = vmatprep.subr.bf16.mxu0 0
    %5421 = vmatpush1.bf16.xpose.msra.mxu0 0
    %5422 = vmatprep.subr.bf16.mxu0 0
    %5423 = vmatpush1.bf16.xpose.msra.mxu0 0
    %5424 = vmatprep.mubr.bf16.mxu0 0
    %5425 = vmatmul.mubr.bf16.gmra.mrb[0].mxu0 %v5378
    %v5426 = vpop.f32.mrb[0].mxu0
    %v5427 = vadd.f32 0.0, %v5426
    %v5428 = vpop.f32.mrb[0].mxu0
    %v5429 = vpop.f32.mrb[0].mxu0
    %v5430 = vadd.f32 0.0, %v5429
    %v5431 = vpop.f32.mrb[0].mxu0
    %5432 = vdwg.mxu0
    %v5434 = vsel %vm491, %v5228, 0
    %v5437 = vsel %vm491, %v5245, 0
    %v5440 = vsel %vm491, %v5246, 0
    %v5443 = vsel %vm491, %v5247, 0
    %v5446 = vsel %vm491, %v5248, 0
    %5448 = vmatprep.subr.bf16.mxu0 0
    %5449 = vmatpush1.bf16.xpose.msra.mxu0 %v5437
    %5450 = vmatprep.subr.bf16.mxu0 0
    %5451 = vmatpush1.bf16.xpose.msra.mxu0 %v5440
    %5452 = vmatprep.subr.bf16.mxu0 0
    %5453 = vmatpush1.bf16.xpose.msra.mxu0 %v5443
    %5454 = vmatprep.subr.bf16.mxu0 0
    %5455 = vmatpush1.bf16.xpose.msra.mxu0 %v5446
    %5456 = vmatprep.subr.bf16.mxu0 0
    %5457 = vmatpush1.bf16.xpose.msra.mxu0 0
    %5458 = vmatprep.subr.bf16.mxu0 0
    %5459 = vmatpush1.bf16.xpose.msra.mxu0 0
    %5460 = vmatprep.subr.bf16.mxu0 0
    %5461 = vmatpush1.bf16.xpose.msra.mxu0 0
    %5462 = vmatprep.subr.bf16.mxu0 0
    %5463 = vmatpush1.bf16.xpose.msra.mxu0 0
    %5464 = vmatprep.subr.bf16.mxu0 0
    %5465 = vmatpush1.bf16.xpose.msra.mxu0 0
    %5466 = vmatprep.subr.bf16.mxu0 0
    %5467 = vmatpush1.bf16.xpose.msra.mxu0 0
    %5468 = vmatprep.subr.bf16.mxu0 0
    %5469 = vmatpush1.bf16.xpose.msra.mxu0 0
    %5470 = vmatprep.subr.bf16.mxu0 0
    %5471 = vmatpush1.bf16.xpose.msra.mxu0 0
    %5472 = vmatprep.subr.bf16.mxu0 0
    %5473 = vmatpush1.bf16.xpose.msra.mxu0 0
    %5474 = vmatprep.subr.bf16.mxu0 0
    %5475 = vmatpush1.bf16.xpose.msra.mxu0 0
    %5476 = vmatprep.subr.bf16.mxu0 0
    %5477 = vmatpush1.bf16.xpose.msra.mxu0 0
    %5478 = vmatprep.subr.bf16.mxu0 0
    %5479 = vmatpush1.bf16.xpose.msra.mxu0 0
    %5480 = vmatprep.mubr.bf16.mxu0 0
    %5481 = vmatmul.mubr.bf16.gmra.mrb[0].mxu0 %v5434
    %v5482 = vpop.f32.mrb[0].mxu0
    %v5483 = vadd.f32 0.0, %v5482
    %v5484 = vpop.f32.mrb[0].mxu0
    %v5485 = vpop.f32.mrb[0].mxu0
    %v5486 = vadd.f32 0.0, %v5485
    %v5487 = vpop.f32.mrb[0].mxu0
    %5488 = vdwg.mxu0
    %v5490 = vsel %vm491, %v5229, 0
    %v5493 = vsel %vm491, %v5249, 0
    %v5496 = vsel %vm491, %v5250, 0
    %v5499 = vsel %vm491, %v5251, 0
    %v5502 = vsel %vm491, %v5252, 0
    %5504 = vmatprep.subr.bf16.mxu0 0
    %5505 = vmatpush1.bf16.xpose.msra.mxu0 %v5493
    %5506 = vmatprep.subr.bf16.mxu0 0
    %5507 = vmatpush1.bf16.xpose.msra.mxu0 %v5496
    %5508 = vmatprep.subr.bf16.mxu0 0
    %5509 = vmatpush1.bf16.xpose.msra.mxu0 %v5499
    %5510 = vmatprep.subr.bf16.mxu0 0
    %5511 = vmatpush1.bf16.xpose.msra.mxu0 %v5502
    %5512 = vmatprep.subr.bf16.mxu0 0
    %5513 = vmatpush1.bf16.xpose.msra.mxu0 0
    %5514 = vmatprep.subr.bf16.mxu0 0
    %5515 = vmatpush1.bf16.xpose.msra.mxu0 0
    %5516 = vmatprep.subr.bf16.mxu0 0
    %5517 = vmatpush1.bf16.xpose.msra.mxu0 0
    %5518 = vmatprep.subr.bf16.mxu0 0
    %5519 = vmatpush1.bf16.xpose.msra.mxu0 0
    %5520 = vmatprep.subr.bf16.mxu0 0
    %5521 = vmatpush1.bf16.xpose.msra.mxu0 0
    %5522 = vmatprep.subr.bf16.mxu0 0
    %5523 = vmatpush1.bf16.xpose.msra.mxu0 0
    %5524 = vmatprep.subr.bf16.mxu0 0
    %5525 = vmatpush1.bf16.xpose.msra.mxu0 0
    %5526 = vmatprep.subr.bf16.mxu0 0
    %5527 = vmatpush1.bf16.xpose.msra.mxu0 0
    %5528 = vmatprep.subr.bf16.mxu0 0
    %5529 = vmatpush1.bf16.xpose.msra.mxu0 0
    %5530 = vmatprep.subr.bf16.mxu0 0
    %5531 = vmatpush1.bf16.xpose.msra.mxu0 0
    %5532 = vmatprep.subr.bf16.mxu0 0
    %5533 = vmatpush1.bf16.xpose.msra.mxu0 0
    %5534 = vmatprep.subr.bf16.mxu0 0
    %5535 = vmatpush1.bf16.xpose.msra.mxu0 0
    %5536 = vmatprep.mubr.bf16.mxu0 0
    %5537 = vmatmul.mubr.bf16.gmra.mrb[0].mxu0 %v5490
    %v5538 = vpop.f32.mrb[0].mxu0
    %v5539 = vadd.f32 0.0, %v5538
    %v5540 = vpop.f32.mrb[0].mxu0
    %v5541 = vpop.f32.mrb[0].mxu0
    %v5542 = vadd.f32 0.0, %v5541
    %v5543 = vpop.f32.mrb[0].mxu0
    %5544 = vdwg.mxu0
    %v5546 = vsel %vm491, %v5230, 0
    %v5549 = vsel %vm491, %v5253, 0
    %v5552 = vsel %vm491, %v5254, 0
    %v5555 = vsel %vm491, %v5255, 0
    %v5558 = vsel %vm491, %v5256, 0
    %5560 = vmatprep.subr.bf16.mxu0 0
    %5561 = vmatpush1.bf16.xpose.msra.mxu0 %v5549
    %5562 = vmatprep.subr.bf16.mxu0 0
    %5563 = vmatpush1.bf16.xpose.msra.mxu0 %v5552
    %5564 = vmatprep.subr.bf16.mxu0 0
    %5565 = vmatpush1.bf16.xpose.msra.mxu0 %v5555
    %5566 = vmatprep.subr.bf16.mxu0 0
    %5567 = vmatpush1.bf16.xpose.msra.mxu0 %v5558
    %5568 = vmatprep.subr.bf16.mxu0 0
    %5569 = vmatpush1.bf16.xpose.msra.mxu0 0
    %5570 = vmatprep.subr.bf16.mxu0 0
    %5571 = vmatpush1.bf16.xpose.msra.mxu0 0
    %5572 = vmatprep.subr.bf16.mxu0 0
    %5573 = vmatpush1.bf16.xpose.msra.mxu0 0
    %5574 = vmatprep.subr.bf16.mxu0 0
    %5575 = vmatpush1.bf16.xpose.msra.mxu0 0
    %5576 = vmatprep.subr.bf16.mxu0 0
    %5577 = vmatpush1.bf16.xpose.msra.mxu0 0
    %5578 = vmatprep.subr.bf16.mxu0 0
    %5579 = vmatpush1.bf16.xpose.msra.mxu0 0
    %5580 = vmatprep.subr.bf16.mxu0 0
    %5581 = vmatpush1.bf16.xpose.msra.mxu0 0
    %5582 = vmatprep.subr.bf16.mxu0 0
    %5583 = vmatpush1.bf16.xpose.msra.mxu0 0
    %5584 = vmatprep.subr.bf16.mxu0 0
    %5585 = vmatpush1.bf16.xpose.msra.mxu0 0
    %5586 = vmatprep.subr.bf16.mxu0 0
    %5587 = vmatpush1.bf16.xpose.msra.mxu0 0
    %5588 = vmatprep.subr.bf16.mxu0 0
    %5589 = vmatpush1.bf16.xpose.msra.mxu0 0
    %5590 = vmatprep.subr.bf16.mxu0 0
    %5591 = vmatpush1.bf16.xpose.msra.mxu0 0
    %5592 = vmatprep.mubr.bf16.mxu0 0
    %5593 = vmatmul.mubr.bf16.gmra.mrb[0].mxu0 %v5546
    %v5594 = vpop.f32.mrb[0].mxu0
    %v5595 = vadd.f32 0.0, %v5594
    %v5596 = vpop.f32.mrb[0].mxu0
    %v5597 = vpop.f32.mrb[0].mxu0
    %v5598 = vadd.f32 0.0, %v5597
    %v5599 = vpop.f32.mrb[0].mxu0
    %5600 = vdwg.mxu0
    %v5602 = vsel %vm491, %v5231, 0
    %v5605 = vsel %vm491, %v5257, 0
    %v5608 = vsel %vm491, %v5258, 0
    %v5611 = vsel %vm491, %v5259, 0
    %v5614 = vsel %vm491, %v5260, 0
    %5616 = vmatprep.subr.bf16.mxu0 0
    %5617 = vmatpush1.bf16.xpose.msra.mxu0 %v5605
    %5618 = vmatprep.subr.bf16.mxu0 0
    %5619 = vmatpush1.bf16.xpose.msra.mxu0 %v5608
    %5620 = vmatprep.subr.bf16.mxu0 0
    %5621 = vmatpush1.bf16.xpose.msra.mxu0 %v5611
    %5622 = vmatprep.subr.bf16.mxu0 0
    %5623 = vmatpush1.bf16.xpose.msra.mxu0 %v5614
    %5624 = vmatprep.subr.bf16.mxu0 0
    %5625 = vmatpush1.bf16.xpose.msra.mxu0 0
    %5626 = vmatprep.subr.bf16.mxu0 0
    %5627 = vmatpush1.bf16.xpose.msra.mxu0 0
    %5628 = vmatprep.subr.bf16.mxu0 0
    %5629 = vmatpush1.bf16.xpose.msra.mxu0 0
    %5630 = vmatprep.subr.bf16.mxu0 0
    %5631 = vmatpush1.bf16.xpose.msra.mxu0 0
    %5632 = vmatprep.subr.bf16.mxu0 0
    %5633 = vmatpush1.bf16.xpose.msra.mxu0 0
    %5634 = vmatprep.subr.bf16.mxu0 0
    %5635 = vmatpush1.bf16.xpose.msra.mxu0 0
    %5636 = vmatprep.subr.bf16.mxu0 0
    %5637 = vmatpush1.bf16.xpose.msra.mxu0 0
    %5638 = vmatprep.subr.bf16.mxu0 0
    %5639 = vmatpush1.bf16.xpose.msra.mxu0 0
    %5640 = vmatprep.subr.bf16.mxu0 0
    %5641 = vmatpush1.bf16.xpose.msra.mxu0 0
    %5642 = vmatprep.subr.bf16.mxu0 0
    %5643 = vmatpush1.bf16.xpose.msra.mxu0 0
    %5644 = vmatprep.subr.bf16.mxu0 0
    %5645 = vmatpush1.bf16.xpose.msra.mxu0 0
    %5646 = vmatprep.subr.bf16.mxu0 0
    %5647 = vmatpush1.bf16.xpose.msra.mxu0 0
    %5648 = vmatprep.mubr.bf16.mxu0 0
    %5649 = vmatmul.mubr.bf16.gmra.mrb[0].mxu0 %v5602
    %v5650 = vpop.f32.mrb[0].mxu0
    %v5651 = vadd.f32 0.0, %v5650
    %v5652 = vpop.f32.mrb[0].mxu0
    %v5653 = vpop.f32.mrb[0].mxu0
    %v5654 = vadd.f32 0.0, %v5653
    %v5655 = vpop.f32.mrb[0].mxu0
    %5656 = vdwg.mxu0
    %v5658 = vsel %vm491, %v5232, 0
    %v5661 = vsel %vm491, %v5261, 0
    %v5664 = vsel %vm491, %v5262, 0
    %v5667 = vsel %vm491, %v5263, 0
    %v5670 = vsel %vm491, %v5264, 0
    %5672 = vmatprep.subr.bf16.mxu0 0
    %5673 = vmatpush1.bf16.xpose.msra.mxu0 %v5661
    %5674 = vmatprep.subr.bf16.mxu0 0
    %5675 = vmatpush1.bf16.xpose.msra.mxu0 %v5664
    %5676 = vmatprep.subr.bf16.mxu0 0
    %5677 = vmatpush1.bf16.xpose.msra.mxu0 %v5667
    %5678 = vmatprep.subr.bf16.mxu0 0
    %5679 = vmatpush1.bf16.xpose.msra.mxu0 %v5670
    %5680 = vmatprep.subr.bf16.mxu0 0
    %5681 = vmatpush1.bf16.xpose.msra.mxu0 0
    %5682 = vmatprep.subr.bf16.mxu0 0
    %5683 = vmatpush1.bf16.xpose.msra.mxu0 0
    %5684 = vmatprep.subr.bf16.mxu0 0
    %5685 = vmatpush1.bf16.xpose.msra.mxu0 0
    %5686 = vmatprep.subr.bf16.mxu0 0
    %5687 = vmatpush1.bf16.xpose.msra.mxu0 0
    %5688 = vmatprep.subr.bf16.mxu0 0
    %5689 = vmatpush1.bf16.xpose.msra.mxu0 0
    %5690 = vmatprep.subr.bf16.mxu0 0
    %5691 = vmatpush1.bf16.xpose.msra.mxu0 0
    %5692 = vmatprep.subr.bf16.mxu0 0
    %5693 = vmatpush1.bf16.xpose.msra.mxu0 0
    %5694 = vmatprep.subr.bf16.mxu0 0
    %5695 = vmatpush1.bf16.xpose.msra.mxu0 0
    %5696 = vmatprep.subr.bf16.mxu0 0
    %5697 = vmatpush1.bf16.xpose.msra.mxu0 0
    %5698 = vmatprep.subr.bf16.mxu0 0
    %5699 = vmatpush1.bf16.xpose.msra.mxu0 0
    %5700 = vmatprep.subr.bf16.mxu0 0
    %5701 = vmatpush1.bf16.xpose.msra.mxu0 0
    %5702 = vmatprep.subr.bf16.mxu0 0
    %5703 = vmatpush1.bf16.xpose.msra.mxu0 0
    %5704 = vmatprep.mubr.bf16.mxu0 0
    %5705 = vmatmul.mubr.bf16.gmra.mrb[0].mxu0 %v5658
    %v5706 = vpop.f32.mrb[0].mxu0
    %v5707 = vadd.f32 0.0, %v5706
    %v5708 = vpop.f32.mrb[0].mxu0
    %v5709 = vpop.f32.mrb[0].mxu0
    %v5710 = vadd.f32 0.0, %v5709
    %v5711 = vpop.f32.mrb[0].mxu0
    %5712 = vdwg.mxu0
    %v5713 = vsel %vm2534, %v5315, -inf
    %5714 = vmax.xlane.f32.xlu0 %v5713
    %v5715 = vpop.xlane.xlu0 %5714
    %v5716 = vsel %vm2534, %v5318, -inf
    %5717 = vmax.xlane.f32.xlu0 %v5716
    %v5718 = vpop.xlane.xlu0 %5717
    %v5719 = vsel %vm2534, %v5371, -inf
    %5720 = vmax.xlane.f32.xlu0 %v5719
    %v5721 = vpop.xlane.xlu0 %5720
    %v5722 = vsel %vm2534, %v5374, -inf
    %5723 = vmax.xlane.f32.xlu0 %v5722
    %v5724 = vpop.xlane.xlu0 %5723
    %v5725 = vsel %vm2534, %v5427, -inf
    %5726 = vmax.xlane.f32.xlu0 %v5725
    %v5727 = vpop.xlane.xlu0 %5726
    %v5728 = vsel %vm2534, %v5430, -inf
    %5729 = vmax.xlane.f32.xlu0 %v5728
    %v5730 = vpop.xlane.xlu0 %5729
    %v5731 = vsel %vm2534, %v5483, -inf
    %5732 = vmax.xlane.f32.xlu0 %v5731
    %v5733 = vpop.xlane.xlu0 %5732
    %v5734 = vsel %vm2534, %v5486, -inf
    %5735 = vmax.xlane.f32.xlu0 %v5734
    %v5736 = vpop.xlane.xlu0 %5735
    %v5737 = vsel %vm2534, %v5539, -inf
    %5738 = vmax.xlane.f32.xlu0 %v5737
    %v5739 = vpop.xlane.xlu0 %5738
    %v5740 = vsel %vm2534, %v5542, -inf
    %5741 = vmax.xlane.f32.xlu0 %v5740
    %v5742 = vpop.xlane.xlu0 %5741
    %v5743 = vsel %vm2534, %v5595, -inf
    %5744 = vmax.xlane.f32.xlu0 %v5743
    %v5745 = vpop.xlane.xlu0 %5744
    %v5746 = vsel %vm2534, %v5598, -inf
    %5747 = vmax.xlane.f32.xlu0 %v5746
    %v5748 = vpop.xlane.xlu0 %5747
    %v5749 = vsel %vm2534, %v5651, -inf
    %5750 = vmax.xlane.f32.xlu0 %v5749
    %v5751 = vpop.xlane.xlu0 %5750
    %v5752 = vsel %vm2534, %v5654, -inf
    %5753 = vmax.xlane.f32.xlu0 %v5752
    %v5754 = vpop.xlane.xlu0 %5753
    %v5755 = vsel %vm2534, %v5707, -inf
    %5756 = vmax.xlane.f32.xlu0 %v5755
    %v5757 = vpop.xlane.xlu0 %5756
    %v5758 = vsel %vm2534, %v5710, -inf
    %5759 = vmax.xlane.f32.xlu0 %v5758
    %v5760 = vpop.xlane.xlu0 %5759
    %v5761 = vsub.f32 %v5315, %v5715
    %v5762 = vsub.f32 %v5318, %v5718
    %v5763 = vsub.f32 %v5371, %v5721
    %v5764 = vsub.f32 %v5374, %v5724
    %v5765 = vsub.f32 %v5427, %v5727
    %v5766 = vsub.f32 %v5430, %v5730
    %v5767 = vsub.f32 %v5483, %v5733
    %v5768 = vsub.f32 %v5486, %v5736
    %v5769 = vsub.f32 %v5539, %v5739
    %v5770 = vsub.f32 %v5542, %v5742
    %v5771 = vsub.f32 %v5595, %v5745
    %v5772 = vsub.f32 %v5598, %v5748
    %v5773 = vsub.f32 %v5651, %v5751
    %v5774 = vsub.f32 %v5654, %v5754
    %v5775 = vsub.f32 %v5707, %v5757
    %v5776 = vsub.f32 %v5710, %v5760
    %v5777 = vmul.f32 %v5761, 1.442695
    %v5778 = vpow.pop %v5777
    %v5779 = vmul.f32 %v5762, 1.442695
    %v5780 = vpow.pop %v5779
    %v5781 = vmul.f32 %v5763, 1.442695
    %v5782 = vpow.pop %v5781
    %v5783 = vmul.f32 %v5764, 1.442695
    %v5784 = vpow.pop %v5783
    %v5785 = vmul.f32 %v5765, 1.442695
    %v5786 = vpow.pop %v5785
    %v5787 = vmul.f32 %v5766, 1.442695
    %v5788 = vpow.pop %v5787
    %v5789 = vmul.f32 %v5767, 1.442695
    %v5790 = vpow.pop %v5789
    %v5791 = vmul.f32 %v5768, 1.442695
    %v5792 = vpow.pop %v5791
    %v5793 = vmul.f32 %v5769, 1.442695
    %v5794 = vpow.pop %v5793
    %v5795 = vmul.f32 %v5770, 1.442695
    %v5796 = vpow.pop %v5795
    %v5797 = vmul.f32 %v5771, 1.442695
    %v5798 = vpow.pop %v5797
    %v5799 = vmul.f32 %v5772, 1.442695
    %v5800 = vpow.pop %v5799
    %v5801 = vmul.f32 %v5773, 1.442695
    %v5802 = vpow.pop %v5801
    %v5803 = vmul.f32 %v5774, 1.442695
    %v5804 = vpow.pop %v5803
    %v5805 = vmul.f32 %v5775, 1.442695
    %v5806 = vpow.pop %v5805
    %v5807 = vmul.f32 %v5776, 1.442695
    %v5808 = vpow.pop %v5807
    %v5809 = vsel %vm2534, %v5778, 0.0
    %5810 = vadd.xlane.f32.xlu0 %v5809
    %v5811 = vpop.xlane.xlu0 %5810
    %v5812 = vsel %vm2534, %v5780, 0.0
    %5813 = vadd.xlane.f32.xlu0 %v5812
    %v5814 = vpop.xlane.xlu0 %5813
    %v5815 = vsel %vm2534, %v5782, 0.0
    %5816 = vadd.xlane.f32.xlu0 %v5815
    %v5817 = vpop.xlane.xlu0 %5816
    %v5818 = vsel %vm2534, %v5784, 0.0
    %5819 = vadd.xlane.f32.xlu0 %v5818
    %v5820 = vpop.xlane.xlu0 %5819
    %v5821 = vsel %vm2534, %v5786, 0.0
    %5822 = vadd.xlane.f32.xlu0 %v5821
    %v5823 = vpop.xlane.xlu0 %5822
    %v5824 = vsel %vm2534, %v5788, 0.0
    %5825 = vadd.xlane.f32.xlu0 %v5824
    %v5826 = vpop.xlane.xlu0 %5825
    %v5827 = vsel %vm2534, %v5790, 0.0
    %5828 = vadd.xlane.f32.xlu0 %v5827
    %v5829 = vpop.xlane.xlu0 %5828
    %v5830 = vsel %vm2534, %v5792, 0.0
    %5831 = vadd.xlane.f32.xlu0 %v5830
    %v5832 = vpop.xlane.xlu0 %5831
    %v5833 = vsel %vm2534, %v5794, 0.0
    %5834 = vadd.xlane.f32.xlu0 %v5833
    %v5835 = vpop.xlane.xlu0 %5834
    %v5836 = vsel %vm2534, %v5796, 0.0
    %5837 = vadd.xlane.f32.xlu0 %v5836
    %v5838 = vpop.xlane.xlu0 %5837
    %v5839 = vsel %vm2534, %v5798, 0.0
    %5840 = vadd.xlane.f32.xlu0 %v5839
    %v5841 = vpop.xlane.xlu0 %5840
    %v5842 = vsel %vm2534, %v5800, 0.0
    %5843 = vadd.xlane.f32.xlu0 %v5842
    %v5844 = vpop.xlane.xlu0 %5843
    %v5845 = vsel %vm2534, %v5802, 0.0
    %5846 = vadd.xlane.f32.xlu0 %v5845
    %v5847 = vpop.xlane.xlu0 %5846
    %v5848 = vsel %vm2534, %v5804, 0.0
    %5849 = vadd.xlane.f32.xlu0 %v5848
    %v5850 = vpop.xlane.xlu0 %5849
    %v5851 = vsel %vm2534, %v5806, 0.0
    %5852 = vadd.xlane.f32.xlu0 %v5851
    %v5853 = vpop.xlane.xlu0 %5852
    %v5854 = vsel %vm2534, %v5808, 0.0
    %5855 = vadd.xlane.f32.xlu0 %v5854
    %v5856 = vpop.xlane.xlu0 %5855
    %v5857 = vrcp.pop %v5811
    %v5858 = vrcp.pop %v5814
    %v5859 = vrcp.pop %v5817
    %v5860 = vrcp.pop %v5820
    %v5861 = vrcp.pop %v5823
    %v5862 = vrcp.pop %v5826
    %v5863 = vrcp.pop %v5829
    %v5864 = vrcp.pop %v5832
    %v5865 = vrcp.pop %v5835
    %v5866 = vrcp.pop %v5838
    %v5867 = vrcp.pop %v5841
    %v5868 = vrcp.pop %v5844
    %v5869 = vrcp.pop %v5847
    %v5870 = vrcp.pop %v5850
    %v5871 = vrcp.pop %v5853
    %v5872 = vrcp.pop %v5856
    %v5873 = vmul.f32 %v5778, %v5857
    %v5874 = vmul.f32 %v5780, %v5858
    %v5875 = vmul.f32 %v5782, %v5859
    %v5876 = vmul.f32 %v5784, %v5860
    %v5877 = vmul.f32 %v5786, %v5861
    %v5878 = vmul.f32 %v5788, %v5862
    %v5879 = vmul.f32 %v5790, %v5863
    %v5880 = vmul.f32 %v5792, %v5864
    %v5881 = vmul.f32 %v5794, %v5865
    %v5882 = vmul.f32 %v5796, %v5866
    %v5883 = vmul.f32 %v5798, %v5867
    %v5884 = vmul.f32 %v5800, %v5868
    %v5885 = vmul.f32 %v5802, %v5869
    %v5886 = vmul.f32 %v5804, %v5870
    %v5887 = vmul.f32 %v5806, %v5871
    %v5888 = vmul.f32 %v5808, %v5872
    %v5889 = vpack.c.bf16 %v5874, %v5873
    %v5890 = vpack.c.bf16 %v5876, %v5875
    %v5891 = vpack.c.bf16 %v5878, %v5877
    %v5892 = vpack.c.bf16 %v5880, %v5879
    %v5893 = vpack.c.bf16 %v5882, %v5881
    %v5894 = vpack.c.bf16 %v5884, %v5883
    %v5895 = vpack.c.bf16 %v5886, %v5885
    %v5896 = vpack.c.bf16 %v5888, %v5887
    %5901 = vrot.lane.b32.xlu0 %v5233, 96
    %v5902 = vpop.permute.xlu0 %5901
    %5903 = vrot.lane.b32.xlu0 %v5234, 96
    %v5904 = vpop.permute.xlu0 %5903
    %5905 = vrot.lane.b32.xlu0 %v5235, 96
    %v5906 = vpop.permute.xlu0 %5905
    %5907 = vrot.lane.b32.xlu0 %v5236, 96
    %v5908 = vpop.permute.xlu0 %5907
    %v5914 = vsel %vm2534, %v5889, 0
    %5916 = vmatprep.subr.bf16.mxu0 0
    %5917 = vmatpush1.bf16.msra.mxu0 %v5902
    %5918 = vmatprep.subr.bf16.mxu0 0
    %5919 = vmatpush1.bf16.msra.mxu0 %v5904
    %5920 = vmatprep.subr.bf16.mxu0 0
    %5921 = vmatpush1.bf16.msra.mxu0 %v5906
    %5922 = vmatprep.subr.bf16.mxu0 0
    %5923 = vmatpush1.bf16.msra.mxu0 %v5908
    %5924 = vmatprep.subr.bf16.mxu0 0
    %5925 = vmatpush1.bf16.msra.mxu0 0
    %5926 = vmatprep.subr.bf16.mxu0 0
    %5927 = vmatpush1.bf16.msra.mxu0 0
    %5928 = vmatprep.subr.bf16.mxu0 0
    %5929 = vmatpush1.bf16.msra.mxu0 0
    %5930 = vmatprep.subr.bf16.mxu0 0
    %5931 = vmatpush1.bf16.msra.mxu0 0
    %5932 = vmatprep.subr.bf16.mxu0 0
    %5933 = vmatpush1.bf16.msra.mxu0 0
    %5934 = vmatprep.subr.bf16.mxu0 0
    %5935 = vmatpush1.bf16.msra.mxu0 0
    %5936 = vmatprep.subr.bf16.mxu0 0
    %5937 = vmatpush1.bf16.msra.mxu0 0
    %5938 = vmatprep.subr.bf16.mxu0 0
    %5939 = vmatpush1.bf16.msra.mxu0 0
    %5940 = vmatprep.subr.bf16.mxu0 0
    %5941 = vmatpush1.bf16.msra.mxu0 0
    %5942 = vmatprep.subr.bf16.mxu0 0
    %5943 = vmatpush1.bf16.msra.mxu0 0
    %5944 = vmatprep.subr.bf16.mxu0 0
    %5945 = vmatpush1.bf16.msra.mxu0 0
    %5946 = vmatprep.subr.bf16.mxu0 0
    %5947 = vmatpush1.bf16.msra.mxu0 0
    %5948 = vmatprep.mubr.bf16.mxu0 0
    %5949 = vmatmul.mubr.bf16.gmra.mrb[0].mxu0 %v5914
    %v5950 = vpop.f32.mrb[0].mxu0
    %v5951 = vadd.f32 0.0, %v5950
    %v5952 = vpop.f32.mrb[0].mxu0
    %v5953 = vpop.f32.mrb[0].mxu0
    %v5954 = vadd.f32 0.0, %v5953
    %v5955 = vpop.f32.mrb[0].mxu0
    %5956 = vdwg.mxu0
    %5961 = vrot.lane.b32.xlu0 %v5237, 96
    %v5962 = vpop.permute.xlu0 %5961
    %5963 = vrot.lane.b32.xlu0 %v5238, 96
    %v5964 = vpop.permute.xlu0 %5963
    %5965 = vrot.lane.b32.xlu0 %v5239, 96
    %v5966 = vpop.permute.xlu0 %5965
    %5967 = vrot.lane.b32.xlu0 %v5240, 96
    %v5968 = vpop.permute.xlu0 %5967
    %v5974 = vsel %vm2534, %v5890, 0
    %5976 = vmatprep.subr.bf16.mxu0 0
    %5977 = vmatpush1.bf16.msra.mxu0 %v5962
    %5978 = vmatprep.subr.bf16.mxu0 0
    %5979 = vmatpush1.bf16.msra.mxu0 %v5964
    %5980 = vmatprep.subr.bf16.mxu0 0
    %5981 = vmatpush1.bf16.msra.mxu0 %v5966
    %5982 = vmatprep.subr.bf16.mxu0 0
    %5983 = vmatpush1.bf16.msra.mxu0 %v5968
    %5984 = vmatprep.subr.bf16.mxu0 0
    %5985 = vmatpush1.bf16.msra.mxu0 0
    %5986 = vmatprep.subr.bf16.mxu0 0
    %5987 = vmatpush1.bf16.msra.mxu0 0
    %5988 = vmatprep.subr.bf16.mxu0 0
    %5989 = vmatpush1.bf16.msra.mxu0 0
    %5990 = vmatprep.subr.bf16.mxu0 0
    %5991 = vmatpush1.bf16.msra.mxu0 0
    %5992 = vmatprep.subr.bf16.mxu0 0
    %5993 = vmatpush1.bf16.msra.mxu0 0
    %5994 = vmatprep.subr.bf16.mxu0 0
    %5995 = vmatpush1.bf16.msra.mxu0 0
    %5996 = vmatprep.subr.bf16.mxu0 0
    %5997 = vmatpush1.bf16.msra.mxu0 0
    %5998 = vmatprep.subr.bf16.mxu0 0
    %5999 = vmatpush1.bf16.msra.mxu0 0
    %6000 = vmatprep.subr.bf16.mxu0 0
    %6001 = vmatpush1.bf16.msra.mxu0 0
    %6002 = vmatprep.subr.bf16.mxu0 0
    %6003 = vmatpush1.bf16.msra.mxu0 0
    %6004 = vmatprep.subr.bf16.mxu0 0
    %6005 = vmatpush1.bf16.msra.mxu0 0
    %6006 = vmatprep.subr.bf16.mxu0 0
    %6007 = vmatpush1.bf16.msra.mxu0 0
    %6008 = vmatprep.mubr.bf16.mxu0 0
    %6009 = vmatmul.mubr.bf16.gmra.mrb[0].mxu0 %v5974
    %v6010 = vpop.f32.mrb[0].mxu0
    %v6011 = vadd.f32 0.0, %v6010
    %v6012 = vpop.f32.mrb[0].mxu0
    %v6013 = vpop.f32.mrb[0].mxu0
    %v6014 = vadd.f32 0.0, %v6013
    %v6015 = vpop.f32.mrb[0].mxu0
    %6016 = vdwg.mxu0
    %6021 = vrot.lane.b32.xlu0 %v5241, 96
    %v6022 = vpop.permute.xlu0 %6021
    %6023 = vrot.lane.b32.xlu0 %v5242, 96
    %v6024 = vpop.permute.xlu0 %6023
    %6025 = vrot.lane.b32.xlu0 %v5243, 96
    %v6026 = vpop.permute.xlu0 %6025
    %6027 = vrot.lane.b32.xlu0 %v5244, 96
    %v6028 = vpop.permute.xlu0 %6027
    %v6034 = vsel %vm2534, %v5891, 0
    %6036 = vmatprep.subr.bf16.mxu0 0
    %6037 = vmatpush1.bf16.msra.mxu0 %v6022
    %6038 = vmatprep.subr.bf16.mxu0 0
    %6039 = vmatpush1.bf16.msra.mxu0 %v6024
    %6040 = vmatprep.subr.bf16.mxu0 0
    %6041 = vmatpush1.bf16.msra.mxu0 %v6026
    %6042 = vmatprep.subr.bf16.mxu0 0
    %6043 = vmatpush1.bf16.msra.mxu0 %v6028
    %6044 = vmatprep.subr.bf16.mxu0 0
    %6045 = vmatpush1.bf16.msra.mxu0 0
    %6046 = vmatprep.subr.bf16.mxu0 0
    %6047 = vmatpush1.bf16.msra.mxu0 0
    %6048 = vmatprep.subr.bf16.mxu0 0
    %6049 = vmatpush1.bf16.msra.mxu0 0
    %6050 = vmatprep.subr.bf16.mxu0 0
    %6051 = vmatpush1.bf16.msra.mxu0 0
    %6052 = vmatprep.subr.bf16.mxu0 0
    %6053 = vmatpush1.bf16.msra.mxu0 0
    %6054 = vmatprep.subr.bf16.mxu0 0
    %6055 = vmatpush1.bf16.msra.mxu0 0
    %6056 = vmatprep.subr.bf16.mxu0 0
    %6057 = vmatpush1.bf16.msra.mxu0 0
    %6058 = vmatprep.subr.bf16.mxu0 0
    %6059 = vmatpush1.bf16.msra.mxu0 0
    %6060 = vmatprep.subr.bf16.mxu0 0
    %6061 = vmatpush1.bf16.msra.mxu0 0
    %6062 = vmatprep.subr.bf16.mxu0 0
    %6063 = vmatpush1.bf16.msra.mxu0 0
    %6064 = vmatprep.subr.bf16.mxu0 0
    %6065 = vmatpush1.bf16.msra.mxu0 0
    %6066 = vmatprep.subr.bf16.mxu0 0
    %6067 = vmatpush1.bf16.msra.mxu0 0
    %6068 = vmatprep.mubr.bf16.mxu0 0
    %6069 = vmatmul.mubr.bf16.gmra.mrb[0].mxu0 %v6034
    %v6070 = vpop.f32.mrb[0].mxu0
    %v6071 = vadd.f32 0.0, %v6070
    %v6072 = vpop.f32.mrb[0].mxu0
    %v6073 = vpop.f32.mrb[0].mxu0
    %v6074 = vadd.f32 0.0, %v6073
    %v6075 = vpop.f32.mrb[0].mxu0
    %6076 = vdwg.mxu0
    %6081 = vrot.lane.b32.xlu0 %v5245, 96
    %v6082 = vpop.permute.xlu0 %6081
    %6083 = vrot.lane.b32.xlu0 %v5246, 96
    %v6084 = vpop.permute.xlu0 %6083
    %6085 = vrot.lane.b32.xlu0 %v5247, 96
    %v6086 = vpop.permute.xlu0 %6085
    %6087 = vrot.lane.b32.xlu0 %v5248, 96
    %v6088 = vpop.permute.xlu0 %6087
    %v6094 = vsel %vm2534, %v5892, 0
    %6096 = vmatprep.subr.bf16.mxu0 0
    %6097 = vmatpush1.bf16.msra.mxu0 %v6082
    %6098 = vmatprep.subr.bf16.mxu0 0
    %6099 = vmatpush1.bf16.msra.mxu0 %v6084
    %6100 = vmatprep.subr.bf16.mxu0 0
    %6101 = vmatpush1.bf16.msra.mxu0 %v6086
    %6102 = vmatprep.subr.bf16.mxu0 0
    %6103 = vmatpush1.bf16.msra.mxu0 %v6088
    %6104 = vmatprep.subr.bf16.mxu0 0
    %6105 = vmatpush1.bf16.msra.mxu0 0
    %6106 = vmatprep.subr.bf16.mxu0 0
    %6107 = vmatpush1.bf16.msra.mxu0 0
    %6108 = vmatprep.subr.bf16.mxu0 0
    %6109 = vmatpush1.bf16.msra.mxu0 0
    %6110 = vmatprep.subr.bf16.mxu0 0
    %6111 = vmatpush1.bf16.msra.mxu0 0
    %6112 = vmatprep.subr.bf16.mxu0 0
    %6113 = vmatpush1.bf16.msra.mxu0 0
    %6114 = vmatprep.subr.bf16.mxu0 0
    %6115 = vmatpush1.bf16.msra.mxu0 0
    %6116 = vmatprep.subr.bf16.mxu0 0
    %6117 = vmatpush1.bf16.msra.mxu0 0
    %6118 = vmatprep.subr.bf16.mxu0 0
    %6119 = vmatpush1.bf16.msra.mxu0 0
    %6120 = vmatprep.subr.bf16.mxu0 0
    %6121 = vmatpush1.bf16.msra.mxu0 0
    %6122 = vmatprep.subr.bf16.mxu0 0
    %6123 = vmatpush1.bf16.msra.mxu0 0
    %6124 = vmatprep.subr.bf16.mxu0 0
    %6125 = vmatpush1.bf16.msra.mxu0 0
    %6126 = vmatprep.subr.bf16.mxu0 0
    %6127 = vmatpush1.bf16.msra.mxu0 0
    %6128 = vmatprep.mubr.bf16.mxu0 0
    %6129 = vmatmul.mubr.bf16.gmra.mrb[0].mxu0 %v6094
    %v6130 = vpop.f32.mrb[0].mxu0
    %v6131 = vadd.f32 0.0, %v6130
    %v6132 = vpop.f32.mrb[0].mxu0
    %v6133 = vpop.f32.mrb[0].mxu0
    %v6134 = vadd.f32 0.0, %v6133
    %v6135 = vpop.f32.mrb[0].mxu0
    %6136 = vdwg.mxu0
    %6141 = vrot.lane.b32.xlu0 %v5249, 96
    %v6142 = vpop.permute.xlu0 %6141
    %6143 = vrot.lane.b32.xlu0 %v5250, 96
    %v6144 = vpop.permute.xlu0 %6143
    %6145 = vrot.lane.b32.xlu0 %v5251, 96
    %v6146 = vpop.permute.xlu0 %6145
    %6147 = vrot.lane.b32.xlu0 %v5252, 96
    %v6148 = vpop.permute.xlu0 %6147
    %v6154 = vsel %vm2534, %v5893, 0
    %6156 = vmatprep.subr.bf16.mxu0 0
    %6157 = vmatpush1.bf16.msra.mxu0 %v6142
    %6158 = vmatprep.subr.bf16.mxu0 0
    %6159 = vmatpush1.bf16.msra.mxu0 %v6144
    %6160 = vmatprep.subr.bf16.mxu0 0
    %6161 = vmatpush1.bf16.msra.mxu0 %v6146
    %6162 = vmatprep.subr.bf16.mxu0 0
    %6163 = vmatpush1.bf16.msra.mxu0 %v6148
    %6164 = vmatprep.subr.bf16.mxu0 0
    %6165 = vmatpush1.bf16.msra.mxu0 0
    %6166 = vmatprep.subr.bf16.mxu0 0
    %6167 = vmatpush1.bf16.msra.mxu0 0
    %6168 = vmatprep.subr.bf16.mxu0 0
    %6169 = vmatpush1.bf16.msra.mxu0 0
    %6170 = vmatprep.subr.bf16.mxu0 0
    %6171 = vmatpush1.bf16.msra.mxu0 0
    %6172 = vmatprep.subr.bf16.mxu0 0
    %6173 = vmatpush1.bf16.msra.mxu0 0
    %6174 = vmatprep.subr.bf16.mxu0 0
    %6175 = vmatpush1.bf16.msra.mxu0 0
    %6176 = vmatprep.subr.bf16.mxu0 0
    %6177 = vmatpush1.bf16.msra.mxu0 0
    %6178 = vmatprep.subr.bf16.mxu0 0
    %6179 = vmatpush1.bf16.msra.mxu0 0
    %6180 = vmatprep.subr.bf16.mxu0 0
    %6181 = vmatpush1.bf16.msra.mxu0 0
    %6182 = vmatprep.subr.bf16.mxu0 0
    %6183 = vmatpush1.bf16.msra.mxu0 0
    %6184 = vmatprep.subr.bf16.mxu0 0
    %6185 = vmatpush1.bf16.msra.mxu0 0
    %6186 = vmatprep.subr.bf16.mxu0 0
    %6187 = vmatpush1.bf16.msra.mxu0 0
    %6188 = vmatprep.mubr.bf16.mxu0 0
    %6189 = vmatmul.mubr.bf16.gmra.mrb[0].mxu0 %v6154
    %v6190 = vpop.f32.mrb[0].mxu0
    %v6191 = vadd.f32 0.0, %v6190
    %v6192 = vpop.f32.mrb[0].mxu0
    %v6193 = vpop.f32.mrb[0].mxu0
    %v6194 = vadd.f32 0.0, %v6193
    %v6195 = vpop.f32.mrb[0].mxu0
    %6196 = vdwg.mxu0
    %6201 = vrot.lane.b32.xlu0 %v5253, 96
    %v6202 = vpop.permute.xlu0 %6201
    %6203 = vrot.lane.b32.xlu0 %v5254, 96
    %v6204 = vpop.permute.xlu0 %6203
    %6205 = vrot.lane.b32.xlu0 %v5255, 96
    %v6206 = vpop.permute.xlu0 %6205
    %6207 = vrot.lane.b32.xlu0 %v5256, 96
    %v6208 = vpop.permute.xlu0 %6207
    %v6214 = vsel %vm2534, %v5894, 0
    %6216 = vmatprep.subr.bf16.mxu0 0
    %6217 = vmatpush1.bf16.msra.mxu0 %v6202
    %6218 = vmatprep.subr.bf16.mxu0 0
    %6219 = vmatpush1.bf16.msra.mxu0 %v6204
    %6220 = vmatprep.subr.bf16.mxu0 0
    %6221 = vmatpush1.bf16.msra.mxu0 %v6206
    %6222 = vmatprep.subr.bf16.mxu0 0
    %6223 = vmatpush1.bf16.msra.mxu0 %v6208
    %6224 = vmatprep.subr.bf16.mxu0 0
    %6225 = vmatpush1.bf16.msra.mxu0 0
    %6226 = vmatprep.subr.bf16.mxu0 0
    %6227 = vmatpush1.bf16.msra.mxu0 0
    %6228 = vmatprep.subr.bf16.mxu0 0
    %6229 = vmatpush1.bf16.msra.mxu0 0
    %6230 = vmatprep.subr.bf16.mxu0 0
    %6231 = vmatpush1.bf16.msra.mxu0 0
    %6232 = vmatprep.subr.bf16.mxu0 0
    %6233 = vmatpush1.bf16.msra.mxu0 0
    %6234 = vmatprep.subr.bf16.mxu0 0
    %6235 = vmatpush1.bf16.msra.mxu0 0
    %6236 = vmatprep.subr.bf16.mxu0 0
    %6237 = vmatpush1.bf16.msra.mxu0 0
    %6238 = vmatprep.subr.bf16.mxu0 0
    %6239 = vmatpush1.bf16.msra.mxu0 0
    %6240 = vmatprep.subr.bf16.mxu0 0
    %6241 = vmatpush1.bf16.msra.mxu0 0
    %6242 = vmatprep.subr.bf16.mxu0 0
    %6243 = vmatpush1.bf16.msra.mxu0 0
    %6244 = vmatprep.subr.bf16.mxu0 0
    %6245 = vmatpush1.bf16.msra.mxu0 0
    %6246 = vmatprep.subr.bf16.mxu0 0
    %6247 = vmatpush1.bf16.msra.mxu0 0
    %6248 = vmatprep.mubr.bf16.mxu0 0
    %6249 = vmatmul.mubr.bf16.gmra.mrb[0].mxu0 %v6214
    %v6250 = vpop.f32.mrb[0].mxu0
    %v6251 = vadd.f32 0.0, %v6250
    %v6252 = vpop.f32.mrb[0].mxu0
    %v6253 = vpop.f32.mrb[0].mxu0
    %v6254 = vadd.f32 0.0, %v6253
    %v6255 = vpop.f32.mrb[0].mxu0
    %6256 = vdwg.mxu0
    %6261 = vrot.lane.b32.xlu0 %v5257, 96
    %v6262 = vpop.permute.xlu0 %6261
    %6263 = vrot.lane.b32.xlu0 %v5258, 96
    %v6264 = vpop.permute.xlu0 %6263
    %6265 = vrot.lane.b32.xlu0 %v5259, 96
    %v6266 = vpop.permute.xlu0 %6265
    %6267 = vrot.lane.b32.xlu0 %v5260, 96
    %v6268 = vpop.permute.xlu0 %6267
    %v6274 = vsel %vm2534, %v5895, 0
    %6276 = vmatprep.subr.bf16.mxu0 0
    %6277 = vmatpush1.bf16.msra.mxu0 %v6262
    %6278 = vmatprep.subr.bf16.mxu0 0
    %6279 = vmatpush1.bf16.msra.mxu0 %v6264
    %6280 = vmatprep.subr.bf16.mxu0 0
    %6281 = vmatpush1.bf16.msra.mxu0 %v6266
    %6282 = vmatprep.subr.bf16.mxu0 0
    %6283 = vmatpush1.bf16.msra.mxu0 %v6268
    %6284 = vmatprep.subr.bf16.mxu0 0
    %6285 = vmatpush1.bf16.msra.mxu0 0
    %6286 = vmatprep.subr.bf16.mxu0 0
    %6287 = vmatpush1.bf16.msra.mxu0 0
    %6288 = vmatprep.subr.bf16.mxu0 0
    %6289 = vmatpush1.bf16.msra.mxu0 0
    %6290 = vmatprep.subr.bf16.mxu0 0
    %6291 = vmatpush1.bf16.msra.mxu0 0
    %6292 = vmatprep.subr.bf16.mxu0 0
    %6293 = vmatpush1.bf16.msra.mxu0 0
    %6294 = vmatprep.subr.bf16.mxu0 0
    %6295 = vmatpush1.bf16.msra.mxu0 0
    %6296 = vmatprep.subr.bf16.mxu0 0
    %6297 = vmatpush1.bf16.msra.mxu0 0
    %6298 = vmatprep.subr.bf16.mxu0 0
    %6299 = vmatpush1.bf16.msra.mxu0 0
    %6300 = vmatprep.subr.bf16.mxu0 0
    %6301 = vmatpush1.bf16.msra.mxu0 0
    %6302 = vmatprep.subr.bf16.mxu0 0
    %6303 = vmatpush1.bf16.msra.mxu0 0
    %6304 = vmatprep.subr.bf16.mxu0 0
    %6305 = vmatpush1.bf16.msra.mxu0 0
    %6306 = vmatprep.subr.bf16.mxu0 0
    %6307 = vmatpush1.bf16.msra.mxu0 0
    %6308 = vmatprep.mubr.bf16.mxu0 0
    %6309 = vmatmul.mubr.bf16.gmra.mrb[0].mxu0 %v6274
    %v6310 = vpop.f32.mrb[0].mxu0
    %v6311 = vadd.f32 0.0, %v6310
    %v6312 = vpop.f32.mrb[0].mxu0
    %v6313 = vpop.f32.mrb[0].mxu0
    %v6314 = vadd.f32 0.0, %v6313
    %v6315 = vpop.f32.mrb[0].mxu0
    %6316 = vdwg.mxu0
    %6321 = vrot.lane.b32.xlu0 %v5261, 96
    %v6322 = vpop.permute.xlu0 %6321
    %6323 = vrot.lane.b32.xlu0 %v5262, 96
    %v6324 = vpop.permute.xlu0 %6323
    %6325 = vrot.lane.b32.xlu0 %v5263, 96
    %v6326 = vpop.permute.xlu0 %6325
    %6327 = vrot.lane.b32.xlu0 %v5264, 96
    %v6328 = vpop.permute.xlu0 %6327
    %v6334 = vsel %vm2534, %v5896, 0
    %6336 = vmatprep.subr.bf16.mxu0 0
    %6337 = vmatpush1.bf16.msra.mxu0 %v6322
    %6338 = vmatprep.subr.bf16.mxu0 0
    %6339 = vmatpush1.bf16.msra.mxu0 %v6324
    %6340 = vmatprep.subr.bf16.mxu0 0
    %6341 = vmatpush1.bf16.msra.mxu0 %v6326
    %6342 = vmatprep.subr.bf16.mxu0 0
    %6343 = vmatpush1.bf16.msra.mxu0 %v6328
    %6344 = vmatprep.subr.bf16.mxu0 0
    %6345 = vmatpush1.bf16.msra.mxu0 0
    %6346 = vmatprep.subr.bf16.mxu0 0
    %6347 = vmatpush1.bf16.msra.mxu0 0
    %6348 = vmatprep.subr.bf16.mxu0 0
    %6349 = vmatpush1.bf16.msra.mxu0 0
    %6350 = vmatprep.subr.bf16.mxu0 0
    %6351 = vmatpush1.bf16.msra.mxu0 0
    %6352 = vmatprep.subr.bf16.mxu0 0
    %6353 = vmatpush1.bf16.msra.mxu0 0
    %6354 = vmatprep.subr.bf16.mxu0 0
    %6355 = vmatpush1.bf16.msra.mxu0 0
    %6356 = vmatprep.subr.bf16.mxu0 0
    %6357 = vmatpush1.bf16.msra.mxu0 0
    %6358 = vmatprep.subr.bf16.mxu0 0
    %6359 = vmatpush1.bf16.msra.mxu0 0
    %6360 = vmatprep.subr.bf16.mxu0 0
    %6361 = vmatpush1.bf16.msra.mxu0 0
    %6362 = vmatprep.subr.bf16.mxu0 0
    %6363 = vmatpush1.bf16.msra.mxu0 0
    %6364 = vmatprep.subr.bf16.mxu0 0
    %6365 = vmatpush1.bf16.msra.mxu0 0
    %6366 = vmatprep.subr.bf16.mxu0 0
    %6367 = vmatpush1.bf16.msra.mxu0 0
    %6368 = vmatprep.mubr.bf16.mxu0 0
    %6369 = vmatmul.mubr.bf16.gmra.mrb[0].mxu0 %v6334
    %v6370 = vpop.f32.mrb[0].mxu0
    %v6371 = vadd.f32 0.0, %v6370
    %v6372 = vpop.f32.mrb[0].mxu0
    %v6373 = vpop.f32.mrb[0].mxu0
    %v6374 = vadd.f32 0.0, %v6373
    %v6375 = vpop.f32.mrb[0].mxu0
    %6376 = vdwg.mxu0
    %6381 = vrot.lane.b32.xlu0 %v6071, 8
    %v6382 = vpop.permute.xlu0 %6381
    %6383 = vrot.lane.b32.xlu0 %v6074, 8
    %v6384 = vpop.permute.xlu0 %6383
    %6385 = vrot.lane.b32.xlu0 %v6131, 8
    %v6386 = vpop.permute.xlu0 %6385
    %6387 = vrot.lane.b32.xlu0 %v6134, 8
    %v6388 = vpop.permute.xlu0 %6387
    %6397 = vrot.lane.b32.xlu0 %v6191, 16
    %v6398 = vpop.permute.xlu0 %6397
    %6399 = vrot.lane.b32.xlu0 %v6194, 16
    %v6400 = vpop.permute.xlu0 %6399
    %6401 = vrot.lane.b32.xlu0 %v6251, 16
    %v6402 = vpop.permute.xlu0 %6401
    %6403 = vrot.lane.b32.xlu0 %v6254, 16
    %v6404 = vpop.permute.xlu0 %6403
    %6413 = vrot.lane.b32.xlu0 %v6311, 24
    %v6414 = vpop.permute.xlu0 %6413
    %6415 = vrot.lane.b32.xlu0 %v6314, 24
    %v6416 = vpop.permute.xlu0 %6415
    %6417 = vrot.lane.b32.xlu0 %v6371, 24
    %v6418 = vpop.permute.xlu0 %6417
    %6419 = vrot.lane.b32.xlu0 %v6374, 24
    %v6420 = vpop.permute.xlu0 %6419
    %v6425 = vsel %vm491, %v5951, %v6382
    %v6426 = vsel %vm491, %v5954, %v6384
    %v6427 = vsel %vm491, %v6011, %v6386
    %v6428 = vsel %vm491, %v6014, %v6388
    %v6429 = vsel %vm889, %v6425, %v6398
    %v6430 = vsel %vm889, %v6426, %v6400
    %v6431 = vsel %vm889, %v6427, %v6402
    %v6432 = vsel %vm889, %v6428, %v6404
    %v6433 = vsel %vm1506, %v6429, %v6414
    %v6434 = vsel %vm1506, %v6430, %v6416
    %v6435 = vsel %vm1506, %v6431, %v6418
    %v6436 = vsel %vm1506, %v6432, %v6420
    %v6437 = vld [vmem:[%s3259] sm:$0xf]
    %v6438 = vld [vmem:[%s3259 + $0x4] sm:$0xf]
    %v6439 = vld [vmem:[%s3259 + $0x8] sm:$0xf]
    %v6440 = vld [vmem:[%s3259 + $0xc] sm:$0xf]
    %v6441 = vpack.c.bf16 %v6434, %v6433
    %v6442 = vpack.c.bf16 %v6436, %v6435
    %v6447 = vunpack.c.l.b16 %v6437
    %v6448 = vunpack.c.l.b16 %v6438
    %v6449 = vunpack.c.l.b16 %v6439
    %v6450 = vunpack.c.l.b16 %v6440
    %v6451 = vpack.c.b16 %v6448, %v6447
    %v6452 = vpack.c.b16 %v6450, %v6449
    %v6456 = vsel %vm105, %v6441, 0
    %v6459 = vsel %vm105, %v6442, 0
    %6461 = vmatprep.subr.bf16.mxu0 0
    %6462 = vmatpush1.bf16.msra.mxu0 %v6451
    %6463 = vmatprep.subr.bf16.mxu0 0
    %6464 = vmatpush1.bf16.msra.mxu0 %v6452
    %6465 = vmatprep.subr.bf16.mxu0 0
    %6466 = vmatpush1.bf16.msra.mxu0 0
    %6467 = vmatprep.subr.bf16.mxu0 0
    %6468 = vmatpush1.bf16.msra.mxu0 0
    %6469 = vmatprep.subr.bf16.mxu0 0
    %6470 = vmatpush1.bf16.msra.mxu0 0
    %6471 = vmatprep.subr.bf16.mxu0 0
    %6472 = vmatpush1.bf16.msra.mxu0 0
    %6473 = vmatprep.subr.bf16.mxu0 0
    %6474 = vmatpush1.bf16.msra.mxu0 0
    %6475 = vmatprep.subr.bf16.mxu0 0
    %6476 = vmatpush1.bf16.msra.mxu0 0
    %6477 = vmatprep.subr.bf16.mxu0 0
    %6478 = vmatpush1.bf16.msra.mxu0 0
    %6479 = vmatprep.subr.bf16.mxu0 0
    %6480 = vmatpush1.bf16.msra.mxu0 0
    %6481 = vmatprep.subr.bf16.mxu0 0
    %6482 = vmatpush1.bf16.msra.mxu0 0
    %6483 = vmatprep.subr.bf16.mxu0 0
    %6484 = vmatpush1.bf16.msra.mxu0 0
    %6485 = vmatprep.subr.bf16.mxu0 0
    %6486 = vmatpush1.bf16.msra.mxu0 0
    %6487 = vmatprep.subr.bf16.mxu0 0
    %6488 = vmatpush1.bf16.msra.mxu0 0
    %6489 = vmatprep.subr.bf16.mxu0 0
    %6490 = vmatpush1.bf16.msra.mxu0 0
    %6491 = vmatprep.subr.bf16.mxu0 0
    %6492 = vmatpush1.bf16.msra.mxu0 0
    %6493 = vmatprep.mubr.bf16.mxu0 0
    %6494 = vmatmul.mubr.bf16.gmra.mrb[0].mxu0 %v6456
    %v6495 = vpop.f32.mrb[0].mxu0
    %v6496 = vadd.f32 %v3269, %v6495
    %v6497 = vpop.f32.mrb[0].mxu0
    %v6498 = vpop.f32.mrb[0].mxu0
    %v6499 = vadd.f32 %v3269, %v6498
    %v6500 = vpop.f32.mrb[0].mxu0
    %6501 = vmatprep.mubr.bf16.mxu0 0
    %6502 = vmatmul.mubr.bf16.gmra.mrb[0].mxu0 %v6459
    %v6503 = vpop.f32.mrb[0].mxu0
    %v6504 = vadd.f32 %v3269, %v6503
    %v6505 = vpop.f32.mrb[0].mxu0
    %v6506 = vpop.f32.mrb[0].mxu0
    %v6507 = vadd.f32 %v3269, %v6506
    %v6508 = vpop.f32.mrb[0].mxu0
    %6509 = vdwg.mxu0
    %v6510 = vld [vmem:[%s8] sm:$0xf]
    %v6511 = vld [vmem:[%s8 + $0x4] sm:$0xf]
    %v6512 = vld [vmem:[%s8 + $0x8] sm:$0xf]
    %v6513 = vld [vmem:[%s8 + $0xc] sm:$0xf]
    %v6514 = vpack.c.bf16 %v6499, %v6496
    %v6515 = vpack.c.bf16 %v6507, %v6504
    %v6520 = vunpack.c.l.b16 %v6510
    %v6521 = vunpack.c.l.b16 %v6511
    %v6522 = vunpack.c.l.b16 %v6512
    %v6523 = vunpack.c.l.b16 %v6513
    %v6524 = vpack.c.b16 %v6521, %v6520
    %v6525 = vpack.c.b16 %v6523, %v6522
    %v6529 = vsel %vm105, %v6514, 0
    %v6532 = vsel %vm105, %v6515, 0
    %6534 = vmatprep.subr.bf16.mxu0 0
    %6535 = vmatpush1.bf16.msra.mxu0 %v6524
    %6536 = vmatprep.subr.bf16.mxu0 0
    %6537 = vmatpush1.bf16.msra.mxu0 %v6525
    %6538 = vmatprep.subr.bf16.mxu0 0
    %6539 = vmatpush1.bf16.msra.mxu0 0
    %6540 = vmatprep.subr.bf16.mxu0 0
    %6541 = vmatpush1.bf16.msra.mxu0 0
    %6542 = vmatprep.subr.bf16.mxu0 0
    %6543 = vmatpush1.bf16.msra.mxu0 0
    %6544 = vmatprep.subr.bf16.mxu0 0
    %6545 = vmatpush1.bf16.msra.mxu0 0
    %6546 = vmatprep.subr.bf16.mxu0 0
    %6547 = vmatpush1.bf16.msra.mxu0 0
    %6548 = vmatprep.subr.bf16.mxu0 0
    %6549 = vmatpush1.bf16.msra.mxu0 0
    %6550 = vmatprep.subr.bf16.mxu0 0
    %6551 = vmatpush1.bf16.msra.mxu0 0
    %6552 = vmatprep.subr.bf16.mxu0 0
    %6553 = vmatpush1.bf16.msra.mxu0 0
    %6554 = vmatprep.subr.bf16.mxu0 0
    %6555 = vmatpush1.bf16.msra.mxu0 0
    %6556 = vmatprep.subr.bf16.mxu0 0
    %6557 = vmatpush1.bf16.msra.mxu0 0
    %6558 = vmatprep.subr.bf16.mxu0 0
    %6559 = vmatpush1.bf16.msra.mxu0 0
    %6560 = vmatprep.subr.bf16.mxu0 0
    %6561 = vmatpush1.bf16.msra.mxu0 0
    %6562 = vmatprep.subr.bf16.mxu0 0
    %6563 = vmatpush1.bf16.msra.mxu0 0
    %6564 = vmatprep.subr.bf16.mxu0 0
    %6565 = vmatpush1.bf16.msra.mxu0 0
    %6566 = vmatprep.mubr.bf16.mxu0 0
    %6567 = vmatmul.mubr.bf16.gmra.mrb[0].mxu0 %v6529
    %v6568 = vpop.f32.mrb[0].mxu0
    %v6569 = vadd.f32 %v3346, %v6568
    %v6570 = vpop.f32.mrb[0].mxu0
    %v6571 = vpop.f32.mrb[0].mxu0
    %v6572 = vadd.f32 %v3346, %v6571
    %v6573 = vpop.f32.mrb[0].mxu0
    %6574 = vmatprep.mubr.bf16.mxu0 0
    %6575 = vmatmul.mubr.bf16.gmra.mrb[0].mxu0 %v6532
    %v6576 = vpop.f32.mrb[0].mxu0
    %v6577 = vadd.f32 %v3346, %v6576
    %v6578 = vpop.f32.mrb[0].mxu0
    %v6579 = vpop.f32.mrb[0].mxu0
    %v6580 = vadd.f32 %v3346, %v6579
    %v6581 = vpop.f32.mrb[0].mxu0
    %6582 = vdwg.mxu0
    %vm6583 = vcmp.gt.f32.partialorder %v6569, 0.0
    %vm6584 = vcmp.gt.f32.partialorder %v6572, 0.0
    %vm6585 = vcmp.gt.f32.partialorder %v6577, 0.0
    %vm6586 = vcmp.gt.f32.partialorder %v6580, 0.0
    %v6587 = vmin.f32 %v6569, 0.0
    %v6588 = vmin.f32 %v6572, 0.0
    %v6589 = vmin.f32 %v6577, 0.0
    %v6590 = vmin.f32 %v6580, 0.0
    %v6591 = vmul.f32 %v6587, 1.442695
    %v6592 = vpow.pop %v6591
    %v6593 = vmul.f32 %v6588, 1.442695
    %v6594 = vpow.pop %v6593
    %v6595 = vmul.f32 %v6589, 1.442695
    %v6596 = vpow.pop %v6595
    %v6597 = vmul.f32 %v6590, 1.442695
    %v6598 = vpow.pop %v6597
    %v6599 = vsub.f32 %v6592, 1.0
    %v6600 = vsub.f32 %v6594, 1.0
    %v6601 = vsub.f32 %v6596, 1.0
    %v6602 = vsub.f32 %v6598, 1.0
    %v6603 = vmul.f32 %v6599, 1.6732632
    %v6604 = vmul.f32 %v6600, 1.6732632
    %v6605 = vmul.f32 %v6601, 1.6732632
    %v6606 = vmul.f32 %v6602, 1.6732632
    %v6607 = vsel %vm6583, %v6569, %v6603
    %v6608 = vsel %vm6584, %v6572, %v6604
    %v6609 = vsel %vm6585, %v6577, %v6605
    %v6610 = vsel %vm6586, %v6580, %v6606
    %v6611 = vmul.f32 %v6607, 1.050701
    %v6612 = vmul.f32 %v6608, 1.050701
    %v6613 = vmul.f32 %v6609, 1.050701
    %v6614 = vmul.f32 %v6610, 1.050701
    %v6615 = vld [vmem:[%s10] sm:$0xf]
    %v6616 = vld [vmem:[%s10 + $0x4] sm:$0xf]
    %v6617 = vld [vmem:[%s10 + $0x8] sm:$0xf]
    %v6618 = vld [vmem:[%s10 + $0xc] sm:$0xf]
    %v6619 = vld [vmem:[%s10 + $0x10] sm:$0xf]
    %v6620 = vld [vmem:[%s10 + $0x14] sm:$0xf]
    %v6621 = vld [vmem:[%s10 + $0x18] sm:$0xf]
    %v6622 = vld [vmem:[%s10 + $0x1c] sm:$0xf]
    %v6623 = vpack.c.bf16 %v6612, %v6611
    %v6624 = vpack.c.bf16 %v6614, %v6613
    %v6633 = vunpack.c.l.b16 %v6615
    %v6634 = vunpack.c.l.b16 %v6616
    %v6635 = vunpack.c.l.b16 %v6617
    %v6636 = vunpack.c.l.b16 %v6618
    %v6637 = vunpack.c.l.b16 %v6619
    %v6638 = vunpack.c.l.b16 %v6620
    %v6639 = vunpack.c.l.b16 %v6621
    %v6640 = vunpack.c.l.b16 %v6622
    %v6641 = vpack.c.b16 %v6634, %v6633
    %v6642 = vpack.c.b16 %v6636, %v6635
    %v6643 = vpack.c.b16 %v6638, %v6637
    %v6644 = vpack.c.b16 %v6640, %v6639
    %v6650 = vsel %vm2534, %v6623, 0
    %v6653 = vsel %vm2534, %v6624, 0
    %6655 = vmatprep.subr.bf16.mxu0 0
    %6656 = vmatpush1.bf16.msra.mxu0 %v6641
    %6657 = vmatprep.subr.bf16.mxu0 0
    %6658 = vmatpush1.bf16.msra.mxu0 %v6642
    %6659 = vmatprep.subr.bf16.mxu0 0
    %6660 = vmatpush1.bf16.msra.mxu0 %v6643
    %6661 = vmatprep.subr.bf16.mxu0 0
    %6662 = vmatpush1.bf16.msra.mxu0 %v6644
    %6663 = vmatprep.subr.bf16.mxu0 0
    %6664 = vmatpush1.bf16.msra.mxu0 0
    %6665 = vmatprep.subr.bf16.mxu0 0
    %6666 = vmatpush1.bf16.msra.mxu0 0
    %6667 = vmatprep.subr.bf16.mxu0 0
    %6668 = vmatpush1.bf16.msra.mxu0 0
    %6669 = vmatprep.subr.bf16.mxu0 0
    %6670 = vmatpush1.bf16.msra.mxu0 0
    %6671 = vmatprep.subr.bf16.mxu0 0
    %6672 = vmatpush1.bf16.msra.mxu0 0
    %6673 = vmatprep.subr.bf16.mxu0 0
    %6674 = vmatpush1.bf16.msra.mxu0 0
    %6675 = vmatprep.subr.bf16.mxu0 0
    %6676 = vmatpush1.bf16.msra.mxu0 0
    %6677 = vmatprep.subr.bf16.mxu0 0
    %6678 = vmatpush1.bf16.msra.mxu0 0
    %6679 = vmatprep.subr.bf16.mxu0 0
    %6680 = vmatpush1.bf16.msra.mxu0 0
    %6681 = vmatprep.subr.bf16.mxu0 0
    %6682 = vmatpush1.bf16.msra.mxu0 0
    %6683 = vmatprep.subr.bf16.mxu0 0
    %6684 = vmatpush1.bf16.msra.mxu0 0
    %6685 = vmatprep.subr.bf16.mxu0 0
    %6686 = vmatpush1.bf16.msra.mxu0 0
    %6687 = vmatprep.mubr.bf16.mxu0 0
    %6688 = vmatmul.mubr.bf16.gmra.mrb[0].mxu0 %v6650
    %v6689 = vpop.f32.mrb[0].mxu0
    %v6690 = vadd.f32 %v3459, %v6689
    %v6691 = vpop.f32.mrb[0].mxu0
    %v6692 = vpop.f32.mrb[0].mxu0
    %v6693 = vadd.f32 %v3459, %v6692
    %v6694 = vpop.f32.mrb[0].mxu0
    %6695 = vmatprep.mubr.bf16.mxu0 0
    %6696 = vmatmul.mubr.bf16.gmra.mrb[0].mxu0 %v6653
    %v6697 = vpop.f32.mrb[0].mxu0
    %v6698 = vadd.f32 %v3459, %v6697
    %v6699 = vpop.f32.mrb[0].mxu0
    %v6700 = vpop.f32.mrb[0].mxu0
    %v6701 = vadd.f32 %v3459, %v6700
    %v6702 = vpop.f32.mrb[0].mxu0
    %6703 = vdwg.mxu0
    %v6704 = vadd.f32 %v6690, %v6496
    %v6705 = vadd.f32 %v6693, %v6499
    %v6706 = vadd.f32 %v6698, %v6504
    %v6707 = vadd.f32 %v6701, %v6507
    %s6708 = scalar_lea.vmem %s4, 32
    %v6709 = vld [vmem:[%s6708] sm:$0xf]
    %v6710 = vld [vmem:[%s6708 + $0x4] sm:$0xf]
    %v6711 = vld [vmem:[%s6708 + $0x8] sm:$0xf]
    %v6712 = vld [vmem:[%s6708 + $0xc] sm:$0xf]
    %v6713 = vlaneseq
    %v6714 = vshrl.u32 %v6713, 7
    %v6715 = vsub.s32 0, %v6714
    %v6716 = vrot.slane %v49, %v6715
    %v6721 = vunpack.c.l.b16 %v6709
    %v6722 = vunpack.c.l.b16 %v6710
    %v6723 = vunpack.c.l.b16 %v6711
    %v6724 = vunpack.c.l.b16 %v6712
    %v6725 = vpack.c.b16 %v6722, %v6721
    %v6726 = vpack.c.b16 %v6724, %v6723
    %6729 = vmatprep.subr.bf16.mxu0 0
    %6730 = vmatpush1.bf16.msra.mxu0 %v6725
    %6731 = vmatprep.subr.bf16.mxu0 0
    %6732 = vmatpush1.bf16.msra.mxu0 %v6726
    %6733 = vmatprep.subr.bf16.mxu0 0
    %6734 = vmatpush1.bf16.msra.mxu0 0
    %6735 = vmatprep.subr.bf16.mxu0 0
    %6736 = vmatpush1.bf16.msra.mxu0 0
    %6737 = vmatprep.subr.bf16.mxu0 0
    %6738 = vmatpush1.bf16.msra.mxu0 0
    %6739 = vmatprep.subr.bf16.mxu0 0
    %6740 = vmatpush1.bf16.msra.mxu0 0
    %6741 = vmatprep.subr.bf16.mxu0 0
    %6742 = vmatpush1.bf16.msra.mxu0 0
    %6743 = vmatprep.subr.bf16.mxu0 0
    %6744 = vmatpush1.bf16.msra.mxu0 0
    %6745 = vmatprep.subr.bf16.mxu0 0
    %6746 = vmatpush1.bf16.msra.mxu0 0
    %6747 = vmatprep.subr.bf16.mxu0 0
    %6748 = vmatpush1.bf16.msra.mxu0 0
    %6749 = vmatprep.subr.bf16.mxu0 0
    %6750 = vmatpush1.bf16.msra.mxu0 0
    %6751 = vmatprep.subr.bf16.mxu0 0
    %6752 = vmatpush1.bf16.msra.mxu0 0
    %6753 = vmatprep.subr.bf16.mxu0 0
    %6754 = vmatpush1.bf16.msra.mxu0 0
    %6755 = vmatprep.subr.bf16.mxu0 0
    %6756 = vmatpush1.bf16.msra.mxu0 0
    %6757 = vmatprep.subr.bf16.mxu0 0
    %6758 = vmatpush1.bf16.msra.mxu0 0
    %6759 = vmatprep.subr.bf16.mxu0 0
    %6760 = vmatpush1.bf16.msra.mxu0 0
    %6761 = vmatprep.mubr.bf16.mxu0 0
    %6762 = vmatmul.mubr.bf16.gmra.mrb[0].mxu0 %v1722
    %v6763 = vpop.f32.mrb[0].mxu0
    %v6764 = vadd.f32 %v6716, %v6763
    %v6765 = vpop.f32.mrb[0].mxu0
    %v6766 = vpop.f32.mrb[0].mxu0
    %v6767 = vadd.f32 %v6716, %v6766
    %v6768 = vpop.f32.mrb[0].mxu0
    %6769 = vmatprep.mubr.bf16.mxu0 0
    %6770 = vmatmul.mubr.bf16.gmra.mrb[0].mxu0 %v1725
    %v6771 = vpop.f32.mrb[0].mxu0
    %v6772 = vadd.f32 %v6716, %v6771
    %v6773 = vpop.f32.mrb[0].mxu0
    %v6774 = vpop.f32.mrb[0].mxu0
    %v6775 = vadd.f32 %v6716, %v6774
    %v6776 = vpop.f32.mrb[0].mxu0
    %6777 = vmatprep.mubr.bf16.mxu0 0
    %6778 = vmatmul.mubr.bf16.gmra.mrb[0].mxu0 %v1728
    %v6779 = vpop.f32.mrb[0].mxu0
    %v6780 = vadd.f32 %v6716, %v6779
    %v6781 = vpop.f32.mrb[0].mxu0
    %v6782 = vpop.f32.mrb[0].mxu0
    %v6783 = vadd.f32 %v6716, %v6782
    %v6784 = vpop.f32.mrb[0].mxu0
    %6785 = vmatprep.mubr.bf16.mxu0 0
    %6786 = vmatmul.mubr.bf16.gmra.mrb[0].mxu0 %v1731
    %v6787 = vpop.f32.mrb[0].mxu0
    %v6788 = vadd.f32 %v6716, %v6787
    %v6789 = vpop.f32.mrb[0].mxu0
    %v6790 = vpop.f32.mrb[0].mxu0
    %v6791 = vadd.f32 %v6716, %v6790
    %v6792 = vpop.f32.mrb[0].mxu0
    %6793 = vmatprep.mubr.bf16.mxu0 0
    %6794 = vmatmul.mubr.bf16.gmra.mrb[0].mxu0 %v1734
    %v6795 = vpop.f32.mrb[0].mxu0
    %v6796 = vadd.f32 %v6716, %v6795
    %v6797 = vpop.f32.mrb[0].mxu0
    %v6798 = vpop.f32.mrb[0].mxu0
    %v6799 = vadd.f32 %v6716, %v6798
    %v6800 = vpop.f32.mrb[0].mxu0
    %6801 = vmatprep.mubr.bf16.mxu0 0
    %6802 = vmatmul.mubr.bf16.gmra.mrb[0].mxu0 %v1737
    %v6803 = vpop.f32.mrb[0].mxu0
    %v6804 = vadd.f32 %v6716, %v6803
    %v6805 = vpop.f32.mrb[0].mxu0
    %v6806 = vpop.f32.mrb[0].mxu0
    %v6807 = vadd.f32 %v6716, %v6806
    %v6808 = vpop.f32.mrb[0].mxu0
    %6809 = vmatprep.mubr.bf16.mxu0 0
    %6810 = vmatmul.mubr.bf16.gmra.mrb[0].mxu0 %v1740
    %v6811 = vpop.f32.mrb[0].mxu0
    %v6812 = vadd.f32 %v6716, %v6811
    %v6813 = vpop.f32.mrb[0].mxu0
    %v6814 = vpop.f32.mrb[0].mxu0
    %v6815 = vadd.f32 %v6716, %v6814
    %v6816 = vpop.f32.mrb[0].mxu0
    %6817 = vmatprep.mubr.bf16.mxu0 0
    %6818 = vmatmul.mubr.bf16.gmra.mrb[0].mxu0 %v1743
    %v6819 = vpop.f32.mrb[0].mxu0
    %v6820 = vadd.f32 %v6716, %v6819
    %v6821 = vpop.f32.mrb[0].mxu0
    %v6822 = vpop.f32.mrb[0].mxu0
    %v6823 = vadd.f32 %v6716, %v6822
    %v6824 = vpop.f32.mrb[0].mxu0
    %6825 = vdwg.mxu0
    %v6826 = vpack.c.bf16 %v6705, %v6704
    %v6827 = vpack.c.bf16 %v6707, %v6706
    %6828 = vrot.lane.b32.xlu0 %v6725, 96
    %v6829 = vpop.permute.xlu0 %6828
    %6830 = vrot.lane.b32.xlu0 %v6726, 96
    %v6831 = vpop.permute.xlu0 %6830
    %6835 = vrot.lane.b32.xlu0 %v6716, 96
    %v6836 = vpop.permute.xlu0 %6835
    %v6839 = vsel %vm105, %v6826, 0
    %v6842 = vsel %vm105, %v6827, 0
    %6844 = vmatprep.subr.bf16.mxu0 0
    %6845 = vmatpush1.bf16.msra.mxu0 %v6829
    %6846 = vmatprep.subr.bf16.mxu0 0
    %6847 = vmatpush1.bf16.msra.mxu0 %v6831
    %6848 = vmatprep.subr.bf16.mxu0 0
    %6849 = vmatpush1.bf16.msra.mxu0 0
    %6850 = vmatprep.subr.bf16.mxu0 0
    %6851 = vmatpush1.bf16.msra.mxu0 0
    %6852 = vmatprep.subr.bf16.mxu0 0
    %6853 = vmatpush1.bf16.msra.mxu0 0
    %6854 = vmatprep.subr.bf16.mxu0 0
    %6855 = vmatpush1.bf16.msra.mxu0 0
    %6856 = vmatprep.subr.bf16.mxu0 0
    %6857 = vmatpush1.bf16.msra.mxu0 0
    %6858 = vmatprep.subr.bf16.mxu0 0
    %6859 = vmatpush1.bf16.msra.mxu0 0
    %6860 = vmatprep.subr.bf16.mxu0 0
    %6861 = vmatpush1.bf16.msra.mxu0 0
    %6862 = vmatprep.subr.bf16.mxu0 0
    %6863 = vmatpush1.bf16.msra.mxu0 0
    %6864 = vmatprep.subr.bf16.mxu0 0
    %6865 = vmatpush1.bf16.msra.mxu0 0
    %6866 = vmatprep.subr.bf16.mxu0 0
    %6867 = vmatpush1.bf16.msra.mxu0 0
    %6868 = vmatprep.subr.bf16.mxu0 0
    %6869 = vmatpush1.bf16.msra.mxu0 0
    %6870 = vmatprep.subr.bf16.mxu0 0
    %6871 = vmatpush1.bf16.msra.mxu0 0
    %6872 = vmatprep.subr.bf16.mxu0 0
    %6873 = vmatpush1.bf16.msra.mxu0 0
    %6874 = vmatprep.subr.bf16.mxu0 0
    %6875 = vmatpush1.bf16.msra.mxu0 0
    %6876 = vmatprep.mubr.bf16.mxu0 0
    %6877 = vmatmul.mubr.bf16.gmra.mrb[0].mxu0 %v6839
    %v6878 = vpop.f32.mrb[0].mxu0
    %v6879 = vadd.f32 %v6836, %v6878
    %v6880 = vpop.f32.mrb[0].mxu0
    %v6881 = vpop.f32.mrb[0].mxu0
    %v6882 = vadd.f32 %v6836, %v6881
    %v6883 = vpop.f32.mrb[0].mxu0
    %6884 = vmatprep.mubr.bf16.mxu0 0
    %6885 = vmatmul.mubr.bf16.gmra.mrb[0].mxu0 %v6842
    %v6886 = vpop.f32.mrb[0].mxu0
    %v6887 = vadd.f32 %v6836, %v6886
    %v6888 = vpop.f32.mrb[0].mxu0
    %v6889 = vpop.f32.mrb[0].mxu0
    %v6890 = vadd.f32 %v6836, %v6889
    %v6891 = vpop.f32.mrb[0].mxu0
    %6892 = vdwg.mxu0
    %v6893 = vmul.f32 %v6764, 0.35355338
    %v6894 = vmul.f32 %v6767, 0.35355338
    %v6895 = vmul.f32 %v6772, 0.35355338
    %v6896 = vmul.f32 %v6775, 0.35355338
    %v6897 = vmul.f32 %v6780, 0.35355338
    %v6898 = vmul.f32 %v6783, 0.35355338
    %v6899 = vmul.f32 %v6788, 0.35355338
    %v6900 = vmul.f32 %v6791, 0.35355338
    %v6901 = vmul.f32 %v6796, 0.35355338
    %v6902 = vmul.f32 %v6799, 0.35355338
    %v6903 = vmul.f32 %v6804, 0.35355338
    %v6904 = vmul.f32 %v6807, 0.35355338
    %v6905 = vmul.f32 %v6812, 0.35355338
    %v6906 = vmul.f32 %v6815, 0.35355338
    %v6907 = vmul.f32 %v6820, 0.35355338
    %v6908 = vmul.f32 %v6823, 0.35355338
    %6925 = vrot.lane.b32.xlu0 %v6893, 120
    %v6926 = vpop.permute.xlu0 %6925
    %6927 = vrot.lane.b32.xlu0 %v6894, 120
    %v6928 = vpop.permute.xlu0 %6927
    %6929 = vrot.lane.b32.xlu0 %v6895, 120
    %v6930 = vpop.permute.xlu0 %6929
    %6931 = vrot.lane.b32.xlu0 %v6896, 120
    %v6932 = vpop.permute.xlu0 %6931
    %6933 = vrot.lane.b32.xlu0 %v6897, 120
    %v6934 = vpop.permute.xlu0 %6933
    %6935 = vrot.lane.b32.xlu0 %v6898, 120
    %v6936 = vpop.permute.xlu0 %6935
    %6937 = vrot.lane.b32.xlu0 %v6899, 120
    %v6938 = vpop.permute.xlu0 %6937
    %6939 = vrot.lane.b32.xlu0 %v6900, 120
    %v6940 = vpop.permute.xlu0 %6939
    %6941 = vrot.lane.b32.xlu0 %v6901, 120
    %v6942 = vpop.permute.xlu0 %6941
    %6943 = vrot.lane.b32.xlu0 %v6902, 120
    %v6944 = vpop.permute.xlu0 %6943
    %6945 = vrot.lane.b32.xlu0 %v6903, 120
    %v6946 = vpop.permute.xlu0 %6945
    %6947 = vrot.lane.b32.xlu0 %v6904, 120
    %v6948 = vpop.permute.xlu0 %6947
    %6949 = vrot.lane.b32.xlu0 %v6905, 120
    %v6950 = vpop.permute.xlu0 %6949
    %6951 = vrot.lane.b32.xlu0 %v6906, 120
    %v6952 = vpop.permute.xlu0 %6951
    %6953 = vrot.lane.b32.xlu0 %v6907, 120
    %v6954 = vpop.permute.xlu0 %6953
    %6955 = vrot.lane.b32.xlu0 %v6908, 120
    %v6956 = vpop.permute.xlu0 %6955
    %6973 = vrot.lane.b32.xlu0 %v6893, 112
    %v6974 = vpop.permute.xlu0 %6973
    %6975 = vrot.lane.b32.xlu0 %v6894, 112
    %v6976 = vpop.permute.xlu0 %6975
    %6977 = vrot.lane.b32.xlu0 %v6895, 112
    %v6978 = vpop.permute.xlu0 %6977
    %6979 = vrot.lane.b32.xlu0 %v6896, 112
    %v6980 = vpop.permute.xlu0 %6979
    %6981 = vrot.lane.b32.xlu0 %v6897, 112
    %v6982 = vpop.permute.xlu0 %6981
    %6983 = vrot.lane.b32.xlu0 %v6898, 112
    %v6984 = vpop.permute.xlu0 %6983
    %6985 = vrot.lane.b32.xlu0 %v6899, 112
    %v6986 = vpop.permute.xlu0 %6985
    %6987 = vrot.lane.b32.xlu0 %v6900, 112
    %v6988 = vpop.permute.xlu0 %6987
    %6989 = vrot.lane.b32.xlu0 %v6901, 112
    %v6990 = vpop.permute.xlu0 %6989
    %6991 = vrot.lane.b32.xlu0 %v6902, 112
    %v6992 = vpop.permute.xlu0 %6991
    %6993 = vrot.lane.b32.xlu0 %v6903, 112
    %v6994 = vpop.permute.xlu0 %6993
    %6995 = vrot.lane.b32.xlu0 %v6904, 112
    %v6996 = vpop.permute.xlu0 %6995
    %6997 = vrot.lane.b32.xlu0 %v6905, 112
    %v6998 = vpop.permute.xlu0 %6997
    %6999 = vrot.lane.b32.xlu0 %v6906, 112
    %v7000 = vpop.permute.xlu0 %6999
    %7001 = vrot.lane.b32.xlu0 %v6907, 112
    %v7002 = vpop.permute.xlu0 %7001
    %7003 = vrot.lane.b32.xlu0 %v6908, 112
    %v7004 = vpop.permute.xlu0 %7003
    %7021 = vrot.lane.b32.xlu0 %v6893, 104
    %v7022 = vpop.permute.xlu0 %7021
    %7023 = vrot.lane.b32.xlu0 %v6894, 104
    %v7024 = vpop.permute.xlu0 %7023
    %7025 = vrot.lane.b32.xlu0 %v6895, 104
    %v7026 = vpop.permute.xlu0 %7025
    %7027 = vrot.lane.b32.xlu0 %v6896, 104
    %v7028 = vpop.permute.xlu0 %7027
    %7029 = vrot.lane.b32.xlu0 %v6897, 104
    %v7030 = vpop.permute.xlu0 %7029
    %7031 = vrot.lane.b32.xlu0 %v6898, 104
    %v7032 = vpop.permute.xlu0 %7031
    %7033 = vrot.lane.b32.xlu0 %v6899, 104
    %v7034 = vpop.permute.xlu0 %7033
    %7035 = vrot.lane.b32.xlu0 %v6900, 104
    %v7036 = vpop.permute.xlu0 %7035
    %7037 = vrot.lane.b32.xlu0 %v6901, 104
    %v7038 = vpop.permute.xlu0 %7037
    %7039 = vrot.lane.b32.xlu0 %v6902, 104
    %v7040 = vpop.permute.xlu0 %7039
    %7041 = vrot.lane.b32.xlu0 %v6903, 104
    %v7042 = vpop.permute.xlu0 %7041
    %7043 = vrot.lane.b32.xlu0 %v6904, 104
    %v7044 = vpop.permute.xlu0 %7043
    %7045 = vrot.lane.b32.xlu0 %v6905, 104
    %v7046 = vpop.permute.xlu0 %7045
    %7047 = vrot.lane.b32.xlu0 %v6906, 104
    %v7048 = vpop.permute.xlu0 %7047
    %7049 = vrot.lane.b32.xlu0 %v6907, 104
    %v7050 = vpop.permute.xlu0 %7049
    %7051 = vrot.lane.b32.xlu0 %v6908, 104
    %v7052 = vpop.permute.xlu0 %7051
    %7073 = vrot.lane.b32.xlu0 %v6879, 120
    %v7074 = vpop.permute.xlu0 %7073
    %7075 = vrot.lane.b32.xlu0 %v6882, 120
    %v7076 = vpop.permute.xlu0 %7075
    %7077 = vrot.lane.b32.xlu0 %v6887, 120
    %v7078 = vpop.permute.xlu0 %7077
    %7079 = vrot.lane.b32.xlu0 %v6890, 120
    %v7080 = vpop.permute.xlu0 %7079
    %7085 = vrot.lane.b32.xlu0 %v6879, 112
    %v7086 = vpop.permute.xlu0 %7085
    %7087 = vrot.lane.b32.xlu0 %v6882, 112
    %v7088 = vpop.permute.xlu0 %7087
    %7089 = vrot.lane.b32.xlu0 %v6887, 112
    %v7090 = vpop.permute.xlu0 %7089
    %7091 = vrot.lane.b32.xlu0 %v6890, 112
    %v7092 = vpop.permute.xlu0 %7091
    %7097 = vrot.lane.b32.xlu0 %v6879, 104
    %v7098 = vpop.permute.xlu0 %7097
    %7099 = vrot.lane.b32.xlu0 %v6882, 104
    %v7100 = vpop.permute.xlu0 %7099
    %7101 = vrot.lane.b32.xlu0 %v6887, 104
    %v7102 = vpop.permute.xlu0 %7101
    %7103 = vrot.lane.b32.xlu0 %v6890, 104
    %v7104 = vpop.permute.xlu0 %7103
    %v7109 = vpack.c.bf16 %v6894, %v6893
    %v7110 = vpack.c.bf16 %v6896, %v6895
    %v7111 = vpack.c.bf16 %v6898, %v6897
    %v7112 = vpack.c.bf16 %v6900, %v6899
    %v7113 = vpack.c.bf16 %v6902, %v6901
    %v7114 = vpack.c.bf16 %v6904, %v6903
    %v7115 = vpack.c.bf16 %v6906, %v6905
    %v7116 = vpack.c.bf16 %v6908, %v6907
    %v7117 = vpack.c.bf16 %v6928, %v6926
    %v7118 = vpack.c.bf16 %v6932, %v6930
    %v7119 = vpack.c.bf16 %v6936, %v6934
    %v7120 = vpack.c.bf16 %v6940, %v6938
    %v7121 = vpack.c.bf16 %v6944, %v6942
    %v7122 = vpack.c.bf16 %v6948, %v6946
    %v7123 = vpack.c.bf16 %v6952, %v6950
    %v7124 = vpack.c.bf16 %v6956, %v6954
    %v7125 = vpack.c.bf16 %v6976, %v6974
    %v7126 = vpack.c.bf16 %v6980, %v6978
    %v7127 = vpack.c.bf16 %v6984, %v6982
    %v7128 = vpack.c.bf16 %v6988, %v6986
    %v7129 = vpack.c.bf16 %v6992, %v6990
    %v7130 = vpack.c.bf16 %v6996, %v6994
    %v7131 = vpack.c.bf16 %v7000, %v6998
    %v7132 = vpack.c.bf16 %v7004, %v7002
    %v7133 = vpack.c.bf16 %v7024, %v7022
    %v7134 = vpack.c.bf16 %v7028, %v7026
    %v7135 = vpack.c.bf16 %v7032, %v7030
    %v7136 = vpack.c.bf16 %v7036, %v7034
    %v7137 = vpack.c.bf16 %v7040, %v7038
    %v7138 = vpack.c.bf16 %v7044, %v7042
    %v7139 = vpack.c.bf16 %v7048, %v7046
    %v7140 = vpack.c.bf16 %v7052, %v7050
    %v7141 = vpack.c.bf16 %v6882, %v6879
    %v7142 = vpack.c.bf16 %v6890, %v6887
    %v7143 = vpack.c.bf16 %v7076, %v7074
    %v7144 = vpack.c.bf16 %v7080, %v7078
    %v7145 = vpack.c.bf16 %v7088, %v7086
    %v7146 = vpack.c.bf16 %v7092, %v7090
    %v7147 = vpack.c.bf16 %v7100, %v7098
    %v7148 = vpack.c.bf16 %v7104, %v7102
    %v7150 = vsel %vm491, %v7109, 0
    %v7153 = vsel %vm491, %v7110, 0
    %v7156 = vsel %vm491, %v7111, 0
    %v7159 = vsel %vm491, %v7112, 0
    %v7162 = vsel %vm491, %v7141, 0
    %7164 = vmatprep.subr.bf16.mxu0 0
    %7165 = vmatpush1.bf16.xpose.msra.mxu0 %v7162
    %7166 = vmatprep.subr.bf16.mxu0 0
    %7167 = vmatpush1.bf16.xpose.msra.mxu0 0
    %7168 = vmatprep.subr.bf16.mxu0 0
    %7169 = vmatpush1.bf16.xpose.msra.mxu0 0
    %7170 = vmatprep.subr.bf16.mxu0 0
    %7171 = vmatpush1.bf16.xpose.msra.mxu0 0
    %7172 = vmatprep.subr.bf16.mxu0 0
    %7173 = vmatpush1.bf16.xpose.msra.mxu0 0
    %7174 = vmatprep.subr.bf16.mxu0 0
    %7175 = vmatpush1.bf16.xpose.msra.mxu0 0
    %7176 = vmatprep.subr.bf16.mxu0 0
    %7177 = vmatpush1.bf16.xpose.msra.mxu0 0
    %7178 = vmatprep.subr.bf16.mxu0 0
    %7179 = vmatpush1.bf16.xpose.msra.mxu0 0
    %7180 = vmatprep.subr.bf16.mxu0 0
    %7181 = vmatpush1.bf16.xpose.msra.mxu0 0
    %7182 = vmatprep.subr.bf16.mxu0 0
    %7183 = vmatpush1.bf16.xpose.msra.mxu0 0
    %7184 = vmatprep.subr.bf16.mxu0 0
    %7185 = vmatpush1.bf16.xpose.msra.mxu0 0
    %7186 = vmatprep.subr.bf16.mxu0 0
    %7187 = vmatpush1.bf16.xpose.msra.mxu0 0
    %7188 = vmatprep.subr.bf16.mxu0 0
    %7189 = vmatpush1.bf16.xpose.msra.mxu0 0
    %7190 = vmatprep.subr.bf16.mxu0 0
    %7191 = vmatpush1.bf16.xpose.msra.mxu0 0
    %7192 = vmatprep.subr.bf16.mxu0 0
    %7193 = vmatpush1.bf16.xpose.msra.mxu0 0
    %7194 = vmatprep.subr.bf16.mxu0 0
    %7195 = vmatpush1.bf16.xpose.msra.mxu0 0
    %7196 = vmatprep.mubr.bf16.mxu0 0
    %7197 = vmatmul.mubr.bf16.gmra.mrb[0].mxu0 %v7150
    %v7198 = vpop.f32.mrb[0].mxu0
    %v7199 = vadd.f32 0.0, %v7198
    %v7200 = vpop.f32.mrb[0].mxu0
    %v7201 = vpop.f32.mrb[0].mxu0
    %v7202 = vadd.f32 0.0, %v7201
    %v7203 = vpop.f32.mrb[0].mxu0
    %7204 = vmatprep.mubr.bf16.mxu0 0
    %7205 = vmatmul.mubr.bf16.gmra.mrb[0].mxu0 %v7153
    %v7206 = vpop.f32.mrb[0].mxu0
    %v7207 = vadd.f32 0.0, %v7206
    %v7208 = vpop.f32.mrb[0].mxu0
    %v7209 = vpop.f32.mrb[0].mxu0
    %v7210 = vadd.f32 0.0, %v7209
    %v7211 = vpop.f32.mrb[0].mxu0
    %7212 = vmatprep.mubr.bf16.mxu0 0
    %7213 = vmatmul.mubr.bf16.gmra.mrb[0].mxu0 %v7156
    %v7214 = vpop.f32.mrb[0].mxu0
    %v7215 = vadd.f32 0.0, %v7214
    %v7216 = vpop.f32.mrb[0].mxu0
    %v7217 = vpop.f32.mrb[0].mxu0
    %v7218 = vadd.f32 0.0, %v7217
    %v7219 = vpop.f32.mrb[0].mxu0
    %7220 = vmatprep.mubr.bf16.mxu0 0
    %7221 = vmatmul.mubr.bf16.gmra.mrb[0].mxu0 %v7159
    %v7222 = vpop.f32.mrb[0].mxu0
    %v7223 = vadd.f32 0.0, %v7222
    %v7224 = vpop.f32.mrb[0].mxu0
    %v7225 = vpop.f32.mrb[0].mxu0
    %v7226 = vadd.f32 0.0, %v7225
    %v7227 = vpop.f32.mrb[0].mxu0
    %7228 = vdwg.mxu0
    %v7230 = vsel %vm491, %v7113, 0
    %v7233 = vsel %vm491, %v7114, 0
    %v7236 = vsel %vm491, %v7115, 0
    %v7239 = vsel %vm491, %v7116, 0
    %v7242 = vsel %vm491, %v7142, 0
    %7244 = vmatprep.subr.bf16.mxu0 0
    %7245 = vmatpush1.bf16.xpose.msra.mxu0 %v7242
    %7246 = vmatprep.subr.bf16.mxu0 0
    %7247 = vmatpush1.bf16.xpose.msra.mxu0 0
    %7248 = vmatprep.subr.bf16.mxu0 0
    %7249 = vmatpush1.bf16.xpose.msra.mxu0 0
    %7250 = vmatprep.subr.bf16.mxu0 0
    %7251 = vmatpush1.bf16.xpose.msra.mxu0 0
    %7252 = vmatprep.subr.bf16.mxu0 0
    %7253 = vmatpush1.bf16.xpose.msra.mxu0 0
    %7254 = vmatprep.subr.bf16.mxu0 0
    %7255 = vmatpush1.bf16.xpose.msra.mxu0 0
    %7256 = vmatprep.subr.bf16.mxu0 0
    %7257 = vmatpush1.bf16.xpose.msra.mxu0 0
    %7258 = vmatprep.subr.bf16.mxu0 0
    %7259 = vmatpush1.bf16.xpose.msra.mxu0 0
    %7260 = vmatprep.subr.bf16.mxu0 0
    %7261 = vmatpush1.bf16.xpose.msra.mxu0 0
    %7262 = vmatprep.subr.bf16.mxu0 0
    %7263 = vmatpush1.bf16.xpose.msra.mxu0 0
    %7264 = vmatprep.subr.bf16.mxu0 0
    %7265 = vmatpush1.bf16.xpose.msra.mxu0 0
    %7266 = vmatprep.subr.bf16.mxu0 0
    %7267 = vmatpush1.bf16.xpose.msra.mxu0 0
    %7268 = vmatprep.subr.bf16.mxu0 0
    %7269 = vmatpush1.bf16.xpose.msra.mxu0 0
    %7270 = vmatprep.subr.bf16.mxu0 0
    %7271 = vmatpush1.bf16.xpose.msra.mxu0 0
    %7272 = vmatprep.subr.bf16.mxu0 0
    %7273 = vmatpush1.bf16.xpose.msra.mxu0 0
    %7274 = vmatprep.subr.bf16.mxu0 0
    %7275 = vmatpush1.bf16.xpose.msra.mxu0 0
    %7276 = vmatprep.mubr.bf16.mxu0 0
    %7277 = vmatmul.mubr.bf16.gmra.mrb[0].mxu0 %v7230
    %v7278 = vpop.f32.mrb[0].mxu0
    %v7279 = vadd.f32 0.0, %v7278
    %v7280 = vpop.f32.mrb[0].mxu0
    %v7281 = vpop.f32.mrb[0].mxu0
    %v7282 = vadd.f32 0.0, %v7281
    %v7283 = vpop.f32.mrb[0].mxu0
    %7284 = vmatprep.mubr.bf16.mxu0 0
    %7285 = vmatmul.mubr.bf16.gmra.mrb[0].mxu0 %v7233
    %v7286 = vpop.f32.mrb[0].mxu0
    %v7287 = vadd.f32 0.0, %v7286
    %v7288 = vpop.f32.mrb[0].mxu0
    %v7289 = vpop.f32.mrb[0].mxu0
    %v7290 = vadd.f32 0.0, %v7289
    %v7291 = vpop.f32.mrb[0].mxu0
    %7292 = vmatprep.mubr.bf16.mxu0 0
    %7293 = vmatmul.mubr.bf16.gmra.mrb[0].mxu0 %v7236
    %v7294 = vpop.f32.mrb[0].mxu0
    %v7295 = vadd.f32 0.0, %v7294
    %v7296 = vpop.f32.mrb[0].mxu0
    %v7297 = vpop.f32.mrb[0].mxu0
    %v7298 = vadd.f32 0.0, %v7297
    %v7299 = vpop.f32.mrb[0].mxu0
    %7300 = vmatprep.mubr.bf16.mxu0 0
    %7301 = vmatmul.mubr.bf16.gmra.mrb[0].mxu0 %v7239
    %v7302 = vpop.f32.mrb[0].mxu0
    %v7303 = vadd.f32 0.0, %v7302
    %v7304 = vpop.f32.mrb[0].mxu0
    %v7305 = vpop.f32.mrb[0].mxu0
    %v7306 = vadd.f32 0.0, %v7305
    %v7307 = vpop.f32.mrb[0].mxu0
    %7308 = vdwg.mxu0
    %v7310 = vsel %vm491, %v7117, 0
    %v7313 = vsel %vm491, %v7118, 0
    %v7316 = vsel %vm491, %v7119, 0
    %v7319 = vsel %vm491, %v7120, 0
    %v7322 = vsel %vm491, %v7143, 0
    %7324 = vmatprep.subr.bf16.mxu0 0
    %7325 = vmatpush1.bf16.xpose.msra.mxu0 %v7322
    %7326 = vmatprep.subr.bf16.mxu0 0
    %7327 = vmatpush1.bf16.xpose.msra.mxu0 0
    %7328 = vmatprep.subr.bf16.mxu0 0
    %7329 = vmatpush1.bf16.xpose.msra.mxu0 0
    %7330 = vmatprep.subr.bf16.mxu0 0
    %7331 = vmatpush1.bf16.xpose.msra.mxu0 0
    %7332 = vmatprep.subr.bf16.mxu0 0
    %7333 = vmatpush1.bf16.xpose.msra.mxu0 0
    %7334 = vmatprep.subr.bf16.mxu0 0
    %7335 = vmatpush1.bf16.xpose.msra.mxu0 0
    %7336 = vmatprep.subr.bf16.mxu0 0
    %7337 = vmatpush1.bf16.xpose.msra.mxu0 0
    %7338 = vmatprep.subr.bf16.mxu0 0
    %7339 = vmatpush1.bf16.xpose.msra.mxu0 0
    %7340 = vmatprep.subr.bf16.mxu0 0
    %7341 = vmatpush1.bf16.xpose.msra.mxu0 0
    %7342 = vmatprep.subr.bf16.mxu0 0
    %7343 = vmatpush1.bf16.xpose.msra.mxu0 0
    %7344 = vmatprep.subr.bf16.mxu0 0
    %7345 = vmatpush1.bf16.xpose.msra.mxu0 0
    %7346 = vmatprep.subr.bf16.mxu0 0
    %7347 = vmatpush1.bf16.xpose.msra.mxu0 0
    %7348 = vmatprep.subr.bf16.mxu0 0
    %7349 = vmatpush1.bf16.xpose.msra.mxu0 0
    %7350 = vmatprep.subr.bf16.mxu0 0
    %7351 = vmatpush1.bf16.xpose.msra.mxu0 0
    %7352 = vmatprep.subr.bf16.mxu0 0
    %7353 = vmatpush1.bf16.xpose.msra.mxu0 0
    %7354 = vmatprep.subr.bf16.mxu0 0
    %7355 = vmatpush1.bf16.xpose.msra.mxu0 0
    %7356 = vmatprep.mubr.bf16.mxu0 0
    %7357 = vmatmul.mubr.bf16.gmra.mrb[0].mxu0 %v7310
    %v7358 = vpop.f32.mrb[0].mxu0
    %v7359 = vadd.f32 0.0, %v7358
    %v7360 = vpop.f32.mrb[0].mxu0
    %v7361 = vpop.f32.mrb[0].mxu0
    %v7362 = vadd.f32 0.0, %v7361
    %v7363 = vpop.f32.mrb[0].mxu0
    %7364 = vmatprep.mubr.bf16.mxu0 0
    %7365 = vmatmul.mubr.bf16.gmra.mrb[0].mxu0 %v7313
    %v7366 = vpop.f32.mrb[0].mxu0
    %v7367 = vadd.f32 0.0, %v7366
    %v7368 = vpop.f32.mrb[0].mxu0
    %v7369 = vpop.f32.mrb[0].mxu0
    %v7370 = vadd.f32 0.0, %v7369
    %v7371 = vpop.f32.mrb[0].mxu0
    %7372 = vmatprep.mubr.bf16.mxu0 0
    %7373 = vmatmul.mubr.bf16.gmra.mrb[0].mxu0 %v7316
    %v7374 = vpop.f32.mrb[0].mxu0
    %v7375 = vadd.f32 0.0, %v7374
    %v7376 = vpop.f32.mrb[0].mxu0
    %v7377 = vpop.f32.mrb[0].mxu0
    %v7378 = vadd.f32 0.0, %v7377
    %v7379 = vpop.f32.mrb[0].mxu0
    %7380 = vmatprep.mubr.bf16.mxu0 0
    %7381 = vmatmul.mubr.bf16.gmra.mrb[0].mxu0 %v7319
    %v7382 = vpop.f32.mrb[0].mxu0
    %v7383 = vadd.f32 0.0, %v7382
    %v7384 = vpop.f32.mrb[0].mxu0
    %v7385 = vpop.f32.mrb[0].mxu0
    %v7386 = vadd.f32 0.0, %v7385
    %v7387 = vpop.f32.mrb[0].mxu0
    %7388 = vdwg.mxu0
    %v7390 = vsel %vm491, %v7121, 0
    %v7393 = vsel %vm491, %v7122, 0
    %v7396 = vsel %vm491, %v7123, 0
    %v7399 = vsel %vm491, %v7124, 0
    %v7402 = vsel %vm491, %v7144, 0
    %7404 = vmatprep.subr.bf16.mxu0 0
    %7405 = vmatpush1.bf16.xpose.msra.mxu0 %v7402
    %7406 = vmatprep.subr.bf16.mxu0 0
    %7407 = vmatpush1.bf16.xpose.msra.mxu0 0
    %7408 = vmatprep.subr.bf16.mxu0 0
    %7409 = vmatpush1.bf16.xpose.msra.mxu0 0
    %7410 = vmatprep.subr.bf16.mxu0 0
    %7411 = vmatpush1.bf16.xpose.msra.mxu0 0
    %7412 = vmatprep.subr.bf16.mxu0 0
    %7413 = vmatpush1.bf16.xpose.msra.mxu0 0
    %7414 = vmatprep.subr.bf16.mxu0 0
    %7415 = vmatpush1.bf16.xpose.msra.mxu0 0
    %7416 = vmatprep.subr.bf16.mxu0 0
    %7417 = vmatpush1.bf16.xpose.msra.mxu0 0
    %7418 = vmatprep.subr.bf16.mxu0 0
    %7419 = vmatpush1.bf16.xpose.msra.mxu0 0
    %7420 = vmatprep.subr.bf16.mxu0 0
    %7421 = vmatpush1.bf16.xpose.msra.mxu0 0
    %7422 = vmatprep.subr.bf16.mxu0 0
    %7423 = vmatpush1.bf16.xpose.msra.mxu0 0
    %7424 = vmatprep.subr.bf16.mxu0 0
    %7425 = vmatpush1.bf16.xpose.msra.mxu0 0
    %7426 = vmatprep.subr.bf16.mxu0 0
    %7427 = vmatpush1.bf16.xpose.msra.mxu0 0
    %7428 = vmatprep.subr.bf16.mxu0 0
    %7429 = vmatpush1.bf16.xpose.msra.mxu0 0
    %7430 = vmatprep.subr.bf16.mxu0 0
    %7431 = vmatpush1.bf16.xpose.msra.mxu0 0
    %7432 = vmatprep.subr.bf16.mxu0 0
    %7433 = vmatpush1.bf16.xpose.msra.mxu0 0
    %7434 = vmatprep.subr.bf16.mxu0 0
    %7435 = vmatpush1.bf16.xpose.msra.mxu0 0
    %7436 = vmatprep.mubr.bf16.mxu0 0
    %7437 = vmatmul.mubr.bf16.gmra.mrb[0].mxu0 %v7390
    %v7438 = vpop.f32.mrb[0].mxu0
    %v7439 = vadd.f32 0.0, %v7438
    %v7440 = vpop.f32.mrb[0].mxu0
    %v7441 = vpop.f32.mrb[0].mxu0
    %v7442 = vadd.f32 0.0, %v7441
    %v7443 = vpop.f32.mrb[0].mxu0
    %7444 = vmatprep.mubr.bf16.mxu0 0
    %7445 = vmatmul.mubr.bf16.gmra.mrb[0].mxu0 %v7393
    %v7446 = vpop.f32.mrb[0].mxu0
    %v7447 = vadd.f32 0.0, %v7446
    %v7448 = vpop.f32.mrb[0].mxu0
    %v7449 = vpop.f32.mrb[0].mxu0
    %v7450 = vadd.f32 0.0, %v7449
    %v7451 = vpop.f32.mrb[0].mxu0
    %7452 = vmatprep.mubr.bf16.mxu0 0
    %7453 = vmatmul.mubr.bf16.gmra.mrb[0].mxu0 %v7396
    %v7454 = vpop.f32.mrb[0].mxu0
    %v7455 = vadd.f32 0.0, %v7454
    %v7456 = vpop.f32.mrb[0].mxu0
    %v7457 = vpop.f32.mrb[0].mxu0
    %v7458 = vadd.f32 0.0, %v7457
    %v7459 = vpop.f32.mrb[0].mxu0
    %7460 = vmatprep.mubr.bf16.mxu0 0
    %7461 = vmatmul.mubr.bf16.gmra.mrb[0].mxu0 %v7399
    %v7462 = vpop.f32.mrb[0].mxu0
    %v7463 = vadd.f32 0.0, %v7462
    %v7464 = vpop.f32.mrb[0].mxu0
    %v7465 = vpop.f32.mrb[0].mxu0
    %v7466 = vadd.f32 0.0, %v7465
    %v7467 = vpop.f32.mrb[0].mxu0
    %7468 = vdwg.mxu0
    %v7470 = vsel %vm491, %v7125, 0
    %v7473 = vsel %vm491, %v7126, 0
    %v7476 = vsel %vm491, %v7127, 0
    %v7479 = vsel %vm491, %v7128, 0
    %v7482 = vsel %vm491, %v7145, 0
    %7484 = vmatprep.subr.bf16.mxu0 0
    %7485 = vmatpush1.bf16.xpose.msra.mxu0 %v7482
    %7486 = vmatprep.subr.bf16.mxu0 0
    %7487 = vmatpush1.bf16.xpose.msra.mxu0 0
    %7488 = vmatprep.subr.bf16.mxu0 0
    %7489 = vmatpush1.bf16.xpose.msra.mxu0 0
    %7490 = vmatprep.subr.bf16.mxu0 0
    %7491 = vmatpush1.bf16.xpose.msra.mxu0 0
    %7492 = vmatprep.subr.bf16.mxu0 0
    %7493 = vmatpush1.bf16.xpose.msra.mxu0 0
    %7494 = vmatprep.subr.bf16.mxu0 0
    %7495 = vmatpush1.bf16.xpose.msra.mxu0 0
    %7496 = vmatprep.subr.bf16.mxu0 0
    %7497 = vmatpush1.bf16.xpose.msra.mxu0 0
    %7498 = vmatprep.subr.bf16.mxu0 0
    %7499 = vmatpush1.bf16.xpose.msra.mxu0 0
    %7500 = vmatprep.subr.bf16.mxu0 0
    %7501 = vmatpush1.bf16.xpose.msra.mxu0 0
    %7502 = vmatprep.subr.bf16.mxu0 0
    %7503 = vmatpush1.bf16.xpose.msra.mxu0 0
    %7504 = vmatprep.subr.bf16.mxu0 0
    %7505 = vmatpush1.bf16.xpose.msra.mxu0 0
    %7506 = vmatprep.subr.bf16.mxu0 0
    %7507 = vmatpush1.bf16.xpose.msra.mxu0 0
    %7508 = vmatprep.subr.bf16.mxu0 0
    %7509 = vmatpush1.bf16.xpose.msra.mxu0 0
    %7510 = vmatprep.subr.bf16.mxu0 0
    %7511 = vmatpush1.bf16.xpose.msra.mxu0 0
    %7512 = vmatprep.subr.bf16.mxu0 0
    %7513 = vmatpush1.bf16.xpose.msra.mxu0 0
    %7514 = vmatprep.subr.bf16.mxu0 0
    %7515 = vmatpush1.bf16.xpose.msra.mxu0 0
    %7516 = vmatprep.mubr.bf16.mxu0 0
    %7517 = vmatmul.mubr.bf16.gmra.mrb[0].mxu0 %v7470
    %v7518 = vpop.f32.mrb[0].mxu0
    %v7519 = vadd.f32 0.0, %v7518
    %v7520 = vpop.f32.mrb[0].mxu0
    %v7521 = vpop.f32.mrb[0].mxu0
    %v7522 = vadd.f32 0.0, %v7521
    %v7523 = vpop.f32.mrb[0].mxu0
    %7524 = vmatprep.mubr.bf16.mxu0 0
    %7525 = vmatmul.mubr.bf16.gmra.mrb[0].mxu0 %v7473
    %v7526 = vpop.f32.mrb[0].mxu0
    %v7527 = vadd.f32 0.0, %v7526
    %v7528 = vpop.f32.mrb[0].mxu0
    %v7529 = vpop.f32.mrb[0].mxu0
    %v7530 = vadd.f32 0.0, %v7529
    %v7531 = vpop.f32.mrb[0].mxu0
    %7532 = vmatprep.mubr.bf16.mxu0 0
    %7533 = vmatmul.mubr.bf16.gmra.mrb[0].mxu0 %v7476
    %v7534 = vpop.f32.mrb[0].mxu0
    %v7535 = vadd.f32 0.0, %v7534
    %v7536 = vpop.f32.mrb[0].mxu0
    %v7537 = vpop.f32.mrb[0].mxu0
    %v7538 = vadd.f32 0.0, %v7537
    %v7539 = vpop.f32.mrb[0].mxu0
    %7540 = vmatprep.mubr.bf16.mxu0 0
    %7541 = vmatmul.mubr.bf16.gmra.mrb[0].mxu0 %v7479
    %v7542 = vpop.f32.mrb[0].mxu0
    %v7543 = vadd.f32 0.0, %v7542
    %v7544 = vpop.f32.mrb[0].mxu0
    %v7545 = vpop.f32.mrb[0].mxu0
    %v7546 = vadd.f32 0.0, %v7545
    %v7547 = vpop.f32.mrb[0].mxu0
    %7548 = vdwg.mxu0
    %v7550 = vsel %vm491, %v7129, 0
    %v7553 = vsel %vm491, %v7130, 0
    %v7556 = vsel %vm491, %v7131, 0
    %v7559 = vsel %vm491, %v7132, 0
    %v7562 = vsel %vm491, %v7146, 0
    %7564 = vmatprep.subr.bf16.mxu0 0
    %7565 = vmatpush1.bf16.xpose.msra.mxu0 %v7562
    %7566 = vmatprep.subr.bf16.mxu0 0
    %7567 = vmatpush1.bf16.xpose.msra.mxu0 0
    %7568 = vmatprep.subr.bf16.mxu0 0
    %7569 = vmatpush1.bf16.xpose.msra.mxu0 0
    %7570 = vmatprep.subr.bf16.mxu0 0
    %7571 = vmatpush1.bf16.xpose.msra.mxu0 0
    %7572 = vmatprep.subr.bf16.mxu0 0
    %7573 = vmatpush1.bf16.xpose.msra.mxu0 0
    %7574 = vmatprep.subr.bf16.mxu0 0
    %7575 = vmatpush1.bf16.xpose.msra.mxu0 0
    %7576 = vmatprep.subr.bf16.mxu0 0
    %7577 = vmatpush1.bf16.xpose.msra.mxu0 0
    %7578 = vmatprep.subr.bf16.mxu0 0
    %7579 = vmatpush1.bf16.xpose.msra.mxu0 0
    %7580 = vmatprep.subr.bf16.mxu0 0
    %7581 = vmatpush1.bf16.xpose.msra.mxu0 0
    %7582 = vmatprep.subr.bf16.mxu0 0
    %7583 = vmatpush1.bf16.xpose.msra.mxu0 0
    %7584 = vmatprep.subr.bf16.mxu0 0
    %7585 = vmatpush1.bf16.xpose.msra.mxu0 0
    %7586 = vmatprep.subr.bf16.mxu0 0
    %7587 = vmatpush1.bf16.xpose.msra.mxu0 0
    %7588 = vmatprep.subr.bf16.mxu0 0
    %7589 = vmatpush1.bf16.xpose.msra.mxu0 0
    %7590 = vmatprep.subr.bf16.mxu0 0
    %7591 = vmatpush1.bf16.xpose.msra.mxu0 0
    %7592 = vmatprep.subr.bf16.mxu0 0
    %7593 = vmatpush1.bf16.xpose.msra.mxu0 0
    %7594 = vmatprep.subr.bf16.mxu0 0
    %7595 = vmatpush1.bf16.xpose.msra.mxu0 0
    %7596 = vmatprep.mubr.bf16.mxu0 0
    %7597 = vmatmul.mubr.bf16.gmra.mrb[0].mxu0 %v7550
    %v7598 = vpop.f32.mrb[0].mxu0
    %v7599 = vadd.f32 0.0, %v7598
    %v7600 = vpop.f32.mrb[0].mxu0
    %v7601 = vpop.f32.mrb[0].mxu0
    %v7602 = vadd.f32 0.0, %v7601
    %v7603 = vpop.f32.mrb[0].mxu0
    %7604 = vmatprep.mubr.bf16.mxu0 0
    %7605 = vmatmul.mubr.bf16.gmra.mrb[0].mxu0 %v7553
    %v7606 = vpop.f32.mrb[0].mxu0
    %v7607 = vadd.f32 0.0, %v7606
    %v7608 = vpop.f32.mrb[0].mxu0
    %v7609 = vpop.f32.mrb[0].mxu0
    %v7610 = vadd.f32 0.0, %v7609
    %v7611 = vpop.f32.mrb[0].mxu0
    %7612 = vmatprep.mubr.bf16.mxu0 0
    %7613 = vmatmul.mubr.bf16.gmra.mrb[0].mxu0 %v7556
    %v7614 = vpop.f32.mrb[0].mxu0
    %v7615 = vadd.f32 0.0, %v7614
    %v7616 = vpop.f32.mrb[0].mxu0
    %v7617 = vpop.f32.mrb[0].mxu0
    %v7618 = vadd.f32 0.0, %v7617
    %v7619 = vpop.f32.mrb[0].mxu0
    %7620 = vmatprep.mubr.bf16.mxu0 0
    %7621 = vmatmul.mubr.bf16.gmra.mrb[0].mxu0 %v7559
    %v7622 = vpop.f32.mrb[0].mxu0
    %v7623 = vadd.f32 0.0, %v7622
    %v7624 = vpop.f32.mrb[0].mxu0
    %v7625 = vpop.f32.mrb[0].mxu0
    %v7626 = vadd.f32 0.0, %v7625
    %v7627 = vpop.f32.mrb[0].mxu0
    %7628 = vdwg.mxu0
    %v7630 = vsel %vm491, %v7133, 0
    %v7633 = vsel %vm491, %v7134, 0
    %v7636 = vsel %vm491, %v7135, 0
    %v7639 = vsel %vm491, %v7136, 0
    %v7642 = vsel %vm491, %v7147, 0
    %7644 = vmatprep.subr.bf16.mxu0 0
    %7645 = vmatpush1.bf16.xpose.msra.mxu0 %v7642
    %7646 = vmatprep.subr.bf16.mxu0 0
    %7647 = vmatpush1.bf16.xpose.msra.mxu0 0
    %7648 = vmatprep.subr.bf16.mxu0 0
    %7649 = vmatpush1.bf16.xpose.msra.mxu0 0
    %7650 = vmatprep.subr.bf16.mxu0 0
    %7651 = vmatpush1.bf16.xpose.msra.mxu0 0
    %7652 = vmatprep.subr.bf16.mxu0 0
    %7653 = vmatpush1.bf16.xpose.msra.mxu0 0
    %7654 = vmatprep.subr.bf16.mxu0 0
    %7655 = vmatpush1.bf16.xpose.msra.mxu0 0
    %7656 = vmatprep.subr.bf16.mxu0 0
    %7657 = vmatpush1.bf16.xpose.msra.mxu0 0
    %7658 = vmatprep.subr.bf16.mxu0 0
    %7659 = vmatpush1.bf16.xpose.msra.mxu0 0
    %7660 = vmatprep.subr.bf16.mxu0 0
    %7661 = vmatpush1.bf16.xpose.msra.mxu0 0
    %7662 = vmatprep.subr.bf16.mxu0 0
    %7663 = vmatpush1.bf16.xpose.msra.mxu0 0
    %7664 = vmatprep.subr.bf16.mxu0 0
    %7665 = vmatpush1.bf16.xpose.msra.mxu0 0
    %7666 = vmatprep.subr.bf16.mxu0 0
    %7667 = vmatpush1.bf16.xpose.msra.mxu0 0
    %7668 = vmatprep.subr.bf16.mxu0 0
    %7669 = vmatpush1.bf16.xpose.msra.mxu0 0
    %7670 = vmatprep.subr.bf16.mxu0 0
    %7671 = vmatpush1.bf16.xpose.msra.mxu0 0
    %7672 = vmatprep.subr.bf16.mxu0 0
    %7673 = vmatpush1.bf16.xpose.msra.mxu0 0
    %7674 = vmatprep.subr.bf16.mxu0 0
    %7675 = vmatpush1.bf16.xpose.msra.mxu0 0
    %7676 = vmatprep.mubr.bf16.mxu0 0
    %7677 = vmatmul.mubr.bf16.gmra.mrb[0].mxu0 %v7630
    %v7678 = vpop.f32.mrb[0].mxu0
    %v7679 = vadd.f32 0.0, %v7678
    %v7680 = vpop.f32.mrb[0].mxu0
    %v7681 = vpop.f32.mrb[0].mxu0
    %v7682 = vadd.f32 0.0, %v7681
    %v7683 = vpop.f32.mrb[0].mxu0
    %7684 = vmatprep.mubr.bf16.mxu0 0
    %7685 = vmatmul.mubr.bf16.gmra.mrb[0].mxu0 %v7633
    %v7686 = vpop.f32.mrb[0].mxu0
    %v7687 = vadd.f32 0.0, %v7686
    %v7688 = vpop.f32.mrb[0].mxu0
    %v7689 = vpop.f32.mrb[0].mxu0
    %v7690 = vadd.f32 0.0, %v7689
    %v7691 = vpop.f32.mrb[0].mxu0
    %7692 = vmatprep.mubr.bf16.mxu0 0
    %7693 = vmatmul.mubr.bf16.gmra.mrb[0].mxu0 %v7636
    %v7694 = vpop.f32.mrb[0].mxu0
    %v7695 = vadd.f32 0.0, %v7694
    %v7696 = vpop.f32.mrb[0].mxu0
    %v7697 = vpop.f32.mrb[0].mxu0
    %v7698 = vadd.f32 0.0, %v7697
    %v7699 = vpop.f32.mrb[0].mxu0
    %7700 = vmatprep.mubr.bf16.mxu0 0
    %7701 = vmatmul.mubr.bf16.gmra.mrb[0].mxu0 %v7639
    %v7702 = vpop.f32.mrb[0].mxu0
    %v7703 = vadd.f32 0.0, %v7702
    %v7704 = vpop.f32.mrb[0].mxu0
    %v7705 = vpop.f32.mrb[0].mxu0
    %v7706 = vadd.f32 0.0, %v7705
    %v7707 = vpop.f32.mrb[0].mxu0
    %7708 = vdwg.mxu0
    %v7710 = vsel %vm491, %v7137, 0
    %v7713 = vsel %vm491, %v7138, 0
    %v7716 = vsel %vm491, %v7139, 0
    %v7719 = vsel %vm491, %v7140, 0
    %v7722 = vsel %vm491, %v7148, 0
    %7724 = vmatprep.subr.bf16.mxu0 0
    %7725 = vmatpush1.bf16.xpose.msra.mxu0 %v7722
    %7726 = vmatprep.subr.bf16.mxu0 0
    %7727 = vmatpush1.bf16.xpose.msra.mxu0 0
    %7728 = vmatprep.subr.bf16.mxu0 0
    %7729 = vmatpush1.bf16.xpose.msra.mxu0 0
    %7730 = vmatprep.subr.bf16.mxu0 0
    %7731 = vmatpush1.bf16.xpose.msra.mxu0 0
    %7732 = vmatprep.subr.bf16.mxu0 0
    %7733 = vmatpush1.bf16.xpose.msra.mxu0 0
    %7734 = vmatprep.subr.bf16.mxu0 0
    %7735 = vmatpush1.bf16.xpose.msra.mxu0 0
    %7736 = vmatprep.subr.bf16.mxu0 0
    %7737 = vmatpush1.bf16.xpose.msra.mxu0 0
    %7738 = vmatprep.subr.bf16.mxu0 0
    %7739 = vmatpush1.bf16.xpose.msra.mxu0 0
    %7740 = vmatprep.subr.bf16.mxu0 0
    %7741 = vmatpush1.bf16.xpose.msra.mxu0 0
    %7742 = vmatprep.subr.bf16.mxu0 0
    %7743 = vmatpush1.bf16.xpose.msra.mxu0 0
    %7744 = vmatprep.subr.bf16.mxu0 0
    %7745 = vmatpush1.bf16.xpose.msra.mxu0 0
    %7746 = vmatprep.subr.bf16.mxu0 0
    %7747 = vmatpush1.bf16.xpose.msra.mxu0 0
    %7748 = vmatprep.subr.bf16.mxu0 0
    %7749 = vmatpush1.bf16.xpose.msra.mxu0 0
    %7750 = vmatprep.subr.bf16.mxu0 0
    %7751 = vmatpush1.bf16.xpose.msra.mxu0 0
    %7752 = vmatprep.subr.bf16.mxu0 0
    %7753 = vmatpush1.bf16.xpose.msra.mxu0 0
    %7754 = vmatprep.subr.bf16.mxu0 0
    %7755 = vmatpush1.bf16.xpose.msra.mxu0 0
    %7756 = vmatprep.mubr.bf16.mxu0 0
    %7757 = vmatmul.mubr.bf16.gmra.mrb[0].mxu0 %v7710
    %v7758 = vpop.f32.mrb[0].mxu0
    %v7759 = vadd.f32 0.0, %v7758
    %v7760 = vpop.f32.mrb[0].mxu0
    %v7761 = vpop.f32.mrb[0].mxu0
    %v7762 = vadd.f32 0.0, %v7761
    %v7763 = vpop.f32.mrb[0].mxu0
    %7764 = vmatprep.mubr.bf16.mxu0 0
    %7765 = vmatmul.mubr.bf16.gmra.mrb[0].mxu0 %v7713
    %v7766 = vpop.f32.mrb[0].mxu0
    %v7767 = vadd.f32 0.0, %v7766
    %v7768 = vpop.f32.mrb[0].mxu0
    %v7769 = vpop.f32.mrb[0].mxu0
    %v7770 = vadd.f32 0.0, %v7769
    %v7771 = vpop.f32.mrb[0].mxu0
    %7772 = vmatprep.mubr.bf16.mxu0 0
    %7773 = vmatmul.mubr.bf16.gmra.mrb[0].mxu0 %v7716
    %v7774 = vpop.f32.mrb[0].mxu0
    %v7775 = vadd.f32 0.0, %v7774
    %v7776 = vpop.f32.mrb[0].mxu0
    %v7777 = vpop.f32.mrb[0].mxu0
    %v7778 = vadd.f32 0.0, %v7777
    %v7779 = vpop.f32.mrb[0].mxu0
    %7780 = vmatprep.mubr.bf16.mxu0 0
    %7781 = vmatmul.mubr.bf16.gmra.mrb[0].mxu0 %v7719
    %v7782 = vpop.f32.mrb[0].mxu0
    %v7783 = vadd.f32 0.0, %v7782
    %v7784 = vpop.f32.mrb[0].mxu0
    %v7785 = vpop.f32.mrb[0].mxu0
    %v7786 = vadd.f32 0.0, %v7785
    %v7787 = vpop.f32.mrb[0].mxu0
    %7788 = vdwg.mxu0
    %v7789 = vsel %vm889, %v7199, -inf
    %7790 = vmax.xlane.f32.xlu0 %v7789
    %v7791 = vpop.xlane.xlu0 %7790
    %v7792 = vsel %vm889, %v7202, -inf
    %7793 = vmax.xlane.f32.xlu0 %v7792
    %v7794 = vpop.xlane.xlu0 %7793
    %v7795 = vsel %vm889, %v7207, -inf
    %7796 = vmax.xlane.f32.xlu0 %v7795
    %v7797 = vpop.xlane.xlu0 %7796
    %v7798 = vsel %vm889, %v7210, -inf
    %7799 = vmax.xlane.f32.xlu0 %v7798
    %v7800 = vpop.xlane.xlu0 %7799
    %v7801 = vsel %vm889, %v7215, -inf
    %7802 = vmax.xlane.f32.xlu0 %v7801
    %v7803 = vpop.xlane.xlu0 %7802
    %v7804 = vsel %vm889, %v7218, -inf
    %7805 = vmax.xlane.f32.xlu0 %v7804
    %v7806 = vpop.xlane.xlu0 %7805
    %v7807 = vsel %vm889, %v7223, -inf
    %7808 = vmax.xlane.f32.xlu0 %v7807
    %v7809 = vpop.xlane.xlu0 %7808
    %v7810 = vsel %vm889, %v7226, -inf
    %7811 = vmax.xlane.f32.xlu0 %v7810
    %v7812 = vpop.xlane.xlu0 %7811
    %v7813 = vsel %vm889, %v7279, -inf
    %7814 = vmax.xlane.f32.xlu0 %v7813
    %v7815 = vpop.xlane.xlu0 %7814
    %v7816 = vsel %vm889, %v7282, -inf
    %7817 = vmax.xlane.f32.xlu0 %v7816
    %v7818 = vpop.xlane.xlu0 %7817
    %v7819 = vsel %vm889, %v7287, -inf
    %7820 = vmax.xlane.f32.xlu0 %v7819
    %v7821 = vpop.xlane.xlu0 %7820
    %v7822 = vsel %vm889, %v7290, -inf
    %7823 = vmax.xlane.f32.xlu0 %v7822
    %v7824 = vpop.xlane.xlu0 %7823
    %v7825 = vsel %vm889, %v7295, -inf
    %7826 = vmax.xlane.f32.xlu0 %v7825
    %v7827 = vpop.xlane.xlu0 %7826
    %v7828 = vsel %vm889, %v7298, -inf
    %7829 = vmax.xlane.f32.xlu0 %v7828
    %v7830 = vpop.xlane.xlu0 %7829
    %v7831 = vsel %vm889, %v7303, -inf
    %7832 = vmax.xlane.f32.xlu0 %v7831
    %v7833 = vpop.xlane.xlu0 %7832
    %v7834 = vsel %vm889, %v7306, -inf
    %7835 = vmax.xlane.f32.xlu0 %v7834
    %v7836 = vpop.xlane.xlu0 %7835
    %v7837 = vsel %vm889, %v7359, -inf
    %7838 = vmax.xlane.f32.xlu0 %v7837
    %v7839 = vpop.xlane.xlu0 %7838
    %v7840 = vsel %vm889, %v7362, -inf
    %7841 = vmax.xlane.f32.xlu0 %v7840
    %v7842 = vpop.xlane.xlu0 %7841
    %v7843 = vsel %vm889, %v7367, -inf
    %7844 = vmax.xlane.f32.xlu0 %v7843
    %v7845 = vpop.xlane.xlu0 %7844
    %v7846 = vsel %vm889, %v7370, -inf
    %7847 = vmax.xlane.f32.xlu0 %v7846
    %v7848 = vpop.xlane.xlu0 %7847
    %v7849 = vsel %vm889, %v7375, -inf
    %7850 = vmax.xlane.f32.xlu0 %v7849
    %v7851 = vpop.xlane.xlu0 %7850
    %v7852 = vsel %vm889, %v7378, -inf
    %7853 = vmax.xlane.f32.xlu0 %v7852
    %v7854 = vpop.xlane.xlu0 %7853
    %v7855 = vsel %vm889, %v7383, -inf
    %7856 = vmax.xlane.f32.xlu0 %v7855
    %v7857 = vpop.xlane.xlu0 %7856
    %v7858 = vsel %vm889, %v7386, -inf
    %7859 = vmax.xlane.f32.xlu0 %v7858
    %v7860 = vpop.xlane.xlu0 %7859
    %v7861 = vsel %vm889, %v7439, -inf
    %7862 = vmax.xlane.f32.xlu0 %v7861
    %v7863 = vpop.xlane.xlu0 %7862
    %v7864 = vsel %vm889, %v7442, -inf
    %7865 = vmax.xlane.f32.xlu0 %v7864
    %v7866 = vpop.xlane.xlu0 %7865
    %v7867 = vsel %vm889, %v7447, -inf
    %7868 = vmax.xlane.f32.xlu0 %v7867
    %v7869 = vpop.xlane.xlu0 %7868
    %v7870 = vsel %vm889, %v7450, -inf
    %7871 = vmax.xlane.f32.xlu0 %v7870
    %v7872 = vpop.xlane.xlu0 %7871
    %v7873 = vsel %vm889, %v7455, -inf
    %7874 = vmax.xlane.f32.xlu0 %v7873
    %v7875 = vpop.xlane.xlu0 %7874
    %v7876 = vsel %vm889, %v7458, -inf
    %7877 = vmax.xlane.f32.xlu0 %v7876
    %v7878 = vpop.xlane.xlu0 %7877
    %v7879 = vsel %vm889, %v7463, -inf
    %7880 = vmax.xlane.f32.xlu0 %v7879
    %v7881 = vpop.xlane.xlu0 %7880
    %v7882 = vsel %vm889, %v7466, -inf
    %7883 = vmax.xlane.f32.xlu0 %v7882
    %v7884 = vpop.xlane.xlu0 %7883
    %v7885 = vsel %vm889, %v7519, -inf
    %7886 = vmax.xlane.f32.xlu0 %v7885
    %v7887 = vpop.xlane.xlu0 %7886
    %v7888 = vsel %vm889, %v7522, -inf
    %7889 = vmax.xlane.f32.xlu0 %v7888
    %v7890 = vpop.xlane.xlu0 %7889
    %v7891 = vsel %vm889, %v7527, -inf
    %7892 = vmax.xlane.f32.xlu0 %v7891
    %v7893 = vpop.xlane.xlu0 %7892
    %v7894 = vsel %vm889, %v7530, -inf
    %7895 = vmax.xlane.f32.xlu0 %v7894
    %v7896 = vpop.xlane.xlu0 %7895
    %v7897 = vsel %vm889, %v7535, -inf
    %7898 = vmax.xlane.f32.xlu0 %v7897
    %v7899 = vpop.xlane.xlu0 %7898
    %v7900 = vsel %vm889, %v7538, -inf
    %7901 = vmax.xlane.f32.xlu0 %v7900
    %v7902 = vpop.xlane.xlu0 %7901
    %v7903 = vsel %vm889, %v7543, -inf
    %7904 = vmax.xlane.f32.xlu0 %v7903
    %v7905 = vpop.xlane.xlu0 %7904
    %v7906 = vsel %vm889, %v7546, -inf
    %7907 = vmax.xlane.f32.xlu0 %v7906
    %v7908 = vpop.xlane.xlu0 %7907
    %v7909 = vsel %vm889, %v7599, -inf
    %7910 = vmax.xlane.f32.xlu0 %v7909
    %v7911 = vpop.xlane.xlu0 %7910
    %v7912 = vsel %vm889, %v7602, -inf
    %7913 = vmax.xlane.f32.xlu0 %v7912
    %v7914 = vpop.xlane.xlu0 %7913
    %v7915 = vsel %vm889, %v7607, -inf
    %7916 = vmax.xlane.f32.xlu0 %v7915
    %v7917 = vpop.xlane.xlu0 %7916
    %v7918 = vsel %vm889, %v7610, -inf
    %7919 = vmax.xlane.f32.xlu0 %v7918
    %v7920 = vpop.xlane.xlu0 %7919
    %v7921 = vsel %vm889, %v7615, -inf
    %7922 = vmax.xlane.f32.xlu0 %v7921
    %v7923 = vpop.xlane.xlu0 %7922
    %v7924 = vsel %vm889, %v7618, -inf
    %7925 = vmax.xlane.f32.xlu0 %v7924
    %v7926 = vpop.xlane.xlu0 %7925
    %v7927 = vsel %vm889, %v7623, -inf
    %7928 = vmax.xlane.f32.xlu0 %v7927
    %v7929 = vpop.xlane.xlu0 %7928
    %v7930 = vsel %vm889, %v7626, -inf
    %7931 = vmax.xlane.f32.xlu0 %v7930
    %v7932 = vpop.xlane.xlu0 %7931
    %v7933 = vsel %vm889, %v7679, -inf
    %7934 = vmax.xlane.f32.xlu0 %v7933
    %v7935 = vpop.xlane.xlu0 %7934
    %v7936 = vsel %vm889, %v7682, -inf
    %7937 = vmax.xlane.f32.xlu0 %v7936
    %v7938 = vpop.xlane.xlu0 %7937
    %v7939 = vsel %vm889, %v7687, -inf
    %7940 = vmax.xlane.f32.xlu0 %v7939
    %v7941 = vpop.xlane.xlu0 %7940
    %v7942 = vsel %vm889, %v7690, -inf
    %7943 = vmax.xlane.f32.xlu0 %v7942
    %v7944 = vpop.xlane.xlu0 %7943
    %v7945 = vsel %vm889, %v7695, -inf
    %7946 = vmax.xlane.f32.xlu0 %v7945
    %v7947 = vpop.xlane.xlu0 %7946
    %v7948 = vsel %vm889, %v7698, -inf
    %7949 = vmax.xlane.f32.xlu0 %v7948
    %v7950 = vpop.xlane.xlu0 %7949
    %v7951 = vsel %vm889, %v7703, -inf
    %7952 = vmax.xlane.f32.xlu0 %v7951
    %v7953 = vpop.xlane.xlu0 %7952
    %v7954 = vsel %vm889, %v7706, -inf
    %7955 = vmax.xlane.f32.xlu0 %v7954
    %v7956 = vpop.xlane.xlu0 %7955
    %v7957 = vsel %vm889, %v7759, -inf
    %7958 = vmax.xlane.f32.xlu0 %v7957
    %v7959 = vpop.xlane.xlu0 %7958
    %v7960 = vsel %vm889, %v7762, -inf
    %7961 = vmax.xlane.f32.xlu0 %v7960
    %v7962 = vpop.xlane.xlu0 %7961
    %v7963 = vsel %vm889, %v7767, -inf
    %7964 = vmax.xlane.f32.xlu0 %v7963
    %v7965 = vpop.xlane.xlu0 %7964
    %v7966 = vsel %vm889, %v7770, -inf
    %7967 = vmax.xlane.f32.xlu0 %v7966
    %v7968 = vpop.xlane.xlu0 %7967
    %v7969 = vsel %vm889, %v7775, -inf
    %7970 = vmax.xlane.f32.xlu0 %v7969
    %v7971 = vpop.xlane.xlu0 %7970
    %v7972 = vsel %vm889, %v7778, -inf
    %7973 = vmax.xlane.f32.xlu0 %v7972
    %v7974 = vpop.xlane.xlu0 %7973
    %v7975 = vsel %vm889, %v7783, -inf
    %7976 = vmax.xlane.f32.xlu0 %v7975
    %v7977 = vpop.xlane.xlu0 %7976
    %v7978 = vsel %vm889, %v7786, -inf
    %7979 = vmax.xlane.f32.xlu0 %v7978
    %v7980 = vpop.xlane.xlu0 %7979
    %v7981 = vsub.f32 %v7199, %v7791
    %v7982 = vsub.f32 %v7202, %v7794
    %v7983 = vsub.f32 %v7207, %v7797
    %v7984 = vsub.f32 %v7210, %v7800
    %v7985 = vsub.f32 %v7215, %v7803
    %v7986 = vsub.f32 %v7218, %v7806
    %v7987 = vsub.f32 %v7223, %v7809
    %v7988 = vsub.f32 %v7226, %v7812
    %v7989 = vsub.f32 %v7279, %v7815
    %v7990 = vsub.f32 %v7282, %v7818
    %v7991 = vsub.f32 %v7287, %v7821
    %v7992 = vsub.f32 %v7290, %v7824
    %v7993 = vsub.f32 %v7295, %v7827
    %v7994 = vsub.f32 %v7298, %v7830
    %v7995 = vsub.f32 %v7303, %v7833
    %v7996 = vsub.f32 %v7306, %v7836
    %v7997 = vsub.f32 %v7359, %v7839
    %v7998 = vsub.f32 %v7362, %v7842
    %v7999 = vsub.f32 %v7367, %v7845
    %v8000 = vsub.f32 %v7370, %v7848
    %v8001 = vsub.f32 %v7375, %v7851
    %v8002 = vsub.f32 %v7378, %v7854
    %v8003 = vsub.f32 %v7383, %v7857
    %v8004 = vsub.f32 %v7386, %v7860
    %v8005 = vsub.f32 %v7439, %v7863
    %v8006 = vsub.f32 %v7442, %v7866
    %v8007 = vsub.f32 %v7447, %v7869
    %v8008 = vsub.f32 %v7450, %v7872
    %v8009 = vsub.f32 %v7455, %v7875
    %v8010 = vsub.f32 %v7458, %v7878
    %v8011 = vsub.f32 %v7463, %v7881
    %v8012 = vsub.f32 %v7466, %v7884
    %v8013 = vsub.f32 %v7519, %v7887
    %v8014 = vsub.f32 %v7522, %v7890
    %v8015 = vsub.f32 %v7527, %v7893
    %v8016 = vsub.f32 %v7530, %v7896
    %v8017 = vsub.f32 %v7535, %v7899
    %v8018 = vsub.f32 %v7538, %v7902
    %v8019 = vsub.f32 %v7543, %v7905
    %v8020 = vsub.f32 %v7546, %v7908
    %v8021 = vsub.f32 %v7599, %v7911
    %v8022 = vsub.f32 %v7602, %v7914
    %v8023 = vsub.f32 %v7607, %v7917
    %v8024 = vsub.f32 %v7610, %v7920
    %v8025 = vsub.f32 %v7615, %v7923
    %v8026 = vsub.f32 %v7618, %v7926
    %v8027 = vsub.f32 %v7623, %v7929
    %v8028 = vsub.f32 %v7626, %v7932
    %v8029 = vsub.f32 %v7679, %v7935
    %v8030 = vsub.f32 %v7682, %v7938
    %v8031 = vsub.f32 %v7687, %v7941
    %v8032 = vsub.f32 %v7690, %v7944
    %v8033 = vsub.f32 %v7695, %v7947
    %v8034 = vsub.f32 %v7698, %v7950
    %v8035 = vsub.f32 %v7703, %v7953
    %v8036 = vsub.f32 %v7706, %v7956
    %v8037 = vsub.f32 %v7759, %v7959
    %v8038 = vsub.f32 %v7762, %v7962
    %v8039 = vsub.f32 %v7767, %v7965
    %v8040 = vsub.f32 %v7770, %v7968
    %v8041 = vsub.f32 %v7775, %v7971
    %v8042 = vsub.f32 %v7778, %v7974
    %v8043 = vsub.f32 %v7783, %v7977
    %v8044 = vsub.f32 %v7786, %v7980
    %v8045 = vmul.f32 %v7981, 1.442695
    %v8046 = vpow.pop %v8045
    %v8047 = vmul.f32 %v7982, 1.442695
    %v8048 = vpow.pop %v8047
    %v8049 = vmul.f32 %v7983, 1.442695
    %v8050 = vpow.pop %v8049
    %v8051 = vmul.f32 %v7984, 1.442695
    %v8052 = vpow.pop %v8051
    %v8053 = vmul.f32 %v7985, 1.442695
    %v8054 = vpow.pop %v8053
    %v8055 = vmul.f32 %v7986, 1.442695
    %v8056 = vpow.pop %v8055
    %v8057 = vmul.f32 %v7987, 1.442695
    %v8058 = vpow.pop %v8057
    %v8059 = vmul.f32 %v7988, 1.442695
    %v8060 = vpow.pop %v8059
    %v8061 = vmul.f32 %v7989, 1.442695
    %v8062 = vpow.pop %v8061
    %v8063 = vmul.f32 %v7990, 1.442695
    %v8064 = vpow.pop %v8063
    %v8065 = vmul.f32 %v7991, 1.442695
    %v8066 = vpow.pop %v8065
    %v8067 = vmul.f32 %v7992, 1.442695
    %v8068 = vpow.pop %v8067
    %v8069 = vmul.f32 %v7993, 1.442695
    %v8070 = vpow.pop %v8069
    %v8071 = vmul.f32 %v7994, 1.442695
    %v8072 = vpow.pop %v8071
    %v8073 = vmul.f32 %v7995, 1.442695
    %v8074 = vpow.pop %v8073
    %v8075 = vmul.f32 %v7996, 1.442695
    %v8076 = vpow.pop %v8075
    %v8077 = vmul.f32 %v7997, 1.442695
    %v8078 = vpow.pop %v8077
    %v8079 = vmul.f32 %v7998, 1.442695
    %v8080 = vpow.pop %v8079
    %v8081 = vmul.f32 %v7999, 1.442695
    %v8082 = vpow.pop %v8081
    %v8083 = vmul.f32 %v8000, 1.442695
    %v8084 = vpow.pop %v8083
    %v8085 = vmul.f32 %v8001, 1.442695
    %v8086 = vpow.pop %v8085
    %v8087 = vmul.f32 %v8002, 1.442695
    %v8088 = vpow.pop %v8087
    %v8089 = vmul.f32 %v8003, 1.442695
    %v8090 = vpow.pop %v8089
    %v8091 = vmul.f32 %v8004, 1.442695
    %v8092 = vpow.pop %v8091
    %v8093 = vmul.f32 %v8005, 1.442695
    %v8094 = vpow.pop %v8093
    %v8095 = vmul.f32 %v8006, 1.442695
    %v8096 = vpow.pop %v8095
    %v8097 = vmul.f32 %v8007, 1.442695
    %v8098 = vpow.pop %v8097
    %v8099 = vmul.f32 %v8008, 1.442695
    %v8100 = vpow.pop %v8099
    %v8101 = vmul.f32 %v8009, 1.442695
    %v8102 = vpow.pop %v8101
    %v8103 = vmul.f32 %v8010, 1.442695
    %v8104 = vpow.pop %v8103
    %v8105 = vmul.f32 %v8011, 1.442695
    %v8106 = vpow.pop %v8105
    %v8107 = vmul.f32 %v8012, 1.442695
    %v8108 = vpow.pop %v8107
    %v8109 = vmul.f32 %v8013, 1.442695
    %v8110 = vpow.pop %v8109
    %v8111 = vmul.f32 %v8014, 1.442695
    %v8112 = vpow.pop %v8111
    %v8113 = vmul.f32 %v8015, 1.442695
    %v8114 = vpow.pop %v8113
    %v8115 = vmul.f32 %v8016, 1.442695
    %v8116 = vpow.pop %v8115
    %v8117 = vmul.f32 %v8017, 1.442695
    %v8118 = vpow.pop %v8117
    %v8119 = vmul.f32 %v8018, 1.442695
    %v8120 = vpow.pop %v8119
    %v8121 = vmul.f32 %v8019, 1.442695
    %v8122 = vpow.pop %v8121
    %v8123 = vmul.f32 %v8020, 1.442695
    %v8124 = vpow.pop %v8123
    %v8125 = vmul.f32 %v8021, 1.442695
    %v8126 = vpow.pop %v8125
    %v8127 = vmul.f32 %v8022, 1.442695
    %v8128 = vpow.pop %v8127
    %v8129 = vmul.f32 %v8023, 1.442695
    %v8130 = vpow.pop %v8129
    %v8131 = vmul.f32 %v8024, 1.442695
    %v8132 = vpow.pop %v8131
    %v8133 = vmul.f32 %v8025, 1.442695
    %v8134 = vpow.pop %v8133
    %v8135 = vmul.f32 %v8026, 1.442695
    %v8136 = vpow.pop %v8135
    %v8137 = vmul.f32 %v8027, 1.442695
    %v8138 = vpow.pop %v8137
    %v8139 = vmul.f32 %v8028, 1.442695
    %v8140 = vpow.pop %v8139
    %v8141 = vmul.f32 %v8029, 1.442695
    %v8142 = vpow.pop %v8141
    %v8143 = vmul.f32 %v8030, 1.442695
    %v8144 = vpow.pop %v8143
    %v8145 = vmul.f32 %v8031, 1.442695
    %v8146 = vpow.pop %v8145
    %v8147 = vmul.f32 %v8032, 1.442695
    %v8148 = vpow.pop %v8147
    %v8149 = vmul.f32 %v8033, 1.442695
    %v8150 = vpow.pop %v8149
    %v8151 = vmul.f32 %v8034, 1.442695
    %v8152 = vpow.pop %v8151
    %v8153 = vmul.f32 %v8035, 1.442695
    %v8154 = vpow.pop %v8153
    %v8155 = vmul.f32 %v8036, 1.442695
    %v8156 = vpow.pop %v8155
    %v8157 = vmul.f32 %v8037, 1.442695
    %v8158 = vpow.pop %v8157
    %v8159 = vmul.f32 %v8038, 1.442695
    %v8160 = vpow.pop %v8159
    %v8161 = vmul.f32 %v8039, 1.442695
    %v8162 = vpow.pop %v8161
    %v8163 = vmul.f32 %v8040, 1.442695
    %v8164 = vpow.pop %v8163
    %v8165 = vmul.f32 %v8041, 1.442695
    %v8166 = vpow.pop %v8165
    %v8167 = vmul.f32 %v8042, 1.442695
    %v8168 = vpow.pop %v8167
    %v8169 = vmul.f32 %v8043, 1.442695
    %v8170 = vpow.pop %v8169
    %v8171 = vmul.f32 %v8044, 1.442695
    %v8172 = vpow.pop %v8171
    %v8173 = vsel %vm889, %v8046, 0.0
    %8174 = vadd.xlane.f32.xlu0 %v8173
    %v8175 = vpop.xlane.xlu0 %8174
    %v8176 = vsel %vm889, %v8048, 0.0
    %8177 = vadd.xlane.f32.xlu0 %v8176
    %v8178 = vpop.xlane.xlu0 %8177
    %v8179 = vsel %vm889, %v8050, 0.0
    %8180 = vadd.xlane.f32.xlu0 %v8179
    %v8181 = vpop.xlane.xlu0 %8180
    %v8182 = vsel %vm889, %v8052, 0.0
    %8183 = vadd.xlane.f32.xlu0 %v8182
    %v8184 = vpop.xlane.xlu0 %8183
    %v8185 = vsel %vm889, %v8054, 0.0
    %8186 = vadd.xlane.f32.xlu0 %v8185
    %v8187 = vpop.xlane.xlu0 %8186
    %v8188 = vsel %vm889, %v8056, 0.0
    %8189 = vadd.xlane.f32.xlu0 %v8188
    %v8190 = vpop.xlane.xlu0 %8189
    %v8191 = vsel %vm889, %v8058, 0.0
    %8192 = vadd.xlane.f32.xlu0 %v8191
    %v8193 = vpop.xlane.xlu0 %8192
    %v8194 = vsel %vm889, %v8060, 0.0
    %8195 = vadd.xlane.f32.xlu0 %v8194
    %v8196 = vpop.xlane.xlu0 %8195
    %v8197 = vsel %vm889, %v8062, 0.0
    %8198 = vadd.xlane.f32.xlu0 %v8197
    %v8199 = vpop.xlane.xlu0 %8198
    %v8200 = vsel %vm889, %v8064, 0.0
    %8201 = vadd.xlane.f32.xlu0 %v8200
    %v8202 = vpop.xlane.xlu0 %8201
    %v8203 = vsel %vm889, %v8066, 0.0
    %8204 = vadd.xlane.f32.xlu0 %v8203
    %v8205 = vpop.xlane.xlu0 %8204
    %v8206 = vsel %vm889, %v8068, 0.0
    %8207 = vadd.xlane.f32.xlu0 %v8206
    %v8208 = vpop.xlane.xlu0 %8207
    %v8209 = vsel %vm889, %v8070, 0.0
    %8210 = vadd.xlane.f32.xlu0 %v8209
    %v8211 = vpop.xlane.xlu0 %8210
    %v8212 = vsel %vm889, %v8072, 0.0
    %8213 = vadd.xlane.f32.xlu0 %v8212
    %v8214 = vpop.xlane.xlu0 %8213
    %v8215 = vsel %vm889, %v8074, 0.0
    %8216 = vadd.xlane.f32.xlu0 %v8215
    %v8217 = vpop.xlane.xlu0 %8216
    %v8218 = vsel %vm889, %v8076, 0.0
    %8219 = vadd.xlane.f32.xlu0 %v8218
    %v8220 = vpop.xlane.xlu0 %8219
    %v8221 = vsel %vm889, %v8078, 0.0
    %8222 = vadd.xlane.f32.xlu0 %v8221
    %v8223 = vpop.xlane.xlu0 %8222
    %v8224 = vsel %vm889, %v8080, 0.0
    %8225 = vadd.xlane.f32.xlu0 %v8224
    %v8226 = vpop.xlane.xlu0 %8225
    %v8227 = vsel %vm889, %v8082, 0.0
    %8228 = vadd.xlane.f32.xlu0 %v8227
    %v8229 = vpop.xlane.xlu0 %8228
    %v8230 = vsel %vm889, %v8084, 0.0
    %8231 = vadd.xlane.f32.xlu0 %v8230
    %v8232 = vpop.xlane.xlu0 %8231
    %v8233 = vsel %vm889, %v8086, 0.0
    %8234 = vadd.xlane.f32.xlu0 %v8233
    %v8235 = vpop.xlane.xlu0 %8234
    %v8236 = vsel %vm889, %v8088, 0.0
    %8237 = vadd.xlane.f32.xlu0 %v8236
    %v8238 = vpop.xlane.xlu0 %8237
    %v8239 = vsel %vm889, %v8090, 0.0
    %8240 = vadd.xlane.f32.xlu0 %v8239
    %v8241 = vpop.xlane.xlu0 %8240
    %v8242 = vsel %vm889, %v8092, 0.0
    %8243 = vadd.xlane.f32.xlu0 %v8242
    %v8244 = vpop.xlane.xlu0 %8243
    %v8245 = vsel %vm889, %v8094, 0.0
    %8246 = vadd.xlane.f32.xlu0 %v8245
    %v8247 = vpop.xlane.xlu0 %8246
    %v8248 = vsel %vm889, %v8096, 0.0
    %8249 = vadd.xlane.f32.xlu0 %v8248
    %v8250 = vpop.xlane.xlu0 %8249
    %v8251 = vsel %vm889, %v8098, 0.0
    %8252 = vadd.xlane.f32.xlu0 %v8251
    %v8253 = vpop.xlane.xlu0 %8252
    %v8254 = vsel %vm889, %v8100, 0.0
    %8255 = vadd.xlane.f32.xlu0 %v8254
    %v8256 = vpop.xlane.xlu0 %8255
    %v8257 = vsel %vm889, %v8102, 0.0
    %8258 = vadd.xlane.f32.xlu0 %v8257
    %v8259 = vpop.xlane.xlu0 %8258
    %v8260 = vsel %vm889, %v8104, 0.0
    %8261 = vadd.xlane.f32.xlu0 %v8260
    %v8262 = vpop.xlane.xlu0 %8261
    %v8263 = vsel %vm889, %v8106, 0.0
    %8264 = vadd.xlane.f32.xlu0 %v8263
    %v8265 = vpop.xlane.xlu0 %8264
    %v8266 = vsel %vm889, %v8108, 0.0
    %8267 = vadd.xlane.f32.xlu0 %v8266
    %v8268 = vpop.xlane.xlu0 %8267
    %v8269 = vsel %vm889, %v8110, 0.0
    %8270 = vadd.xlane.f32.xlu0 %v8269
    %v8271 = vpop.xlane.xlu0 %8270
    %v8272 = vsel %vm889, %v8112, 0.0
    %8273 = vadd.xlane.f32.xlu0 %v8272
    %v8274 = vpop.xlane.xlu0 %8273
    %v8275 = vsel %vm889, %v8114, 0.0
    %8276 = vadd.xlane.f32.xlu0 %v8275
    %v8277 = vpop.xlane.xlu0 %8276
    %v8278 = vsel %vm889, %v8116, 0.0
    %8279 = vadd.xlane.f32.xlu0 %v8278
    %v8280 = vpop.xlane.xlu0 %8279
    %v8281 = vsel %vm889, %v8118, 0.0
    %8282 = vadd.xlane.f32.xlu0 %v8281
    %v8283 = vpop.xlane.xlu0 %8282
    %v8284 = vsel %vm889, %v8120, 0.0
    %8285 = vadd.xlane.f32.xlu0 %v8284
    %v8286 = vpop.xlane.xlu0 %8285
    %v8287 = vsel %vm889, %v8122, 0.0
    %8288 = vadd.xlane.f32.xlu0 %v8287
    %v8289 = vpop.xlane.xlu0 %8288
    %v8290 = vsel %vm889, %v8124, 0.0
    %8291 = vadd.xlane.f32.xlu0 %v8290
    %v8292 = vpop.xlane.xlu0 %8291
    %v8293 = vsel %vm889, %v8126, 0.0
    %8294 = vadd.xlane.f32.xlu0 %v8293
    %v8295 = vpop.xlane.xlu0 %8294
    %v8296 = vsel %vm889, %v8128, 0.0
    %8297 = vadd.xlane.f32.xlu0 %v8296
    %v8298 = vpop.xlane.xlu0 %8297
    %v8299 = vsel %vm889, %v8130, 0.0
    %8300 = vadd.xlane.f32.xlu0 %v8299
    %v8301 = vpop.xlane.xlu0 %8300
    %v8302 = vsel %vm889, %v8132, 0.0
    %8303 = vadd.xlane.f32.xlu0 %v8302
    %v8304 = vpop.xlane.xlu0 %8303
    %v8305 = vsel %vm889, %v8134, 0.0
    %8306 = vadd.xlane.f32.xlu0 %v8305
    %v8307 = vpop.xlane.xlu0 %8306
    %v8308 = vsel %vm889, %v8136, 0.0
    %8309 = vadd.xlane.f32.xlu0 %v8308
    %v8310 = vpop.xlane.xlu0 %8309
    %v8311 = vsel %vm889, %v8138, 0.0
    %8312 = vadd.xlane.f32.xlu0 %v8311
    %v8313 = vpop.xlane.xlu0 %8312
    %v8314 = vsel %vm889, %v8140, 0.0
    %8315 = vadd.xlane.f32.xlu0 %v8314
    %v8316 = vpop.xlane.xlu0 %8315
    %v8317 = vsel %vm889, %v8142, 0.0
    %8318 = vadd.xlane.f32.xlu0 %v8317
    %v8319 = vpop.xlane.xlu0 %8318
    %v8320 = vsel %vm889, %v8144, 0.0
    %8321 = vadd.xlane.f32.xlu0 %v8320
    %v8322 = vpop.xlane.xlu0 %8321
    %v8323 = vsel %vm889, %v8146, 0.0
    %8324 = vadd.xlane.f32.xlu0 %v8323
    %v8325 = vpop.xlane.xlu0 %8324
    %v8326 = vsel %vm889, %v8148, 0.0
    %8327 = vadd.xlane.f32.xlu0 %v8326
    %v8328 = vpop.xlane.xlu0 %8327
    %v8329 = vsel %vm889, %v8150, 0.0
    %8330 = vadd.xlane.f32.xlu0 %v8329
    %v8331 = vpop.xlane.xlu0 %8330
    %v8332 = vsel %vm889, %v8152, 0.0
    %8333 = vadd.xlane.f32.xlu0 %v8332
    %v8334 = vpop.xlane.xlu0 %8333
    %v8335 = vsel %vm889, %v8154, 0.0
    %8336 = vadd.xlane.f32.xlu0 %v8335
    %v8337 = vpop.xlane.xlu0 %8336
    %v8338 = vsel %vm889, %v8156, 0.0
    %8339 = vadd.xlane.f32.xlu0 %v8338
    %v8340 = vpop.xlane.xlu0 %8339
    %v8341 = vsel %vm889, %v8158, 0.0
    %8342 = vadd.xlane.f32.xlu0 %v8341
    %v8343 = vpop.xlane.xlu0 %8342
    %v8344 = vsel %vm889, %v8160, 0.0
    %8345 = vadd.xlane.f32.xlu0 %v8344
    %v8346 = vpop.xlane.xlu0 %8345
    %v8347 = vsel %vm889, %v8162, 0.0
    %8348 = vadd.xlane.f32.xlu0 %v8347
    %v8349 = vpop.xlane.xlu0 %8348
    %v8350 = vsel %vm889, %v8164, 0.0
    %8351 = vadd.xlane.f32.xlu0 %v8350
    %v8352 = vpop.xlane.xlu0 %8351
    %v8353 = vsel %vm889, %v8166, 0.0
    %8354 = vadd.xlane.f32.xlu0 %v8353
    %v8355 = vpop.xlane.xlu0 %8354
    %v8356 = vsel %vm889, %v8168, 0.0
    %8357 = vadd.xlane.f32.xlu0 %v8356
    %v8358 = vpop.xlane.xlu0 %8357
    %v8359 = vsel %vm889, %v8170, 0.0
    %8360 = vadd.xlane.f32.xlu0 %v8359
    %v8361 = vpop.xlane.xlu0 %8360
    %v8362 = vsel %vm889, %v8172, 0.0
    %8363 = vadd.xlane.f32.xlu0 %v8362
    %v8364 = vpop.xlane.xlu0 %8363
    %v8365 = vrcp.pop %v8175
    %v8366 = vrcp.pop %v8178
    %v8367 = vrcp.pop %v8181
    %v8368 = vrcp.pop %v8184
    %v8369 = vrcp.pop %v8187
    %v8370 = vrcp.pop %v8190
    %v8371 = vrcp.pop %v8193
    %v8372 = vrcp.pop %v8196
    %v8373 = vrcp.pop %v8199
    %v8374 = vrcp.pop %v8202
    %v8375 = vrcp.pop %v8205
    %v8376 = vrcp.pop %v8208
    %v8377 = vrcp.pop %v8211
    %v8378 = vrcp.pop %v8214
    %v8379 = vrcp.pop %v8217
    %v8380 = vrcp.pop %v8220
    %v8381 = vrcp.pop %v8223
    %v8382 = vrcp.pop %v8226
    %v8383 = vrcp.pop %v8229
    %v8384 = vrcp.pop %v8232
    %v8385 = vrcp.pop %v8235
    %v8386 = vrcp.pop %v8238
    %v8387 = vrcp.pop %v8241
    %v8388 = vrcp.pop %v8244
    %v8389 = vrcp.pop %v8247
    %v8390 = vrcp.pop %v8250
    %v8391 = vrcp.pop %v8253
    %v8392 = vrcp.pop %v8256
    %v8393 = vrcp.pop %v8259
    %v8394 = vrcp.pop %v8262
    %v8395 = vrcp.pop %v8265
    %v8396 = vrcp.pop %v8268
    %v8397 = vrcp.pop %v8271
    %v8398 = vrcp.pop %v8274
    %v8399 = vrcp.pop %v8277
    %v8400 = vrcp.pop %v8280
    %v8401 = vrcp.pop %v8283
    %v8402 = vrcp.pop %v8286
    %v8403 = vrcp.pop %v8289
    %v8404 = vrcp.pop %v8292
    %v8405 = vrcp.pop %v8295
    %v8406 = vrcp.pop %v8298
    %v8407 = vrcp.pop %v8301
    %v8408 = vrcp.pop %v8304
    %v8409 = vrcp.pop %v8307
    %v8410 = vrcp.pop %v8310
    %v8411 = vrcp.pop %v8313
    %v8412 = vrcp.pop %v8316
    %v8413 = vrcp.pop %v8319
    %v8414 = vrcp.pop %v8322
    %v8415 = vrcp.pop %v8325
    %v8416 = vrcp.pop %v8328
    %v8417 = vrcp.pop %v8331
    %v8418 = vrcp.pop %v8334
    %v8419 = vrcp.pop %v8337
    %v8420 = vrcp.pop %v8340
    %v8421 = vrcp.pop %v8343
    %v8422 = vrcp.pop %v8346
    %v8423 = vrcp.pop %v8349
    %v8424 = vrcp.pop %v8352
    %v8425 = vrcp.pop %v8355
    %v8426 = vrcp.pop %v8358
    %v8427 = vrcp.pop %v8361
    %v8428 = vrcp.pop %v8364
    %v8429 = vmul.f32 %v8046, %v8365
    %v8430 = vmul.f32 %v8048, %v8366
    %v8431 = vmul.f32 %v8050, %v8367
    %v8432 = vmul.f32 %v8052, %v8368
    %v8433 = vmul.f32 %v8054, %v8369
    %v8434 = vmul.f32 %v8056, %v8370
    %v8435 = vmul.f32 %v8058, %v8371
    %v8436 = vmul.f32 %v8060, %v8372
    %v8437 = vmul.f32 %v8062, %v8373
    %v8438 = vmul.f32 %v8064, %v8374
    %v8439 = vmul.f32 %v8066, %v8375
    %v8440 = vmul.f32 %v8068, %v8376
    %v8441 = vmul.f32 %v8070, %v8377
    %v8442 = vmul.f32 %v8072, %v8378
    %v8443 = vmul.f32 %v8074, %v8379
    %v8444 = vmul.f32 %v8076, %v8380
    %v8445 = vmul.f32 %v8078, %v8381
    %v8446 = vmul.f32 %v8080, %v8382
    %v8447 = vmul.f32 %v8082, %v8383
    %v8448 = vmul.f32 %v8084, %v8384
    %v8449 = vmul.f32 %v8086, %v8385
    %v8450 = vmul.f32 %v8088, %v8386
    %v8451 = vmul.f32 %v8090, %v8387
    %v8452 = vmul.f32 %v8092, %v8388
    %v8453 = vmul.f32 %v8094, %v8389
    %v8454 = vmul.f32 %v8096, %v8390
    %v8455 = vmul.f32 %v8098, %v8391
    %v8456 = vmul.f32 %v8100, %v8392
    %v8457 = vmul.f32 %v8102, %v8393
    %v8458 = vmul.f32 %v8104, %v8394
    %v8459 = vmul.f32 %v8106, %v8395
    %v8460 = vmul.f32 %v8108, %v8396
    %v8461 = vmul.f32 %v8110, %v8397
    %v8462 = vmul.f32 %v8112, %v8398
    %v8463 = vmul.f32 %v8114, %v8399
    %v8464 = vmul.f32 %v8116, %v8400
    %v8465 = vmul.f32 %v8118, %v8401
    %v8466 = vmul.f32 %v8120, %v8402
    %v8467 = vmul.f32 %v8122, %v8403
    %v8468 = vmul.f32 %v8124, %v8404
    %v8469 = vmul.f32 %v8126, %v8405
    %v8470 = vmul.f32 %v8128, %v8406
    %v8471 = vmul.f32 %v8130, %v8407
    %v8472 = vmul.f32 %v8132, %v8408
    %v8473 = vmul.f32 %v8134, %v8409
    %v8474 = vmul.f32 %v8136, %v8410
    %v8475 = vmul.f32 %v8138, %v8411
    %v8476 = vmul.f32 %v8140, %v8412
    %v8477 = vmul.f32 %v8142, %v8413
    %v8478 = vmul.f32 %v8144, %v8414
    %v8479 = vmul.f32 %v8146, %v8415
    %v8480 = vmul.f32 %v8148, %v8416
    %v8481 = vmul.f32 %v8150, %v8417
    %v8482 = vmul.f32 %v8152, %v8418
    %v8483 = vmul.f32 %v8154, %v8419
    %v8484 = vmul.f32 %v8156, %v8420
    %v8485 = vmul.f32 %v8158, %v8421
    %v8486 = vmul.f32 %v8160, %v8422
    %v8487 = vmul.f32 %v8162, %v8423
    %v8488 = vmul.f32 %v8164, %v8424
    %v8489 = vmul.f32 %v8166, %v8425
    %v8490 = vmul.f32 %v8168, %v8426
    %v8491 = vmul.f32 %v8170, %v8427
    %v8492 = vmul.f32 %v8172, %v8428
    %v8493 = vpack.c.bf16 %v8430, %v8429
    %v8494 = vpack.c.bf16 %v8432, %v8431
    %v8495 = vpack.c.bf16 %v8434, %v8433
    %v8496 = vpack.c.bf16 %v8436, %v8435
    %v8497 = vpack.c.bf16 %v8438, %v8437
    %v8498 = vpack.c.bf16 %v8440, %v8439
    %v8499 = vpack.c.bf16 %v8442, %v8441
    %v8500 = vpack.c.bf16 %v8444, %v8443
    %v8501 = vpack.c.bf16 %v8446, %v8445
    %v8502 = vpack.c.bf16 %v8448, %v8447
    %v8503 = vpack.c.bf16 %v8450, %v8449
    %v8504 = vpack.c.bf16 %v8452, %v8451
    %v8505 = vpack.c.bf16 %v8454, %v8453
    %v8506 = vpack.c.bf16 %v8456, %v8455
    %v8507 = vpack.c.bf16 %v8458, %v8457
    %v8508 = vpack.c.bf16 %v8460, %v8459
    %v8509 = vpack.c.bf16 %v8462, %v8461
    %v8510 = vpack.c.bf16 %v8464, %v8463
    %v8511 = vpack.c.bf16 %v8466, %v8465
    %v8512 = vpack.c.bf16 %v8468, %v8467
    %v8513 = vpack.c.bf16 %v8470, %v8469
    %v8514 = vpack.c.bf16 %v8472, %v8471
    %v8515 = vpack.c.bf16 %v8474, %v8473
    %v8516 = vpack.c.bf16 %v8476, %v8475
    %v8517 = vpack.c.bf16 %v8478, %v8477
    %v8518 = vpack.c.bf16 %v8480, %v8479
    %v8519 = vpack.c.bf16 %v8482, %v8481
    %v8520 = vpack.c.bf16 %v8484, %v8483
    %v8521 = vpack.c.bf16 %v8486, %v8485
    %v8522 = vpack.c.bf16 %v8488, %v8487
    %v8523 = vpack.c.bf16 %v8490, %v8489
    %v8524 = vpack.c.bf16 %v8492, %v8491
    %8526 = vrot.lane.b32.xlu0 %v7141, 96
    %v8527 = vpop.permute.xlu0 %8526
    %v8530 = vsel %vm889, %v8493, 0
    %v8533 = vsel %vm889, %v8494, 0
    %v8536 = vsel %vm889, %v8495, 0
    %v8539 = vsel %vm889, %v8496, 0
    %8541 = vmatprep.subr.bf16.mxu0 0
    %8542 = vmatpush1.bf16.msra.mxu0 %v8527
    %8543 = vmatprep.subr.bf16.mxu0 0
    %8544 = vmatpush1.bf16.msra.mxu0 0
    %8545 = vmatprep.subr.bf16.mxu0 0
    %8546 = vmatpush1.bf16.msra.mxu0 0
    %8547 = vmatprep.subr.bf16.mxu0 0
    %8548 = vmatpush1.bf16.msra.mxu0 0
    %8549 = vmatprep.subr.bf16.mxu0 0
    %8550 = vmatpush1.bf16.msra.mxu0 0
    %8551 = vmatprep.subr.bf16.mxu0 0
    %8552 = vmatpush1.bf16.msra.mxu0 0
    %8553 = vmatprep.subr.bf16.mxu0 0
    %8554 = vmatpush1.bf16.msra.mxu0 0
    %8555 = vmatprep.subr.bf16.mxu0 0
    %8556 = vmatpush1.bf16.msra.mxu0 0
    %8557 = vmatprep.subr.bf16.mxu0 0
    %8558 = vmatpush1.bf16.msra.mxu0 0
    %8559 = vmatprep.subr.bf16.mxu0 0
    %8560 = vmatpush1.bf16.msra.mxu0 0
    %8561 = vmatprep.subr.bf16.mxu0 0
    %8562 = vmatpush1.bf16.msra.mxu0 0
    %8563 = vmatprep.subr.bf16.mxu0 0
    %8564 = vmatpush1.bf16.msra.mxu0 0
    %8565 = vmatprep.subr.bf16.mxu0 0
    %8566 = vmatpush1.bf16.msra.mxu0 0
    %8567 = vmatprep.subr.bf16.mxu0 0
    %8568 = vmatpush1.bf16.msra.mxu0 0
    %8569 = vmatprep.subr.bf16.mxu0 0
    %8570 = vmatpush1.bf16.msra.mxu0 0
    %8571 = vmatprep.subr.bf16.mxu0 0
    %8572 = vmatpush1.bf16.msra.mxu0 0
    %8573 = vmatprep.mubr.bf16.mxu0 0
    %8574 = vmatmul.mubr.bf16.gmra.mrb[0].mxu0 %v8530
    %v8575 = vpop.f32.mrb[0].mxu0
    %v8576 = vadd.f32 0.0, %v8575
    %v8577 = vpop.f32.mrb[0].mxu0
    %v8578 = vpop.f32.mrb[0].mxu0
    %v8579 = vadd.f32 0.0, %v8578
    %v8580 = vpop.f32.mrb[0].mxu0
    %8581 = vmatprep.mubr.bf16.mxu0 0
    %8582 = vmatmul.mubr.bf16.gmra.mrb[0].mxu0 %v8533
    %v8583 = vpop.f32.mrb[0].mxu0
    %v8584 = vadd.f32 0.0, %v8583
    %v8585 = vpop.f32.mrb[0].mxu0
    %v8586 = vpop.f32.mrb[0].mxu0
    %v8587 = vadd.f32 0.0, %v8586
    %v8588 = vpop.f32.mrb[0].mxu0
    %8589 = vmatprep.mubr.bf16.mxu0 0
    %8590 = vmatmul.mubr.bf16.gmra.mrb[0].mxu0 %v8536
    %v8591 = vpop.f32.mrb[0].mxu0
    %v8592 = vadd.f32 0.0, %v8591
    %v8593 = vpop.f32.mrb[0].mxu0
    %v8594 = vpop.f32.mrb[0].mxu0
    %v8595 = vadd.f32 0.0, %v8594
    %v8596 = vpop.f32.mrb[0].mxu0
    %8597 = vmatprep.mubr.bf16.mxu0 0
    %8598 = vmatmul.mubr.bf16.gmra.mrb[0].mxu0 %v8539
    %v8599 = vpop.f32.mrb[0].mxu0
    %v8600 = vadd.f32 0.0, %v8599
    %v8601 = vpop.f32.mrb[0].mxu0
    %v8602 = vpop.f32.mrb[0].mxu0
    %v8603 = vadd.f32 0.0, %v8602
    %v8604 = vpop.f32.mrb[0].mxu0
    %8605 = vdwg.mxu0
    %8607 = vrot.lane.b32.xlu0 %v7142, 96
    %v8608 = vpop.permute.xlu0 %8607
    %v8611 = vsel %vm889, %v8497, 0
    %v8614 = vsel %vm889, %v8498, 0
    %v8617 = vsel %vm889, %v8499, 0
    %v8620 = vsel %vm889, %v8500, 0
    %8622 = vmatprep.subr.bf16.mxu0 0
    %8623 = vmatpush1.bf16.msra.mxu0 %v8608
    %8624 = vmatprep.subr.bf16.mxu0 0
    %8625 = vmatpush1.bf16.msra.mxu0 0
    %8626 = vmatprep.subr.bf16.mxu0 0
    %8627 = vmatpush1.bf16.msra.mxu0 0
    %8628 = vmatprep.subr.bf16.mxu0 0
    %8629 = vmatpush1.bf16.msra.mxu0 0
    %8630 = vmatprep.subr.bf16.mxu0 0
    %8631 = vmatpush1.bf16.msra.mxu0 0
    %8632 = vmatprep.subr.bf16.mxu0 0
    %8633 = vmatpush1.bf16.msra.mxu0 0
    %8634 = vmatprep.subr.bf16.mxu0 0
    %8635 = vmatpush1.bf16.msra.mxu0 0
    %8636 = vmatprep.subr.bf16.mxu0 0
    %8637 = vmatpush1.bf16.msra.mxu0 0
    %8638 = vmatprep.subr.bf16.mxu0 0
    %8639 = vmatpush1.bf16.msra.mxu0 0
    %8640 = vmatprep.subr.bf16.mxu0 0
    %8641 = vmatpush1.bf16.msra.mxu0 0
    %8642 = vmatprep.subr.bf16.mxu0 0
    %8643 = vmatpush1.bf16.msra.mxu0 0
    %8644 = vmatprep.subr.bf16.mxu0 0
    %8645 = vmatpush1.bf16.msra.mxu0 0
    %8646 = vmatprep.subr.bf16.mxu0 0
    %8647 = vmatpush1.bf16.msra.mxu0 0
    %8648 = vmatprep.subr.bf16.mxu0 0
    %8649 = vmatpush1.bf16.msra.mxu0 0
    %8650 = vmatprep.subr.bf16.mxu0 0
    %8651 = vmatpush1.bf16.msra.mxu0 0
    %8652 = vmatprep.subr.bf16.mxu0 0
    %8653 = vmatpush1.bf16.msra.mxu0 0
    %8654 = vmatprep.mubr.bf16.mxu0 0
    %8655 = vmatmul.mubr.bf16.gmra.mrb[0].mxu0 %v8611
    %v8656 = vpop.f32.mrb[0].mxu0
    %v8657 = vadd.f32 0.0, %v8656
    %v8658 = vpop.f32.mrb[0].mxu0
    %v8659 = vpop.f32.mrb[0].mxu0
    %v8660 = vadd.f32 0.0, %v8659
    %v8661 = vpop.f32.mrb[0].mxu0
    %8662 = vmatprep.mubr.bf16.mxu0 0
    %8663 = vmatmul.mubr.bf16.gmra.mrb[0].mxu0 %v8614
    %v8664 = vpop.f32.mrb[0].mxu0
    %v8665 = vadd.f32 0.0, %v8664
    %v8666 = vpop.f32.mrb[0].mxu0
    %v8667 = vpop.f32.mrb[0].mxu0
    %v8668 = vadd.f32 0.0, %v8667
    %v8669 = vpop.f32.mrb[0].mxu0
    %8670 = vmatprep.mubr.bf16.mxu0 0
    %8671 = vmatmul.mubr.bf16.gmra.mrb[0].mxu0 %v8617
    %v8672 = vpop.f32.mrb[0].mxu0
    %v8673 = vadd.f32 0.0, %v8672
    %v8674 = vpop.f32.mrb[0].mxu0
    %v8675 = vpop.f32.mrb[0].mxu0
    %v8676 = vadd.f32 0.0, %v8675
    %v8677 = vpop.f32.mrb[0].mxu0
    %8678 = vmatprep.mubr.bf16.mxu0 0
    %8679 = vmatmul.mubr.bf16.gmra.mrb[0].mxu0 %v8620
    %v8680 = vpop.f32.mrb[0].mxu0
    %v8681 = vadd.f32 0.0, %v8680
    %v8682 = vpop.f32.mrb[0].mxu0
    %v8683 = vpop.f32.mrb[0].mxu0
    %v8684 = vadd.f32 0.0, %v8683
    %v8685 = vpop.f32.mrb[0].mxu0
    %8686 = vdwg.mxu0
    %8688 = vrot.lane.b32.xlu0 %v7143, 96
    %v8689 = vpop.permute.xlu0 %8688
    %v8692 = vsel %vm889, %v8501, 0
    %v8695 = vsel %vm889, %v8502, 0
    %v8698 = vsel %vm889, %v8503, 0
    %v8701 = vsel %vm889, %v8504, 0
    %8703 = vmatprep.subr.bf16.mxu0 0
    %8704 = vmatpush1.bf16.msra.mxu0 %v8689
    %8705 = vmatprep.subr.bf16.mxu0 0
    %8706 = vmatpush1.bf16.msra.mxu0 0
    %8707 = vmatprep.subr.bf16.mxu0 0
    %8708 = vmatpush1.bf16.msra.mxu0 0
    %8709 = vmatprep.subr.bf16.mxu0 0
    %8710 = vmatpush1.bf16.msra.mxu0 0
    %8711 = vmatprep.subr.bf16.mxu0 0
    %8712 = vmatpush1.bf16.msra.mxu0 0
    %8713 = vmatprep.subr.bf16.mxu0 0
    %8714 = vmatpush1.bf16.msra.mxu0 0
    %8715 = vmatprep.subr.bf16.mxu0 0
    %8716 = vmatpush1.bf16.msra.mxu0 0
    %8717 = vmatprep.subr.bf16.mxu0 0
    %8718 = vmatpush1.bf16.msra.mxu0 0
    %8719 = vmatprep.subr.bf16.mxu0 0
    %8720 = vmatpush1.bf16.msra.mxu0 0
    %8721 = vmatprep.subr.bf16.mxu0 0
    %8722 = vmatpush1.bf16.msra.mxu0 0
    %8723 = vmatprep.subr.bf16.mxu0 0
    %8724 = vmatpush1.bf16.msra.mxu0 0
    %8725 = vmatprep.subr.bf16.mxu0 0
    %8726 = vmatpush1.bf16.msra.mxu0 0
    %8727 = vmatprep.subr.bf16.mxu0 0
    %8728 = vmatpush1.bf16.msra.mxu0 0
    %8729 = vmatprep.subr.bf16.mxu0 0
    %8730 = vmatpush1.bf16.msra.mxu0 0
    %8731 = vmatprep.subr.bf16.mxu0 0
    %8732 = vmatpush1.bf16.msra.mxu0 0
    %8733 = vmatprep.subr.bf16.mxu0 0
    %8734 = vmatpush1.bf16.msra.mxu0 0
    %8735 = vmatprep.mubr.bf16.mxu0 0
    %8736 = vmatmul.mubr.bf16.gmra.mrb[0].mxu0 %v8692
    %v8737 = vpop.f32.mrb[0].mxu0
    %v8738 = vadd.f32 0.0, %v8737
    %v8739 = vpop.f32.mrb[0].mxu0
    %v8740 = vpop.f32.mrb[0].mxu0
    %v8741 = vadd.f32 0.0, %v8740
    %v8742 = vpop.f32.mrb[0].mxu0
    %8743 = vmatprep.mubr.bf16.mxu0 0
    %8744 = vmatmul.mubr.bf16.gmra.mrb[0].mxu0 %v8695
    %v8745 = vpop.f32.mrb[0].mxu0
    %v8746 = vadd.f32 0.0, %v8745
    %v8747 = vpop.f32.mrb[0].mxu0
    %v8748 = vpop.f32.mrb[0].mxu0
    %v8749 = vadd.f32 0.0, %v8748
    %v8750 = vpop.f32.mrb[0].mxu0
    %8751 = vmatprep.mubr.bf16.mxu0 0
    %8752 = vmatmul.mubr.bf16.gmra.mrb[0].mxu0 %v8698
    %v8753 = vpop.f32.mrb[0].mxu0
    %v8754 = vadd.f32 0.0, %v8753
    %v8755 = vpop.f32.mrb[0].mxu0
    %v8756 = vpop.f32.mrb[0].mxu0
    %v8757 = vadd.f32 0.0, %v8756
    %v8758 = vpop.f32.mrb[0].mxu0
    %8759 = vmatprep.mubr.bf16.mxu0 0
    %8760 = vmatmul.mubr.bf16.gmra.mrb[0].mxu0 %v8701
    %v8761 = vpop.f32.mrb[0].mxu0
    %v8762 = vadd.f32 0.0, %v8761
    %v8763 = vpop.f32.mrb[0].mxu0
    %v8764 = vpop.f32.mrb[0].mxu0
    %v8765 = vadd.f32 0.0, %v8764
    %v8766 = vpop.f32.mrb[0].mxu0
    %8767 = vdwg.mxu0
    %8769 = vrot.lane.b32.xlu0 %v7144, 96
    %v8770 = vpop.permute.xlu0 %8769
    %v8773 = vsel %vm889, %v8505, 0
    %v8776 = vsel %vm889, %v8506, 0
    %v8779 = vsel %vm889, %v8507, 0
    %v8782 = vsel %vm889, %v8508, 0
    %8784 = vmatprep.subr.bf16.mxu0 0
    %8785 = vmatpush1.bf16.msra.mxu0 %v8770
    %8786 = vmatprep.subr.bf16.mxu0 0
    %8787 = vmatpush1.bf16.msra.mxu0 0
    %8788 = vmatprep.subr.bf16.mxu0 0
    %8789 = vmatpush1.bf16.msra.mxu0 0
    %8790 = vmatprep.subr.bf16.mxu0 0
    %8791 = vmatpush1.bf16.msra.mxu0 0
    %8792 = vmatprep.subr.bf16.mxu0 0
    %8793 = vmatpush1.bf16.msra.mxu0 0
    %8794 = vmatprep.subr.bf16.mxu0 0
    %8795 = vmatpush1.bf16.msra.mxu0 0
    %8796 = vmatprep.subr.bf16.mxu0 0
    %8797 = vmatpush1.bf16.msra.mxu0 0
    %8798 = vmatprep.subr.bf16.mxu0 0
    %8799 = vmatpush1.bf16.msra.mxu0 0
    %8800 = vmatprep.subr.bf16.mxu0 0
    %8801 = vmatpush1.bf16.msra.mxu0 0
    %8802 = vmatprep.subr.bf16.mxu0 0
    %8803 = vmatpush1.bf16.msra.mxu0 0
    %8804 = vmatprep.subr.bf16.mxu0 0
    %8805 = vmatpush1.bf16.msra.mxu0 0
    %8806 = vmatprep.subr.bf16.mxu0 0
    %8807 = vmatpush1.bf16.msra.mxu0 0
    %8808 = vmatprep.subr.bf16.mxu0 0
    %8809 = vmatpush1.bf16.msra.mxu0 0
    %8810 = vmatprep.subr.bf16.mxu0 0
    %8811 = vmatpush1.bf16.msra.mxu0 0
    %8812 = vmatprep.subr.bf16.mxu0 0
    %8813 = vmatpush1.bf16.msra.mxu0 0
    %8814 = vmatprep.subr.bf16.mxu0 0
    %8815 = vmatpush1.bf16.msra.mxu0 0
    %8816 = vmatprep.mubr.bf16.mxu0 0
    %8817 = vmatmul.mubr.bf16.gmra.mrb[0].mxu0 %v8773
    %v8818 = vpop.f32.mrb[0].mxu0
    %v8819 = vadd.f32 0.0, %v8818
    %v8820 = vpop.f32.mrb[0].mxu0
    %v8821 = vpop.f32.mrb[0].mxu0
    %v8822 = vadd.f32 0.0, %v8821
    %v8823 = vpop.f32.mrb[0].mxu0
    %8824 = vmatprep.mubr.bf16.mxu0 0
    %8825 = vmatmul.mubr.bf16.gmra.mrb[0].mxu0 %v8776
    %v8826 = vpop.f32.mrb[0].mxu0
    %v8827 = vadd.f32 0.0, %v8826
    %v8828 = vpop.f32.mrb[0].mxu0
    %v8829 = vpop.f32.mrb[0].mxu0
    %v8830 = vadd.f32 0.0, %v8829
    %v8831 = vpop.f32.mrb[0].mxu0
    %8832 = vmatprep.mubr.bf16.mxu0 0
    %8833 = vmatmul.mubr.bf16.gmra.mrb[0].mxu0 %v8779
    %v8834 = vpop.f32.mrb[0].mxu0
    %v8835 = vadd.f32 0.0, %v8834
    %v8836 = vpop.f32.mrb[0].mxu0
    %v8837 = vpop.f32.mrb[0].mxu0
    %v8838 = vadd.f32 0.0, %v8837
    %v8839 = vpop.f32.mrb[0].mxu0
    %8840 = vmatprep.mubr.bf16.mxu0 0
    %8841 = vmatmul.mubr.bf16.gmra.mrb[0].mxu0 %v8782
    %v8842 = vpop.f32.mrb[0].mxu0
    %v8843 = vadd.f32 0.0, %v8842
    %v8844 = vpop.f32.mrb[0].mxu0
    %v8845 = vpop.f32.mrb[0].mxu0
    %v8846 = vadd.f32 0.0, %v8845
    %v8847 = vpop.f32.mrb[0].mxu0
    %8848 = vdwg.mxu0
    %8850 = vrot.lane.b32.xlu0 %v7145, 96
    %v8851 = vpop.permute.xlu0 %8850
    %v8854 = vsel %vm889, %v8509, 0
    %v8857 = vsel %vm889, %v8510, 0
    %v8860 = vsel %vm889, %v8511, 0
    %v8863 = vsel %vm889, %v8512, 0
    %8865 = vmatprep.subr.bf16.mxu0 0
    %8866 = vmatpush1.bf16.msra.mxu0 %v8851
    %8867 = vmatprep.subr.bf16.mxu0 0
    %8868 = vmatpush1.bf16.msra.mxu0 0
    %8869 = vmatprep.subr.bf16.mxu0 0
    %8870 = vmatpush1.bf16.msra.mxu0 0
    %8871 = vmatprep.subr.bf16.mxu0 0
    %8872 = vmatpush1.bf16.msra.mxu0 0
    %8873 = vmatprep.subr.bf16.mxu0 0
    %8874 = vmatpush1.bf16.msra.mxu0 0
    %8875 = vmatprep.subr.bf16.mxu0 0
    %8876 = vmatpush1.bf16.msra.mxu0 0
    %8877 = vmatprep.subr.bf16.mxu0 0
    %8878 = vmatpush1.bf16.msra.mxu0 0
    %8879 = vmatprep.subr.bf16.mxu0 0
    %8880 = vmatpush1.bf16.msra.mxu0 0
    %8881 = vmatprep.subr.bf16.mxu0 0
    %8882 = vmatpush1.bf16.msra.mxu0 0
    %8883 = vmatprep.subr.bf16.mxu0 0
    %8884 = vmatpush1.bf16.msra.mxu0 0
    %8885 = vmatprep.subr.bf16.mxu0 0
    %8886 = vmatpush1.bf16.msra.mxu0 0
    %8887 = vmatprep.subr.bf16.mxu0 0
    %8888 = vmatpush1.bf16.msra.mxu0 0
    %8889 = vmatprep.subr.bf16.mxu0 0
    %8890 = vmatpush1.bf16.msra.mxu0 0
    %8891 = vmatprep.subr.bf16.mxu0 0
    %8892 = vmatpush1.bf16.msra.mxu0 0
    %8893 = vmatprep.subr.bf16.mxu0 0
    %8894 = vmatpush1.bf16.msra.mxu0 0
    %8895 = vmatprep.subr.bf16.mxu0 0
    %8896 = vmatpush1.bf16.msra.mxu0 0
    %8897 = vmatprep.mubr.bf16.mxu0 0
    %8898 = vmatmul.mubr.bf16.gmra.mrb[0].mxu0 %v8854
    %v8899 = vpop.f32.mrb[0].mxu0
    %v8900 = vadd.f32 0.0, %v8899
    %v8901 = vpop.f32.mrb[0].mxu0
    %v8902 = vpop.f32.mrb[0].mxu0
    %v8903 = vadd.f32 0.0, %v8902
    %v8904 = vpop.f32.mrb[0].mxu0
    %8905 = vmatprep.mubr.bf16.mxu0 0
    %8906 = vmatmul.mubr.bf16.gmra.mrb[0].mxu0 %v8857
    %v8907 = vpop.f32.mrb[0].mxu0
    %v8908 = vadd.f32 0.0, %v8907
    %v8909 = vpop.f32.mrb[0].mxu0
    %v8910 = vpop.f32.mrb[0].mxu0
    %v8911 = vadd.f32 0.0, %v8910
    %v8912 = vpop.f32.mrb[0].mxu0
    %8913 = vmatprep.mubr.bf16.mxu0 0
    %8914 = vmatmul.mubr.bf16.gmra.mrb[0].mxu0 %v8860
    %v8915 = vpop.f32.mrb[0].mxu0
    %v8916 = vadd.f32 0.0, %v8915
    %v8917 = vpop.f32.mrb[0].mxu0
    %v8918 = vpop.f32.mrb[0].mxu0
    %v8919 = vadd.f32 0.0, %v8918
    %v8920 = vpop.f32.mrb[0].mxu0
    %8921 = vmatprep.mubr.bf16.mxu0 0
    %8922 = vmatmul.mubr.bf16.gmra.mrb[0].mxu0 %v8863
    %v8923 = vpop.f32.mrb[0].mxu0
    %v8924 = vadd.f32 0.0, %v8923
    %v8925 = vpop.f32.mrb[0].mxu0
    %v8926 = vpop.f32.mrb[0].mxu0
    %v8927 = vadd.f32 0.0, %v8926
    %v8928 = vpop.f32.mrb[0].mxu0
    %8929 = vdwg.mxu0
    %8931 = vrot.lane.b32.xlu0 %v7146, 96
    %v8932 = vpop.permute.xlu0 %8931
    %v8935 = vsel %vm889, %v8513, 0
    %v8938 = vsel %vm889, %v8514, 0
    %v8941 = vsel %vm889, %v8515, 0
    %v8944 = vsel %vm889, %v8516, 0
    %8946 = vmatprep.subr.bf16.mxu0 0
    %8947 = vmatpush1.bf16.msra.mxu0 %v8932
    %8948 = vmatprep.subr.bf16.mxu0 0
    %8949 = vmatpush1.bf16.msra.mxu0 0
    %8950 = vmatprep.subr.bf16.mxu0 0
    %8951 = vmatpush1.bf16.msra.mxu0 0
    %8952 = vmatprep.subr.bf16.mxu0 0
    %8953 = vmatpush1.bf16.msra.mxu0 0
    %8954 = vmatprep.subr.bf16.mxu0 0
    %8955 = vmatpush1.bf16.msra.mxu0 0
    %8956 = vmatprep.subr.bf16.mxu0 0
    %8957 = vmatpush1.bf16.msra.mxu0 0
    %8958 = vmatprep.subr.bf16.mxu0 0
    %8959 = vmatpush1.bf16.msra.mxu0 0
    %8960 = vmatprep.subr.bf16.mxu0 0
    %8961 = vmatpush1.bf16.msra.mxu0 0
    %8962 = vmatprep.subr.bf16.mxu0 0
    %8963 = vmatpush1.bf16.msra.mxu0 0
    %8964 = vmatprep.subr.bf16.mxu0 0
    %8965 = vmatpush1.bf16.msra.mxu0 0
    %8966 = vmatprep.subr.bf16.mxu0 0
    %8967 = vmatpush1.bf16.msra.mxu0 0
    %8968 = vmatprep.subr.bf16.mxu0 0
    %8969 = vmatpush1.bf16.msra.mxu0 0
    %8970 = vmatprep.subr.bf16.mxu0 0
    %8971 = vmatpush1.bf16.msra.mxu0 0
    %8972 = vmatprep.subr.bf16.mxu0 0
    %8973 = vmatpush1.bf16.msra.mxu0 0
    %8974 = vmatprep.subr.bf16.mxu0 0
    %8975 = vmatpush1.bf16.msra.mxu0 0
    %8976 = vmatprep.subr.bf16.mxu0 0
    %8977 = vmatpush1.bf16.msra.mxu0 0
    %8978 = vmatprep.mubr.bf16.mxu0 0
    %8979 = vmatmul.mubr.bf16.gmra.mrb[0].mxu0 %v8935
    %v8980 = vpop.f32.mrb[0].mxu0
    %v8981 = vadd.f32 0.0, %v8980
    %v8982 = vpop.f32.mrb[0].mxu0
    %v8983 = vpop.f32.mrb[0].mxu0
    %v8984 = vadd.f32 0.0, %v8983
    %v8985 = vpop.f32.mrb[0].mxu0
    %8986 = vmatprep.mubr.bf16.mxu0 0
    %8987 = vmatmul.mubr.bf16.gmra.mrb[0].mxu0 %v8938
    %v8988 = vpop.f32.mrb[0].mxu0
    %v8989 = vadd.f32 0.0, %v8988
    %v8990 = vpop.f32.mrb[0].mxu0
    %v8991 = vpop.f32.mrb[0].mxu0
    %v8992 = vadd.f32 0.0, %v8991
    %v8993 = vpop.f32.mrb[0].mxu0
    %8994 = vmatprep.mubr.bf16.mxu0 0
    %8995 = vmatmul.mubr.bf16.gmra.mrb[0].mxu0 %v8941
    %v8996 = vpop.f32.mrb[0].mxu0
    %v8997 = vadd.f32 0.0, %v8996
    %v8998 = vpop.f32.mrb[0].mxu0
    %v8999 = vpop.f32.mrb[0].mxu0
    %v9000 = vadd.f32 0.0, %v8999
    %v9001 = vpop.f32.mrb[0].mxu0
    %9002 = vmatprep.mubr.bf16.mxu0 0
    %9003 = vmatmul.mubr.bf16.gmra.mrb[0].mxu0 %v8944
    %v9004 = vpop.f32.mrb[0].mxu0
    %v9005 = vadd.f32 0.0, %v9004
    %v9006 = vpop.f32.mrb[0].mxu0
    %v9007 = vpop.f32.mrb[0].mxu0
    %v9008 = vadd.f32 0.0, %v9007
    %v9009 = vpop.f32.mrb[0].mxu0
    %9010 = vdwg.mxu0
    %9012 = vrot.lane.b32.xlu0 %v7147, 96
    %v9013 = vpop.permute.xlu0 %9012
    %v9016 = vsel %vm889, %v8517, 0
    %v9019 = vsel %vm889, %v8518, 0
    %v9022 = vsel %vm889, %v8519, 0
    %v9025 = vsel %vm889, %v8520, 0
    %9027 = vmatprep.subr.bf16.mxu0 0
    %9028 = vmatpush1.bf16.msra.mxu0 %v9013
    %9029 = vmatprep.subr.bf16.mxu0 0
    %9030 = vmatpush1.bf16.msra.mxu0 0
    %9031 = vmatprep.subr.bf16.mxu0 0
    %9032 = vmatpush1.bf16.msra.mxu0 0
    %9033 = vmatprep.subr.bf16.mxu0 0
    %9034 = vmatpush1.bf16.msra.mxu0 0
    %9035 = vmatprep.subr.bf16.mxu0 0
    %9036 = vmatpush1.bf16.msra.mxu0 0
    %9037 = vmatprep.subr.bf16.mxu0 0
    %9038 = vmatpush1.bf16.msra.mxu0 0
    %9039 = vmatprep.subr.bf16.mxu0 0
    %9040 = vmatpush1.bf16.msra.mxu0 0
    %9041 = vmatprep.subr.bf16.mxu0 0
    %9042 = vmatpush1.bf16.msra.mxu0 0
    %9043 = vmatprep.subr.bf16.mxu0 0
    %9044 = vmatpush1.bf16.msra.mxu0 0
    %9045 = vmatprep.subr.bf16.mxu0 0
    %9046 = vmatpush1.bf16.msra.mxu0 0
    %9047 = vmatprep.subr.bf16.mxu0 0
    %9048 = vmatpush1.bf16.msra.mxu0 0
    %9049 = vmatprep.subr.bf16.mxu0 0
    %9050 = vmatpush1.bf16.msra.mxu0 0
    %9051 = vmatprep.subr.bf16.mxu0 0
    %9052 = vmatpush1.bf16.msra.mxu0 0
    %9053 = vmatprep.subr.bf16.mxu0 0
    %9054 = vmatpush1.bf16.msra.mxu0 0
    %9055 = vmatprep.subr.bf16.mxu0 0
    %9056 = vmatpush1.bf16.msra.mxu0 0
    %9057 = vmatprep.subr.bf16.mxu0 0
    %9058 = vmatpush1.bf16.msra.mxu0 0
    %9059 = vmatprep.mubr.bf16.mxu0 0
    %9060 = vmatmul.mubr.bf16.gmra.mrb[0].mxu0 %v9016
    %v9061 = vpop.f32.mrb[0].mxu0
    %v9062 = vadd.f32 0.0, %v9061
    %v9063 = vpop.f32.mrb[0].mxu0
    %v9064 = vpop.f32.mrb[0].mxu0
    %v9065 = vadd.f32 0.0, %v9064
    %v9066 = vpop.f32.mrb[0].mxu0
    %9067 = vmatprep.mubr.bf16.mxu0 0
    %9068 = vmatmul.mubr.bf16.gmra.mrb[0].mxu0 %v9019
    %v9069 = vpop.f32.mrb[0].mxu0
    %v9070 = vadd.f32 0.0, %v9069
    %v9071 = vpop.f32.mrb[0].mxu0
    %v9072 = vpop.f32.mrb[0].mxu0
    %v9073 = vadd.f32 0.0, %v9072
    %v9074 = vpop.f32.mrb[0].mxu0
    %9075 = vmatprep.mubr.bf16.mxu0 0
    %9076 = vmatmul.mubr.bf16.gmra.mrb[0].mxu0 %v9022
    %v9077 = vpop.f32.mrb[0].mxu0
    %v9078 = vadd.f32 0.0, %v9077
    %v9079 = vpop.f32.mrb[0].mxu0
    %v9080 = vpop.f32.mrb[0].mxu0
    %v9081 = vadd.f32 0.0, %v9080
    %v9082 = vpop.f32.mrb[0].mxu0
    %9083 = vmatprep.mubr.bf16.mxu0 0
    %9084 = vmatmul.mubr.bf16.gmra.mrb[0].mxu0 %v9025
    %v9085 = vpop.f32.mrb[0].mxu0
    %v9086 = vadd.f32 0.0, %v9085
    %v9087 = vpop.f32.mrb[0].mxu0
    %v9088 = vpop.f32.mrb[0].mxu0
    %v9089 = vadd.f32 0.0, %v9088
    %v9090 = vpop.f32.mrb[0].mxu0
    %9091 = vdwg.mxu0
    %9093 = vrot.lane.b32.xlu0 %v7148, 96
    %v9094 = vpop.permute.xlu0 %9093
    %v9097 = vsel %vm889, %v8521, 0
    %v9100 = vsel %vm889, %v8522, 0
    %v9103 = vsel %vm889, %v8523, 0
    %v9106 = vsel %vm889, %v8524, 0
    %9108 = vmatprep.subr.bf16.mxu0 0
    %9109 = vmatpush1.bf16.msra.mxu0 %v9094
    %9110 = vmatprep.subr.bf16.mxu0 0
    %9111 = vmatpush1.bf16.msra.mxu0 0
    %9112 = vmatprep.subr.bf16.mxu0 0
    %9113 = vmatpush1.bf16.msra.mxu0 0
    %9114 = vmatprep.subr.bf16.mxu0 0
    %9115 = vmatpush1.bf16.msra.mxu0 0
    %9116 = vmatprep.subr.bf16.mxu0 0
    %9117 = vmatpush1.bf16.msra.mxu0 0
    %9118 = vmatprep.subr.bf16.mxu0 0
    %9119 = vmatpush1.bf16.msra.mxu0 0
    %9120 = vmatprep.subr.bf16.mxu0 0
    %9121 = vmatpush1.bf16.msra.mxu0 0
    %9122 = vmatprep.subr.bf16.mxu0 0
    %9123 = vmatpush1.bf16.msra.mxu0 0
    %9124 = vmatprep.subr.bf16.mxu0 0
    %9125 = vmatpush1.bf16.msra.mxu0 0
    %9126 = vmatprep.subr.bf16.mxu0 0
    %9127 = vmatpush1.bf16.msra.mxu0 0
    %9128 = vmatprep.subr.bf16.mxu0 0
    %9129 = vmatpush1.bf16.msra.mxu0 0
    %9130 = vmatprep.subr.bf16.mxu0 0
    %9131 = vmatpush1.bf16.msra.mxu0 0
    %9132 = vmatprep.subr.bf16.mxu0 0
    %9133 = vmatpush1.bf16.msra.mxu0 0
    %9134 = vmatprep.subr.bf16.mxu0 0
    %9135 = vmatpush1.bf16.msra.mxu0 0
    %9136 = vmatprep.subr.bf16.mxu0 0
    %9137 = vmatpush1.bf16.msra.mxu0 0
    %9138 = vmatprep.subr.bf16.mxu0 0
    %9139 = vmatpush1.bf16.msra.mxu0 0
    %9140 = vmatprep.mubr.bf16.mxu0 0
    %9141 = vmatmul.mubr.bf16.gmra.mrb[0].mxu0 %v9097
    %v9142 = vpop.f32.mrb[0].mxu0
    %v9143 = vadd.f32 0.0, %v9142
    %v9144 = vpop.f32.mrb[0].mxu0
    %v9145 = vpop.f32.mrb[0].mxu0
    %v9146 = vadd.f32 0.0, %v9145
    %v9147 = vpop.f32.mrb[0].mxu0
    %9148 = vmatprep.mubr.bf16.mxu0 0
    %9149 = vmatmul.mubr.bf16.gmra.mrb[0].mxu0 %v9100
    %v9150 = vpop.f32.mrb[0].mxu0
    %v9151 = vadd.f32 0.0, %v9150
    %v9152 = vpop.f32.mrb[0].mxu0
    %v9153 = vpop.f32.mrb[0].mxu0
    %v9154 = vadd.f32 0.0, %v9153
    %v9155 = vpop.f32.mrb[0].mxu0
    %9156 = vmatprep.mubr.bf16.mxu0 0
    %9157 = vmatmul.mubr.bf16.gmra.mrb[0].mxu0 %v9103
    %v9158 = vpop.f32.mrb[0].mxu0
    %v9159 = vadd.f32 0.0, %v9158
    %v9160 = vpop.f32.mrb[0].mxu0
    %v9161 = vpop.f32.mrb[0].mxu0
    %v9162 = vadd.f32 0.0, %v9161
    %v9163 = vpop.f32.mrb[0].mxu0
    %9164 = vmatprep.mubr.bf16.mxu0 0
    %9165 = vmatmul.mubr.bf16.gmra.mrb[0].mxu0 %v9106
    %v9166 = vpop.f32.mrb[0].mxu0
    %v9167 = vadd.f32 0.0, %v9166
    %v9168 = vpop.f32.mrb[0].mxu0
    %v9169 = vpop.f32.mrb[0].mxu0
    %v9170 = vadd.f32 0.0, %v9169
    %v9171 = vpop.f32.mrb[0].mxu0
    %9172 = vdwg.mxu0
    %9189 = vrot.lane.b32.xlu0 %v8738, 8
    %v9190 = vpop.permute.xlu0 %9189
    %9191 = vrot.lane.b32.xlu0 %v8741, 8
    %v9192 = vpop.permute.xlu0 %9191
    %9193 = vrot.lane.b32.xlu0 %v8746, 8
    %v9194 = vpop.permute.xlu0 %9193
    %9195 = vrot.lane.b32.xlu0 %v8749, 8
    %v9196 = vpop.permute.xlu0 %9195
    %9197 = vrot.lane.b32.xlu0 %v8754, 8
    %v9198 = vpop.permute.xlu0 %9197
    %9199 = vrot.lane.b32.xlu0 %v8757, 8
    %v9200 = vpop.permute.xlu0 %9199
    %9201 = vrot.lane.b32.xlu0 %v8762, 8
    %v9202 = vpop.permute.xlu0 %9201
    %9203 = vrot.lane.b32.xlu0 %v8765, 8
    %v9204 = vpop.permute.xlu0 %9203
    %9205 = vrot.lane.b32.xlu0 %v8819, 8
    %v9206 = vpop.permute.xlu0 %9205
    %9207 = vrot.lane.b32.xlu0 %v8822, 8
    %v9208 = vpop.permute.xlu0 %9207
    %9209 = vrot.lane.b32.xlu0 %v8827, 8
    %v9210 = vpop.permute.xlu0 %9209
    %9211 = vrot.lane.b32.xlu0 %v8830, 8
    %v9212 = vpop.permute.xlu0 %9211
    %9213 = vrot.lane.b32.xlu0 %v8835, 8
    %v9214 = vpop.permute.xlu0 %9213
    %9215 = vrot.lane.b32.xlu0 %v8838, 8
    %v9216 = vpop.permute.xlu0 %9215
    %9217 = vrot.lane.b32.xlu0 %v8843, 8
    %v9218 = vpop.permute.xlu0 %9217
    %9219 = vrot.lane.b32.xlu0 %v8846, 8
    %v9220 = vpop.permute.xlu0 %9219
    %9253 = vrot.lane.b32.xlu0 %v8900, 16
    %v9254 = vpop.permute.xlu0 %9253
    %9255 = vrot.lane.b32.xlu0 %v8903, 16
    %v9256 = vpop.permute.xlu0 %9255
    %9257 = vrot.lane.b32.xlu0 %v8908, 16
    %v9258 = vpop.permute.xlu0 %9257
    %9259 = vrot.lane.b32.xlu0 %v8911, 16
    %v9260 = vpop.permute.xlu0 %9259
    %9261 = vrot.lane.b32.xlu0 %v8916, 16
    %v9262 = vpop.permute.xlu0 %9261
    %9263 = vrot.lane.b32.xlu0 %v8919, 16
    %v9264 = vpop.permute.xlu0 %9263
    %9265 = vrot.lane.b32.xlu0 %v8924, 16
    %v9266 = vpop.permute.xlu0 %9265
    %9267 = vrot.lane.b32.xlu0 %v8927, 16
    %v9268 = vpop.permute.xlu0 %9267
    %9269 = vrot.lane.b32.xlu0 %v8981, 16
    %v9270 = vpop.permute.xlu0 %9269
    %9271 = vrot.lane.b32.xlu0 %v8984, 16
    %v9272 = vpop.permute.xlu0 %9271
    %9273 = vrot.lane.b32.xlu0 %v8989, 16
    %v9274 = vpop.permute.xlu0 %9273
    %9275 = vrot.lane.b32.xlu0 %v8992, 16
    %v9276 = vpop.permute.xlu0 %9275
    %9277 = vrot.lane.b32.xlu0 %v8997, 16
    %v9278 = vpop.permute.xlu0 %9277
    %9279 = vrot.lane.b32.xlu0 %v9000, 16
    %v9280 = vpop.permute.xlu0 %9279
    %9281 = vrot.lane.b32.xlu0 %v9005, 16
    %v9282 = vpop.permute.xlu0 %9281
    %9283 = vrot.lane.b32.xlu0 %v9008, 16
    %v9284 = vpop.permute.xlu0 %9283
    %9317 = vrot.lane.b32.xlu0 %v9062, 24
    %v9318 = vpop.permute.xlu0 %9317
    %9319 = vrot.lane.b32.xlu0 %v9065, 24
    %v9320 = vpop.permute.xlu0 %9319
    %9321 = vrot.lane.b32.xlu0 %v9070, 24
    %v9322 = vpop.permute.xlu0 %9321
    %9323 = vrot.lane.b32.xlu0 %v9073, 24
    %v9324 = vpop.permute.xlu0 %9323
    %9325 = vrot.lane.b32.xlu0 %v9078, 24
    %v9326 = vpop.permute.xlu0 %9325
    %9327 = vrot.lane.b32.xlu0 %v9081, 24
    %v9328 = vpop.permute.xlu0 %9327
    %9329 = vrot.lane.b32.xlu0 %v9086, 24
    %v9330 = vpop.permute.xlu0 %9329
    %9331 = vrot.lane.b32.xlu0 %v9089, 24
    %v9332 = vpop.permute.xlu0 %9331
    %9333 = vrot.lane.b32.xlu0 %v9143, 24
    %v9334 = vpop.permute.xlu0 %9333
    %9335 = vrot.lane.b32.xlu0 %v9146, 24
    %v9336 = vpop.permute.xlu0 %9335
    %9337 = vrot.lane.b32.xlu0 %v9151, 24
    %v9338 = vpop.permute.xlu0 %9337
    %9339 = vrot.lane.b32.xlu0 %v9154, 24
    %v9340 = vpop.permute.xlu0 %9339
    %9341 = vrot.lane.b32.xlu0 %v9159, 24
    %v9342 = vpop.permute.xlu0 %9341
    %9343 = vrot.lane.b32.xlu0 %v9162, 24
    %v9344 = vpop.permute.xlu0 %9343
    %9345 = vrot.lane.b32.xlu0 %v9167, 24
    %v9346 = vpop.permute.xlu0 %9345
    %9347 = vrot.lane.b32.xlu0 %v9170, 24
    %v9348 = vpop.permute.xlu0 %9347
    %v9365 = vsel %vm491, %v8576, %v9190
    %v9366 = vsel %vm491, %v8579, %v9192
    %v9367 = vsel %vm491, %v8584, %v9194
    %v9368 = vsel %vm491, %v8587, %v9196
    %v9369 = vsel %vm491, %v8592, %v9198
    %v9370 = vsel %vm491, %v8595, %v9200
    %v9371 = vsel %vm491, %v8600, %v9202
    %v9372 = vsel %vm491, %v8603, %v9204
    %v9373 = vsel %vm491, %v8657, %v9206
    %v9374 = vsel %vm491, %v8660, %v9208
    %v9375 = vsel %vm491, %v8665, %v9210
    %v9376 = vsel %vm491, %v8668, %v9212
    %v9377 = vsel %vm491, %v8673, %v9214
    %v9378 = vsel %vm491, %v8676, %v9216
    %v9379 = vsel %vm491, %v8681, %v9218
    %v9380 = vsel %vm491, %v8684, %v9220
    %v9381 = vsel %vm889, %v9365, %v9254
    %v9382 = vsel %vm889, %v9366, %v9256
    %v9383 = vsel %vm889, %v9367, %v9258
    %v9384 = vsel %vm889, %v9368, %v9260
    %v9385 = vsel %vm889, %v9369, %v9262
    %v9386 = vsel %vm889, %v9370, %v9264
    %v9387 = vsel %vm889, %v9371, %v9266
    %v9388 = vsel %vm889, %v9372, %v9268
    %v9389 = vsel %vm889, %v9373, %v9270
    %v9390 = vsel %vm889, %v9374, %v9272
    %v9391 = vsel %vm889, %v9375, %v9274
    %v9392 = vsel %vm889, %v9376, %v9276
    %v9393 = vsel %vm889, %v9377, %v9278
    %v9394 = vsel %vm889, %v9378, %v9280
    %v9395 = vsel %vm889, %v9379, %v9282
    %v9396 = vsel %vm889, %v9380, %v9284
    %v9397 = vsel %vm1506, %v9381, %v9318
    %v9398 = vsel %vm1506, %v9382, %v9320
    %v9399 = vsel %vm1506, %v9383, %v9322
    %v9400 = vsel %vm1506, %v9384, %v9324
    %v9401 = vsel %vm1506, %v9385, %v9326
    %v9402 = vsel %vm1506, %v9386, %v9328
    %v9403 = vsel %vm1506, %v9387, %v9330
    %v9404 = vsel %vm1506, %v9388, %v9332
    %v9405 = vsel %vm1506, %v9389, %v9334
    %v9406 = vsel %vm1506, %v9390, %v9336
    %v9407 = vsel %vm1506, %v9391, %v9338
    %v9408 = vsel %vm1506, %v9392, %v9340
    %v9409 = vsel %vm1506, %v9393, %v9342
    %v9410 = vsel %vm1506, %v9394, %v9344
    %v9411 = vsel %vm1506, %v9395, %v9346
    %v9412 = vsel %vm1506, %v9396, %v9348
    %s9413 = scalar_lea.vmem %s6, 32
    %v9414 = vld [vmem:[%s9413] sm:$0xf]
    %v9415 = vld [vmem:[%s9413 + $0x4] sm:$0xf]
    %v9416 = vld [vmem:[%s9413 + $0x8] sm:$0xf]
    %v9417 = vld [vmem:[%s9413 + $0xc] sm:$0xf]
    %v9418 = vpack.c.bf16 %v9398, %v9397
    %v9419 = vpack.c.bf16 %v9400, %v9399
    %v9420 = vpack.c.bf16 %v9402, %v9401
    %v9421 = vpack.c.bf16 %v9404, %v9403
    %v9422 = vpack.c.bf16 %v9406, %v9405
    %v9423 = vpack.c.bf16 %v9408, %v9407
    %v9424 = vpack.c.bf16 %v9410, %v9409
    %v9425 = vpack.c.bf16 %v9412, %v9411
    %v9426 = vlaneseq
    %v9427 = vshrl.u32 %v9426, 7
    %v9428 = vsub.s32 0, %v9427
    %v9429 = vrot.slane %v52, %v9428
    %v9434 = vunpack.c.l.b16 %v9414
    %v9435 = vunpack.c.l.b16 %v9415
    %v9436 = vunpack.c.l.b16 %v9416
    %v9437 = vunpack.c.l.b16 %v9417
    %v9438 = vpack.c.b16 %v9435, %v9434
    %v9439 = vpack.c.b16 %v9437, %v9436
    %v9443 = vsel %vm105, %v9418, 0
    %v9446 = vsel %vm105, %v9419, 0
    %v9449 = vsel %vm105, %v9420, 0
    %v9452 = vsel %vm105, %v9421, 0
    %v9455 = vsel %vm105, %v9422, 0
    %v9458 = vsel %vm105, %v9423, 0
    %v9461 = vsel %vm105, %v9424, 0
    %v9464 = vsel %vm105, %v9425, 0
    %9466 = vmatprep.subr.bf16.mxu0 0
    %9467 = vmatpush1.bf16.msra.mxu0 %v9438
    %9468 = vmatprep.subr.bf16.mxu0 0
    %9469 = vmatpush1.bf16.msra.mxu0 %v9439
    %9470 = vmatprep.subr.bf16.mxu0 0
    %9471 = vmatpush1.bf16.msra.mxu0 0
    %9472 = vmatprep.subr.bf16.mxu0 0
    %9473 = vmatpush1.bf16.msra.mxu0 0
    %9474 = vmatprep.subr.bf16.mxu0 0
    %9475 = vmatpush1.bf16.msra.mxu0 0
    %9476 = vmatprep.subr.bf16.mxu0 0
    %9477 = vmatpush1.bf16.msra.mxu0 0
    %9478 = vmatprep.subr.bf16.mxu0 0
    %9479 = vmatpush1.bf16.msra.mxu0 0
    %9480 = vmatprep.subr.bf16.mxu0 0
    %9481 = vmatpush1.bf16.msra.mxu0 0
    %9482 = vmatprep.subr.bf16.mxu0 0
    %9483 = vmatpush1.bf16.msra.mxu0 0
    %9484 = vmatprep.subr.bf16.mxu0 0
    %9485 = vmatpush1.bf16.msra.mxu0 0
    %9486 = vmatprep.subr.bf16.mxu0 0
    %9487 = vmatpush1.bf16.msra.mxu0 0
    %9488 = vmatprep.subr.bf16.mxu0 0
    %9489 = vmatpush1.bf16.msra.mxu0 0
    %9490 = vmatprep.subr.bf16.mxu0 0
    %9491 = vmatpush1.bf16.msra.mxu0 0
    %9492 = vmatprep.subr.bf16.mxu0 0
    %9493 = vmatpush1.bf16.msra.mxu0 0
    %9494 = vmatprep.subr.bf16.mxu0 0
    %9495 = vmatpush1.bf16.msra.mxu0 0
    %9496 = vmatprep.subr.bf16.mxu0 0
    %9497 = vmatpush1.bf16.msra.mxu0 0
    %9498 = vmatprep.mubr.bf16.mxu0 0
    %9499 = vmatmul.mubr.bf16.gmra.mrb[0].mxu0 %v9443
    %v9500 = vpop.f32.mrb[0].mxu0
    %v9501 = vadd.f32 %v9429, %v9500
    %v9502 = vpop.f32.mrb[0].mxu0
    %v9503 = vpop.f32.mrb[0].mxu0
    %v9504 = vadd.f32 %v9429, %v9503
    %v9505 = vpop.f32.mrb[0].mxu0
    %9506 = vmatprep.mubr.bf16.mxu0 0
    %9507 = vmatmul.mubr.bf16.gmra.mrb[0].mxu0 %v9446
    %v9508 = vpop.f32.mrb[0].mxu0
    %v9509 = vadd.f32 %v9429, %v9508
    %v9510 = vpop.f32.mrb[0].mxu0
    %v9511 = vpop.f32.mrb[0].mxu0
    %v9512 = vadd.f32 %v9429, %v9511
    %v9513 = vpop.f32.mrb[0].mxu0
    %9514 = vmatprep.mubr.bf16.mxu0 0
    %9515 = vmatmul.mubr.bf16.gmra.mrb[0].mxu0 %v9449
    %v9516 = vpop.f32.mrb[0].mxu0
    %v9517 = vadd.f32 %v9429, %v9516
    %v9518 = vpop.f32.mrb[0].mxu0
    %v9519 = vpop.f32.mrb[0].mxu0
    %v9520 = vadd.f32 %v9429, %v9519
    %v9521 = vpop.f32.mrb[0].mxu0
    %9522 = vmatprep.mubr.bf16.mxu0 0
    %9523 = vmatmul.mubr.bf16.gmra.mrb[0].mxu0 %v9452
    %v9524 = vpop.f32.mrb[0].mxu0
    %v9525 = vadd.f32 %v9429, %v9524
    %v9526 = vpop.f32.mrb[0].mxu0
    %v9527 = vpop.f32.mrb[0].mxu0
    %v9528 = vadd.f32 %v9429, %v9527
    %v9529 = vpop.f32.mrb[0].mxu0
    %9530 = vmatprep.mubr.bf16.mxu0 0
    %9531 = vmatmul.mubr.bf16.gmra.mrb[0].mxu0 %v9455
    %v9532 = vpop.f32.mrb[0].mxu0
    %v9533 = vadd.f32 %v9429, %v9532
    %v9534 = vpop.f32.mrb[0].mxu0
    %v9535 = vpop.f32.mrb[0].mxu0
    %v9536 = vadd.f32 %v9429, %v9535
    %v9537 = vpop.f32.mrb[0].mxu0
    %9538 = vmatprep.mubr.bf16.mxu0 0
    %9539 = vmatmul.mubr.bf16.gmra.mrb[0].mxu0 %v9458
    %v9540 = vpop.f32.mrb[0].mxu0
    %v9541 = vadd.f32 %v9429, %v9540
    %v9542 = vpop.f32.mrb[0].mxu0
    %v9543 = vpop.f32.mrb[0].mxu0
    %v9544 = vadd.f32 %v9429, %v9543
    %v9545 = vpop.f32.mrb[0].mxu0
    %9546 = vmatprep.mubr.bf16.mxu0 0
    %9547 = vmatmul.mubr.bf16.gmra.mrb[0].mxu0 %v9461
    %v9548 = vpop.f32.mrb[0].mxu0
    %v9549 = vadd.f32 %v9429, %v9548
    %v9550 = vpop.f32.mrb[0].mxu0
    %v9551 = vpop.f32.mrb[0].mxu0
    %v9552 = vadd.f32 %v9429, %v9551
    %v9553 = vpop.f32.mrb[0].mxu0
    %9554 = vmatprep.mubr.bf16.mxu0 0
    %9555 = vmatmul.mubr.bf16.gmra.mrb[0].mxu0 %v9464
    %v9556 = vpop.f32.mrb[0].mxu0
    %v9557 = vadd.f32 %v9429, %v9556
    %v9558 = vpop.f32.mrb[0].mxu0
    %v9559 = vpop.f32.mrb[0].mxu0
    %v9560 = vadd.f32 %v9429, %v9559
    %v9561 = vpop.f32.mrb[0].mxu0
    %9562 = vdwg.mxu0
    %v9563 = vmul.f32 %v9501, %v9501
    %v9564 = vmul.f32 %v9504, %v9504
    %v9565 = vmul.f32 %v9509, %v9509
    %v9566 = vmul.f32 %v9512, %v9512
    %v9567 = vmul.f32 %v9517, %v9517
    %v9568 = vmul.f32 %v9520, %v9520
    %v9569 = vmul.f32 %v9525, %v9525
    %v9570 = vmul.f32 %v9528, %v9528
    %v9571 = vmul.f32 %v9533, %v9533
    %v9572 = vmul.f32 %v9536, %v9536
    %v9573 = vmul.f32 %v9541, %v9541
    %v9574 = vmul.f32 %v9544, %v9544
    %v9575 = vmul.f32 %v9549, %v9549
    %v9576 = vmul.f32 %v9552, %v9552
    %v9577 = vmul.f32 %v9557, %v9557
    %v9578 = vmul.f32 %v9560, %v9560
    %v9579 = vsel %vm105, %v9563, 0.0
    %9580 = vadd.xlane.f32.xlu0 %v9579
    %v9581 = vpop.xlane.xlu0 %9580
    %v9582 = vsel %vm105, %v9564, 0.0
    %9583 = vadd.xlane.f32.xlu0 %v9582
    %v9584 = vpop.xlane.xlu0 %9583
    %v9585 = vsel %vm105, %v9565, 0.0
    %9586 = vadd.xlane.f32.xlu0 %v9585
    %v9587 = vpop.xlane.xlu0 %9586
    %v9588 = vsel %vm105, %v9566, 0.0
    %9589 = vadd.xlane.f32.xlu0 %v9588
    %v9590 = vpop.xlane.xlu0 %9589
    %v9591 = vsel %vm105, %v9567, 0.0
    %9592 = vadd.xlane.f32.xlu0 %v9591
    %v9593 = vpop.xlane.xlu0 %9592
    %v9594 = vsel %vm105, %v9568, 0.0
    %9595 = vadd.xlane.f32.xlu0 %v9594
    %v9596 = vpop.xlane.xlu0 %9595
    %v9597 = vsel %vm105, %v9569, 0.0
    %9598 = vadd.xlane.f32.xlu0 %v9597
    %v9599 = vpop.xlane.xlu0 %9598
    %v9600 = vsel %vm105, %v9570, 0.0
    %9601 = vadd.xlane.f32.xlu0 %v9600
    %v9602 = vpop.xlane.xlu0 %9601
    %v9603 = vsel %vm105, %v9571, 0.0
    %9604 = vadd.xlane.f32.xlu0 %v9603
    %v9605 = vpop.xlane.xlu0 %9604
    %v9606 = vsel %vm105, %v9572, 0.0
    %9607 = vadd.xlane.f32.xlu0 %v9606
    %v9608 = vpop.xlane.xlu0 %9607
    %v9609 = vsel %vm105, %v9573, 0.0
    %9610 = vadd.xlane.f32.xlu0 %v9609
    %v9611 = vpop.xlane.xlu0 %9610
    %v9612 = vsel %vm105, %v9574, 0.0
    %9613 = vadd.xlane.f32.xlu0 %v9612
    %v9614 = vpop.xlane.xlu0 %9613
    %v9615 = vsel %vm105, %v9575, 0.0
    %9616 = vadd.xlane.f32.xlu0 %v9615
    %v9617 = vpop.xlane.xlu0 %9616
    %v9618 = vsel %vm105, %v9576, 0.0
    %9619 = vadd.xlane.f32.xlu0 %v9618
    %v9620 = vpop.xlane.xlu0 %9619
    %v9621 = vsel %vm105, %v9577, 0.0
    %9622 = vadd.xlane.f32.xlu0 %v9621
    %v9623 = vpop.xlane.xlu0 %9622
    %v9624 = vsel %vm105, %v9578, 0.0
    %9625 = vadd.xlane.f32.xlu0 %v9624
    %v9626 = vpop.xlane.xlu0 %9625
    %v9627 = vmul.f32 %v9581, %v1604
    %v9628 = vmul.f32 %v9584, %v1604
    %v9629 = vmul.f32 %v9587, %v1604
    %v9630 = vmul.f32 %v9590, %v1604
    %v9631 = vmul.f32 %v9593, %v1604
    %v9632 = vmul.f32 %v9596, %v1604
    %v9633 = vmul.f32 %v9599, %v1604
    %v9634 = vmul.f32 %v9602, %v1604
    %v9635 = vmul.f32 %v9605, %v1604
    %v9636 = vmul.f32 %v9608, %v1604
    %v9637 = vmul.f32 %v9611, %v1604
    %v9638 = vmul.f32 %v9614, %v1604
    %v9639 = vmul.f32 %v9617, %v1604
    %v9640 = vmul.f32 %v9620, %v1604
    %v9641 = vmul.f32 %v9623, %v1604
    %v9642 = vmul.f32 %v9626, %v1604
    %v9643 = vadd.f32 %v9627, 1e-06
    %v9644 = vadd.f32 %v9628, 1e-06
    %v9645 = vadd.f32 %v9629, 1e-06
    %v9646 = vadd.f32 %v9630, 1e-06
    %v9647 = vadd.f32 %v9631, 1e-06
    %v9648 = vadd.f32 %v9632, 1e-06
    %v9649 = vadd.f32 %v9633, 1e-06
    %v9650 = vadd.f32 %v9634, 1e-06
    %v9651 = vadd.f32 %v9635, 1e-06
    %v9652 = vadd.f32 %v9636, 1e-06
    %v9653 = vadd.f32 %v9637, 1e-06
    %v9654 = vadd.f32 %v9638, 1e-06
    %v9655 = vadd.f32 %v9639, 1e-06
    %v9656 = vadd.f32 %v9640, 1e-06
    %v9657 = vadd.f32 %v9641, 1e-06
    %v9658 = vadd.f32 %v9642, 1e-06
    %v9659 = vrsqrt.pop %v9643
    %v9660 = vrsqrt.pop %v9644
    %v9661 = vrsqrt.pop %v9645
    %v9662 = vrsqrt.pop %v9646
    %v9663 = vrsqrt.pop %v9647
    %v9664 = vrsqrt.pop %v9648
    %v9665 = vrsqrt.pop %v9649
    %v9666 = vrsqrt.pop %v9650
    %v9667 = vrsqrt.pop %v9651
    %v9668 = vrsqrt.pop %v9652
    %v9669 = vrsqrt.pop %v9653
    %v9670 = vrsqrt.pop %v9654
    %v9671 = vrsqrt.pop %v9655
    %v9672 = vrsqrt.pop %v9656
    %v9673 = vrsqrt.pop %v9657
    %v9674 = vrsqrt.pop %v9658
    %v9675 = vmul.f32 %v9501, %v9659
    %v9676 = vmul.f32 %v9504, %v9660
    %v9677 = vmul.f32 %v9509, %v9661
    %v9678 = vmul.f32 %v9512, %v9662
    %v9679 = vmul.f32 %v9517, %v9663
    %v9680 = vmul.f32 %v9520, %v9664
    %v9681 = vmul.f32 %v9525, %v9665
    %v9682 = vmul.f32 %v9528, %v9666
    %v9683 = vmul.f32 %v9533, %v9667
    %v9684 = vmul.f32 %v9536, %v9668
    %v9685 = vmul.f32 %v9541, %v9669
    %v9686 = vmul.f32 %v9544, %v9670
    %v9687 = vmul.f32 %v9549, %v9671
    %v9688 = vmul.f32 %v9552, %v9672
    %v9689 = vmul.f32 %v9557, %v9673
    %v9690 = vmul.f32 %v9560, %v9674
    %v9691 = vadd.f32 %v9675, %v165
    %v9692 = vadd.f32 %v9676, %v168
    %v9693 = vadd.f32 %v9677, %v173
    %v9694 = vadd.f32 %v9678, %v176
    %v9695 = vadd.f32 %v9679, %v181
    %v9696 = vadd.f32 %v9680, %v184
    %v9697 = vadd.f32 %v9681, %v189
    %v9698 = vadd.f32 %v9682, %v192
    %v9699 = vadd.f32 %v9683, %v197
    %v9700 = vadd.f32 %v9684, %v200
    %v9701 = vadd.f32 %v9685, %v205
    %v9702 = vadd.f32 %v9686, %v208
    %v9703 = vadd.f32 %v9687, %v213
    %v9704 = vadd.f32 %v9688, %v216
    %v9705 = vadd.f32 %v9689, %v221
    %v9706 = vadd.f32 %v9690, %v224
    %s9707 = scalar_lea.vmem %s8, 16
    %v9708 = vld [vmem:[%s9707] sm:$0xf]
    %v9709 = vld [vmem:[%s9707 + $0x4] sm:$0xf]
    %v9710 = vld [vmem:[%s9707 + $0x8] sm:$0xf]
    %v9711 = vld [vmem:[%s9707 + $0xc] sm:$0xf]
    %v9712 = vpack.c.bf16 %v9692, %v9691
    %v9713 = vpack.c.bf16 %v9694, %v9693
    %v9714 = vpack.c.bf16 %v9696, %v9695
    %v9715 = vpack.c.bf16 %v9698, %v9697
    %v9716 = vpack.c.bf16 %v9700, %v9699
    %v9717 = vpack.c.bf16 %v9702, %v9701
    %v9718 = vpack.c.bf16 %v9704, %v9703
    %v9719 = vpack.c.bf16 %v9706, %v9705
    %v9720 = vlaneseq
    %v9721 = vshrl.u32 %v9720, 7
    %v9722 = vsub.s32 0, %v9721
    %v9723 = vrot.slane %v54, %v9722
    %v9728 = vunpack.c.l.b16 %v9708
    %v9729 = vunpack.c.l.b16 %v9709
    %v9730 = vunpack.c.l.b16 %v9710
    %v9731 = vunpack.c.l.b16 %v9711
    %v9732 = vpack.c.b16 %v9729, %v9728
    %v9733 = vpack.c.b16 %v9731, %v9730
    %v9737 = vsel %vm105, %v9712, 0
    %v9740 = vsel %vm105, %v9713, 0
    %v9743 = vsel %vm105, %v9714, 0
    %v9746 = vsel %vm105, %v9715, 0
    %v9749 = vsel %vm105, %v9716, 0
    %v9752 = vsel %vm105, %v9717, 0
    %v9755 = vsel %vm105, %v9718, 0
    %v9758 = vsel %vm105, %v9719, 0
    %9760 = vmatprep.subr.bf16.mxu0 0
    %9761 = vmatpush1.bf16.msra.mxu0 %v9732
    %9762 = vmatprep.subr.bf16.mxu0 0
    %9763 = vmatpush1.bf16.msra.mxu0 %v9733
    %9764 = vmatprep.subr.bf16.mxu0 0
    %9765 = vmatpush1.bf16.msra.mxu0 0
    %9766 = vmatprep.subr.bf16.mxu0 0
    %9767 = vmatpush1.bf16.msra.mxu0 0
    %9768 = vmatprep.subr.bf16.mxu0 0
    %9769 = vmatpush1.bf16.msra.mxu0 0
    %9770 = vmatprep.subr.bf16.mxu0 0
    %9771 = vmatpush1.bf16.msra.mxu0 0
    %9772 = vmatprep.subr.bf16.mxu0 0
    %9773 = vmatpush1.bf16.msra.mxu0 0
    %9774 = vmatprep.subr.bf16.mxu0 0
    %9775 = vmatpush1.bf16.msra.mxu0 0
    %9776 = vmatprep.subr.bf16.mxu0 0
    %9777 = vmatpush1.bf16.msra.mxu0 0
    %9778 = vmatprep.subr.bf16.mxu0 0
    %9779 = vmatpush1.bf16.msra.mxu0 0
    %9780 = vmatprep.subr.bf16.mxu0 0
    %9781 = vmatpush1.bf16.msra.mxu0 0
    %9782 = vmatprep.subr.bf16.mxu0 0
    %9783 = vmatpush1.bf16.msra.mxu0 0
    %9784 = vmatprep.subr.bf16.mxu0 0
    %9785 = vmatpush1.bf16.msra.mxu0 0
    %9786 = vmatprep.subr.bf16.mxu0 0
    %9787 = vmatpush1.bf16.msra.mxu0 0
    %9788 = vmatprep.subr.bf16.mxu0 0
    %9789 = vmatpush1.bf16.msra.mxu0 0
    %9790 = vmatprep.subr.bf16.mxu0 0
    %9791 = vmatpush1.bf16.msra.mxu0 0
    %9792 = vmatprep.mubr.bf16.mxu0 0
    %9793 = vmatmul.mubr.bf16.gmra.mrb[0].mxu0 %v9737
    %v9794 = vpop.f32.mrb[0].mxu0
    %v9795 = vadd.f32 %v9723, %v9794
    %v9796 = vpop.f32.mrb[0].mxu0
    %v9797 = vpop.f32.mrb[0].mxu0
    %v9798 = vadd.f32 %v9723, %v9797
    %v9799 = vpop.f32.mrb[0].mxu0
    %9800 = vmatprep.mubr.bf16.mxu0 0
    %9801 = vmatmul.mubr.bf16.gmra.mrb[0].mxu0 %v9740
    %v9802 = vpop.f32.mrb[0].mxu0
    %v9803 = vadd.f32 %v9723, %v9802
    %v9804 = vpop.f32.mrb[0].mxu0
    %v9805 = vpop.f32.mrb[0].mxu0
    %v9806 = vadd.f32 %v9723, %v9805
    %v9807 = vpop.f32.mrb[0].mxu0
    %9808 = vmatprep.mubr.bf16.mxu0 0
    %9809 = vmatmul.mubr.bf16.gmra.mrb[0].mxu0 %v9743
    %v9810 = vpop.f32.mrb[0].mxu0
    %v9811 = vadd.f32 %v9723, %v9810
    %v9812 = vpop.f32.mrb[0].mxu0
    %v9813 = vpop.f32.mrb[0].mxu0
    %v9814 = vadd.f32 %v9723, %v9813
    %v9815 = vpop.f32.mrb[0].mxu0
    %9816 = vmatprep.mubr.bf16.mxu0 0
    %9817 = vmatmul.mubr.bf16.gmra.mrb[0].mxu0 %v9746
    %v9818 = vpop.f32.mrb[0].mxu0
    %v9819 = vadd.f32 %v9723, %v9818
    %v9820 = vpop.f32.mrb[0].mxu0
    %v9821 = vpop.f32.mrb[0].mxu0
    %v9822 = vadd.f32 %v9723, %v9821
    %v9823 = vpop.f32.mrb[0].mxu0
    %9824 = vmatprep.mubr.bf16.mxu0 0
    %9825 = vmatmul.mubr.bf16.gmra.mrb[0].mxu0 %v9749
    %v9826 = vpop.f32.mrb[0].mxu0
    %v9827 = vadd.f32 %v9723, %v9826
    %v9828 = vpop.f32.mrb[0].mxu0
    %v9829 = vpop.f32.mrb[0].mxu0
    %v9830 = vadd.f32 %v9723, %v9829
    %v9831 = vpop.f32.mrb[0].mxu0
    %9832 = vmatprep.mubr.bf16.mxu0 0
    %9833 = vmatmul.mubr.bf16.gmra.mrb[0].mxu0 %v9752
    %v9834 = vpop.f32.mrb[0].mxu0
    %v9835 = vadd.f32 %v9723, %v9834
    %v9836 = vpop.f32.mrb[0].mxu0
    %v9837 = vpop.f32.mrb[0].mxu0
    %v9838 = vadd.f32 %v9723, %v9837
    %v9839 = vpop.f32.mrb[0].mxu0
    %9840 = vmatprep.mubr.bf16.mxu0 0
    %9841 = vmatmul.mubr.bf16.gmra.mrb[0].mxu0 %v9755
    %v9842 = vpop.f32.mrb[0].mxu0
    %v9843 = vadd.f32 %v9723, %v9842
    %v9844 = vpop.f32.mrb[0].mxu0
    %v9845 = vpop.f32.mrb[0].mxu0
    %v9846 = vadd.f32 %v9723, %v9845
    %v9847 = vpop.f32.mrb[0].mxu0
    %9848 = vmatprep.mubr.bf16.mxu0 0
    %9849 = vmatmul.mubr.bf16.gmra.mrb[0].mxu0 %v9758
    %v9850 = vpop.f32.mrb[0].mxu0
    %v9851 = vadd.f32 %v9723, %v9850
    %v9852 = vpop.f32.mrb[0].mxu0
    %v9853 = vpop.f32.mrb[0].mxu0
    %v9854 = vadd.f32 %v9723, %v9853
    %v9855 = vpop.f32.mrb[0].mxu0
    %9856 = vdwg.mxu0
    %vm9857 = vcmp.gt.f32.partialorder %v9795, 0.0
    %vm9858 = vcmp.gt.f32.partialorder %v9798, 0.0
    %vm9859 = vcmp.gt.f32.partialorder %v9803, 0.0
    %vm9860 = vcmp.gt.f32.partialorder %v9806, 0.0
    %vm9861 = vcmp.gt.f32.partialorder %v9811, 0.0
    %vm9862 = vcmp.gt.f32.partialorder %v9814, 0.0
    %vm9863 = vcmp.gt.f32.partialorder %v9819, 0.0
    %vm9864 = vcmp.gt.f32.partialorder %v9822, 0.0
    %vm9865 = vcmp.gt.f32.partialorder %v9827, 0.0
    %vm9866 = vcmp.gt.f32.partialorder %v9830, 0.0
    %vm9867 = vcmp.gt.f32.partialorder %v9835, 0.0
    %vm9868 = vcmp.gt.f32.partialorder %v9838, 0.0
    %vm9869 = vcmp.gt.f32.partialorder %v9843, 0.0
    %vm9870 = vcmp.gt.f32.partialorder %v9846, 0.0
    %vm9871 = vcmp.gt.f32.partialorder %v9851, 0.0
    %vm9872 = vcmp.gt.f32.partialorder %v9854, 0.0
    %v9873 = vmin.f32 %v9795, 0.0
    %v9874 = vmin.f32 %v9798, 0.0
    %v9875 = vmin.f32 %v9803, 0.0
    %v9876 = vmin.f32 %v9806, 0.0
    %v9877 = vmin.f32 %v9811, 0.0
    %v9878 = vmin.f32 %v9814, 0.0
    %v9879 = vmin.f32 %v9819, 0.0
    %v9880 = vmin.f32 %v9822, 0.0
    %v9881 = vmin.f32 %v9827, 0.0
    %v9882 = vmin.f32 %v9830, 0.0
    %v9883 = vmin.f32 %v9835, 0.0
    %v9884 = vmin.f32 %v9838, 0.0
    %v9885 = vmin.f32 %v9843, 0.0
    %v9886 = vmin.f32 %v9846, 0.0
    %v9887 = vmin.f32 %v9851, 0.0
    %v9888 = vmin.f32 %v9854, 0.0
    %v9889 = vmul.f32 %v9873, 1.442695
    %v9890 = vpow.pop %v9889
    %v9891 = vmul.f32 %v9874, 1.442695
    %v9892 = vpow.pop %v9891
    %v9893 = vmul.f32 %v9875, 1.442695
    %v9894 = vpow.pop %v9893
    %v9895 = vmul.f32 %v9876, 1.442695
    %v9896 = vpow.pop %v9895
    %v9897 = vmul.f32 %v9877, 1.442695
    %v9898 = vpow.pop %v9897
    %v9899 = vmul.f32 %v9878, 1.442695
    %v9900 = vpow.pop %v9899
    %v9901 = vmul.f32 %v9879, 1.442695
    %v9902 = vpow.pop %v9901
    %v9903 = vmul.f32 %v9880, 1.442695
    %v9904 = vpow.pop %v9903
    %v9905 = vmul.f32 %v9881, 1.442695
    %v9906 = vpow.pop %v9905
    %v9907 = vmul.f32 %v9882, 1.442695
    %v9908 = vpow.pop %v9907
    %v9909 = vmul.f32 %v9883, 1.442695
    %v9910 = vpow.pop %v9909
    %v9911 = vmul.f32 %v9884, 1.442695
    %v9912 = vpow.pop %v9911
    %v9913 = vmul.f32 %v9885, 1.442695
    %v9914 = vpow.pop %v9913
    %v9915 = vmul.f32 %v9886, 1.442695
    %v9916 = vpow.pop %v9915
    %v9917 = vmul.f32 %v9887, 1.442695
    %v9918 = vpow.pop %v9917
    %v9919 = vmul.f32 %v9888, 1.442695
    %v9920 = vpow.pop %v9919
    %v9921 = vsub.f32 %v9890, 1.0
    %v9922 = vsub.f32 %v9892, 1.0
    %v9923 = vsub.f32 %v9894, 1.0
    %v9924 = vsub.f32 %v9896, 1.0
    %v9925 = vsub.f32 %v9898, 1.0
    %v9926 = vsub.f32 %v9900, 1.0
    %v9927 = vsub.f32 %v9902, 1.0
    %v9928 = vsub.f32 %v9904, 1.0
    %v9929 = vsub.f32 %v9906, 1.0
    %v9930 = vsub.f32 %v9908, 1.0
    %v9931 = vsub.f32 %v9910, 1.0
    %v9932 = vsub.f32 %v9912, 1.0
    %v9933 = vsub.f32 %v9914, 1.0
    %v9934 = vsub.f32 %v9916, 1.0
    %v9935 = vsub.f32 %v9918, 1.0
    %v9936 = vsub.f32 %v9920, 1.0
    %v9937 = vmul.f32 %v9921, 1.6732632
    %v9938 = vmul.f32 %v9922, 1.6732632
    %v9939 = vmul.f32 %v9923, 1.6732632
    %v9940 = vmul.f32 %v9924, 1.6732632
    %v9941 = vmul.f32 %v9925, 1.6732632
    %v9942 = vmul.f32 %v9926, 1.6732632
    %v9943 = vmul.f32 %v9927, 1.6732632
    %v9944 = vmul.f32 %v9928, 1.6732632
    %v9945 = vmul.f32 %v9929, 1.6732632
    %v9946 = vmul.f32 %v9930, 1.6732632
    %v9947 = vmul.f32 %v9931, 1.6732632
    %v9948 = vmul.f32 %v9932, 1.6732632
    %v9949 = vmul.f32 %v9933, 1.6732632
    %v9950 = vmul.f32 %v9934, 1.6732632
    %v9951 = vmul.f32 %v9935, 1.6732632
    %v9952 = vmul.f32 %v9936, 1.6732632
    %v9953 = vsel %vm9857, %v9795, %v9937
    %v9954 = vsel %vm9858, %v9798, %v9938
    %v9955 = vsel %vm9859, %v9803, %v9939
    %v9956 = vsel %vm9860, %v9806, %v9940
    %v9957 = vsel %vm9861, %v9811, %v9941
    %v9958 = vsel %vm9862, %v9814, %v9942
    %v9959 = vsel %vm9863, %v9819, %v9943
    %v9960 = vsel %vm9864, %v9822, %v9944
    %v9961 = vsel %vm9865, %v9827, %v9945
    %v9962 = vsel %vm9866, %v9830, %v9946
    %v9963 = vsel %vm9867, %v9835, %v9947
    %v9964 = vsel %vm9868, %v9838, %v9948
    %v9965 = vsel %vm9869, %v9843, %v9949
    %v9966 = vsel %vm9870, %v9846, %v9950
    %v9967 = vsel %vm9871, %v9851, %v9951
    %v9968 = vsel %vm9872, %v9854, %v9952
    %v9969 = vmul.f32 %v9953, 1.050701
    %v9970 = vmul.f32 %v9954, 1.050701
    %v9971 = vmul.f32 %v9955, 1.050701
    %v9972 = vmul.f32 %v9956, 1.050701
    %v9973 = vmul.f32 %v9957, 1.050701
    %v9974 = vmul.f32 %v9958, 1.050701
    %v9975 = vmul.f32 %v9959, 1.050701
    %v9976 = vmul.f32 %v9960, 1.050701
    %v9977 = vmul.f32 %v9961, 1.050701
    %v9978 = vmul.f32 %v9962, 1.050701
    %v9979 = vmul.f32 %v9963, 1.050701
    %v9980 = vmul.f32 %v9964, 1.050701
    %v9981 = vmul.f32 %v9965, 1.050701
    %v9982 = vmul.f32 %v9966, 1.050701
    %v9983 = vmul.f32 %v9967, 1.050701
    %v9984 = vmul.f32 %v9968, 1.050701
    %s9985 = scalar_lea.vmem %s10, 32
    %v9986 = vld [vmem:[%s9985] sm:$0xf]
    %v9987 = vld [vmem:[%s9985 + $0x4] sm:$0xf]
    %v9988 = vld [vmem:[%s9985 + $0x8] sm:$0xf]
    %v9989 = vld [vmem:[%s9985 + $0xc] sm:$0xf]
    %v9990 = vld [vmem:[%s9985 + $0x10] sm:$0xf]
    %v9991 = vld [vmem:[%s9985 + $0x14] sm:$0xf]
    %v9992 = vld [vmem:[%s9985 + $0x18] sm:$0xf]
    %v9993 = vld [vmem:[%s9985 + $0x1c] sm:$0xf]
    %v9994 = vpack.c.bf16 %v9970, %v9969
    %v9995 = vpack.c.bf16 %v9972, %v9971
    %v9996 = vpack.c.bf16 %v9974, %v9973
    %v9997 = vpack.c.bf16 %v9976, %v9975
    %v9998 = vpack.c.bf16 %v9978, %v9977
    %v9999 = vpack.c.bf16 %v9980, %v9979
    %v10000 = vpack.c.bf16 %v9982, %v9981
    %v10001 = vpack.c.bf16 %v9984, %v9983
    %v10002 = vlaneseq
    %v10003 = vshrl.u32 %v10002, 7
    %v10004 = vsub.s32 0, %v10003
    %v10005 = vrot.slane %v57, %v10004
    %v10014 = vunpack.c.l.b16 %v9986
    %v10015 = vunpack.c.l.b16 %v9987
    %v10016 = vunpack.c.l.b16 %v9988
    %v10017 = vunpack.c.l.b16 %v9989
    %v10018 = vunpack.c.l.b16 %v9990
    %v10019 = vunpack.c.l.b16 %v9991
    %v10020 = vunpack.c.l.b16 %v9992
    %v10021 = vunpack.c.l.b16 %v9993
    %v10022 = vpack.c.b16 %v10015, %v10014
    %v10023 = vpack.c.b16 %v10017, %v10016
    %v10024 = vpack.c.b16 %v10019, %v10018
    %v10025 = vpack.c.b16 %v10021, %v10020
    %v10031 = vsel %vm2534, %v9994, 0
    %v10034 = vsel %vm2534, %v9995, 0
    %v10037 = vsel %vm2534, %v9996, 0
    %v10040 = vsel %vm2534, %v9997, 0
    %v10043 = vsel %vm2534, %v9998, 0
    %v10046 = vsel %vm2534, %v9999, 0
    %v10049 = vsel %vm2534, %v10000, 0
    %v10052 = vsel %vm2534, %v10001, 0
    %10054 = vmatprep.subr.bf16.mxu0 0
    %10055 = vmatpush1.bf16.msra.mxu0 %v10022
    %10056 = vmatprep.subr.bf16.mxu0 0
    %10057 = vmatpush1.bf16.msra.mxu0 %v10023
    %10058 = vmatprep.subr.bf16.mxu0 0
    %10059 = vmatpush1.bf16.msra.mxu0 %v10024
    %10060 = vmatprep.subr.bf16.mxu0 0
    %10061 = vmatpush1.bf16.msra.mxu0 %v10025
    %10062 = vmatprep.subr.bf16.mxu0 0
    %10063 = vmatpush1.bf16.msra.mxu0 0
    %10064 = vmatprep.subr.bf16.mxu0 0
    %10065 = vmatpush1.bf16.msra.mxu0 0
    %10066 = vmatprep.subr.bf16.mxu0 0
    %10067 = vmatpush1.bf16.msra.mxu0 0
    %10068 = vmatprep.subr.bf16.mxu0 0
    %10069 = vmatpush1.bf16.msra.mxu0 0
    %10070 = vmatprep.subr.bf16.mxu0 0
    %10071 = vmatpush1.bf16.msra.mxu0 0
    %10072 = vmatprep.subr.bf16.mxu0 0
    %10073 = vmatpush1.bf16.msra.mxu0 0
    %10074 = vmatprep.subr.bf16.mxu0 0
    %10075 = vmatpush1.bf16.msra.mxu0 0
    %10076 = vmatprep.subr.bf16.mxu0 0
    %10077 = vmatpush1.bf16.msra.mxu0 0
    %10078 = vmatprep.subr.bf16.mxu0 0
    %10079 = vmatpush1.bf16.msra.mxu0 0
    %10080 = vmatprep.subr.bf16.mxu0 0
    %10081 = vmatpush1.bf16.msra.mxu0 0
    %10082 = vmatprep.subr.bf16.mxu0 0
    %10083 = vmatpush1.bf16.msra.mxu0 0
    %10084 = vmatprep.subr.bf16.mxu0 0
    %10085 = vmatpush1.bf16.msra.mxu0 0
    %10086 = vmatprep.mubr.bf16.mxu0 0
    %10087 = vmatmul.mubr.bf16.gmra.mrb[0].mxu0 %v10031
    %v10088 = vpop.f32.mrb[0].mxu0
    %v10089 = vadd.f32 %v10005, %v10088
    %v10090 = vpop.f32.mrb[0].mxu0
    %v10091 = vpop.f32.mrb[0].mxu0
    %v10092 = vadd.f32 %v10005, %v10091
    %v10093 = vpop.f32.mrb[0].mxu0
    %10094 = vmatprep.mubr.bf16.mxu0 0
    %10095 = vmatmul.mubr.bf16.gmra.mrb[0].mxu0 %v10034
    %v10096 = vpop.f32.mrb[0].mxu0
    %v10097 = vadd.f32 %v10005, %v10096
    %v10098 = vpop.f32.mrb[0].mxu0
    %v10099 = vpop.f32.mrb[0].mxu0
    %v10100 = vadd.f32 %v10005, %v10099
    %v10101 = vpop.f32.mrb[0].mxu0
    %10102 = vmatprep.mubr.bf16.mxu0 0
    %10103 = vmatmul.mubr.bf16.gmra.mrb[0].mxu0 %v10037
    %v10104 = vpop.f32.mrb[0].mxu0
    %v10105 = vadd.f32 %v10005, %v10104
    %v10106 = vpop.f32.mrb[0].mxu0
    %v10107 = vpop.f32.mrb[0].mxu0
    %v10108 = vadd.f32 %v10005, %v10107
    %v10109 = vpop.f32.mrb[0].mxu0
    %10110 = vmatprep.mubr.bf16.mxu0 0
    %10111 = vmatmul.mubr.bf16.gmra.mrb[0].mxu0 %v10040
    %v10112 = vpop.f32.mrb[0].mxu0
    %v10113 = vadd.f32 %v10005, %v10112
    %v10114 = vpop.f32.mrb[0].mxu0
    %v10115 = vpop.f32.mrb[0].mxu0
    %v10116 = vadd.f32 %v10005, %v10115
    %v10117 = vpop.f32.mrb[0].mxu0
    %10118 = vmatprep.mubr.bf16.mxu0 0
    %10119 = vmatmul.mubr.bf16.gmra.mrb[0].mxu0 %v10043
    %v10120 = vpop.f32.mrb[0].mxu0
    %v10121 = vadd.f32 %v10005, %v10120
    %v10122 = vpop.f32.mrb[0].mxu0
    %v10123 = vpop.f32.mrb[0].mxu0
    %v10124 = vadd.f32 %v10005, %v10123
    %v10125 = vpop.f32.mrb[0].mxu0
    %10126 = vmatprep.mubr.bf16.mxu0 0
    %10127 = vmatmul.mubr.bf16.gmra.mrb[0].mxu0 %v10046
    %v10128 = vpop.f32.mrb[0].mxu0
    %v10129 = vadd.f32 %v10005, %v10128
    %v10130 = vpop.f32.mrb[0].mxu0
    %v10131 = vpop.f32.mrb[0].mxu0
    %v10132 = vadd.f32 %v10005, %v10131
    %v10133 = vpop.f32.mrb[0].mxu0
    %10134 = vmatprep.mubr.bf16.mxu0 0
    %10135 = vmatmul.mubr.bf16.gmra.mrb[0].mxu0 %v10049
    %v10136 = vpop.f32.mrb[0].mxu0
    %v10137 = vadd.f32 %v10005, %v10136
    %v10138 = vpop.f32.mrb[0].mxu0
    %v10139 = vpop.f32.mrb[0].mxu0
    %v10140 = vadd.f32 %v10005, %v10139
    %v10141 = vpop.f32.mrb[0].mxu0
    %10142 = vmatprep.mubr.bf16.mxu0 0
    %10143 = vmatmul.mubr.bf16.gmra.mrb[0].mxu0 %v10052
    %v10144 = vpop.f32.mrb[0].mxu0
    %v10145 = vadd.f32 %v10005, %v10144
    %v10146 = vpop.f32.mrb[0].mxu0
    %v10147 = vpop.f32.mrb[0].mxu0
    %v10148 = vadd.f32 %v10005, %v10147
    %v10149 = vpop.f32.mrb[0].mxu0
    %10150 = vdwg.mxu0
    %10151 = vst.msk [vmem:[#allocation2] sm:$0xff] %vm105, %v10089
    %10152 = vst.msk [vmem:[#allocation2 + $0x8] sm:$0xff] %vm105, %v10092
    %10153 = vst.msk [vmem:[#allocation2 + $0x10] sm:$0xff] %vm105, %v10097
    %10154 = vst.msk [vmem:[#allocation2 + $0x18] sm:$0xff] %vm105, %v10100
    %10155 = vst.msk [vmem:[#allocation2 + $0x20] sm:$0xff] %vm105, %v10105
    %10156 = vst.msk [vmem:[#allocation2 + $0x28] sm:$0xff] %vm105, %v10108
    %10157 = vst.msk [vmem:[#allocation2 + $0x30] sm:$0xff] %vm105, %v10113
    %10158 = vst.msk [vmem:[#allocation2 + $0x38] sm:$0xff] %vm105, %v10116
    %10159 = vst.msk [vmem:[#allocation2 + $0x40] sm:$0xff] %vm105, %v10121
    %10160 = vst.msk [vmem:[#allocation2 + $0x48] sm:$0xff] %vm105, %v10124
    %10161 = vst.msk [vmem:[#allocation2 + $0x50] sm:$0xff] %vm105, %v10129
    %10162 = vst.msk [vmem:[#allocation2 + $0x58] sm:$0xff] %vm105, %v10132
    %10163 = vst.msk [vmem:[#allocation2 + $0x60] sm:$0xff] %vm105, %v10137
    %10164 = vst.msk [vmem:[#allocation2 + $0x68] sm:$0xff] %vm105, %v10140
    %10165 = vst.msk [vmem:[#allocation2 + $0x70] sm:$0xff] %vm105, %v10145
    %10166 = vst.msk [vmem:[#allocation2 + $0x78] sm:$0xff] %vm105, %v10148
    %s10167 = scalar_lea.vmem %s8, 32
    %v10168 = vld [vmem:[%s10167] sm:$0xf]
    %v10169 = vld [vmem:[%s10167 + $0x4] sm:$0xf]
    %v10170 = vld [vmem:[%s10167 + $0x8] sm:$0xf]
    %v10171 = vld [vmem:[%s10167 + $0xc] sm:$0xf]
    %v10172 = vlaneseq
    %v10173 = vshrl.u32 %v10172, 7
    %v10174 = vsub.s32 0, %v10173
    %v10175 = vrot.slane %v55, %v10174
    %v10180 = vunpack.c.l.b16 %v10168
    %v10181 = vunpack.c.l.b16 %v10169
    %v10182 = vunpack.c.l.b16 %v10170
    %v10183 = vunpack.c.l.b16 %v10171
    %v10184 = vpack.c.b16 %v10181, %v10180
    %v10185 = vpack.c.b16 %v10183, %v10182
    %10188 = vmatprep.subr.bf16.mxu0 0
    %10189 = vmatpush1.bf16.msra.mxu0 %v10184
    %10190 = vmatprep.subr.bf16.mxu0 0
    %10191 = vmatpush1.bf16.msra.mxu0 %v10185
    %10192 = vmatprep.subr.bf16.mxu0 0
    %10193 = vmatpush1.bf16.msra.mxu0 0
    %10194 = vmatprep.subr.bf16.mxu0 0
    %10195 = vmatpush1.bf16.msra.mxu0 0
    %10196 = vmatprep.subr.bf16.mxu0 0
    %10197 = vmatpush1.bf16.msra.mxu0 0
    %10198 = vmatprep.subr.bf16.mxu0 0
    %10199 = vmatpush1.bf16.msra.mxu0 0
    %10200 = vmatprep.subr.bf16.mxu0 0
    %10201 = vmatpush1.bf16.msra.mxu0 0
    %10202 = vmatprep.subr.bf16.mxu0 0
    %10203 = vmatpush1.bf16.msra.mxu0 0
    %10204 = vmatprep.subr.bf16.mxu0 0
    %10205 = vmatpush1.bf16.msra.mxu0 0
    %10206 = vmatprep.subr.bf16.mxu0 0
    %10207 = vmatpush1.bf16.msra.mxu0 0
    %10208 = vmatprep.subr.bf16.mxu0 0
    %10209 = vmatpush1.bf16.msra.mxu0 0
    %10210 = vmatprep.subr.bf16.mxu0 0
    %10211 = vmatpush1.bf16.msra.mxu0 0
    %10212 = vmatprep.subr.bf16.mxu0 0
    %10213 = vmatpush1.bf16.msra.mxu0 0
    %10214 = vmatprep.subr.bf16.mxu0 0
    %10215 = vmatpush1.bf16.msra.mxu0 0
    %10216 = vmatprep.subr.bf16.mxu0 0
    %10217 = vmatpush1.bf16.msra.mxu0 0
    %10218 = vmatprep.subr.bf16.mxu0 0
    %10219 = vmatpush1.bf16.msra.mxu0 0
    %10220 = vmatprep.mubr.bf16.mxu0 0
    %10221 = vmatmul.mubr.bf16.gmra.mrb[0].mxu0 %v6839
    %v10222 = vpop.f32.mrb[0].mxu0
    %v10223 = vadd.f32 %v10175, %v10222
    %v10224 = vpop.f32.mrb[0].mxu0
    %v10225 = vpop.f32.mrb[0].mxu0
    %v10226 = vadd.f32 %v10175, %v10225
    %v10227 = vpop.f32.mrb[0].mxu0
    %10228 = vmatprep.mubr.bf16.mxu0 0
    %10229 = vmatmul.mubr.bf16.gmra.mrb[0].mxu0 %v6842
    %v10230 = vpop.f32.mrb[0].mxu0
    %v10231 = vadd.f32 %v10175, %v10230
    %v10232 = vpop.f32.mrb[0].mxu0
    %v10233 = vpop.f32.mrb[0].mxu0
    %v10234 = vadd.f32 %v10175, %v10233
    %v10235 = vpop.f32.mrb[0].mxu0
    %10236 = vdwg.mxu0
    %vm10237 = vcmp.gt.f32.partialorder %v10223, 0.0
    %vm10238 = vcmp.gt.f32.partialorder %v10226, 0.0
    %vm10239 = vcmp.gt.f32.partialorder %v10231, 0.0
    %vm10240 = vcmp.gt.f32.partialorder %v10234, 0.0
    %v10241 = vmin.f32 %v10223, 0.0
    %v10242 = vmin.f32 %v10226, 0.0
    %v10243 = vmin.f32 %v10231, 0.0
    %v10244 = vmin.f32 %v10234, 0.0
    %v10245 = vmul.f32 %v10241, 1.442695
    %v10246 = vpow.pop %v10245
    %v10247 = vmul.f32 %v10242, 1.442695
    %v10248 = vpow.pop %v10247
    %v10249 = vmul.f32 %v10243, 1.442695
    %v10250 = vpow.pop %v10249
    %v10251 = vmul.f32 %v10244, 1.442695
    %v10252 = vpow.pop %v10251
    %v10253 = vsub.f32 %v10246, 1.0
    %v10254 = vsub.f32 %v10248, 1.0
    %v10255 = vsub.f32 %v10250, 1.0
    %v10256 = vsub.f32 %v10252, 1.0
    %v10257 = vmul.f32 %v10253, 1.6732632
    %v10258 = vmul.f32 %v10254, 1.6732632
    %v10259 = vmul.f32 %v10255, 1.6732632
    %v10260 = vmul.f32 %v10256, 1.6732632
    %v10261 = vsel %vm10237, %v10223, %v10257
    %v10262 = vsel %vm10238, %v10226, %v10258
    %v10263 = vsel %vm10239, %v10231, %v10259
    %v10264 = vsel %vm10240, %v10234, %v10260
    %v10265 = vmul.f32 %v10261, 1.050701
    %v10266 = vmul.f32 %v10262, 1.050701
    %v10267 = vmul.f32 %v10263, 1.050701
    %v10268 = vmul.f32 %v10264, 1.050701
    %s10269 = scalar_lea.vmem %s10, 64
    %v10270 = vld [vmem:[%s10269] sm:$0xf]
    %v10271 = vld [vmem:[%s10269 + $0x4] sm:$0xf]
    %v10272 = vld [vmem:[%s10269 + $0x8] sm:$0xf]
    %v10273 = vld [vmem:[%s10269 + $0xc] sm:$0xf]
    %v10274 = vld [vmem:[%s10269 + $0x10] sm:$0xf]
    %v10275 = vld [vmem:[%s10269 + $0x14] sm:$0xf]
    %v10276 = vld [vmem:[%s10269 + $0x18] sm:$0xf]
    %v10277 = vld [vmem:[%s10269 + $0x1c] sm:$0xf]
    %v10278 = vpack.c.bf16 %v10266, %v10265
    %v10279 = vpack.c.bf16 %v10268, %v10267
    %v10280 = vlaneseq
    %v10281 = vshrl.u32 %v10280, 7
    %v10282 = vsub.s32 0, %v10281
    %v10283 = vrot.slane %v58, %v10282
    %v10292 = vunpack.c.l.b16 %v10270
    %v10293 = vunpack.c.l.b16 %v10271
    %v10294 = vunpack.c.l.b16 %v10272
    %v10295 = vunpack.c.l.b16 %v10273
    %v10296 = vunpack.c.l.b16 %v10274
    %v10297 = vunpack.c.l.b16 %v10275
    %v10298 = vunpack.c.l.b16 %v10276
    %v10299 = vunpack.c.l.b16 %v10277
    %v10300 = vpack.c.b16 %v10293, %v10292
    %v10301 = vpack.c.b16 %v10295, %v10294
    %v10302 = vpack.c.b16 %v10297, %v10296
    %v10303 = vpack.c.b16 %v10299, %v10298
    %v10309 = vsel %vm2534, %v10278, 0
    %v10312 = vsel %vm2534, %v10279, 0
    %10314 = vmatprep.subr.bf16.mxu0 0
    %10315 = vmatpush1.bf16.msra.mxu0 %v10300
    %10316 = vmatprep.subr.bf16.mxu0 0
    %10317 = vmatpush1.bf16.msra.mxu0 %v10301
    %10318 = vmatprep.subr.bf16.mxu0 0
    %10319 = vmatpush1.bf16.msra.mxu0 %v10302
    %10320 = vmatprep.subr.bf16.mxu0 0
    %10321 = vmatpush1.bf16.msra.mxu0 %v10303
    %10322 = vmatprep.subr.bf16.mxu0 0
    %10323 = vmatpush1.bf16.msra.mxu0 0
    %10324 = vmatprep.subr.bf16.mxu0 0
    %10325 = vmatpush1.bf16.msra.mxu0 0
    %10326 = vmatprep.subr.bf16.mxu0 0
    %10327 = vmatpush1.bf16.msra.mxu0 0
    %10328 = vmatprep.subr.bf16.mxu0 0
    %10329 = vmatpush1.bf16.msra.mxu0 0
    %10330 = vmatprep.subr.bf16.mxu0 0
    %10331 = vmatpush1.bf16.msra.mxu0 0
    %10332 = vmatprep.subr.bf16.mxu0 0
    %10333 = vmatpush1.bf16.msra.mxu0 0
    %10334 = vmatprep.subr.bf16.mxu0 0
    %10335 = vmatpush1.bf16.msra.mxu0 0
    %10336 = vmatprep.subr.bf16.mxu0 0
    %10337 = vmatpush1.bf16.msra.mxu0 0
    %10338 = vmatprep.subr.bf16.mxu0 0
    %10339 = vmatpush1.bf16.msra.mxu0 0
    %10340 = vmatprep.subr.bf16.mxu0 0
    %10341 = vmatpush1.bf16.msra.mxu0 0
    %10342 = vmatprep.subr.bf16.mxu0 0
    %10343 = vmatpush1.bf16.msra.mxu0 0
    %10344 = vmatprep.subr.bf16.mxu0 0
    %10345 = vmatpush1.bf16.msra.mxu0 0
    %10346 = vmatprep.mubr.bf16.mxu0 0
    %10347 = vmatmul.mubr.bf16.gmra.mrb[0].mxu0 %v10309
    %v10348 = vpop.f32.mrb[0].mxu0
    %v10349 = vadd.f32 %v10283, %v10348
    %v10350 = vpop.f32.mrb[0].mxu0
    %v10351 = vpop.f32.mrb[0].mxu0
    %v10352 = vadd.f32 %v10283, %v10351
    %v10353 = vpop.f32.mrb[0].mxu0
    %10354 = vmatprep.mubr.bf16.mxu0 0
    %10355 = vmatmul.mubr.bf16.gmra.mrb[0].mxu0 %v10312
    %v10356 = vpop.f32.mrb[0].mxu0
    %v10357 = vadd.f32 %v10283, %v10356
    %v10358 = vpop.f32.mrb[0].mxu0
    %v10359 = vpop.f32.mrb[0].mxu0
    %v10360 = vadd.f32 %v10283, %v10359
    %v10361 = vpop.f32.mrb[0].mxu0
    %10362 = vdwg.mxu0
    %10363 = vst.msk [vmem:[#allocation4] sm:$0xff] %vm105, %v10349
    %10364 = vst.msk [vmem:[#allocation4 + $0x8] sm:$0xff] %vm105, %v10352
    %10365 = vst.msk [vmem:[#allocation4 + $0x10] sm:$0xff] %vm105, %v10357
    %10366 = vst.msk [vmem:[#allocation4 + $0x18] sm:$0xff] %vm105, %v10360
    // Predicated region
    $region50: #{bidirectional_attention_forward.1} parent=1 // pred_check
      _
    $region51: #{bidirectional_attention_forward.1} parent=1 // pred_check_branch
      %10368 = sbr.rel (0) target = $region53
    $region52: #{bidirectional_attention_forward.1} parent=1 // pred_region
      %s10370 = ssub.s32 2048, 2048
      %10371 = vsyncadd [#allocation3], %s10370
      %s10372 = sshll.u32 [#allocation2], 4
      %s10373 = int_to_ptr.vmem [resolvable:$true] %s10372
      %10378 = dma.vmem_to_hbm [thread:$0]  %s10373, 2048, %s12, [#allocation3], 128, 128, 8
    $region53: #{bidirectional_attention_forward.1} parent=1 // pred_fallthru
      _
    // Predicated region
    $region54: #{bidirectional_attention_forward.1} parent=1 // pred_check
      _
    $region55: #{bidirectional_attention_forward.1} parent=1 // pred_check_branch
      %10380 = sbr.rel (0) target = $region57
    $region56: #{bidirectional_attention_forward.1} parent=1 // pred_region
      %s10382 = ssub.s32 512, 512
      %10383 = vsyncadd [#allocation5], %s10382
      %s10384 = sshll.u32 [#allocation4], 4
      %s10385 = int_to_ptr.vmem [resolvable:$true] %s10384
      %10390 = dma.vmem_to_hbm [thread:$0]  %s10385, 512, %s13, [#allocation5], 128, 128, 8
    $region57: #{bidirectional_attention_forward.1} parent=1 // pred_fallthru
      _
    // Predicated region
    $region58: #{bidirectional_attention_forward.1} parent=1 // pred_check
      _
    $region59: #{bidirectional_attention_forward.1} parent=1 // pred_check_branch
      %10392 = sbr.rel (0) target = $region61
    $region60: #{bidirectional_attention_forward.1} parent=1 // pred_region
      %10393 = dma.done [#allocation3], 2048
    $region61: #{bidirectional_attention_forward.1} parent=1 // pred_fallthru
      _
    // Predicated region
    $region62: #{bidirectional_attention_forward.1} parent=1 // pred_check
      _
    $region63: #{bidirectional_attention_forward.1} parent=1 // pred_check_branch
      %10395 = sbr.rel (0) target = $region65
    $region64: #{bidirectional_attention_forward.1} parent=1 // pred_region
      %10396 = dma.done [#allocation5], 512
    $region65: #{bidirectional_attention_forward.1} parent=1 // pred_fallthru
      _
    %10397 = vsyncpa [#allocation3], 1
    %10398 = vsyncpa [#allocation5], 1

</llo_original>
